<compile_context>
chip_gen: v7x
topology: tpu7x:2x2x1
jax: 0.10.0
libtpu: 0.0.40
codegen_flags: <defaults>
</compile_context>

<pallas_src>
import functools

import jax
import jax.numpy as jnp
from jax.experimental import pallas as pl
from jax.experimental.pallas import tpu as pltpu


_EPS = 1e-5
_ROWS = 8          # image rows per accumulation chunk (8 * W = 128 output rows)


# --------------------------------------------------------------------------
# Fused ResBlock kernel
# --------------------------------------------------------------------------
def _resblock_kernel(x_ref, w_ref, gb_ref, o_ref, pad_ref, conv_ref, *, n_batch):
    # x_ref   : (H*W, N*C)       f32   packed input (also the skip branch)
    # w_ref   : (9, N*C, N*C)    bf16  block-diagonal per-tap conv weight
    # gb_ref  : (2, N*C)         f32   row 0 = BN gamma, row 1 = BN beta (lane-tiled)
    # o_ref   : (H*W, N*C)       f32   packed output
    # pad_ref : (H+2, W+2, N*C)  bf16  zero-halo padded activation scratch
    # conv_ref: (H*W, N*C)       f32   conv output staging scratch
    HP, WP, NC = pad_ref.shape
    H, W = HP - 2, WP - 2
    C = NC // n_batch
    inv_count = 1.0 / (n_batch * H * W)     # per-channel element count (train-mode BN)

    # ---- Zero only the halo border strips (interior is overwritten below).
    zrow = jnp.zeros((1, WP, NC), jnp.bfloat16)
    zcol = jnp.zeros((HP, 1, NC), jnp.bfloat16)
    pad_ref[0:1, :, :] = zrow
    pad_ref[HP - 1:HP, :, :] = zrow
    pad_ref[:, 0:1, :] = zcol
    pad_ref[:, WP - 1:WP, :] = zcol

    def write_interior(get_chunk):
        # Fill the padded scratch interior chunk-by-chunk; cast to bf16 exactly
        # once per conv here.
        for c0 in range(0, H, _ROWS):
            blk = get_chunk(c0)                                   # (_ROWS*W, NC) f32
            pad_ref[1 + c0:1 + c0 + _ROWS, 1:W + 1, :] = (
                blk.reshape(_ROWS, W, NC).astype(jnp.bfloat16))

    def conv_bn_scale_shift():
        # Fused im2col 3x3 conv: 9 shifted taps of the bf16 padded scratch, each
        # a (128, NC) x (NC, NC) bf16 MXU matmul with f32 accumulation, done in
        # 128-row chunks (16-vreg accumulator) into the conv scratch.  BN sum
        # and sum-of-squares are accumulated in the same pass.
        s1 = jnp.zeros((1, NC), jnp.float32)
        s2 = jnp.zeros((1, NC), jnp.float32)
        for c0 in range(0, H, _ROWS):
            acc = jnp.zeros((_ROWS * W, NC), jnp.float32)
            for kh in range(3):
                for kw in range(3):
                    a = pad_ref[c0 + kh:c0 + kh + _ROWS, kw:kw + W, :]
                    acc = acc + jnp.dot(a.reshape(_ROWS * W, NC),
                                        w_ref[kh * 3 + kw],
                                        preferred_element_type=jnp.float32)
            conv_ref[c0 * W:(c0 + _ROWS) * W, :] = acc
            s1 = s1 + jnp.sum(acc, axis=0, keepdims=True)
            s2 = s2 + jnp.sum(acc * acc, axis=0, keepdims=True)
        # The batch is packed along lanes: fold the per-(n, c) partials across
        # the n lane-copies with lane rotations (XLU) so every lane ends up
        # holding its channel's full-batch statistic.
        s1_tot, s2_tot = s1, s2
        for i in range(1, n_batch):
            s1_tot = s1_tot + pltpu.roll(s1, shift=i * C, axis=1)
            s2_tot = s2_tot + pltpu.roll(s2, shift=i * C, axis=1)
        mean = s1_tot * inv_count
        var = s2_tot * inv_count - mean * mean            # biased variance
        scale = gb_ref[0:1, :] * jax.lax.rsqrt(var + _EPS)
        shift = gb_ref[1:2, :] - mean * scale
        return scale, shift

    # ---- conv1 -> BN -> ReLU (ReLU fused into the scratch refill for conv2)
    write_interior(lambda c0: x_ref[c0 * W:(c0 + _ROWS) * W, :])
    scale, shift = conv_bn_scale_shift()
    write_interior(
        lambda c0: jnp.maximum(
            conv_ref[c0 * W:(c0 + _ROWS) * W, :] * scale + shift, 0.0))

    # ---- conv2 (same weights) -> BN (same gamma/beta) -> residual add
    scale, shift = conv_bn_scale_shift()
    for c0 in range(0, H, _ROWS):
        sl = slice(c0 * W, (c0 + _ROWS) * W)
        o_ref[sl, :] = (conv_ref[sl, :] * scale + shift) + x_ref[sl, :]


def resblock_forward(params, x_nchw):
    """ResBlock forward.  x_nchw: (N, C, H, W) f32 -> (N, C, H, W) f32."""
    N, C, H, W = x_nchw.shape
    NC = N * C
    assert NC % 128 == 0 and H % _ROWS == 0

    # Pack the batch into the lane axis: NCHW -> (H*W, N*C).  (Only required
    # because the external interface is NCHW; the kernel itself is lane-dense.)
    x = jnp.transpose(x_nchw, (2, 3, 0, 1)).reshape(H * W, NC).astype(jnp.float32)

    # PyTorch weight (Cout, Cin, 3, 3) -> per-tap (Cin, Cout), block-diagonal
    # over the packed batch copies, cast once to bf16 for the MXU.
    w_taps = jnp.transpose(params["conv_w"], (2, 3, 1, 0)).reshape(9, C, C)
    eye = jnp.eye(N, dtype=w_taps.dtype)
    w_bd = jnp.einsum("ij,kab->kiajb", eye, w_taps).reshape(9, NC, NC)
    w_bd = w_bd.astype(jnp.bfloat16)
    # NOTE: the conv bias is intentionally NOT passed to the kernel — adding a
    # per-channel constant before train-mode BatchNorm cancels exactly.

    # gamma / beta tiled across the packed batch lanes, merged into one input.
    gb = jnp.stack([jnp.tile(params["bn_g"], N),
                    jnp.tile(params["bn_b"], N)]).astype(jnp.float32)

    kernel = functools.partial(_resblock_kernel, n_batch=N)
    out = pl.pallas_call(
        kernel,
        out_shape=jax.ShapeDtypeStruct((H * W, NC), jnp.float32),
        grid=(1,),
        in_specs=[
            pl.BlockSpec((H * W, NC), lambda i: (0, 0)),
            pl.BlockSpec((9, NC, NC), lambda i: (0, 0, 0)),
            pl.BlockSpec((2, NC), lambda i: (0, 0)),
        ],
        out_specs=pl.BlockSpec((H * W, NC), lambda i: (0, 0)),
        scratch_shapes=[
            pltpu.VMEM((H + 2, W + 2, NC), jnp.bfloat16),   # padded activations
            pltpu.VMEM((H * W, NC), jnp.float32),           # conv output staging
        ],
        compiler_params=pltpu.CompilerParams(
            dimension_semantics=("arbitrary",)),
    )(x, w_bd, gb)

    # (H*W, N*C) -> NCHW
    return jnp.transpose(out.reshape(H, W, N, C), (2, 3, 0, 1))


# --------------------------------------------------------------------------
# Pure-JAX reference (independent NHWC formulation, same bf16 matmul casts,
# conv bias kept to demonstrate its exact cancellation under train-mode BN).
# --------------------------------------------------------------------------
def resblock_reference(params, x_nchw):
    x = jnp.transpose(x_nchw, (0, 2, 3, 1)).astype(jnp.float32)    # NHWC
    N, H, W, C = x.shape
    w = jnp.transpose(params["conv_w"], (2, 3, 1, 0))              # (3,3,Cin,Cout)
    b = params["conv_b"]
    g, bb = params["bn_g"], params["bn_b"]

    def conv3x3(v):
        vp = jnp.pad(v, ((0, 0), (1, 1), (1, 1), (0, 0)))
        acc = jnp.zeros((N, H, W, C), jnp.float32)
        for kh in range(3):
            for kw in range(3):
                a = vp[:, kh:kh + H, kw:kw + W, :].astype(jnp.bfloat16)
                acc = acc + jnp.einsum(
                    "nhwc,cd->nhwd", a, w[kh, kw].astype(jnp.bfloat16),
                    preferred_element_type=jnp.float32)
        return acc + b

    def batchnorm(y):
        mean = jnp.mean(y, axis=(0, 1, 2), keepdims=True)
        var = jnp.mean((y - mean) ** 2, axis=(0, 1, 2), keepdims=True)
        return (y - mean) * jax.lax.rsqrt(var + _EPS) * g + bb

    h = jnp.maximum(batchnorm(conv3x3(x)), 0.0)
    out = batchnorm(conv3x3(h)) + x
    return jnp.transpose(out, (0, 3, 1, 2))


# --------------------------------------------------------------------------
# Parameter init (mimics a fresh nn.Conv2d / nn.BatchNorm2d)
# --------------------------------------------------------------------------
def init_resblock(key, c):
    k_w, k_b = jax.random.split(key)
    fan_in = 9 * c
    bound = 1.0 / (fan_in ** 0.5)
    return dict(
        conv_w=jax.random.uniform(k_w, (c, c, 3, 3), jnp.float32, -bound, bound),
        conv_b=jax.random.uniform(k_b, (c,), jnp.float32, -bound, bound),
        bn_g=jnp.ones((c,), jnp.float32),    # BatchNorm2d weight init
        bn_b=jnp.zeros((c,), jnp.float32),   # BatchNorm2d bias init
    )


if __name__ == "__main__":
    key = jax.random.PRNGKey(0)
    pkey, xkey = jax.random.split(key)

    hidden_channels, N, H, W = 64, 2, 16, 16
    params = init_resblock(pkey, hidden_channels)
    x = jax.random.normal(xkey, (N, hidden_channels, H, W), jnp.float32)

    out = jax.block_until_ready(jax.jit(resblock_forward)(params, x))
    assert out.shape == (N, hidden_channels, H, W)
    assert bool(jnp.all(jnp.isfinite(out)))

    ref = jax.block_until_ready(jax.jit(resblock_reference)(params, x))
    max_diff = float(jnp.max(jnp.abs(out - ref)))
    assert bool(jnp.allclose(out, ref, atol=5e-3, rtol=5e-3)), max_diff

    print("KERNEL_OK")
</pallas_src>

<mosaic_0001>
module attributes {stable_mosaic.version = 11 : i64} {
  func.func @_resblock_kernel(%arg0: i32, %arg1: memref<256x128xf32, #tpu.memory_space<vmem>>, %arg2: memref<9x128x128xbf16, #tpu.memory_space<vmem>>, %arg3: memref<2x128xf32, #tpu.memory_space<vmem>>, %arg4: memref<256x128xf32, #tpu.memory_space<vmem>>, %arg5: memref<18x18x128xbf16, #tpu.memory_space<vmem>>, %arg6: memref<256x128xf32, #tpu.memory_space<vmem>>) attributes {dimension_semantics = [#tpu.dimension_semantics<arbitrary>], iteration_bounds = array<i64: 1>, scalar_prefetch = 0 : i64, scratch_operands = 2 : i64, tpu.core_type = #tpu.core_type<tc>, window_params = [{pipeline_mode = #tpu.pipeline_mode<synchronous>, transform_indices = @transform_0, window_bounds = array<i64: 256, 128>}, {pipeline_mode = #tpu.pipeline_mode<synchronous>, transform_indices = @transform_1, window_bounds = array<i64: 9, 128, 128>}, {pipeline_mode = #tpu.pipeline_mode<synchronous>, transform_indices = @transform_2, window_bounds = array<i64: 2, 128>}, {pipeline_mode = #tpu.pipeline_mode<synchronous>, transform_indices = @transform_3, window_bounds = array<i64: 256, 128>}]} {
    %cst = arith.constant 0.000000e+00 : bf16
    %0 = vector.broadcast %cst : bf16 to vector<1x18x128xbf16>
    %cst_0 = arith.constant 0.000000e+00 : bf16
    %1 = vector.broadcast %cst_0 : bf16 to vector<18x1x128xbf16>
    %c0 = arith.constant 0 : index
    %c0_1 = arith.constant 0 : index
    %c0_2 = arith.constant 0 : index
    %2 = vector.load %arg5[%c0, %c0_1, %c0_2] : memref<18x18x128xbf16, #tpu.memory_space<vmem>>, vector<1x18x128xbf16>
    tpu.vector_store %arg5[%c0, %c0_1, %c0_2], %0 {strides = array<i32>} : memref<18x18x128xbf16, #tpu.memory_space<vmem>>, vector<1x18x128xbf16>,
    %c17 = arith.constant 17 : index
    %c0_3 = arith.constant 0 : index
    %c0_4 = arith.constant 0 : index
    %3 = vector.load %arg5[%c17, %c0_3, %c0_4] : memref<18x18x128xbf16, #tpu.memory_space<vmem>>, vector<1x18x128xbf16>
    tpu.vector_store %arg5[%c17, %c0_3, %c0_4], %0 {strides = array<i32>} : memref<18x18x128xbf16, #tpu.memory_space<vmem>>, vector<1x18x128xbf16>,
    %c0_5 = arith.constant 0 : index
    %c0_6 = arith.constant 0 : index
    %c0_7 = arith.constant 0 : index
    %4 = vector.load %arg5[%c0_5, %c0_6, %c0_7] : memref<18x18x128xbf16, #tpu.memory_space<vmem>>, vector<18x1x128xbf16>
    tpu.vector_store %arg5[%c0_5, %c0_6, %c0_7], %1 {strides = array<i32>} : memref<18x18x128xbf16, #tpu.memory_space<vmem>>, vector<18x1x128xbf16>,
    %c0_8 = arith.constant 0 : index
    %c17_9 = arith.constant 17 : index
    %c0_10 = arith.constant 0 : index
    %5 = vector.load %arg5[%c0_8, %c17_9, %c0_10] : memref<18x18x128xbf16, #tpu.memory_space<vmem>>, vector<18x1x128xbf16>
    tpu.vector_store %arg5[%c0_8, %c17_9, %c0_10], %1 {strides = array<i32>} : memref<18x18x128xbf16, #tpu.memory_space<vmem>>, vector<18x1x128xbf16>,
    %c0_11 = arith.constant 0 : index
    %c0_12 = arith.constant 0 : index
    %6 = vector.load %arg1[%c0_11, %c0_12] : memref<256x128xf32, #tpu.memory_space<vmem>>, vector<128x128xf32>
    %7 = vector.shape_cast %6 : vector<128x128xf32> to vector<8x16x128xf32>
    %8 = arith.truncf %7 : vector<8x16x128xf32> to vector<8x16x128xbf16>
    %c1 = arith.constant 1 : index
    %c1_13 = arith.constant 1 : index
    %c0_14 = arith.constant 0 : index
    %9 = vector.load %arg5[%c1, %c1_13, %c0_14] : memref<18x18x128xbf16, #tpu.memory_space<vmem>>, vector<8x16x128xbf16>
    tpu.vector_store %arg5[%c1, %c1_13, %c0_14], %8 {strides = array<i32>} : memref<18x18x128xbf16, #tpu.memory_space<vmem>>, vector<8x16x128xbf16>,
    %c128 = arith.constant 128 : index
    %c0_15 = arith.constant 0 : index
    %10 = vector.load %arg1[%c128, %c0_15] : memref<256x128xf32, #tpu.memory_space<vmem>>, vector<128x128xf32>
    %11 = vector.shape_cast %10 : vector<128x128xf32> to vector<8x16x128xf32>
    %12 = arith.truncf %11 : vector<8x16x128xf32> to vector<8x16x128xbf16>
    %c9 = arith.constant 9 : index
    %c1_16 = arith.constant 1 : index
    %c0_17 = arith.constant 0 : index
    %13 = vector.load %arg5[%c9, %c1_16, %c0_17] : memref<18x18x128xbf16, #tpu.memory_space<vmem>>, vector<8x16x128xbf16>
    tpu.vector_store %arg5[%c9, %c1_16, %c0_17], %12 {strides = array<i32>} : memref<18x18x128xbf16, #tpu.memory_space<vmem>>, vector<8x16x128xbf16>,
    %cst_18 = arith.constant 0.000000e+00 : f32
    %14 = vector.broadcast %cst_18 : f32 to vector<1x128xf32>
    %cst_19 = arith.constant 0.000000e+00 : f32
    %15 = vector.broadcast %cst_19 : f32 to vector<1x128xf32>
    %cst_20 = arith.constant 0.000000e+00 : f32
    %16 = vector.broadcast %cst_20 : f32 to vector<128x128xf32>
    %c0_21 = arith.constant 0 : index
    %c0_22 = arith.constant 0 : index
    %c0_23 = arith.constant 0 : index
    %17 = vector.load %arg5[%c0_21, %c0_22, %c0_23] : memref<18x18x128xbf16, #tpu.memory_space<vmem>>, vector<8x16x128xbf16>
    %18 = vector.shape_cast %17 : vector<8x16x128xbf16> to vector<128x128xbf16>
    %c0_24 = arith.constant 0 : index
    %c0_25 = arith.constant 0 : index
    %c0_26 = arith.constant 0 : index
    %19 = vector.load %arg2[%c0_24, %c0_25, %c0_26] : memref<9x128x128xbf16, #tpu.memory_space<vmem>>, vector<1x128x128xbf16>
    %20 = vector.shape_cast %19 : vector<1x128x128xbf16> to vector<128x128xbf16>
    %cst_27 = arith.constant dense<0.000000e+00> : vector<128x128xf32>
    %21 = tpu.matmul %18, %20, %cst_27 {dimension_numbers = #tpu.dot_dimension_numbers<[1], [0], [0], [1], [0, 0, 1, 1], [], []>} : vector<128x128xbf16>, vector<128x128xbf16>, vector<128x128xf32> -> vector<128x128xf32>
    %22 = arith.addf %16, %21 : vector<128x128xf32>
    %c0_28 = arith.constant 0 : index
    %c1_29 = arith.constant 1 : index
    %c0_30 = arith.constant 0 : index
    %23 = vector.load %arg5[%c0_28, %c1_29, %c0_30] : memref<18x18x128xbf16, #tpu.memory_space<vmem>>, vector<8x16x128xbf16>
    %24 = vector.shape_cast %23 : vector<8x16x128xbf16> to vector<128x128xbf16>
    %c1_31 = arith.constant 1 : index
    %c0_32 = arith.constant 0 : index
    %c0_33 = arith.constant 0 : index
    %25 = vector.load %arg2[%c1_31, %c0_32, %c0_33] : memref<9x128x128xbf16, #tpu.memory_space<vmem>>, vector<1x128x128xbf16>
    %26 = vector.shape_cast %25 : vector<1x128x128xbf16> to vector<128x128xbf16>
    %cst_34 = arith.constant dense<0.000000e+00> : vector<128x128xf32>
    %27 = tpu.matmul %24, %26, %cst_34 {dimension_numbers = #tpu.dot_dimension_numbers<[1], [0], [0], [1], [0, 0, 1, 1], [], []>} : vector<128x128xbf16>, vector<128x128xbf16>, vector<128x128xf32> -> vector<128x128xf32>
    %28 = arith.addf %22, %27 : vector<128x128xf32>
    %c0_35 = arith.constant 0 : index
    %c2 = arith.constant 2 : index
    %c0_36 = arith.constant 0 : index
    %29 = vector.load %arg5[%c0_35, %c2, %c0_36] : memref<18x18x128xbf16, #tpu.memory_space<vmem>>, vector<8x16x128xbf16>
    %30 = vector.shape_cast %29 : vector<8x16x128xbf16> to vector<128x128xbf16>
    %c2_37 = arith.constant 2 : index
    %c0_38 = arith.constant 0 : index
    %c0_39 = arith.constant 0 : index
    %31 = vector.load %arg2[%c2_37, %c0_38, %c0_39] : memref<9x128x128xbf16, #tpu.memory_space<vmem>>, vector<1x128x128xbf16>
    %32 = vector.shape_cast %31 : vector<1x128x128xbf16> to vector<128x128xbf16>
    %cst_40 = arith.constant dense<0.000000e+00> : vector<128x128xf32>
    %33 = tpu.matmul %30, %32, %cst_40 {dimension_numbers = #tpu.dot_dimension_numbers<[1], [0], [0], [1], [0, 0, 1, 1], [], []>} : vector<128x128xbf16>, vector<128x128xbf16>, vector<128x128xf32> -> vector<128x128xf32>
    %34 = arith.addf %28, %33 : vector<128x128xf32>
    %c1_41 = arith.constant 1 : index
    %c0_42 = arith.constant 0 : index
    %c0_43 = arith.constant 0 : index
    %35 = vector.load %arg5[%c1_41, %c0_42, %c0_43] : memref<18x18x128xbf16, #tpu.memory_space<vmem>>, vector<8x16x128xbf16>
    %36 = vector.shape_cast %35 : vector<8x16x128xbf16> to vector<128x128xbf16>
    %c3 = arith.constant 3 : index
    %c0_44 = arith.constant 0 : index
    %c0_45 = arith.constant 0 : index
    %37 = vector.load %arg2[%c3, %c0_44, %c0_45] : memref<9x128x128xbf16, #tpu.memory_space<vmem>>, vector<1x128x128xbf16>
    %38 = vector.shape_cast %37 : vector<1x128x128xbf16> to vector<128x128xbf16>
    %cst_46 = arith.constant dense<0.000000e+00> : vector<128x128xf32>
    %39 = tpu.matmul %36, %38, %cst_46 {dimension_numbers = #tpu.dot_dimension_numbers<[1], [0], [0], [1], [0, 0, 1, 1], [], []>} : vector<128x128xbf16>, vector<128x128xbf16>, vector<128x128xf32> -> vector<128x128xf32>
    %40 = arith.addf %34, %39 : vector<128x128xf32>
    %c1_47 = arith.constant 1 : index
    %c1_48 = arith.constant 1 : index
    %c0_49 = arith.constant 0 : index
    %41 = vector.load %arg5[%c1_47, %c1_48, %c0_49] : memref<18x18x128xbf16, #tpu.memory_space<vmem>>, vector<8x16x128xbf16>
    %42 = vector.shape_cast %41 : vector<8x16x128xbf16> to vector<128x128xbf16>
    %c4 = arith.constant 4 : index
    %c0_50 = arith.constant 0 : index
    %c0_51 = arith.constant 0 : index
    %43 = vector.load %arg2[%c4, %c0_50, %c0_51] : memref<9x128x128xbf16, #tpu.memory_space<vmem>>, vector<1x128x128xbf16>
    %44 = vector.shape_cast %43 : vector<1x128x128xbf16> to vector<128x128xbf16>
    %cst_52 = arith.constant dense<0.000000e+00> : vector<128x128xf32>
    %45 = tpu.matmul %42, %44, %cst_52 {dimension_numbers = #tpu.dot_dimension_numbers<[1], [0], [0], [1], [0, 0, 1, 1], [], []>} : vector<128x128xbf16>, vector<128x128xbf16>, vector<128x128xf32> -> vector<128x128xf32>
    %46 = arith.addf %40, %45 : vector<128x128xf32>
    %c1_53 = arith.constant 1 : index
    %c2_54 = arith.constant 2 : index
    %c0_55 = arith.constant 0 : index
    %47 = vector.load %arg5[%c1_53, %c2_54, %c0_55] : memref<18x18x128xbf16, #tpu.memory_space<vmem>>, vector<8x16x128xbf16>
    %48 = vector.shape_cast %47 : vector<8x16x128xbf16> to vector<128x128xbf16>
    %c5 = arith.constant 5 : index
    %c0_56 = arith.constant 0 : index
    %c0_57 = arith.constant 0 : index
    %49 = vector.load %arg2[%c5, %c0_56, %c0_57] : memref<9x128x128xbf16, #tpu.memory_space<vmem>>, vector<1x128x128xbf16>
    %50 = vector.shape_cast %49 : vector<1x128x128xbf16> to vector<128x128xbf16>
    %cst_58 = arith.constant dense<0.000000e+00> : vector<128x128xf32>
    %51 = tpu.matmul %48, %50, %cst_58 {dimension_numbers = #tpu.dot_dimension_numbers<[1], [0], [0], [1], [0, 0, 1, 1], [], []>} : vector<128x128xbf16>, vector<128x128xbf16>, vector<128x128xf32> -> vector<128x128xf32>
    %52 = arith.addf %46, %51 : vector<128x128xf32>
    %c2_59 = arith.constant 2 : index
    %c0_60 = arith.constant 0 : index
    %c0_61 = arith.constant 0 : index
    %53 = vector.load %arg5[%c2_59, %c0_60, %c0_61] : memref<18x18x128xbf16, #tpu.memory_space<vmem>>, vector<8x16x128xbf16>
    %54 = vector.shape_cast %53 : vector<8x16x128xbf16> to vector<128x128xbf16>
    %c6 = arith.constant 6 : index
    %c0_62 = arith.constant 0 : index
    %c0_63 = arith.constant 0 : index
    %55 = vector.load %arg2[%c6, %c0_62, %c0_63] : memref<9x128x128xbf16, #tpu.memory_space<vmem>>, vector<1x128x128xbf16>
    %56 = vector.shape_cast %55 : vector<1x128x128xbf16> to vector<128x128xbf16>
    %cst_64 = arith.constant dense<0.000000e+00> : vector<128x128xf32>
    %57 = tpu.matmul %54, %56, %cst_64 {dimension_numbers = #tpu.dot_dimension_numbers<[1], [0], [0], [1], [0, 0, 1, 1], [], []>} : vector<128x128xbf16>, vector<128x128xbf16>, vector<128x128xf32> -> vector<128x128xf32>
    %58 = arith.addf %52, %57 : vector<128x128xf32>
    %c2_65 = arith.constant 2 : index
    %c1_66 = arith.constant 1 : index
    %c0_67 = arith.constant 0 : index
    %59 = vector.load %arg5[%c2_65, %c1_66, %c0_67] : memref<18x18x128xbf16, #tpu.memory_space<vmem>>, vector<8x16x128xbf16>
    %60 = vector.shape_cast %59 : vector<8x16x128xbf16> to vector<128x128xbf16>
    %c7 = arith.constant 7 : index
    %c0_68 = arith.constant 0 : index
    %c0_69 = arith.constant 0 : index
    %61 = vector.load %arg2[%c7, %c0_68, %c0_69] : memref<9x128x128xbf16, #tpu.memory_space<vmem>>, vector<1x128x128xbf16>
    %62 = vector.shape_cast %61 : vector<1x128x128xbf16> to vector<128x128xbf16>
    %cst_70 = arith.constant dense<0.000000e+00> : vector<128x128xf32>
    %63 = tpu.matmul %60, %62, %cst_70 {dimension_numbers = #tpu.dot_dimension_numbers<[1], [0], [0], [1], [0, 0, 1, 1], [], []>} : vector<128x128xbf16>, vector<128x128xbf16>, vector<128x128xf32> -> vector<128x128xf32>
    %64 = arith.addf %58, %63 : vector<128x128xf32>
    %c2_71 = arith.constant 2 : index
    %c2_72 = arith.constant 2 : index
    %c0_73 = arith.constant 0 : index
    %65 = vector.load %arg5[%c2_71, %c2_72, %c0_73] : memref<18x18x128xbf16, #tpu.memory_space<vmem>>, vector<8x16x128xbf16>
    %66 = vector.shape_cast %65 : vector<8x16x128xbf16> to vector<128x128xbf16>
    %c8 = arith.constant 8 : index
    %c0_74 = arith.constant 0 : index
    %c0_75 = arith.constant 0 : index
    %67 = vector.load %arg2[%c8, %c0_74, %c0_75] : memref<9x128x128xbf16, #tpu.memory_space<vmem>>, vector<1x128x128xbf16>
    %68 = vector.shape_cast %67 : vector<1x128x128xbf16> to vector<128x128xbf16>
    %cst_76 = arith.constant dense<0.000000e+00> : vector<128x128xf32>
    %69 = tpu.matmul %66, %68, %cst_76 {dimension_numbers = #tpu.dot_dimension_numbers<[1], [0], [0], [1], [0, 0, 1, 1], [], []>} : vector<128x128xbf16>, vector<128x128xbf16>, vector<128x128xf32> -> vector<128x128xf32>
    %70 = arith.addf %64, %69 : vector<128x128xf32>
    %c0_77 = arith.constant 0 : index
    %c0_78 = arith.constant 0 : index
    %71 = vector.load %arg6[%c0_77, %c0_78] : memref<256x128xf32, #tpu.memory_space<vmem>>, vector<128x128xf32>
    tpu.vector_store %arg6[%c0_77, %c0_78], %70 {strides = array<i32>} : memref<256x128xf32, #tpu.memory_space<vmem>>, vector<128x128xf32>,
    %cst_79 = arith.constant dense<0.000000e+00> : vector<128xf32>
    %72 = vector.multi_reduction <add>, %70, %cst_79 [0] : vector<128x128xf32> to vector<128xf32>
    %73 = vector.shape_cast %72 : vector<128xf32> to vector<1x128xf32>
    %74 = arith.addf %14, %73 : vector<1x128xf32>
    %75 = arith.mulf %70, %70 : vector<128x128xf32>
    %cst_80 = arith.constant dense<0.000000e+00> : vector<128xf32>
    %76 = vector.multi_reduction <add>, %75, %cst_80 [0] : vector<128x128xf32> to vector<128xf32>
    %77 = vector.shape_cast %76 : vector<128xf32> to vector<1x128xf32>
    %78 = arith.addf %15, %77 : vector<1x128xf32>
    %cst_81 = arith.constant 0.000000e+00 : f32
    %79 = vector.broadcast %cst_81 : f32 to vector<128x128xf32>
    %c8_82 = arith.constant 8 : index
    %c0_83 = arith.constant 0 : index
    %c0_84 = arith.constant 0 : index
    %80 = vector.load %arg5[%c8_82, %c0_83, %c0_84] : memref<18x18x128xbf16, #tpu.memory_space<vmem>>, vector<8x16x128xbf16>
    %81 = vector.shape_cast %80 : vector<8x16x128xbf16> to vector<128x128xbf16>
    %c0_85 = arith.constant 0 : index
    %c0_86 = arith.constant 0 : index
    %c0_87 = arith.constant 0 : index
    %82 = vector.load %arg2[%c0_85, %c0_86, %c0_87] : memref<9x128x128xbf16, #tpu.memory_space<vmem>>, vector<1x128x128xbf16>
    %83 = vector.shape_cast %82 : vector<1x128x128xbf16> to vector<128x128xbf16>
    %cst_88 = arith.constant dense<0.000000e+00> : vector<128x128xf32>
    %84 = tpu.matmul %81, %83, %cst_88 {dimension_numbers = #tpu.dot_dimension_numbers<[1], [0], [0], [1], [0, 0, 1, 1], [], []>} : vector<128x128xbf16>, vector<128x128xbf16>, vector<128x128xf32> -> vector<128x128xf32>
    %85 = arith.addf %79, %84 : vector<128x128xf32>
    %c8_89 = arith.constant 8 : index
    %c1_90 = arith.constant 1 : index
    %c0_91 = arith.constant 0 : index
    %86 = vector.load %arg5[%c8_89, %c1_90, %c0_91] : memref<18x18x128xbf16, #tpu.memory_space<vmem>>, vector<8x16x128xbf16>
    %87 = vector.shape_cast %86 : vector<8x16x128xbf16> to vector<128x128xbf16>
    %c1_92 = arith.constant 1 : index
    %c0_93 = arith.constant 0 : index
    %c0_94 = arith.constant 0 : index
    %88 = vector.load %arg2[%c1_92, %c0_93, %c0_94] : memref<9x128x128xbf16, #tpu.memory_space<vmem>>, vector<1x128x128xbf16>
    %89 = vector.shape_cast %88 : vector<1x128x128xbf16> to vector<128x128xbf16>
    %cst_95 = arith.constant dense<0.000000e+00> : vector<128x128xf32>
    %90 = tpu.matmul %87, %89, %cst_95 {dimension_numbers = #tpu.dot_dimension_numbers<[1], [0], [0], [1], [0, 0, 1, 1], [], []>} : vector<128x128xbf16>, vector<128x128xbf16>, vector<128x128xf32> -> vector<128x128xf32>
    %91 = arith.addf %85, %90 : vector<128x128xf32>
    %c8_96 = arith.constant 8 : index
    %c2_97 = arith.constant 2 : index
    %c0_98 = arith.constant 0 : index
    %92 = vector.load %arg5[%c8_96, %c2_97, %c0_98] : memref<18x18x128xbf16, #tpu.memory_space<vmem>>, vector<8x16x128xbf16>
    %93 = vector.shape_cast %92 : vector<8x16x128xbf16> to vector<128x128xbf16>
    %c2_99 = arith.constant 2 : index
    %c0_100 = arith.constant 0 : index
    %c0_101 = arith.constant 0 : index
    %94 = vector.load %arg2[%c2_99, %c0_100, %c0_101] : memref<9x128x128xbf16, #tpu.memory_space<vmem>>, vector<1x128x128xbf16>
    %95 = vector.shape_cast %94 : vector<1x128x128xbf16> to vector<128x128xbf16>
    %cst_102 = arith.constant dense<0.000000e+00> : vector<128x128xf32>
    %96 = tpu.matmul %93, %95, %cst_102 {dimension_numbers = #tpu.dot_dimension_numbers<[1], [0], [0], [1], [0, 0, 1, 1], [], []>} : vector<128x128xbf16>, vector<128x128xbf16>, vector<128x128xf32> -> vector<128x128xf32>
    %97 = arith.addf %91, %96 : vector<128x128xf32>
    %c9_103 = arith.constant 9 : index
    %c0_104 = arith.constant 0 : index
    %c0_105 = arith.constant 0 : index
    %98 = vector.load %arg5[%c9_103, %c0_104, %c0_105] : memref<18x18x128xbf16, #tpu.memory_space<vmem>>, vector<8x16x128xbf16>
    %99 = vector.shape_cast %98 : vector<8x16x128xbf16> to vector<128x128xbf16>
    %c3_106 = arith.constant 3 : index
    %c0_107 = arith.constant 0 : index
    %c0_108 = arith.constant 0 : index
    %100 = vector.load %arg2[%c3_106, %c0_107, %c0_108] : memref<9x128x128xbf16, #tpu.memory_space<vmem>>, vector<1x128x128xbf16>
    %101 = vector.shape_cast %100 : vector<1x128x128xbf16> to vector<128x128xbf16>
    %cst_109 = arith.constant dense<0.000000e+00> : vector<128x128xf32>
    %102 = tpu.matmul %99, %101, %cst_109 {dimension_numbers = #tpu.dot_dimension_numbers<[1], [0], [0], [1], [0, 0, 1, 1], [], []>} : vector<128x128xbf16>, vector<128x128xbf16>, vector<128x128xf32> -> vector<128x128xf32>
    %103 = arith.addf %97, %102 : vector<128x128xf32>
    %c9_110 = arith.constant 9 : index
    %c1_111 = arith.constant 1 : index
    %c0_112 = arith.constant 0 : index
    %104 = vector.load %arg5[%c9_110, %c1_111, %c0_112] : memref<18x18x128xbf16, #tpu.memory_space<vmem>>, vector<8x16x128xbf16>
    %105 = vector.shape_cast %104 : vector<8x16x128xbf16> to vector<128x128xbf16>
    %c4_113 = arith.constant 4 : index
    %c0_114 = arith.constant 0 : index
    %c0_115 = arith.constant 0 : index
    %106 = vector.load %arg2[%c4_113, %c0_114, %c0_115] : memref<9x128x128xbf16, #tpu.memory_space<vmem>>, vector<1x128x128xbf16>
    %107 = vector.shape_cast %106 : vector<1x128x128xbf16> to vector<128x128xbf16>
    %cst_116 = arith.constant dense<0.000000e+00> : vector<128x128xf32>
    %108 = tpu.matmul %105, %107, %cst_116 {dimension_numbers = #tpu.dot_dimension_numbers<[1], [0], [0], [1], [0, 0, 1, 1], [], []>} : vector<128x128xbf16>, vector<128x128xbf16>, vector<128x128xf32> -> vector<128x128xf32>
    %109 = arith.addf %103, %108 : vector<128x128xf32>
    %c9_117 = arith.constant 9 : index
    %c2_118 = arith.constant 2 : index
    %c0_119 = arith.constant 0 : index
    %110 = vector.load %arg5[%c9_117, %c2_118, %c0_119] : memref<18x18x128xbf16, #tpu.memory_space<vmem>>, vector<8x16x128xbf16>
    %111 = vector.shape_cast %110 : vector<8x16x128xbf16> to vector<128x128xbf16>
    %c5_120 = arith.constant 5 : index
    %c0_121 = arith.constant 0 : index
    %c0_122 = arith.constant 0 : index
    %112 = vector.load %arg2[%c5_120, %c0_121, %c0_122] : memref<9x128x128xbf16, #tpu.memory_space<vmem>>, vector<1x128x128xbf16>
    %113 = vector.shape_cast %112 : vector<1x128x128xbf16> to vector<128x128xbf16>
    %cst_123 = arith.constant dense<0.000000e+00> : vector<128x128xf32>
    %114 = tpu.matmul %111, %113, %cst_123 {dimension_numbers = #tpu.dot_dimension_numbers<[1], [0], [0], [1], [0, 0, 1, 1], [], []>} : vector<128x128xbf16>, vector<128x128xbf16>, vector<128x128xf32> -> vector<128x128xf32>
    %115 = arith.addf %109, %114 : vector<128x128xf32>
    %c10 = arith.constant 10 : index
    %c0_124 = arith.constant 0 : index
    %c0_125 = arith.constant 0 : index
    %116 = vector.load %arg5[%c10, %c0_124, %c0_125] : memref<18x18x128xbf16, #tpu.memory_space<vmem>>, vector<8x16x128xbf16>
    %117 = vector.shape_cast %116 : vector<8x16x128xbf16> to vector<128x128xbf16>
    %c6_126 = arith.constant 6 : index
    %c0_127 = arith.constant 0 : index
    %c0_128 = arith.constant 0 : index
    %118 = vector.load %arg2[%c6_126, %c0_127, %c0_128] : memref<9x128x128xbf16, #tpu.memory_space<vmem>>, vector<1x128x128xbf16>
    %119 = vector.shape_cast %118 : vector<1x128x128xbf16> to vector<128x128xbf16>
    %cst_129 = arith.constant dense<0.000000e+00> : vector<128x128xf32>
    %120 = tpu.matmul %117, %119, %cst_129 {dimension_numbers = #tpu.dot_dimension_numbers<[1], [0], [0], [1], [0, 0, 1, 1], [], []>} : vector<128x128xbf16>, vector<128x128xbf16>, vector<128x128xf32> -> vector<128x128xf32>
    %121 = arith.addf %115, %120 : vector<128x128xf32>
    %c10_130 = arith.constant 10 : index
    %c1_131 = arith.constant 1 : index
    %c0_132 = arith.constant 0 : index
    %122 = vector.load %arg5[%c10_130, %c1_131, %c0_132] : memref<18x18x128xbf16, #tpu.memory_space<vmem>>, vector<8x16x128xbf16>
    %123 = vector.shape_cast %122 : vector<8x16x128xbf16> to vector<128x128xbf16>
    %c7_133 = arith.constant 7 : index
    %c0_134 = arith.constant 0 : index
    %c0_135 = arith.constant 0 : index
    %124 = vector.load %arg2[%c7_133, %c0_134, %c0_135] : memref<9x128x128xbf16, #tpu.memory_space<vmem>>, vector<1x128x128xbf16>
    %125 = vector.shape_cast %124 : vector<1x128x128xbf16> to vector<128x128xbf16>
    %cst_136 = arith.constant dense<0.000000e+00> : vector<128x128xf32>
    %126 = tpu.matmul %123, %125, %cst_136 {dimension_numbers = #tpu.dot_dimension_numbers<[1], [0], [0], [1], [0, 0, 1, 1], [], []>} : vector<128x128xbf16>, vector<128x128xbf16>, vector<128x128xf32> -> vector<128x128xf32>
    %127 = arith.addf %121, %126 : vector<128x128xf32>
    %c10_137 = arith.constant 10 : index
    %c2_138 = arith.constant 2 : index
    %c0_139 = arith.constant 0 : index
    %128 = vector.load %arg5[%c10_137, %c2_138, %c0_139] : memref<18x18x128xbf16, #tpu.memory_space<vmem>>, vector<8x16x128xbf16>
    %129 = vector.shape_cast %128 : vector<8x16x128xbf16> to vector<128x128xbf16>
    %c8_140 = arith.constant 8 : index
    %c0_141 = arith.constant 0 : index
    %c0_142 = arith.constant 0 : index
    %130 = vector.load %arg2[%c8_140, %c0_141, %c0_142] : memref<9x128x128xbf16, #tpu.memory_space<vmem>>, vector<1x128x128xbf16>
    %131 = vector.shape_cast %130 : vector<1x128x128xbf16> to vector<128x128xbf16>
    %cst_143 = arith.constant dense<0.000000e+00> : vector<128x128xf32>
    %132 = tpu.matmul %129, %131, %cst_143 {dimension_numbers = #tpu.dot_dimension_numbers<[1], [0], [0], [1], [0, 0, 1, 1], [], []>} : vector<128x128xbf16>, vector<128x128xbf16>, vector<128x128xf32> -> vector<128x128xf32>
    %133 = arith.addf %127, %132 : vector<128x128xf32>
    %c128_144 = arith.constant 128 : index
    %c0_145 = arith.constant 0 : index
    %134 = vector.load %arg6[%c128_144, %c0_145] : memref<256x128xf32, #tpu.memory_space<vmem>>, vector<128x128xf32>
    tpu.vector_store %arg6[%c128_144, %c0_145], %133 {strides = array<i32>} : memref<256x128xf32, #tpu.memory_space<vmem>>, vector<128x128xf32>,
    %cst_146 = arith.constant dense<0.000000e+00> : vector<128xf32>
    %135 = vector.multi_reduction <add>, %133, %cst_146 [0] : vector<128x128xf32> to vector<128xf32>
    %136 = vector.shape_cast %135 : vector<128xf32> to vector<1x128xf32>
    %137 = arith.addf %74, %136 : vector<1x128xf32>
    %138 = arith.mulf %133, %133 : vector<128x128xf32>
    %cst_147 = arith.constant dense<0.000000e+00> : vector<128xf32>
    %139 = vector.multi_reduction <add>, %138, %cst_147 [0] : vector<128x128xf32> to vector<128xf32>
    %140 = vector.shape_cast %139 : vector<128xf32> to vector<1x128xf32>
    %141 = arith.addf %78, %140 : vector<1x128xf32>
    %c64_i32 = arith.constant 64 : i32
    %142 = tpu.dynamic_rotate %137 by %c64_i32 dim 1 : vector<1x128xf32>, i32 -> vector<1x128xf32>
    %143 = arith.addf %137, %142 : vector<1x128xf32>
    %c64_i32_148 = arith.constant 64 : i32
    %144 = tpu.dynamic_rotate %141 by %c64_i32_148 dim 1 : vector<1x128xf32>, i32 -> vector<1x128xf32>
    %145 = arith.addf %141, %144 : vector<1x128xf32>
    %cst_149 = arith.constant 0.001953125 : f32
    %146 = vector.broadcast %cst_149 : f32 to vector<1x128xf32>
    %147 = arith.mulf %143, %146 : vector<1x128xf32>
    %cst_150 = arith.constant 0.001953125 : f32
    %148 = vector.broadcast %cst_150 : f32 to vector<1x128xf32>
    %149 = arith.mulf %145, %148 : vector<1x128xf32>
    %150 = arith.mulf %147, %147 : vector<1x128xf32>
    %151 = arith.subf %149, %150 : vector<1x128xf32>
    %c0_151 = arith.constant 0 : index
    %c0_152 = arith.constant 0 : index
    %152 = vector.load %arg3[%c0_151, %c0_152] : memref<2x128xf32, #tpu.memory_space<vmem>>, vector<1x128xf32>
    %cst_153 = arith.constant 9.99999974E-6 : f32
    %153 = vector.broadcast %cst_153 : f32 to vector<1x128xf32>
    %154 = arith.addf %151, %153 : vector<1x128xf32>
    %155 = math.rsqrt %154 : vector<1x128xf32>
    %156 = arith.mulf %152, %155 : vector<1x128xf32>
    %c1_154 = arith.constant 1 : index
    %c0_155 = arith.constant 0 : index
    %157 = vector.load %arg3[%c1_154, %c0_155] : memref<2x128xf32, #tpu.memory_space<vmem>>, vector<1x128xf32>
    %158 = arith.mulf %147, %156 : vector<1x128xf32>
    %159 = arith.subf %157, %158 : vector<1x128xf32>
    %c0_156 = arith.constant 0 : index
    %c0_157 = arith.constant 0 : index
    %160 = vector.load %arg6[%c0_156, %c0_157] : memref<256x128xf32, #tpu.memory_space<vmem>>, vector<128x128xf32>
    %161 = vector.broadcast %156 : vector<1x128xf32> to vector<128x128xf32>
    %162 = arith.mulf %160, %161 : vector<128x128xf32>
    %163 = vector.broadcast %159 : vector<1x128xf32> to vector<128x128xf32>
    %164 = arith.addf %162, %163 : vector<128x128xf32>
    %cst_158 = arith.constant 0.000000e+00 : f32
    %165 = vector.broadcast %cst_158 : f32 to vector<128x128xf32>
    %166 = arith.maximumf %164, %165 : vector<128x128xf32>
    %167 = vector.shape_cast %166 : vector<128x128xf32> to vector<8x16x128xf32>
    %168 = arith.truncf %167 : vector<8x16x128xf32> to vector<8x16x128xbf16>
    %c1_159 = arith.constant 1 : index
    %c1_160 = arith.constant 1 : index
    %c0_161 = arith.constant 0 : index
    %169 = vector.load %arg5[%c1_159, %c1_160, %c0_161] : memref<18x18x128xbf16, #tpu.memory_space<vmem>>, vector<8x16x128xbf16>
    tpu.vector_store %arg5[%c1_159, %c1_160, %c0_161], %168 {strides = array<i32>} : memref<18x18x128xbf16, #tpu.memory_space<vmem>>, vector<8x16x128xbf16>,
    %c128_162 = arith.constant 128 : index
    %c0_163 = arith.constant 0 : index
    %170 = vector.load %arg6[%c128_162, %c0_163] : memref<256x128xf32, #tpu.memory_space<vmem>>, vector<128x128xf32>
    %171 = vector.broadcast %156 : vector<1x128xf32> to vector<128x128xf32>
    %172 = arith.mulf %170, %171 : vector<128x128xf32>
    %173 = vector.broadcast %159 : vector<1x128xf32> to vector<128x128xf32>
    %174 = arith.addf %172, %173 : vector<128x128xf32>
    %cst_164 = arith.constant 0.000000e+00 : f32
    %175 = vector.broadcast %cst_164 : f32 to vector<128x128xf32>
    %176 = arith.maximumf %174, %175 : vector<128x128xf32>
    %177 = vector.shape_cast %176 : vector<128x128xf32> to vector<8x16x128xf32>
    %178 = arith.truncf %177 : vector<8x16x128xf32> to vector<8x16x128xbf16>
    %c9_165 = arith.constant 9 : index
    %c1_166 = arith.constant 1 : index
    %c0_167 = arith.constant 0 : index
    %179 = vector.load %arg5[%c9_165, %c1_166, %c0_167] : memref<18x18x128xbf16, #tpu.memory_space<vmem>>, vector<8x16x128xbf16>
    tpu.vector_store %arg5[%c9_165, %c1_166, %c0_167], %178 {strides = array<i32>} : memref<18x18x128xbf16, #tpu.memory_space<vmem>>, vector<8x16x128xbf16>,
    %cst_168 = arith.constant 0.000000e+00 : f32
    %180 = vector.broadcast %cst_168 : f32 to vector<1x128xf32>
    %cst_169 = arith.constant 0.000000e+00 : f32
    %181 = vector.broadcast %cst_169 : f32 to vector<1x128xf32>
    %cst_170 = arith.constant 0.000000e+00 : f32
    %182 = vector.broadcast %cst_170 : f32 to vector<128x128xf32>
    %c0_171 = arith.constant 0 : index
    %c0_172 = arith.constant 0 : index
    %c0_173 = arith.constant 0 : index
    %183 = vector.load %arg5[%c0_171, %c0_172, %c0_173] : memref<18x18x128xbf16, #tpu.memory_space<vmem>>, vector<8x16x128xbf16>
    %184 = vector.shape_cast %183 : vector<8x16x128xbf16> to vector<128x128xbf16>
    %c0_174 = arith.constant 0 : index
    %c0_175 = arith.constant 0 : index
    %c0_176 = arith.constant 0 : index
    %185 = vector.load %arg2[%c0_174, %c0_175, %c0_176] : memref<9x128x128xbf16, #tpu.memory_space<vmem>>, vector<1x128x128xbf16>
    %186 = vector.shape_cast %185 : vector<1x128x128xbf16> to vector<128x128xbf16>
    %cst_177 = arith.constant dense<0.000000e+00> : vector<128x128xf32>
    %187 = tpu.matmul %184, %186, %cst_177 {dimension_numbers = #tpu.dot_dimension_numbers<[1], [0], [0], [1], [0, 0, 1, 1], [], []>} : vector<128x128xbf16>, vector<128x128xbf16>, vector<128x128xf32> -> vector<128x128xf32>
    %188 = arith.addf %182, %187 : vector<128x128xf32>
    %c0_178 = arith.constant 0 : index
    %c1_179 = arith.constant 1 : index
    %c0_180 = arith.constant 0 : index
    %189 = vector.load %arg5[%c0_178, %c1_179, %c0_180] : memref<18x18x128xbf16, #tpu.memory_space<vmem>>, vector<8x16x128xbf16>
    %190 = vector.shape_cast %189 : vector<8x16x128xbf16> to vector<128x128xbf16>
    %c1_181 = arith.constant 1 : index
    %c0_182 = arith.constant 0 : index
    %c0_183 = arith.constant 0 : index
    %191 = vector.load %arg2[%c1_181, %c0_182, %c0_183] : memref<9x128x128xbf16, #tpu.memory_space<vmem>>, vector<1x128x128xbf16>
    %192 = vector.shape_cast %191 : vector<1x128x128xbf16> to vector<128x128xbf16>
    %cst_184 = arith.constant dense<0.000000e+00> : vector<128x128xf32>
    %193 = tpu.matmul %190, %192, %cst_184 {dimension_numbers = #tpu.dot_dimension_numbers<[1], [0], [0], [1], [0, 0, 1, 1], [], []>} : vector<128x128xbf16>, vector<128x128xbf16>, vector<128x128xf32> -> vector<128x128xf32>
    %194 = arith.addf %188, %193 : vector<128x128xf32>
    %c0_185 = arith.constant 0 : index
    %c2_186 = arith.constant 2 : index
    %c0_187 = arith.constant 0 : index
    %195 = vector.load %arg5[%c0_185, %c2_186, %c0_187] : memref<18x18x128xbf16, #tpu.memory_space<vmem>>, vector<8x16x128xbf16>
    %196 = vector.shape_cast %195 : vector<8x16x128xbf16> to vector<128x128xbf16>
    %c2_188 = arith.constant 2 : index
    %c0_189 = arith.constant 0 : index
    %c0_190 = arith.constant 0 : index
    %197 = vector.load %arg2[%c2_188, %c0_189, %c0_190] : memref<9x128x128xbf16, #tpu.memory_space<vmem>>, vector<1x128x128xbf16>
    %198 = vector.shape_cast %197 : vector<1x128x128xbf16> to vector<128x128xbf16>
    %cst_191 = arith.constant dense<0.000000e+00> : vector<128x128xf32>
    %199 = tpu.matmul %196, %198, %cst_191 {dimension_numbers = #tpu.dot_dimension_numbers<[1], [0], [0], [1], [0, 0, 1, 1], [], []>} : vector<128x128xbf16>, vector<128x128xbf16>, vector<128x128xf32> -> vector<128x128xf32>
    %200 = arith.addf %194, %199 : vector<128x128xf32>
    %c1_192 = arith.constant 1 : index
    %c0_193 = arith.constant 0 : index
    %c0_194 = arith.constant 0 : index
    %201 = vector.load %arg5[%c1_192, %c0_193, %c0_194] : memref<18x18x128xbf16, #tpu.memory_space<vmem>>, vector<8x16x128xbf16>
    %202 = vector.shape_cast %201 : vector<8x16x128xbf16> to vector<128x128xbf16>
    %c3_195 = arith.constant 3 : index
    %c0_196 = arith.constant 0 : index
    %c0_197 = arith.constant 0 : index
    %203 = vector.load %arg2[%c3_195, %c0_196, %c0_197] : memref<9x128x128xbf16, #tpu.memory_space<vmem>>, vector<1x128x128xbf16>
    %204 = vector.shape_cast %203 : vector<1x128x128xbf16> to vector<128x128xbf16>
    %cst_198 = arith.constant dense<0.000000e+00> : vector<128x128xf32>
    %205 = tpu.matmul %202, %204, %cst_198 {dimension_numbers = #tpu.dot_dimension_numbers<[1], [0], [0], [1], [0, 0, 1, 1], [], []>} : vector<128x128xbf16>, vector<128x128xbf16>, vector<128x128xf32> -> vector<128x128xf32>
    %206 = arith.addf %200, %205 : vector<128x128xf32>
    %c1_199 = arith.constant 1 : index
    %c1_200 = arith.constant 1 : index
    %c0_201 = arith.constant 0 : index
    %207 = vector.load %arg5[%c1_199, %c1_200, %c0_201] : memref<18x18x128xbf16, #tpu.memory_space<vmem>>, vector<8x16x128xbf16>
    %208 = vector.shape_cast %207 : vector<8x16x128xbf16> to vector<128x128xbf16>
    %c4_202 = arith.constant 4 : index
    %c0_203 = arith.constant 0 : index
    %c0_204 = arith.constant 0 : index
    %209 = vector.load %arg2[%c4_202, %c0_203, %c0_204] : memref<9x128x128xbf16, #tpu.memory_space<vmem>>, vector<1x128x128xbf16>
    %210 = vector.shape_cast %209 : vector<1x128x128xbf16> to vector<128x128xbf16>
    %cst_205 = arith.constant dense<0.000000e+00> : vector<128x128xf32>
    %211 = tpu.matmul %208, %210, %cst_205 {dimension_numbers = #tpu.dot_dimension_numbers<[1], [0], [0], [1], [0, 0, 1, 1], [], []>} : vector<128x128xbf16>, vector<128x128xbf16>, vector<128x128xf32> -> vector<128x128xf32>
    %212 = arith.addf %206, %211 : vector<128x128xf32>
    %c1_206 = arith.constant 1 : index
    %c2_207 = arith.constant 2 : index
    %c0_208 = arith.constant 0 : index
    %213 = vector.load %arg5[%c1_206, %c2_207, %c0_208] : memref<18x18x128xbf16, #tpu.memory_space<vmem>>, vector<8x16x128xbf16>
    %214 = vector.shape_cast %213 : vector<8x16x128xbf16> to vector<128x128xbf16>
    %c5_209 = arith.constant 5 : index
    %c0_210 = arith.constant 0 : index
    %c0_211 = arith.constant 0 : index
    %215 = vector.load %arg2[%c5_209, %c0_210, %c0_211] : memref<9x128x128xbf16, #tpu.memory_space<vmem>>, vector<1x128x128xbf16>
    %216 = vector.shape_cast %215 : vector<1x128x128xbf16> to vector<128x128xbf16>
    %cst_212 = arith.constant dense<0.000000e+00> : vector<128x128xf32>
    %217 = tpu.matmul %214, %216, %cst_212 {dimension_numbers = #tpu.dot_dimension_numbers<[1], [0], [0], [1], [0, 0, 1, 1], [], []>} : vector<128x128xbf16>, vector<128x128xbf16>, vector<128x128xf32> -> vector<128x128xf32>
    %218 = arith.addf %212, %217 : vector<128x128xf32>
    %c2_213 = arith.constant 2 : index
    %c0_214 = arith.constant 0 : index
    %c0_215 = arith.constant 0 : index
    %219 = vector.load %arg5[%c2_213, %c0_214, %c0_215] : memref<18x18x128xbf16, #tpu.memory_space<vmem>>, vector<8x16x128xbf16>
    %220 = vector.shape_cast %219 : vector<8x16x128xbf16> to vector<128x128xbf16>
    %c6_216 = arith.constant 6 : index
    %c0_217 = arith.constant 0 : index
    %c0_218 = arith.constant 0 : index
    %221 = vector.load %arg2[%c6_216, %c0_217, %c0_218] : memref<9x128x128xbf16, #tpu.memory_space<vmem>>, vector<1x128x128xbf16>
    %222 = vector.shape_cast %221 : vector<1x128x128xbf16> to vector<128x128xbf16>
    %cst_219 = arith.constant dense<0.000000e+00> : vector<128x128xf32>
    %223 = tpu.matmul %220, %222, %cst_219 {dimension_numbers = #tpu.dot_dimension_numbers<[1], [0], [0], [1], [0, 0, 1, 1], [], []>} : vector<128x128xbf16>, vector<128x128xbf16>, vector<128x128xf32> -> vector<128x128xf32>
    %224 = arith.addf %218, %223 : vector<128x128xf32>
    %c2_220 = arith.constant 2 : index
    %c1_221 = arith.constant 1 : index
    %c0_222 = arith.constant 0 : index
    %225 = vector.load %arg5[%c2_220, %c1_221, %c0_222] : memref<18x18x128xbf16, #tpu.memory_space<vmem>>, vector<8x16x128xbf16>
    %226 = vector.shape_cast %225 : vector<8x16x128xbf16> to vector<128x128xbf16>
    %c7_223 = arith.constant 7 : index
    %c0_224 = arith.constant 0 : index
    %c0_225 = arith.constant 0 : index
    %227 = vector.load %arg2[%c7_223, %c0_224, %c0_225] : memref<9x128x128xbf16, #tpu.memory_space<vmem>>, vector<1x128x128xbf16>
    %228 = vector.shape_cast %227 : vector<1x128x128xbf16> to vector<128x128xbf16>
    %cst_226 = arith.constant dense<0.000000e+00> : vector<128x128xf32>
    %229 = tpu.matmul %226, %228, %cst_226 {dimension_numbers = #tpu.dot_dimension_numbers<[1], [0], [0], [1], [0, 0, 1, 1], [], []>} : vector<128x128xbf16>, vector<128x128xbf16>, vector<128x128xf32> -> vector<128x128xf32>
    %230 = arith.addf %224, %229 : vector<128x128xf32>
    %c2_227 = arith.constant 2 : index
    %c2_228 = arith.constant 2 : index
    %c0_229 = arith.constant 0 : index
    %231 = vector.load %arg5[%c2_227, %c2_228, %c0_229] : memref<18x18x128xbf16, #tpu.memory_space<vmem>>, vector<8x16x128xbf16>
    %232 = vector.shape_cast %231 : vector<8x16x128xbf16> to vector<128x128xbf16>
    %c8_230 = arith.constant 8 : index
    %c0_231 = arith.constant 0 : index
    %c0_232 = arith.constant 0 : index
    %233 = vector.load %arg2[%c8_230, %c0_231, %c0_232] : memref<9x128x128xbf16, #tpu.memory_space<vmem>>, vector<1x128x128xbf16>
    %234 = vector.shape_cast %233 : vector<1x128x128xbf16> to vector<128x128xbf16>
    %cst_233 = arith.constant dense<0.000000e+00> : vector<128x128xf32>
    %235 = tpu.matmul %232, %234, %cst_233 {dimension_numbers = #tpu.dot_dimension_numbers<[1], [0], [0], [1], [0, 0, 1, 1], [], []>} : vector<128x128xbf16>, vector<128x128xbf16>, vector<128x128xf32> -> vector<128x128xf32>
    %236 = arith.addf %230, %235 : vector<128x128xf32>
    %c0_234 = arith.constant 0 : index
    %c0_235 = arith.constant 0 : index
    %237 = vector.load %arg6[%c0_234, %c0_235] : memref<256x128xf32, #tpu.memory_space<vmem>>, vector<128x128xf32>
    tpu.vector_store %arg6[%c0_234, %c0_235], %236 {strides = array<i32>} : memref<256x128xf32, #tpu.memory_space<vmem>>, vector<128x128xf32>,
    %cst_236 = arith.constant dense<0.000000e+00> : vector<128xf32>
    %238 = vector.multi_reduction <add>, %236, %cst_236 [0] : vector<128x128xf32> to vector<128xf32>
    %239 = vector.shape_cast %238 : vector<128xf32> to vector<1x128xf32>
    %240 = arith.addf %180, %239 : vector<1x128xf32>
    %241 = arith.mulf %236, %236 : vector<128x128xf32>
    %cst_237 = arith.constant dense<0.000000e+00> : vector<128xf32>
    %242 = vector.multi_reduction <add>, %241, %cst_237 [0] : vector<128x128xf32> to vector<128xf32>
    %243 = vector.shape_cast %242 : vector<128xf32> to vector<1x128xf32>
    %244 = arith.addf %181, %243 : vector<1x128xf32>
    %cst_238 = arith.constant 0.000000e+00 : f32
    %245 = vector.broadcast %cst_238 : f32 to vector<128x128xf32>
    %c8_239 = arith.constant 8 : index
    %c0_240 = arith.constant 0 : index
    %c0_241 = arith.constant 0 : index
    %246 = vector.load %arg5[%c8_239, %c0_240, %c0_241] : memref<18x18x128xbf16, #tpu.memory_space<vmem>>, vector<8x16x128xbf16>
    %247 = vector.shape_cast %246 : vector<8x16x128xbf16> to vector<128x128xbf16>
    %c0_242 = arith.constant 0 : index
    %c0_243 = arith.constant 0 : index
    %c0_244 = arith.constant 0 : index
    %248 = vector.load %arg2[%c0_242, %c0_243, %c0_244] : memref<9x128x128xbf16, #tpu.memory_space<vmem>>, vector<1x128x128xbf16>
    %249 = vector.shape_cast %248 : vector<1x128x128xbf16> to vector<128x128xbf16>
    %cst_245 = arith.constant dense<0.000000e+00> : vector<128x128xf32>
    %250 = tpu.matmul %247, %249, %cst_245 {dimension_numbers = #tpu.dot_dimension_numbers<[1], [0], [0], [1], [0, 0, 1, 1], [], []>} : vector<128x128xbf16>, vector<128x128xbf16>, vector<128x128xf32> -> vector<128x128xf32>
    %251 = arith.addf %245, %250 : vector<128x128xf32>
    %c8_246 = arith.constant 8 : index
    %c1_247 = arith.constant 1 : index
    %c0_248 = arith.constant 0 : index
    %252 = vector.load %arg5[%c8_246, %c1_247, %c0_248] : memref<18x18x128xbf16, #tpu.memory_space<vmem>>, vector<8x16x128xbf16>
    %253 = vector.shape_cast %252 : vector<8x16x128xbf16> to vector<128x128xbf16>
    %c1_249 = arith.constant 1 : index
    %c0_250 = arith.constant 0 : index
    %c0_251 = arith.constant 0 : index
    %254 = vector.load %arg2[%c1_249, %c0_250, %c0_251] : memref<9x128x128xbf16, #tpu.memory_space<vmem>>, vector<1x128x128xbf16>
    %255 = vector.shape_cast %254 : vector<1x128x128xbf16> to vector<128x128xbf16>
    %cst_252 = arith.constant dense<0.000000e+00> : vector<128x128xf32>
    %256 = tpu.matmul %253, %255, %cst_252 {dimension_numbers = #tpu.dot_dimension_numbers<[1], [0], [0], [1], [0, 0, 1, 1], [], []>} : vector<128x128xbf16>, vector<128x128xbf16>, vector<128x128xf32> -> vector<128x128xf32>
    %257 = arith.addf %251, %256 : vector<128x128xf32>
    %c8_253 = arith.constant 8 : index
    %c2_254 = arith.constant 2 : index
    %c0_255 = arith.constant 0 : index
    %258 = vector.load %arg5[%c8_253, %c2_254, %c0_255] : memref<18x18x128xbf16, #tpu.memory_space<vmem>>, vector<8x16x128xbf16>
    %259 = vector.shape_cast %258 : vector<8x16x128xbf16> to vector<128x128xbf16>
    %c2_256 = arith.constant 2 : index
    %c0_257 = arith.constant 0 : index
    %c0_258 = arith.constant 0 : index
    %260 = vector.load %arg2[%c2_256, %c0_257, %c0_258] : memref<9x128x128xbf16, #tpu.memory_space<vmem>>, vector<1x128x128xbf16>
    %261 = vector.shape_cast %260 : vector<1x128x128xbf16> to vector<128x128xbf16>
    %cst_259 = arith.constant dense<0.000000e+00> : vector<128x128xf32>
    %262 = tpu.matmul %259, %261, %cst_259 {dimension_numbers = #tpu.dot_dimension_numbers<[1], [0], [0], [1], [0, 0, 1, 1], [], []>} : vector<128x128xbf16>, vector<128x128xbf16>, vector<128x128xf32> -> vector<128x128xf32>
    %263 = arith.addf %257, %262 : vector<128x128xf32>
    %c9_260 = arith.constant 9 : index
    %c0_261 = arith.constant 0 : index
    %c0_262 = arith.constant 0 : index
    %264 = vector.load %arg5[%c9_260, %c0_261, %c0_262] : memref<18x18x128xbf16, #tpu.memory_space<vmem>>, vector<8x16x128xbf16>
    %265 = vector.shape_cast %264 : vector<8x16x128xbf16> to vector<128x128xbf16>
    %c3_263 = arith.constant 3 : index
    %c0_264 = arith.constant 0 : index
    %c0_265 = arith.constant 0 : index
    %266 = vector.load %arg2[%c3_263, %c0_264, %c0_265] : memref<9x128x128xbf16, #tpu.memory_space<vmem>>, vector<1x128x128xbf16>
    %267 = vector.shape_cast %266 : vector<1x128x128xbf16> to vector<128x128xbf16>
    %cst_266 = arith.constant dense<0.000000e+00> : vector<128x128xf32>
    %268 = tpu.matmul %265, %267, %cst_266 {dimension_numbers = #tpu.dot_dimension_numbers<[1], [0], [0], [1], [0, 0, 1, 1], [], []>} : vector<128x128xbf16>, vector<128x128xbf16>, vector<128x128xf32> -> vector<128x128xf32>
    %269 = arith.addf %263, %268 : vector<128x128xf32>
    %c9_267 = arith.constant 9 : index
    %c1_268 = arith.constant 1 : index
    %c0_269 = arith.constant 0 : index
    %270 = vector.load %arg5[%c9_267, %c1_268, %c0_269] : memref<18x18x128xbf16, #tpu.memory_space<vmem>>, vector<8x16x128xbf16>
    %271 = vector.shape_cast %270 : vector<8x16x128xbf16> to vector<128x128xbf16>
    %c4_270 = arith.constant 4 : index
    %c0_271 = arith.constant 0 : index
    %c0_272 = arith.constant 0 : index
    %272 = vector.load %arg2[%c4_270, %c0_271, %c0_272] : memref<9x128x128xbf16, #tpu.memory_space<vmem>>, vector<1x128x128xbf16>
    %273 = vector.shape_cast %272 : vector<1x128x128xbf16> to vector<128x128xbf16>
    %cst_273 = arith.constant dense<0.000000e+00> : vector<128x128xf32>
    %274 = tpu.matmul %271, %273, %cst_273 {dimension_numbers = #tpu.dot_dimension_numbers<[1], [0], [0], [1], [0, 0, 1, 1], [], []>} : vector<128x128xbf16>, vector<128x128xbf16>, vector<128x128xf32> -> vector<128x128xf32>
    %275 = arith.addf %269, %274 : vector<128x128xf32>
    %c9_274 = arith.constant 9 : index
    %c2_275 = arith.constant 2 : index
    %c0_276 = arith.constant 0 : index
    %276 = vector.load %arg5[%c9_274, %c2_275, %c0_276] : memref<18x18x128xbf16, #tpu.memory_space<vmem>>, vector<8x16x128xbf16>
    %277 = vector.shape_cast %276 : vector<8x16x128xbf16> to vector<128x128xbf16>
    %c5_277 = arith.constant 5 : index
    %c0_278 = arith.constant 0 : index
    %c0_279 = arith.constant 0 : index
    %278 = vector.load %arg2[%c5_277, %c0_278, %c0_279] : memref<9x128x128xbf16, #tpu.memory_space<vmem>>, vector<1x128x128xbf16>
    %279 = vector.shape_cast %278 : vector<1x128x128xbf16> to vector<128x128xbf16>
    %cst_280 = arith.constant dense<0.000000e+00> : vector<128x128xf32>
    %280 = tpu.matmul %277, %279, %cst_280 {dimension_numbers = #tpu.dot_dimension_numbers<[1], [0], [0], [1], [0, 0, 1, 1], [], []>} : vector<128x128xbf16>, vector<128x128xbf16>, vector<128x128xf32> -> vector<128x128xf32>
    %281 = arith.addf %275, %280 : vector<128x128xf32>
    %c10_281 = arith.constant 10 : index
    %c0_282 = arith.constant 0 : index
    %c0_283 = arith.constant 0 : index
    %282 = vector.load %arg5[%c10_281, %c0_282, %c0_283] : memref<18x18x128xbf16, #tpu.memory_space<vmem>>, vector<8x16x128xbf16>
    %283 = vector.shape_cast %282 : vector<8x16x128xbf16> to vector<128x128xbf16>
    %c6_284 = arith.constant 6 : index
    %c0_285 = arith.constant 0 : index
    %c0_286 = arith.constant 0 : index
    %284 = vector.load %arg2[%c6_284, %c0_285, %c0_286] : memref<9x128x128xbf16, #tpu.memory_space<vmem>>, vector<1x128x128xbf16>
    %285 = vector.shape_cast %284 : vector<1x128x128xbf16> to vector<128x128xbf16>
    %cst_287 = arith.constant dense<0.000000e+00> : vector<128x128xf32>
    %286 = tpu.matmul %283, %285, %cst_287 {dimension_numbers = #tpu.dot_dimension_numbers<[1], [0], [0], [1], [0, 0, 1, 1], [], []>} : vector<128x128xbf16>, vector<128x128xbf16>, vector<128x128xf32> -> vector<128x128xf32>
    %287 = arith.addf %281, %286 : vector<128x128xf32>
    %c10_288 = arith.constant 10 : index
    %c1_289 = arith.constant 1 : index
    %c0_290 = arith.constant 0 : index
    %288 = vector.load %arg5[%c10_288, %c1_289, %c0_290] : memref<18x18x128xbf16, #tpu.memory_space<vmem>>, vector<8x16x128xbf16>
    %289 = vector.shape_cast %288 : vector<8x16x128xbf16> to vector<128x128xbf16>
    %c7_291 = arith.constant 7 : index
    %c0_292 = arith.constant 0 : index
    %c0_293 = arith.constant 0 : index
    %290 = vector.load %arg2[%c7_291, %c0_292, %c0_293] : memref<9x128x128xbf16, #tpu.memory_space<vmem>>, vector<1x128x128xbf16>
    %291 = vector.shape_cast %290 : vector<1x128x128xbf16> to vector<128x128xbf16>
    %cst_294 = arith.constant dense<0.000000e+00> : vector<128x128xf32>
    %292 = tpu.matmul %289, %291, %cst_294 {dimension_numbers = #tpu.dot_dimension_numbers<[1], [0], [0], [1], [0, 0, 1, 1], [], []>} : vector<128x128xbf16>, vector<128x128xbf16>, vector<128x128xf32> -> vector<128x128xf32>
    %293 = arith.addf %287, %292 : vector<128x128xf32>
    %c10_295 = arith.constant 10 : index
    %c2_296 = arith.constant 2 : index
    %c0_297 = arith.constant 0 : index
    %294 = vector.load %arg5[%c10_295, %c2_296, %c0_297] : memref<18x18x128xbf16, #tpu.memory_space<vmem>>, vector<8x16x128xbf16>
    %295 = vector.shape_cast %294 : vector<8x16x128xbf16> to vector<128x128xbf16>
    %c8_298 = arith.constant 8 : index
    %c0_299 = arith.constant 0 : index
    %c0_300 = arith.constant 0 : index
    %296 = vector.load %arg2[%c8_298, %c0_299, %c0_300] : memref<9x128x128xbf16, #tpu.memory_space<vmem>>, vector<1x128x128xbf16>
    %297 = vector.shape_cast %296 : vector<1x128x128xbf16> to vector<128x128xbf16>
    %cst_301 = arith.constant dense<0.000000e+00> : vector<128x128xf32>
    %298 = tpu.matmul %295, %297, %cst_301 {dimension_numbers = #tpu.dot_dimension_numbers<[1], [0], [0], [1], [0, 0, 1, 1], [], []>} : vector<128x128xbf16>, vector<128x128xbf16>, vector<128x128xf32> -> vector<128x128xf32>
    %299 = arith.addf %293, %298 : vector<128x128xf32>
    %c128_302 = arith.constant 128 : index
    %c0_303 = arith.constant 0 : index
    %300 = vector.load %arg6[%c128_302, %c0_303] : memref<256x128xf32, #tpu.memory_space<vmem>>, vector<128x128xf32>
    tpu.vector_store %arg6[%c128_302, %c0_303], %299 {strides = array<i32>} : memref<256x128xf32, #tpu.memory_space<vmem>>, vector<128x128xf32>,
    %cst_304 = arith.constant dense<0.000000e+00> : vector<128xf32>
    %301 = vector.multi_reduction <add>, %299, %cst_304 [0] : vector<128x128xf32> to vector<128xf32>
    %302 = vector.shape_cast %301 : vector<128xf32> to vector<1x128xf32>
    %303 = arith.addf %240, %302 : vector<1x128xf32>
    %304 = arith.mulf %299, %299 : vector<128x128xf32>
    %cst_305 = arith.constant dense<0.000000e+00> : vector<128xf32>
    %305 = vector.multi_reduction <add>, %304, %cst_305 [0] : vector<128x128xf32> to vector<128xf32>
    %306 = vector.shape_cast %305 : vector<128xf32> to vector<1x128xf32>
    %307 = arith.addf %244, %306 : vector<1x128xf32>
    %c64_i32_306 = arith.constant 64 : i32
    %308 = tpu.dynamic_rotate %303 by %c64_i32_306 dim 1 : vector<1x128xf32>, i32 -> vector<1x128xf32>
    %309 = arith.addf %303, %308 : vector<1x128xf32>
    %c64_i32_307 = arith.constant 64 : i32
    %310 = tpu.dynamic_rotate %307 by %c64_i32_307 dim 1 : vector<1x128xf32>, i32 -> vector<1x128xf32>
    %311 = arith.addf %307, %310 : vector<1x128xf32>
    %cst_308 = arith.constant 0.001953125 : f32
    %312 = vector.broadcast %cst_308 : f32 to vector<1x128xf32>
    %313 = arith.mulf %309, %312 : vector<1x128xf32>
    %cst_309 = arith.constant 0.001953125 : f32
    %314 = vector.broadcast %cst_309 : f32 to vector<1x128xf32>
    %315 = arith.mulf %311, %314 : vector<1x128xf32>
    %316 = arith.mulf %313, %313 : vector<1x128xf32>
    %317 = arith.subf %315, %316 : vector<1x128xf32>
    %c0_310 = arith.constant 0 : index
    %c0_311 = arith.constant 0 : index
    %318 = vector.load %arg3[%c0_310, %c0_311] : memref<2x128xf32, #tpu.memory_space<vmem>>, vector<1x128xf32>
    %cst_312 = arith.constant 9.99999974E-6 : f32
    %319 = vector.broadcast %cst_312 : f32 to vector<1x128xf32>
    %320 = arith.addf %317, %319 : vector<1x128xf32>
    %321 = math.rsqrt %320 : vector<1x128xf32>
    %322 = arith.mulf %318, %321 : vector<1x128xf32>
    %c1_313 = arith.constant 1 : index
    %c0_314 = arith.constant 0 : index
    %323 = vector.load %arg3[%c1_313, %c0_314] : memref<2x128xf32, #tpu.memory_space<vmem>>, vector<1x128xf32>
    %324 = arith.mulf %313, %322 : vector<1x128xf32>
    %325 = arith.subf %323, %324 : vector<1x128xf32>
    %c0_315 = arith.constant 0 : index
    %c0_316 = arith.constant 0 : index
    %326 = vector.load %arg6[%c0_315, %c0_316] : memref<256x128xf32, #tpu.memory_space<vmem>>, vector<128x128xf32>
    %327 = vector.broadcast %322 : vector<1x128xf32> to vector<128x128xf32>
    %328 = arith.mulf %326, %327 : vector<128x128xf32>
    %329 = vector.broadcast %325 : vector<1x128xf32> to vector<128x128xf32>
    %330 = arith.addf %328, %329 : vector<128x128xf32>
    %c0_317 = arith.constant 0 : index
    %c0_318 = arith.constant 0 : index
    %331 = vector.load %arg1[%c0_317, %c0_318] : memref<256x128xf32, #tpu.memory_space<vmem>>, vector<128x128xf32>
    %332 = arith.addf %330, %331 : vector<128x128xf32>
    %c0_319 = arith.constant 0 : index
    %c0_320 = arith.constant 0 : index
    %333 = vector.load %arg4[%c0_319, %c0_320] : memref<256x128xf32, #tpu.memory_space<vmem>>, vector<128x128xf32>
    tpu.vector_store %arg4[%c0_319, %c0_320], %332 {strides = array<i32>} : memref<256x128xf32, #tpu.memory_space<vmem>>, vector<128x128xf32>,
    %c128_321 = arith.constant 128 : index
    %c0_322 = arith.constant 0 : index
    %334 = vector.load %arg6[%c128_321, %c0_322] : memref<256x128xf32, #tpu.memory_space<vmem>>, vector<128x128xf32>
    %335 = vector.broadcast %322 : vector<1x128xf32> to vector<128x128xf32>
    %336 = arith.mulf %334, %335 : vector<128x128xf32>
    %337 = vector.broadcast %325 : vector<1x128xf32> to vector<128x128xf32>
    %338 = arith.addf %336, %337 : vector<128x128xf32>
    %c128_323 = arith.constant 128 : index
    %c0_324 = arith.constant 0 : index
    %339 = vector.load %arg1[%c128_323, %c0_324] : memref<256x128xf32, #tpu.memory_space<vmem>>, vector<128x128xf32>
    %340 = arith.addf %338, %339 : vector<128x128xf32>
    %c128_325 = arith.constant 128 : index
    %c0_326 = arith.constant 0 : index
    %341 = vector.load %arg4[%c128_325, %c0_326] : memref<256x128xf32, #tpu.memory_space<vmem>>, vector<128x128xf32>
    tpu.vector_store %arg4[%c128_325, %c0_326], %340 {strides = array<i32>} : memref<256x128xf32, #tpu.memory_space<vmem>>, vector<128x128xf32>,
    return
  }
  func.func @transform_0(%arg0: i32) -> (i32, i32) {
    %c0_i32 = arith.constant 0 : i32
    %c0_i32_0 = arith.constant 0 : i32
    %c0_i32_1 = arith.constant 0 : i32
    return %c0_i32, %c0_i32_0 : i32, i32
  }
  func.func @transform_1(%arg0: i32) -> (i32, i32, i32) {
    %c0_i32 = arith.constant 0 : i32
    %c0_i32_0 = arith.constant 0 : i32
    %c0_i32_1 = arith.constant 0 : i32
    %c0_i32_2 = arith.constant 0 : i32
    return %c0_i32, %c0_i32_0, %c0_i32_1 : i32, i32, i32
  }
  func.func @transform_2(%arg0: i32) -> (i32, i32) {
    %c0_i32 = arith.constant 0 : i32
    %c0_i32_0 = arith.constant 0 : i32
    %c0_i32_1 = arith.constant 0 : i32
    return %c0_i32, %c0_i32_0 : i32, i32
  }
  func.func @transform_3(%arg0: i32) -> (i32, i32) {
    %c0_i32 = arith.constant 0 : i32
    %c0_i32_0 = arith.constant 0 : i32
    %c0_i32_1 = arith.constant 0 : i32
    return %c0_i32, %c0_i32_0 : i32, i32
  }
}

</mosaic_0001>

<llo_original>
// kernel: tile.13
$region0: #{tile.13}
  #allocation0 [shape = 's32[1]{0}', space=sflag, size = 0x4, scoped, tag = 'scoped memory for tile.13']
  %s0 = inlined_call_operand.vmem [shape: f32[64], index: 0, kind: input, shape index: {}]
  %s1 = inlined_call_operand.vmem [shape: f32[2,64], index: 1, kind: output, shape index: {}]
  // Predicated region
  $region2: #{tile.13} parent=0 // pred_check
    _
  $region3: #{tile.13} parent=0 // pred_check_branch
    %3 = sbr.rel (0) target = $region5
  $region4: #{tile.13} parent=0 // pred_region
    _
  $region5: #{tile.13} parent=0 // pred_fallthru
    _
  %v4 = vld [vmem:[%s0] ss:$0 sm:$0xff]
  %5 = vst [vmem:[%s1] sm:$0x3] %v4

// kernel: tile.18
$region0: #{tile.18}
  %s0 = inlined_call_operand.vmem [shape: f32[2,64], index: 0, kind: input, shape index: {}]
  %s1 = inlined_call_operand.vmem [shape: f32[1,128], index: 1, kind: output, shape index: {}]
  $region1: #{tile.18} parent=0
    #allocation0 [shape = 'u8[4096]{0}', space=vmem, size = 0x1000, scoped, tag = 'scoped mem for output reshape']
    #allocation1 [shape = 'u8[4096]{0}', space=vmem, size = 0x1000, scoped, tag = 'scoped mem for input reshape']
    %s3 = sshllo.u32 0, 2
    %v4 = vld [vmem:[%s0] sm:%s3]
    %5 = vst [vmem:[#allocation1] sm:%s3] %v4
    %v6 = vld [vmem:[#allocation1] sm:$0x1]
    %vm7 = vcmask 523264
    %8 = vst.msk [vmem:[#allocation0] sm:$0x1] %vm7, %v6
    %s9 = scalar_lea.vmem [#allocation1], 1
    %v10 = vld [vmem:[%s9] sm:$0x1]
    %11 = vrot.lane.b32.xlu0 %v10, 64
    %v12 = vpop.permute.xlu0 %11
    %vm13 = vcmask 1048064
    %14 = vst.msk [vmem:[#allocation0] sm:$0x1] %vm13, %v12
    %s16 = sshllo.u32 0, 1
    %v18 = vld [vmem:[#allocation0] sm:%s16]
    %s19 = sshllo.u32 0, 1
    %20 = vst [vmem:[%s1] sm:%s19] %v18

// kernel: resblock_forward.1
$region0: #{resblock_forward.1}
  #allocation0 [shape = 'u32[]', space=smem, size = 0x4, offset = 0x4, fixed_abs, tag = 'smem constant byte address 0x4 - core index']
  #allocation1 [shape = 'u32[144,128]{1,0:T(1,128)}', space=vmem, size = 0x12000, scoped, tag = 'internal scratch']
  #allocation2 [shape = 'bf16[18,18,128]{2,1,0:T(8,128)(2,1)}', space=vmem, size = 0x1b000, scoped, tag = 'scratch operand']
  #allocation3 [shape = 'f32[256,128]{1,0:T(8,128)}', space=vmem, size = 0x20000, scoped, tag = 'scratch operand']
  %s0 = inlined_call_operand.vmem [shape: f32[256,128], index: 0, kind: input, shape index: {}]
  %s1 = inlined_call_operand.vmem [shape: bf16[9,128,128], index: 1, kind: input, shape index: {}]
  %s2 = inlined_call_operand.vmem [shape: f32[2,128], index: 2, kind: input, shape index: {}]
  %s3 = inlined_call_operand.vmem [shape: f32[256,128], index: 3, kind: output, shape index: {}]
  %s4 = sld [smem:[#allocation0]]
  $region22: #{resblock_forward.1} parent=0
    _
  %s6 = ssub.s32 1, %s4
  %s7 = scalar_select 0, %s6, %s4
  // Predicated region
  $region2: #{resblock_forward.1} parent=0 // pred_check
    _
  $region3: #{resblock_forward.1} parent=0 // pred_check_branch
    %9 = sbr.rel (0) target = $region5
  $region4: #{resblock_forward.1} parent=0 // pred_region
    _
  $region5: #{resblock_forward.1} parent=0 // pred_fallthru
    _
  // Predicated region
  $region6: #{resblock_forward.1} parent=0 // pred_check
    _
  $region7: #{resblock_forward.1} parent=0 // pred_check_branch
    %11 = sbr.rel (0) target = $region9
  $region8: #{resblock_forward.1} parent=0 // pred_region
    _
  $region9: #{resblock_forward.1} parent=0 // pred_fallthru
    _
  // Predicated region
  $region10: #{resblock_forward.1} parent=0 // pred_check
    _
  $region11: #{resblock_forward.1} parent=0 // pred_check_branch
    %13 = sbr.rel (0) target = $region13
  $region12: #{resblock_forward.1} parent=0 // pred_region
    _
  $region13: #{resblock_forward.1} parent=0 // pred_fallthru
    _
  %15 = vst [vmem:[#allocation2] sm:$0xf] 0
  %16 = vst [vmem:[#allocation2 + $0x4] sm:$0xf] 0
  %17 = vst [vmem:[#allocation2 + $0x8] sm:$0x1] 0
  %s18 = scalar_lea.vmem [#allocation2], 204
  %19 = vst [vmem:[%s18] sm:$0xf] 0
  %20 = vst [vmem:[%s18 + $0x4] sm:$0xf] 0
  %21 = vst [vmem:[%s18 + $0x8] sm:$0x1] 0
  %vm22 = vcmask 1040384
  %vm23 = vsmask.f32 256
  %vm24 = vmand %vm22, %vm23
  %v25 = vld [vmem:[#allocation2] sm:$0x1]
  %v26 = vsel %vm24, 0, %v25
  %27 = vst [vmem:[#allocation2] sm:$0x1] %v26
  %v28 = vld [vmem:[#allocation2 + $0xc] sm:$0x1]
  %v29 = vsel %vm24, 0, %v28
  %30 = vst [vmem:[#allocation2 + $0xc] sm:$0x1] %v29
  %v31 = vld [vmem:[#allocation2 + $0x18] sm:$0x1]
  %v32 = vsel %vm24, 0, %v31
  %33 = vst [vmem:[#allocation2 + $0x18] sm:$0x1] %v32
  %v34 = vld [vmem:[#allocation2 + $0x24] sm:$0x1]
  %v35 = vsel %vm24, 0, %v34
  %36 = vst [vmem:[#allocation2 + $0x24] sm:$0x1] %v35
  %v37 = vld [vmem:[#allocation2 + $0x30] sm:$0x1]
  %v38 = vsel %vm24, 0, %v37
  %39 = vst [vmem:[#allocation2 + $0x30] sm:$0x1] %v38
  %v40 = vld [vmem:[#allocation2 + $0x3c] sm:$0x1]
  %v41 = vsel %vm24, 0, %v40
  %42 = vst [vmem:[#allocation2 + $0x3c] sm:$0x1] %v41
  %v43 = vld [vmem:[#allocation2 + $0x48] sm:$0x1]
  %v44 = vsel %vm24, 0, %v43
  %45 = vst [vmem:[#allocation2 + $0x48] sm:$0x1] %v44
  %v46 = vld [vmem:[#allocation2 + $0x54] sm:$0x1]
  %v47 = vsel %vm24, 0, %v46
  %48 = vst [vmem:[#allocation2 + $0x54] sm:$0x1] %v47
  %v49 = vld [vmem:[#allocation2 + $0x60] sm:$0x1]
  %v50 = vsel %vm24, 0, %v49
  %51 = vst [vmem:[#allocation2 + $0x60] sm:$0x1] %v50
  %v52 = vld [vmem:[#allocation2 + $0x6c] sm:$0x1]
  %v53 = vsel %vm24, 0, %v52
  %54 = vst [vmem:[#allocation2 + $0x6c] sm:$0x1] %v53
  %v55 = vld [vmem:[#allocation2 + $0x78] sm:$0x1]
  %v56 = vsel %vm24, 0, %v55
  %57 = vst [vmem:[#allocation2 + $0x78] sm:$0x1] %v56
  %v58 = vld [vmem:[#allocation2 + $0x84] sm:$0x1]
  %v59 = vsel %vm24, 0, %v58
  %60 = vst [vmem:[#allocation2 + $0x84] sm:$0x1] %v59
  %v61 = vld [vmem:[#allocation2 + $0x90] sm:$0x1]
  %v62 = vsel %vm24, 0, %v61
  %63 = vst [vmem:[#allocation2 + $0x90] sm:$0x1] %v62
  %v64 = vld [vmem:[#allocation2 + $0x9c] sm:$0x1]
  %v65 = vsel %vm24, 0, %v64
  %66 = vst [vmem:[#allocation2 + $0x9c] sm:$0x1] %v65
  %v67 = vld [vmem:[#allocation2 + $0xa8] sm:$0x1]
  %v68 = vsel %vm24, 0, %v67
  %69 = vst [vmem:[#allocation2 + $0xa8] sm:$0x1] %v68
  %v70 = vld [vmem:[#allocation2 + $0xb4] sm:$0x1]
  %v71 = vsel %vm24, 0, %v70
  %72 = vst [vmem:[#allocation2 + $0xb4] sm:$0x1] %v71
  %v73 = vld [vmem:[#allocation2 + $0xc0] sm:$0x1]
  %v74 = vsel %vm24, 0, %v73
  %75 = vst [vmem:[#allocation2 + $0xc0] sm:$0x1] %v74
  %v76 = vld [vmem:[#allocation2 + $0xcc] sm:$0x1]
  %v77 = vsel %vm24, 0, %v76
  %78 = vst [vmem:[#allocation2 + $0xcc] sm:$0x1] %v77
  %vm79 = vsmask.f32 7938
  %vm80 = vmand %vm22, %vm79
  %v81 = vld [vmem:[#allocation2 + $0x8] sm:$0x1]
  %v82 = vsel %vm80, 0, %v81
  %83 = vst [vmem:[#allocation2 + $0x8] sm:$0x1] %v82
  %v84 = vld [vmem:[#allocation2 + $0x14] sm:$0x1]
  %v85 = vsel %vm80, 0, %v84
  %86 = vst [vmem:[#allocation2 + $0x14] sm:$0x1] %v85
  %v87 = vld [vmem:[#allocation2 + $0x20] sm:$0x1]
  %v88 = vsel %vm80, 0, %v87
  %89 = vst [vmem:[#allocation2 + $0x20] sm:$0x1] %v88
  %v90 = vld [vmem:[#allocation2 + $0x2c] sm:$0x1]
  %v91 = vsel %vm80, 0, %v90
  %92 = vst [vmem:[#allocation2 + $0x2c] sm:$0x1] %v91
  %v93 = vld [vmem:[#allocation2 + $0x38] sm:$0x1]
  %v94 = vsel %vm80, 0, %v93
  %95 = vst [vmem:[#allocation2 + $0x38] sm:$0x1] %v94
  %v96 = vld [vmem:[#allocation2 + $0x44] sm:$0x1]
  %v97 = vsel %vm80, 0, %v96
  %98 = vst [vmem:[#allocation2 + $0x44] sm:$0x1] %v97
  %v99 = vld [vmem:[#allocation2 + $0x50] sm:$0x1]
  %v100 = vsel %vm80, 0, %v99
  %101 = vst [vmem:[#allocation2 + $0x50] sm:$0x1] %v100
  %v102 = vld [vmem:[#allocation2 + $0x5c] sm:$0x1]
  %v103 = vsel %vm80, 0, %v102
  %104 = vst [vmem:[#allocation2 + $0x5c] sm:$0x1] %v103
  %v105 = vld [vmem:[#allocation2 + $0x68] sm:$0x1]
  %v106 = vsel %vm80, 0, %v105
  %107 = vst [vmem:[#allocation2 + $0x68] sm:$0x1] %v106
  %v108 = vld [vmem:[#allocation2 + $0x74] sm:$0x1]
  %v109 = vsel %vm80, 0, %v108
  %110 = vst [vmem:[#allocation2 + $0x74] sm:$0x1] %v109
  %v111 = vld [vmem:[#allocation2 + $0x80] sm:$0x1]
  %v112 = vsel %vm80, 0, %v111
  %113 = vst [vmem:[#allocation2 + $0x80] sm:$0x1] %v112
  %v114 = vld [vmem:[#allocation2 + $0x8c] sm:$0x1]
  %v115 = vsel %vm80, 0, %v114
  %116 = vst [vmem:[#allocation2 + $0x8c] sm:$0x1] %v115
  %v117 = vld [vmem:[#allocation2 + $0x98] sm:$0x1]
  %v118 = vsel %vm80, 0, %v117
  %119 = vst [vmem:[#allocation2 + $0x98] sm:$0x1] %v118
  %v120 = vld [vmem:[#allocation2 + $0xa4] sm:$0x1]
  %v121 = vsel %vm80, 0, %v120
  %122 = vst [vmem:[#allocation2 + $0xa4] sm:$0x1] %v121
  %v123 = vld [vmem:[#allocation2 + $0xb0] sm:$0x1]
  %v124 = vsel %vm80, 0, %v123
  %125 = vst [vmem:[#allocation2 + $0xb0] sm:$0x1] %v124
  %v126 = vld [vmem:[#allocation2 + $0xbc] sm:$0x1]
  %v127 = vsel %vm80, 0, %v126
  %128 = vst [vmem:[#allocation2 + $0xbc] sm:$0x1] %v127
  %v129 = vld [vmem:[#allocation2 + $0xc8] sm:$0x1]
  %v130 = vsel %vm80, 0, %v129
  %131 = vst [vmem:[#allocation2 + $0xc8] sm:$0x1] %v130
  %v132 = vld [vmem:[#allocation2 + $0xd4] sm:$0x1]
  %v133 = vsel %vm80, 0, %v132
  %134 = vst [vmem:[#allocation2 + $0xd4] sm:$0x1] %v133
  %v135 = vld [vmem:[%s0] sm:$0xff]
  %v136 = vld [vmem:[%s0 + $0x8] sm:$0xff]
  %v137 = vld [vmem:[%s0 + $0x10] sm:$0xff]
  %v138 = vld [vmem:[%s0 + $0x18] sm:$0xff]
  %v139 = vld [vmem:[%s0 + $0x20] sm:$0xff]
  %v140 = vld [vmem:[%s0 + $0x28] sm:$0xff]
  %v141 = vld [vmem:[%s0 + $0x30] sm:$0xff]
  %v142 = vld [vmem:[%s0 + $0x38] sm:$0xff]
  %v143 = vld [vmem:[%s0 + $0x40] sm:$0xff]
  %v144 = vld [vmem:[%s0 + $0x48] sm:$0xff]
  %v145 = vld [vmem:[%s0 + $0x50] sm:$0xff]
  %v146 = vld [vmem:[%s0 + $0x58] sm:$0xff]
  %v147 = vld [vmem:[%s0 + $0x60] sm:$0xff]
  %v148 = vld [vmem:[%s0 + $0x68] sm:$0xff]
  %v149 = vld [vmem:[%s0 + $0x70] sm:$0xff]
  %v150 = vld [vmem:[%s0 + $0x78] sm:$0xff]
  %v151 = vpack.c.bf16 %v136, %v135
  %v152 = vpack.c.bf16 %v138, %v137
  %v153 = vpack.c.bf16 %v140, %v139
  %v154 = vpack.c.bf16 %v142, %v141
  %v155 = vpack.c.bf16 %v144, %v143
  %v156 = vpack.c.bf16 %v146, %v145
  %v157 = vpack.c.bf16 %v148, %v147
  %v158 = vpack.c.bf16 %v150, %v149
  %v167 = vunpack.c.l.b16 %v151
  %v168 = vunpack.c.h.b16 %v151
  %v169 = vunpack.c.l.b16 %v152
  %v170 = vunpack.c.h.b16 %v152
  %v171 = vunpack.c.l.b16 %v153
  %v172 = vunpack.c.h.b16 %v153
  %v173 = vunpack.c.l.b16 %v154
  %v174 = vunpack.c.h.b16 %v154
  %v175 = vunpack.c.l.b16 %v155
  %v176 = vunpack.c.h.b16 %v155
  %v177 = vunpack.c.l.b16 %v156
  %v178 = vunpack.c.h.b16 %v156
  %v179 = vunpack.c.l.b16 %v157
  %v180 = vunpack.c.h.b16 %v157
  %v181 = vunpack.c.l.b16 %v158
  %v182 = vunpack.c.h.b16 %v158
  %v183 = vpack.c.b16 %v167, %v167
  %v184 = vpack.c.b16 %v168, %v168
  %v185 = vpack.c.b16 %v169, %v169
  %v186 = vpack.c.b16 %v170, %v170
  %v187 = vpack.c.b16 %v171, %v171
  %v188 = vpack.c.b16 %v172, %v172
  %v189 = vpack.c.b16 %v173, %v173
  %v190 = vpack.c.b16 %v174, %v174
  %v191 = vpack.c.b16 %v175, %v175
  %v192 = vpack.c.b16 %v176, %v176
  %v193 = vpack.c.b16 %v177, %v177
  %v194 = vpack.c.b16 %v178, %v178
  %v195 = vpack.c.b16 %v179, %v179
  %v196 = vpack.c.b16 %v180, %v180
  %v197 = vpack.c.b16 %v181, %v181
  %v198 = vpack.c.b16 %v182, %v182
  %vm199 = vsmask.f32 4368
  %vm200 = vmor %vm23, %vm199
  %v202 = vshrl.u32 %v183, 16
  %v204 = vrot.slane %v202, 7
  %v205 = vshll.u32 %v183, 16
  %v207 = vor.u32 %v204, %v205
  %v208 = vrot.slane %v204, 4
  %v210 = vshrl.u32 %v184, 16
  %v212 = vrot.slane %v210, 7
  %v213 = vshll.u32 %v184, 16
  %v215 = vor.u32 %v212, %v213
  %v216 = vsel %vm200, %v208, %v215
  %v217 = vrot.slane %v212, 4
  %v219 = vshrl.u32 %v185, 16
  %v221 = vrot.slane %v219, 7
  %v222 = vshll.u32 %v185, 16
  %v224 = vor.u32 %v221, %v222
  %v225 = vrot.slane %v221, 4
  %v227 = vshrl.u32 %v186, 16
  %v229 = vrot.slane %v227, 7
  %v230 = vshll.u32 %v186, 16
  %v232 = vor.u32 %v229, %v230
  %v233 = vsel %vm200, %v225, %v232
  %v234 = vrot.slane %v229, 4
  %v236 = vshrl.u32 %v187, 16
  %v238 = vrot.slane %v236, 7
  %v239 = vshll.u32 %v187, 16
  %v241 = vor.u32 %v238, %v239
  %v242 = vrot.slane %v238, 4
  %v244 = vshrl.u32 %v188, 16
  %v246 = vrot.slane %v244, 7
  %v247 = vshll.u32 %v188, 16
  %v249 = vor.u32 %v246, %v247
  %v250 = vsel %vm200, %v242, %v249
  %v251 = vrot.slane %v246, 4
  %v253 = vshrl.u32 %v189, 16
  %v255 = vrot.slane %v253, 7
  %v256 = vshll.u32 %v189, 16
  %v258 = vor.u32 %v255, %v256
  %v259 = vrot.slane %v255, 4
  %v261 = vshrl.u32 %v190, 16
  %v263 = vrot.slane %v261, 7
  %v264 = vshll.u32 %v190, 16
  %v266 = vor.u32 %v263, %v264
  %v267 = vsel %vm200, %v259, %v266
  %v268 = vrot.slane %v263, 4
  %v270 = vshrl.u32 %v191, 16
  %v272 = vrot.slane %v270, 7
  %v273 = vshll.u32 %v191, 16
  %v275 = vor.u32 %v272, %v273
  %v276 = vrot.slane %v272, 4
  %v278 = vshrl.u32 %v192, 16
  %v280 = vrot.slane %v278, 7
  %v281 = vshll.u32 %v192, 16
  %v283 = vor.u32 %v280, %v281
  %v284 = vsel %vm200, %v276, %v283
  %v285 = vrot.slane %v280, 4
  %v287 = vshrl.u32 %v193, 16
  %v289 = vrot.slane %v287, 7
  %v290 = vshll.u32 %v193, 16
  %v292 = vor.u32 %v289, %v290
  %v293 = vrot.slane %v289, 4
  %v295 = vshrl.u32 %v194, 16
  %v297 = vrot.slane %v295, 7
  %v298 = vshll.u32 %v194, 16
  %v300 = vor.u32 %v297, %v298
  %v301 = vsel %vm200, %v293, %v300
  %v302 = vrot.slane %v297, 4
  %v304 = vshrl.u32 %v195, 16
  %v306 = vrot.slane %v304, 7
  %v307 = vshll.u32 %v195, 16
  %v309 = vor.u32 %v306, %v307
  %v310 = vrot.slane %v306, 4
  %v312 = vshrl.u32 %v196, 16
  %v314 = vrot.slane %v312, 7
  %v315 = vshll.u32 %v196, 16
  %v317 = vor.u32 %v314, %v315
  %v318 = vsel %vm200, %v310, %v317
  %v319 = vrot.slane %v314, 4
  %v321 = vshrl.u32 %v197, 16
  %v323 = vrot.slane %v321, 7
  %v324 = vshll.u32 %v197, 16
  %v326 = vor.u32 %v323, %v324
  %v327 = vrot.slane %v323, 4
  %v329 = vshrl.u32 %v198, 16
  %v331 = vrot.slane %v329, 7
  %v332 = vshll.u32 %v198, 16
  %v334 = vor.u32 %v331, %v332
  %v335 = vsel %vm200, %v327, %v334
  %v336 = vrot.slane %v331, 4
  %s361 = scalar_lea.vmem [#allocation2], 12
  %vm362 = vcmask 1043456
  %vm363 = vmand %vm362, %vm79
  %v364 = vld [vmem:[%s361] sm:$0xf]
  %v365 = vsel %vm363, %v207, %v364
  %366 = vst [vmem:[%s361] sm:$0xf] %v365
  %367 = vst [vmem:[%s361 + $0x4] sm:$0xf] %v216
  %v368 = vld [vmem:[%s361 + $0x8] sm:$0x1]
  %v369 = vsel %vm24, %v217, %v368
  %370 = vst [vmem:[%s361 + $0x8] sm:$0x1] %v369
  %v371 = vld [vmem:[%s361 + $0xc] sm:$0xf]
  %v372 = vsel %vm363, %v224, %v371
  %373 = vst [vmem:[%s361 + $0xc] sm:$0xf] %v372
  %374 = vst [vmem:[%s361 + $0x10] sm:$0xf] %v233
  %v375 = vld [vmem:[%s361 + $0x14] sm:$0x1]
  %v376 = vsel %vm24, %v234, %v375
  %377 = vst [vmem:[%s361 + $0x14] sm:$0x1] %v376
  %v378 = vld [vmem:[%s361 + $0x18] sm:$0xf]
  %v379 = vsel %vm363, %v241, %v378
  %380 = vst [vmem:[%s361 + $0x18] sm:$0xf] %v379
  %381 = vst [vmem:[%s361 + $0x1c] sm:$0xf] %v250
  %v382 = vld [vmem:[%s361 + $0x20] sm:$0x1]
  %v383 = vsel %vm24, %v251, %v382
  %384 = vst [vmem:[%s361 + $0x20] sm:$0x1] %v383
  %v385 = vld [vmem:[%s361 + $0x24] sm:$0xf]
  %v386 = vsel %vm363, %v258, %v385
  %387 = vst [vmem:[%s361 + $0x24] sm:$0xf] %v386
  %388 = vst [vmem:[%s361 + $0x28] sm:$0xf] %v267
  %v389 = vld [vmem:[%s361 + $0x2c] sm:$0x1]
  %v390 = vsel %vm24, %v268, %v389
  %391 = vst [vmem:[%s361 + $0x2c] sm:$0x1] %v390
  %v392 = vld [vmem:[%s361 + $0x30] sm:$0xf]
  %v393 = vsel %vm363, %v275, %v392
  %394 = vst [vmem:[%s361 + $0x30] sm:$0xf] %v393
  %395 = vst [vmem:[%s361 + $0x34] sm:$0xf] %v284
  %v396 = vld [vmem:[%s361 + $0x38] sm:$0x1]
  %v397 = vsel %vm24, %v285, %v396
  %398 = vst [vmem:[%s361 + $0x38] sm:$0x1] %v397
  %v399 = vld [vmem:[%s361 + $0x3c] sm:$0xf]
  %v400 = vsel %vm363, %v292, %v399
  %401 = vst [vmem:[%s361 + $0x3c] sm:$0xf] %v400
  %402 = vst [vmem:[%s361 + $0x40] sm:$0xf] %v301
  %v403 = vld [vmem:[%s361 + $0x44] sm:$0x1]
  %v404 = vsel %vm24, %v302, %v403
  %405 = vst [vmem:[%s361 + $0x44] sm:$0x1] %v404
  %v406 = vld [vmem:[%s361 + $0x48] sm:$0xf]
  %v407 = vsel %vm363, %v309, %v406
  %408 = vst [vmem:[%s361 + $0x48] sm:$0xf] %v407
  %409 = vst [vmem:[%s361 + $0x4c] sm:$0xf] %v318
  %v410 = vld [vmem:[%s361 + $0x50] sm:$0x1]
  %v411 = vsel %vm24, %v319, %v410
  %412 = vst [vmem:[%s361 + $0x50] sm:$0x1] %v411
  %v413 = vld [vmem:[%s361 + $0x54] sm:$0xf]
  %v414 = vsel %vm363, %v326, %v413
  %415 = vst [vmem:[%s361 + $0x54] sm:$0xf] %v414
  %416 = vst [vmem:[%s361 + $0x58] sm:$0xf] %v335
  %v417 = vld [vmem:[%s361 + $0x5c] sm:$0x1]
  %v418 = vsel %vm24, %v336, %v417
  %419 = vst [vmem:[%s361 + $0x5c] sm:$0x1] %v418
  %v420 = vld [vmem:[%s0 + $0x80] sm:$0xff]
  %v421 = vld [vmem:[%s0 + $0x88] sm:$0xff]
  %v422 = vld [vmem:[%s0 + $0x90] sm:$0xff]
  %v423 = vld [vmem:[%s0 + $0x98] sm:$0xff]
  %v424 = vld [vmem:[%s0 + $0xa0] sm:$0xff]
  %v425 = vld [vmem:[%s0 + $0xa8] sm:$0xff]
  %v426 = vld [vmem:[%s0 + $0xb0] sm:$0xff]
  %v427 = vld [vmem:[%s0 + $0xb8] sm:$0xff]
  %v428 = vld [vmem:[%s0 + $0xc0] sm:$0xff]
  %v429 = vld [vmem:[%s0 + $0xc8] sm:$0xff]
  %v430 = vld [vmem:[%s0 + $0xd0] sm:$0xff]
  %v431 = vld [vmem:[%s0 + $0xd8] sm:$0xff]
  %v432 = vld [vmem:[%s0 + $0xe0] sm:$0xff]
  %v433 = vld [vmem:[%s0 + $0xe8] sm:$0xff]
  %v434 = vld [vmem:[%s0 + $0xf0] sm:$0xff]
  %v435 = vld [vmem:[%s0 + $0xf8] sm:$0xff]
  %v436 = vpack.c.bf16 %v421, %v420
  %v437 = vpack.c.bf16 %v423, %v422
  %v438 = vpack.c.bf16 %v425, %v424
  %v439 = vpack.c.bf16 %v427, %v426
  %v440 = vpack.c.bf16 %v429, %v428
  %v441 = vpack.c.bf16 %v431, %v430
  %v442 = vpack.c.bf16 %v433, %v432
  %v443 = vpack.c.bf16 %v435, %v434
  %v452 = vunpack.c.l.b16 %v436
  %v453 = vunpack.c.h.b16 %v436
  %v454 = vunpack.c.l.b16 %v437
  %v455 = vunpack.c.h.b16 %v437
  %v456 = vunpack.c.l.b16 %v438
  %v457 = vunpack.c.h.b16 %v438
  %v458 = vunpack.c.l.b16 %v439
  %v459 = vunpack.c.h.b16 %v439
  %v460 = vunpack.c.l.b16 %v440
  %v461 = vunpack.c.h.b16 %v440
  %v462 = vunpack.c.l.b16 %v441
  %v463 = vunpack.c.h.b16 %v441
  %v464 = vunpack.c.l.b16 %v442
  %v465 = vunpack.c.h.b16 %v442
  %v466 = vunpack.c.l.b16 %v443
  %v467 = vunpack.c.h.b16 %v443
  %v468 = vpack.c.b16 %v452, %v452
  %v469 = vpack.c.b16 %v453, %v453
  %v470 = vpack.c.b16 %v454, %v454
  %v471 = vpack.c.b16 %v455, %v455
  %v472 = vpack.c.b16 %v456, %v456
  %v473 = vpack.c.b16 %v457, %v457
  %v474 = vpack.c.b16 %v458, %v458
  %v475 = vpack.c.b16 %v459, %v459
  %v476 = vpack.c.b16 %v460, %v460
  %v477 = vpack.c.b16 %v461, %v461
  %v478 = vpack.c.b16 %v462, %v462
  %v479 = vpack.c.b16 %v463, %v463
  %v480 = vpack.c.b16 %v464, %v464
  %v481 = vpack.c.b16 %v465, %v465
  %v482 = vpack.c.b16 %v466, %v466
  %v483 = vpack.c.b16 %v467, %v467
  %v485 = vshrl.u32 %v468, 16
  %v487 = vrot.slane %v485, 7
  %v488 = vshll.u32 %v468, 16
  %v490 = vor.u32 %v487, %v488
  %v491 = vrot.slane %v487, 4
  %v493 = vshrl.u32 %v469, 16
  %v495 = vrot.slane %v493, 7
  %v496 = vshll.u32 %v469, 16
  %v498 = vor.u32 %v495, %v496
  %v499 = vsel %vm200, %v491, %v498
  %v500 = vrot.slane %v495, 4
  %v502 = vshrl.u32 %v470, 16
  %v504 = vrot.slane %v502, 7
  %v505 = vshll.u32 %v470, 16
  %v507 = vor.u32 %v504, %v505
  %v508 = vrot.slane %v504, 4
  %v510 = vshrl.u32 %v471, 16
  %v512 = vrot.slane %v510, 7
  %v513 = vshll.u32 %v471, 16
  %v515 = vor.u32 %v512, %v513
  %v516 = vsel %vm200, %v508, %v515
  %v517 = vrot.slane %v512, 4
  %v519 = vshrl.u32 %v472, 16
  %v521 = vrot.slane %v519, 7
  %v522 = vshll.u32 %v472, 16
  %v524 = vor.u32 %v521, %v522
  %v525 = vrot.slane %v521, 4
  %v527 = vshrl.u32 %v473, 16
  %v529 = vrot.slane %v527, 7
  %v530 = vshll.u32 %v473, 16
  %v532 = vor.u32 %v529, %v530
  %v533 = vsel %vm200, %v525, %v532
  %v534 = vrot.slane %v529, 4
  %v536 = vshrl.u32 %v474, 16
  %v538 = vrot.slane %v536, 7
  %v539 = vshll.u32 %v474, 16
  %v541 = vor.u32 %v538, %v539
  %v542 = vrot.slane %v538, 4
  %v544 = vshrl.u32 %v475, 16
  %v546 = vrot.slane %v544, 7
  %v547 = vshll.u32 %v475, 16
  %v549 = vor.u32 %v546, %v547
  %v550 = vsel %vm200, %v542, %v549
  %v551 = vrot.slane %v546, 4
  %v553 = vshrl.u32 %v476, 16
  %v555 = vrot.slane %v553, 7
  %v556 = vshll.u32 %v476, 16
  %v558 = vor.u32 %v555, %v556
  %v559 = vrot.slane %v555, 4
  %v561 = vshrl.u32 %v477, 16
  %v563 = vrot.slane %v561, 7
  %v564 = vshll.u32 %v477, 16
  %v566 = vor.u32 %v563, %v564
  %v567 = vsel %vm200, %v559, %v566
  %v568 = vrot.slane %v563, 4
  %v570 = vshrl.u32 %v478, 16
  %v572 = vrot.slane %v570, 7
  %v573 = vshll.u32 %v478, 16
  %v575 = vor.u32 %v572, %v573
  %v576 = vrot.slane %v572, 4
  %v578 = vshrl.u32 %v479, 16
  %v580 = vrot.slane %v578, 7
  %v581 = vshll.u32 %v479, 16
  %v583 = vor.u32 %v580, %v581
  %v584 = vsel %vm200, %v576, %v583
  %v585 = vrot.slane %v580, 4
  %v587 = vshrl.u32 %v480, 16
  %v589 = vrot.slane %v587, 7
  %v590 = vshll.u32 %v480, 16
  %v592 = vor.u32 %v589, %v590
  %v593 = vrot.slane %v589, 4
  %v595 = vshrl.u32 %v481, 16
  %v597 = vrot.slane %v595, 7
  %v598 = vshll.u32 %v481, 16
  %v600 = vor.u32 %v597, %v598
  %v601 = vsel %vm200, %v593, %v600
  %v602 = vrot.slane %v597, 4
  %v604 = vshrl.u32 %v482, 16
  %v606 = vrot.slane %v604, 7
  %v607 = vshll.u32 %v482, 16
  %v609 = vor.u32 %v606, %v607
  %v610 = vrot.slane %v606, 4
  %v612 = vshrl.u32 %v483, 16
  %v614 = vrot.slane %v612, 7
  %v615 = vshll.u32 %v483, 16
  %v617 = vor.u32 %v614, %v615
  %v618 = vsel %vm200, %v610, %v617
  %v619 = vrot.slane %v614, 4
  %s644 = scalar_lea.vmem [#allocation2], 108
  %v645 = vld [vmem:[%s644] sm:$0xf]
  %v646 = vsel %vm363, %v490, %v645
  %647 = vst [vmem:[%s644] sm:$0xf] %v646
  %648 = vst [vmem:[%s644 + $0x4] sm:$0xf] %v499
  %v649 = vld [vmem:[%s644 + $0x8] sm:$0x1]
  %v650 = vsel %vm24, %v500, %v649
  %651 = vst [vmem:[%s644 + $0x8] sm:$0x1] %v650
  %v652 = vld [vmem:[%s644 + $0xc] sm:$0xf]
  %v653 = vsel %vm363, %v507, %v652
  %654 = vst [vmem:[%s644 + $0xc] sm:$0xf] %v653
  %655 = vst [vmem:[%s644 + $0x10] sm:$0xf] %v516
  %v656 = vld [vmem:[%s644 + $0x14] sm:$0x1]
  %v657 = vsel %vm24, %v517, %v656
  %658 = vst [vmem:[%s644 + $0x14] sm:$0x1] %v657
  %v659 = vld [vmem:[%s644 + $0x18] sm:$0xf]
  %v660 = vsel %vm363, %v524, %v659
  %661 = vst [vmem:[%s644 + $0x18] sm:$0xf] %v660
  %662 = vst [vmem:[%s644 + $0x1c] sm:$0xf] %v533
  %v663 = vld [vmem:[%s644 + $0x20] sm:$0x1]
  %v664 = vsel %vm24, %v534, %v663
  %665 = vst [vmem:[%s644 + $0x20] sm:$0x1] %v664
  %v666 = vld [vmem:[%s644 + $0x24] sm:$0xf]
  %v667 = vsel %vm363, %v541, %v666
  %668 = vst [vmem:[%s644 + $0x24] sm:$0xf] %v667
  %669 = vst [vmem:[%s644 + $0x28] sm:$0xf] %v550
  %v670 = vld [vmem:[%s644 + $0x2c] sm:$0x1]
  %v671 = vsel %vm24, %v551, %v670
  %672 = vst [vmem:[%s644 + $0x2c] sm:$0x1] %v671
  %v673 = vld [vmem:[%s644 + $0x30] sm:$0xf]
  %v674 = vsel %vm363, %v558, %v673
  %675 = vst [vmem:[%s644 + $0x30] sm:$0xf] %v674
  %676 = vst [vmem:[%s644 + $0x34] sm:$0xf] %v567
  %v677 = vld [vmem:[%s644 + $0x38] sm:$0x1]
  %v678 = vsel %vm24, %v568, %v677
  %679 = vst [vmem:[%s644 + $0x38] sm:$0x1] %v678
  %v680 = vld [vmem:[%s644 + $0x3c] sm:$0xf]
  %v681 = vsel %vm363, %v575, %v680
  %682 = vst [vmem:[%s644 + $0x3c] sm:$0xf] %v681
  %683 = vst [vmem:[%s644 + $0x40] sm:$0xf] %v584
  %v684 = vld [vmem:[%s644 + $0x44] sm:$0x1]
  %v685 = vsel %vm24, %v585, %v684
  %686 = vst [vmem:[%s644 + $0x44] sm:$0x1] %v685
  %v687 = vld [vmem:[%s644 + $0x48] sm:$0xf]
  %v688 = vsel %vm363, %v592, %v687
  %689 = vst [vmem:[%s644 + $0x48] sm:$0xf] %v688
  %690 = vst [vmem:[%s644 + $0x4c] sm:$0xf] %v601
  %v691 = vld [vmem:[%s644 + $0x50] sm:$0x1]
  %v692 = vsel %vm24, %v602, %v691
  %693 = vst [vmem:[%s644 + $0x50] sm:$0x1] %v692
  %v694 = vld [vmem:[%s644 + $0x54] sm:$0xf]
  %v695 = vsel %vm363, %v609, %v694
  %696 = vst [vmem:[%s644 + $0x54] sm:$0xf] %v695
  %697 = vst [vmem:[%s644 + $0x58] sm:$0xf] %v618
  %v698 = vld [vmem:[%s644 + $0x5c] sm:$0x1]
  %v699 = vsel %vm24, %v619, %v698
  %700 = vst [vmem:[%s644 + $0x5c] sm:$0x1] %v699
  %v701 = vld [vmem:[#allocation2] sm:$0xf]
  %v702 = vld [vmem:[#allocation2 + $0x4] sm:$0xf]
  %v703 = vld [vmem:[#allocation2 + $0xc] sm:$0xf]
  %v704 = vld [vmem:[#allocation2 + $0x10] sm:$0xf]
  %v705 = vld [vmem:[#allocation2 + $0x18] sm:$0xf]
  %v706 = vld [vmem:[#allocation2 + $0x1c] sm:$0xf]
  %v707 = vld [vmem:[#allocation2 + $0x24] sm:$0xf]
  %v708 = vld [vmem:[#allocation2 + $0x28] sm:$0xf]
  %v709 = vld [vmem:[#allocation2 + $0x30] sm:$0xf]
  %v710 = vld [vmem:[#allocation2 + $0x34] sm:$0xf]
  %v711 = vld [vmem:[#allocation2 + $0x3c] sm:$0xf]
  %v712 = vld [vmem:[#allocation2 + $0x40] sm:$0xf]
  %v713 = vld [vmem:[#allocation2 + $0x48] sm:$0xf]
  %v714 = vld [vmem:[#allocation2 + $0x4c] sm:$0xf]
  %v715 = vld [vmem:[#allocation2 + $0x54] sm:$0xf]
  %v716 = vld [vmem:[#allocation2 + $0x58] sm:$0xf]
  %v717 = vld [vmem:[%s1] sm:$0xf]
  %v718 = vld [vmem:[%s1 + $0x4] sm:$0xf]
  %v719 = vld [vmem:[%s1 + $0x8] sm:$0xf]
  %v720 = vld [vmem:[%s1 + $0xc] sm:$0xf]
  %v721 = vld [vmem:[%s1 + $0x10] sm:$0xf]
  %v722 = vld [vmem:[%s1 + $0x14] sm:$0xf]
  %v723 = vld [vmem:[%s1 + $0x18] sm:$0xf]
  %v724 = vld [vmem:[%s1 + $0x1c] sm:$0xf]
  %v725 = vld [vmem:[%s1 + $0x20] sm:$0xf]
  %v726 = vld [vmem:[%s1 + $0x24] sm:$0xf]
  %v727 = vld [vmem:[%s1 + $0x28] sm:$0xf]
  %v728 = vld [vmem:[%s1 + $0x2c] sm:$0xf]
  %v729 = vld [vmem:[%s1 + $0x30] sm:$0xf]
  %v730 = vld [vmem:[%s1 + $0x34] sm:$0xf]
  %v731 = vld [vmem:[%s1 + $0x38] sm:$0xf]
  %v732 = vld [vmem:[%s1 + $0x3c] sm:$0xf]
  %v733 = vld [vmem:[#allocation2 + $0x8] sm:$0x1]
  %v734 = vld [vmem:[#allocation2 + $0x14] sm:$0x1]
  %v735 = vld [vmem:[#allocation2 + $0x20] sm:$0x1]
  %v736 = vld [vmem:[#allocation2 + $0x2c] sm:$0x1]
  %v737 = vld [vmem:[#allocation2 + $0x38] sm:$0x1]
  %v738 = vld [vmem:[#allocation2 + $0x44] sm:$0x1]
  %v739 = vld [vmem:[#allocation2 + $0x50] sm:$0x1]
  %v740 = vld [vmem:[#allocation2 + $0x5c] sm:$0x1]
  %vm741 = vsmask.f32 3328
  %vm742 = vsmask.f32 7440
  %vm743 = vmor %vm741, %vm742
  %v745 = vshrl.u32 %v701, 16
  %v747 = vrot.slane %v745, 4
  %v748 = vshll.u32 %v701, 16
  %v750 = vrot.slane %v748, 5
  %v751 = vor.u32 %v747, %v750
  %v752 = vrot.slane %v751, 4
  %v754 = vshll.u32 %v702, 16
  %v756 = vrot.slane %v754, 5
  %v757 = vsel %vm743, %v752, %v756
  %v758 = vshrl.u32 %v702, 16
  %v760 = vrot.slane %v758, 4
  %v761 = vor.u32 %v760, %v756
  %v762 = vrot.slane %v761, 4
  %v764 = vshll.u32 %v733, 16
  %v766 = vrot.slane %v764, 5
  %v767 = vsel %vm743, %v762, %v766
  %v769 = vshrl.u32 %v703, 16
  %v771 = vrot.slane %v769, 4
  %v772 = vshll.u32 %v703, 16
  %v774 = vrot.slane %v772, 5
  %v775 = vor.u32 %v771, %v774
  %v776 = vrot.slane %v775, 4
  %v778 = vshll.u32 %v704, 16
  %v780 = vrot.slane %v778, 5
  %v781 = vsel %vm743, %v776, %v780
  %v782 = vshrl.u32 %v704, 16
  %v784 = vrot.slane %v782, 4
  %v785 = vor.u32 %v784, %v780
  %v786 = vrot.slane %v785, 4
  %v788 = vshll.u32 %v734, 16
  %v790 = vrot.slane %v788, 5
  %v791 = vsel %vm743, %v786, %v790
  %v793 = vshrl.u32 %v705, 16
  %v795 = vrot.slane %v793, 4
  %v796 = vshll.u32 %v705, 16
  %v798 = vrot.slane %v796, 5
  %v799 = vor.u32 %v795, %v798
  %v800 = vrot.slane %v799, 4
  %v802 = vshll.u32 %v706, 16
  %v804 = vrot.slane %v802, 5
  %v805 = vsel %vm743, %v800, %v804
  %v806 = vshrl.u32 %v706, 16
  %v808 = vrot.slane %v806, 4
  %v809 = vor.u32 %v808, %v804
  %v810 = vrot.slane %v809, 4
  %v812 = vshll.u32 %v735, 16
  %v814 = vrot.slane %v812, 5
  %v815 = vsel %vm743, %v810, %v814
  %v817 = vshrl.u32 %v707, 16
  %v819 = vrot.slane %v817, 4
  %v820 = vshll.u32 %v707, 16
  %v822 = vrot.slane %v820, 5
  %v823 = vor.u32 %v819, %v822
  %v824 = vrot.slane %v823, 4
  %v826 = vshll.u32 %v708, 16
  %v828 = vrot.slane %v826, 5
  %v829 = vsel %vm743, %v824, %v828
  %v830 = vshrl.u32 %v708, 16
  %v832 = vrot.slane %v830, 4
  %v833 = vor.u32 %v832, %v828
  %v834 = vrot.slane %v833, 4
  %v836 = vshll.u32 %v736, 16
  %v838 = vrot.slane %v836, 5
  %v839 = vsel %vm743, %v834, %v838
  %v841 = vshrl.u32 %v709, 16
  %v843 = vrot.slane %v841, 4
  %v844 = vshll.u32 %v709, 16
  %v846 = vrot.slane %v844, 5
  %v847 = vor.u32 %v843, %v846
  %v848 = vrot.slane %v847, 4
  %v850 = vshll.u32 %v710, 16
  %v852 = vrot.slane %v850, 5
  %v853 = vsel %vm743, %v848, %v852
  %v854 = vshrl.u32 %v710, 16
  %v856 = vrot.slane %v854, 4
  %v857 = vor.u32 %v856, %v852
  %v858 = vrot.slane %v857, 4
  %v860 = vshll.u32 %v737, 16
  %v862 = vrot.slane %v860, 5
  %v863 = vsel %vm743, %v858, %v862
  %v865 = vshrl.u32 %v711, 16
  %v867 = vrot.slane %v865, 4
  %v868 = vshll.u32 %v711, 16
  %v870 = vrot.slane %v868, 5
  %v871 = vor.u32 %v867, %v870
  %v872 = vrot.slane %v871, 4
  %v874 = vshll.u32 %v712, 16
  %v876 = vrot.slane %v874, 5
  %v877 = vsel %vm743, %v872, %v876
  %v878 = vshrl.u32 %v712, 16
  %v880 = vrot.slane %v878, 4
  %v881 = vor.u32 %v880, %v876
  %v882 = vrot.slane %v881, 4
  %v884 = vshll.u32 %v738, 16
  %v886 = vrot.slane %v884, 5
  %v887 = vsel %vm743, %v882, %v886
  %v889 = vshrl.u32 %v713, 16
  %v891 = vrot.slane %v889, 4
  %v892 = vshll.u32 %v713, 16
  %v894 = vrot.slane %v892, 5
  %v895 = vor.u32 %v891, %v894
  %v896 = vrot.slane %v895, 4
  %v898 = vshll.u32 %v714, 16
  %v900 = vrot.slane %v898, 5
  %v901 = vsel %vm743, %v896, %v900
  %v902 = vshrl.u32 %v714, 16
  %v904 = vrot.slane %v902, 4
  %v905 = vor.u32 %v904, %v900
  %v906 = vrot.slane %v905, 4
  %v908 = vshll.u32 %v739, 16
  %v910 = vrot.slane %v908, 5
  %v911 = vsel %vm743, %v906, %v910
  %v913 = vshrl.u32 %v715, 16
  %v915 = vrot.slane %v913, 4
  %v916 = vshll.u32 %v715, 16
  %v918 = vrot.slane %v916, 5
  %v919 = vor.u32 %v915, %v918
  %v920 = vrot.slane %v919, 4
  %v922 = vshll.u32 %v716, 16
  %v924 = vrot.slane %v922, 5
  %v925 = vsel %vm743, %v920, %v924
  %v926 = vshrl.u32 %v716, 16
  %v928 = vrot.slane %v926, 4
  %v929 = vor.u32 %v928, %v924
  %v930 = vrot.slane %v929, 4
  %v932 = vshll.u32 %v740, 16
  %v934 = vrot.slane %v932, 5
  %v935 = vsel %vm743, %v930, %v934
  %s936 = scalar_lea.vmem %s1, 64
  %v937 = vld [vmem:[%s936] sm:$0xf]
  %v938 = vld [vmem:[%s936 + $0x4] sm:$0xf]
  %v939 = vld [vmem:[%s936 + $0x8] sm:$0xf]
  %v940 = vld [vmem:[%s936 + $0xc] sm:$0xf]
  %v941 = vld [vmem:[%s936 + $0x10] sm:$0xf]
  %v942 = vld [vmem:[%s936 + $0x14] sm:$0xf]
  %v943 = vld [vmem:[%s936 + $0x18] sm:$0xf]
  %v944 = vld [vmem:[%s936 + $0x1c] sm:$0xf]
  %v945 = vld [vmem:[%s936 + $0x20] sm:$0xf]
  %v946 = vld [vmem:[%s936 + $0x24] sm:$0xf]
  %v947 = vld [vmem:[%s936 + $0x28] sm:$0xf]
  %v948 = vld [vmem:[%s936 + $0x2c] sm:$0xf]
  %v949 = vld [vmem:[%s936 + $0x30] sm:$0xf]
  %v950 = vld [vmem:[%s936 + $0x34] sm:$0xf]
  %v951 = vld [vmem:[%s936 + $0x38] sm:$0xf]
  %v952 = vld [vmem:[%s936 + $0x3c] sm:$0xf]
  %v953 = vunpack.c.l.b16 %v757
  %v954 = vunpack.c.l.b16 %v767
  %v955 = vunpack.c.l.b16 %v781
  %v956 = vunpack.c.l.b16 %v791
  %v957 = vunpack.c.l.b16 %v805
  %v958 = vunpack.c.l.b16 %v815
  %v959 = vunpack.c.l.b16 %v829
  %v960 = vunpack.c.l.b16 %v839
  %v961 = vunpack.c.l.b16 %v853
  %v962 = vunpack.c.l.b16 %v863
  %v963 = vunpack.c.l.b16 %v877
  %v964 = vunpack.c.l.b16 %v887
  %v965 = vunpack.c.l.b16 %v901
  %v966 = vunpack.c.l.b16 %v911
  %v967 = vunpack.c.l.b16 %v925
  %v968 = vunpack.c.l.b16 %v935
  %v969 = vpack.c.b16 %v954, %v953
  %v970 = vpack.c.b16 %v956, %v955
  %v971 = vpack.c.b16 %v958, %v957
  %v972 = vpack.c.b16 %v960, %v959
  %v973 = vpack.c.b16 %v962, %v961
  %v974 = vpack.c.b16 %v964, %v963
  %v975 = vpack.c.b16 %v966, %v965
  %v976 = vpack.c.b16 %v968, %v967
  %v1001 = vunpack.c.l.b16 %v937
  %v1002 = vunpack.c.l.b16 %v938
  %v1003 = vunpack.c.l.b16 %v939
  %v1004 = vunpack.c.l.b16 %v940
  %v1005 = vunpack.c.l.b16 %v941
  %v1006 = vunpack.c.l.b16 %v942
  %v1007 = vunpack.c.l.b16 %v943
  %v1008 = vunpack.c.l.b16 %v944
  %v1009 = vunpack.c.l.b16 %v945
  %v1010 = vunpack.c.l.b16 %v946
  %v1011 = vunpack.c.l.b16 %v947
  %v1012 = vunpack.c.l.b16 %v948
  %v1013 = vunpack.c.l.b16 %v949
  %v1014 = vunpack.c.l.b16 %v950
  %v1015 = vunpack.c.l.b16 %v951
  %v1016 = vunpack.c.l.b16 %v952
  %v1017 = vpack.c.b16 %v1002, %v1001
  %v1018 = vpack.c.b16 %v1004, %v1003
  %v1019 = vpack.c.b16 %v1006, %v1005
  %v1020 = vpack.c.b16 %v1008, %v1007
  %v1021 = vpack.c.b16 %v1010, %v1009
  %v1022 = vpack.c.b16 %v1012, %v1011
  %v1023 = vpack.c.b16 %v1014, %v1013
  %v1024 = vpack.c.b16 %v1016, %v1015
  %1033 = vmatprep.subr.bf16.mxu0 0
  %1034 = vmatpush1.bf16.msra.mxu0 %v1017
  %1035 = vmatprep.subr.bf16.mxu0 0
  %1036 = vmatpush1.bf16.msra.mxu0 %v1018
  %1037 = vmatprep.subr.bf16.mxu0 0
  %1038 = vmatpush1.bf16.msra.mxu0 %v1019
  %1039 = vmatprep.subr.bf16.mxu0 0
  %1040 = vmatpush1.bf16.msra.mxu0 %v1020
  %1041 = vmatprep.subr.bf16.mxu0 0
  %1042 = vmatpush1.bf16.msra.mxu0 %v1021
  %1043 = vmatprep.subr.bf16.mxu0 0
  %1044 = vmatpush1.bf16.msra.mxu0 %v1022
  %1045 = vmatprep.subr.bf16.mxu0 0
  %1046 = vmatpush1.bf16.msra.mxu0 %v1023
  %1047 = vmatprep.subr.bf16.mxu0 0
  %1048 = vmatpush1.bf16.msra.mxu0 %v1024
  %1049 = vmatprep.subr.bf16.mxu0 0
  %1050 = vmatpush1.bf16.msra.mxu0 0
  %1051 = vmatprep.subr.bf16.mxu0 0
  %1052 = vmatpush1.bf16.msra.mxu0 0
  %1053 = vmatprep.subr.bf16.mxu0 0
  %1054 = vmatpush1.bf16.msra.mxu0 0
  %1055 = vmatprep.subr.bf16.mxu0 0
  %1056 = vmatpush1.bf16.msra.mxu0 0
  %1057 = vmatprep.subr.bf16.mxu0 0
  %1058 = vmatpush1.bf16.msra.mxu0 0
  %1059 = vmatprep.subr.bf16.mxu0 0
  %1060 = vmatpush1.bf16.msra.mxu0 0
  %1061 = vmatprep.subr.bf16.mxu0 0
  %1062 = vmatpush1.bf16.msra.mxu0 0
  %1063 = vmatprep.subr.bf16.mxu0 0
  %1064 = vmatpush1.bf16.msra.mxu0 0
  %1065 = vmatprep.mubr.bf16.mxu0 0
  %1066 = vmatmul.mubr.bf16.gmra.mrb[0].mxu0 %v969
  %v1067 = vpop.f32.mrb[0].mxu0
  %v1068 = vadd.f32 0.0, %v1067
  %v1069 = vpop.f32.mrb[0].mxu0
  %v1070 = vpop.f32.mrb[0].mxu0
  %v1071 = vadd.f32 0.0, %v1070
  %v1072 = vpop.f32.mrb[0].mxu0
  %1073 = vmatprep.mubr.bf16.mxu0 0
  %1074 = vmatmul.mubr.bf16.gmra.mrb[0].mxu0 %v970
  %v1075 = vpop.f32.mrb[0].mxu0
  %v1076 = vadd.f32 0.0, %v1075
  %v1077 = vpop.f32.mrb[0].mxu0
  %v1078 = vpop.f32.mrb[0].mxu0
  %v1079 = vadd.f32 0.0, %v1078
  %v1080 = vpop.f32.mrb[0].mxu0
  %1081 = vmatprep.mubr.bf16.mxu0 0
  %1082 = vmatmul.mubr.bf16.gmra.mrb[0].mxu0 %v971
  %v1083 = vpop.f32.mrb[0].mxu0
  %v1084 = vadd.f32 0.0, %v1083
  %v1085 = vpop.f32.mrb[0].mxu0
  %v1086 = vpop.f32.mrb[0].mxu0
  %v1087 = vadd.f32 0.0, %v1086
  %v1088 = vpop.f32.mrb[0].mxu0
  %1089 = vmatprep.mubr.bf16.mxu0 0
  %1090 = vmatmul.mubr.bf16.gmra.mrb[0].mxu0 %v972
  %v1091 = vpop.f32.mrb[0].mxu0
  %v1092 = vadd.f32 0.0, %v1091
  %v1093 = vpop.f32.mrb[0].mxu0
  %v1094 = vpop.f32.mrb[0].mxu0
  %v1095 = vadd.f32 0.0, %v1094
  %v1096 = vpop.f32.mrb[0].mxu0
  %1097 = vmatprep.mubr.bf16.mxu0 0
  %1098 = vmatmul.mubr.bf16.gmra.mrb[0].mxu0 %v973
  %v1099 = vpop.f32.mrb[0].mxu0
  %v1100 = vadd.f32 0.0, %v1099
  %v1101 = vpop.f32.mrb[0].mxu0
  %v1102 = vpop.f32.mrb[0].mxu0
  %v1103 = vadd.f32 0.0, %v1102
  %v1104 = vpop.f32.mrb[0].mxu0
  %1105 = vmatprep.mubr.bf16.mxu0 0
  %1106 = vmatmul.mubr.bf16.gmra.mrb[0].mxu0 %v974
  %v1107 = vpop.f32.mrb[0].mxu0
  %v1108 = vadd.f32 0.0, %v1107
  %v1109 = vpop.f32.mrb[0].mxu0
  %v1110 = vpop.f32.mrb[0].mxu0
  %v1111 = vadd.f32 0.0, %v1110
  %v1112 = vpop.f32.mrb[0].mxu0
  %1113 = vmatprep.mubr.bf16.mxu0 0
  %1114 = vmatmul.mubr.bf16.gmra.mrb[0].mxu0 %v975
  %v1115 = vpop.f32.mrb[0].mxu0
  %v1116 = vadd.f32 0.0, %v1115
  %v1117 = vpop.f32.mrb[0].mxu0
  %v1118 = vpop.f32.mrb[0].mxu0
  %v1119 = vadd.f32 0.0, %v1118
  %v1120 = vpop.f32.mrb[0].mxu0
  %1121 = vmatprep.mubr.bf16.mxu0 0
  %1122 = vmatmul.mubr.bf16.gmra.mrb[0].mxu0 %v976
  %v1123 = vpop.f32.mrb[0].mxu0
  %v1124 = vadd.f32 0.0, %v1123
  %v1125 = vpop.f32.mrb[0].mxu0
  %v1126 = vpop.f32.mrb[0].mxu0
  %v1127 = vadd.f32 0.0, %v1126
  %v1128 = vpop.f32.mrb[0].mxu0
  %1129 = vdwg.mxu0
  %v1146 = vunpack.c.l.b16 %v701
  %v1147 = vunpack.c.l.b16 %v702
  %v1148 = vunpack.c.l.b16 %v703
  %v1149 = vunpack.c.l.b16 %v704
  %v1150 = vunpack.c.l.b16 %v705
  %v1151 = vunpack.c.l.b16 %v706
  %v1152 = vunpack.c.l.b16 %v707
  %v1153 = vunpack.c.l.b16 %v708
  %v1154 = vunpack.c.l.b16 %v709
  %v1155 = vunpack.c.l.b16 %v710
  %v1156 = vunpack.c.l.b16 %v711
  %v1157 = vunpack.c.l.b16 %v712
  %v1158 = vunpack.c.l.b16 %v713
  %v1159 = vunpack.c.l.b16 %v714
  %v1160 = vunpack.c.l.b16 %v715
  %v1161 = vunpack.c.l.b16 %v716
  %v1162 = vpack.c.b16 %v1147, %v1146
  %v1163 = vpack.c.b16 %v1149, %v1148
  %v1164 = vpack.c.b16 %v1151, %v1150
  %v1165 = vpack.c.b16 %v1153, %v1152
  %v1166 = vpack.c.b16 %v1155, %v1154
  %v1167 = vpack.c.b16 %v1157, %v1156
  %v1168 = vpack.c.b16 %v1159, %v1158
  %v1169 = vpack.c.b16 %v1161, %v1160
  %v1194 = vunpack.c.l.b16 %v717
  %v1195 = vunpack.c.l.b16 %v718
  %v1196 = vunpack.c.l.b16 %v719
  %v1197 = vunpack.c.l.b16 %v720
  %v1198 = vunpack.c.l.b16 %v721
  %v1199 = vunpack.c.l.b16 %v722
  %v1200 = vunpack.c.l.b16 %v723
  %v1201 = vunpack.c.l.b16 %v724
  %v1202 = vunpack.c.l.b16 %v725
  %v1203 = vunpack.c.l.b16 %v726
  %v1204 = vunpack.c.l.b16 %v727
  %v1205 = vunpack.c.l.b16 %v728
  %v1206 = vunpack.c.l.b16 %v729
  %v1207 = vunpack.c.l.b16 %v730
  %v1208 = vunpack.c.l.b16 %v731
  %v1209 = vunpack.c.l.b16 %v732
  %v1210 = vpack.c.b16 %v1195, %v1194
  %v1211 = vpack.c.b16 %v1197, %v1196
  %v1212 = vpack.c.b16 %v1199, %v1198
  %v1213 = vpack.c.b16 %v1201, %v1200
  %v1214 = vpack.c.b16 %v1203, %v1202
  %v1215 = vpack.c.b16 %v1205, %v1204
  %v1216 = vpack.c.b16 %v1207, %v1206
  %v1217 = vpack.c.b16 %v1209, %v1208
  %1226 = vmatprep.subr.bf16.mxu0 0
  %1227 = vmatpush1.bf16.msra.mxu0 %v1210
  %1228 = vmatprep.subr.bf16.mxu0 0
  %1229 = vmatpush1.bf16.msra.mxu0 %v1211
  %1230 = vmatprep.subr.bf16.mxu0 0
  %1231 = vmatpush1.bf16.msra.mxu0 %v1212
  %1232 = vmatprep.subr.bf16.mxu0 0
  %1233 = vmatpush1.bf16.msra.mxu0 %v1213
  %1234 = vmatprep.subr.bf16.mxu0 0
  %1235 = vmatpush1.bf16.msra.mxu0 %v1214
  %1236 = vmatprep.subr.bf16.mxu0 0
  %1237 = vmatpush1.bf16.msra.mxu0 %v1215
  %1238 = vmatprep.subr.bf16.mxu0 0
  %1239 = vmatpush1.bf16.msra.mxu0 %v1216
  %1240 = vmatprep.subr.bf16.mxu0 0
  %1241 = vmatpush1.bf16.msra.mxu0 %v1217
  %1242 = vmatprep.subr.bf16.mxu0 0
  %1243 = vmatpush1.bf16.msra.mxu0 0
  %1244 = vmatprep.subr.bf16.mxu0 0
  %1245 = vmatpush1.bf16.msra.mxu0 0
  %1246 = vmatprep.subr.bf16.mxu0 0
  %1247 = vmatpush1.bf16.msra.mxu0 0
  %1248 = vmatprep.subr.bf16.mxu0 0
  %1249 = vmatpush1.bf16.msra.mxu0 0
  %1250 = vmatprep.subr.bf16.mxu0 0
  %1251 = vmatpush1.bf16.msra.mxu0 0
  %1252 = vmatprep.subr.bf16.mxu0 0
  %1253 = vmatpush1.bf16.msra.mxu0 0
  %1254 = vmatprep.subr.bf16.mxu0 0
  %1255 = vmatpush1.bf16.msra.mxu0 0
  %1256 = vmatprep.subr.bf16.mxu0 0
  %1257 = vmatpush1.bf16.msra.mxu0 0
  %1258 = vmatprep.mubr.bf16.mxu0 0
  %1259 = vmatmul.mubr.bf16.gmra.mrb[0].mxu0 %v1162
  %v1260 = vpop.f32.mrb[0].mxu0
  %v1261 = vadd.f32 %v1068, %v1260
  %v1262 = vpop.f32.mrb[0].mxu0
  %v1263 = vpop.f32.mrb[0].mxu0
  %v1264 = vadd.f32 %v1071, %v1263
  %v1265 = vpop.f32.mrb[0].mxu0
  %1266 = vmatprep.mubr.bf16.mxu0 0
  %1267 = vmatmul.mubr.bf16.gmra.mrb[0].mxu0 %v1163
  %v1268 = vpop.f32.mrb[0].mxu0
  %v1269 = vadd.f32 %v1076, %v1268
  %v1270 = vpop.f32.mrb[0].mxu0
  %v1271 = vpop.f32.mrb[0].mxu0
  %v1272 = vadd.f32 %v1079, %v1271
  %v1273 = vpop.f32.mrb[0].mxu0
  %1274 = vmatprep.mubr.bf16.mxu0 0
  %1275 = vmatmul.mubr.bf16.gmra.mrb[0].mxu0 %v1164
  %v1276 = vpop.f32.mrb[0].mxu0
  %v1277 = vadd.f32 %v1084, %v1276
  %v1278 = vpop.f32.mrb[0].mxu0
  %v1279 = vpop.f32.mrb[0].mxu0
  %v1280 = vadd.f32 %v1087, %v1279
  %v1281 = vpop.f32.mrb[0].mxu0
  %1282 = vmatprep.mubr.bf16.mxu0 0
  %1283 = vmatmul.mubr.bf16.gmra.mrb[0].mxu0 %v1165
  %v1284 = vpop.f32.mrb[0].mxu0
  %v1285 = vadd.f32 %v1092, %v1284
  %v1286 = vpop.f32.mrb[0].mxu0
  %v1287 = vpop.f32.mrb[0].mxu0
  %v1288 = vadd.f32 %v1095, %v1287
  %v1289 = vpop.f32.mrb[0].mxu0
  %1290 = vmatprep.mubr.bf16.mxu0 0
  %1291 = vmatmul.mubr.bf16.gmra.mrb[0].mxu0 %v1166
  %v1292 = vpop.f32.mrb[0].mxu0
  %v1293 = vadd.f32 %v1100, %v1292
  %v1294 = vpop.f32.mrb[0].mxu0
  %v1295 = vpop.f32.mrb[0].mxu0
  %v1296 = vadd.f32 %v1103, %v1295
  %v1297 = vpop.f32.mrb[0].mxu0
  %1298 = vmatprep.mubr.bf16.mxu0 0
  %1299 = vmatmul.mubr.bf16.gmra.mrb[0].mxu0 %v1167
  %v1300 = vpop.f32.mrb[0].mxu0
  %v1301 = vadd.f32 %v1108, %v1300
  %v1302 = vpop.f32.mrb[0].mxu0
  %v1303 = vpop.f32.mrb[0].mxu0
  %v1304 = vadd.f32 %v1111, %v1303
  %v1305 = vpop.f32.mrb[0].mxu0
  %1306 = vmatprep.mubr.bf16.mxu0 0
  %1307 = vmatmul.mubr.bf16.gmra.mrb[0].mxu0 %v1168
  %v1308 = vpop.f32.mrb[0].mxu0
  %v1309 = vadd.f32 %v1116, %v1308
  %v1310 = vpop.f32.mrb[0].mxu0
  %v1311 = vpop.f32.mrb[0].mxu0
  %v1312 = vadd.f32 %v1119, %v1311
  %v1313 = vpop.f32.mrb[0].mxu0
  %1314 = vmatprep.mubr.bf16.mxu0 0
  %1315 = vmatmul.mubr.bf16.gmra.mrb[0].mxu0 %v1169
  %v1316 = vpop.f32.mrb[0].mxu0
  %v1317 = vadd.f32 %v1124, %v1316
  %v1318 = vpop.f32.mrb[0].mxu0
  %v1319 = vpop.f32.mrb[0].mxu0
  %v1320 = vadd.f32 %v1127, %v1319
  %v1321 = vpop.f32.mrb[0].mxu0
  %1322 = vdwg.mxu0
  %v1323 = vld [vmem:[#allocation2] sm:$0xe]
  %v1324 = vld [vmem:[#allocation2 + $0xc] sm:$0xe]
  %v1325 = vld [vmem:[#allocation2 + $0x18] sm:$0xe]
  %v1326 = vld [vmem:[#allocation2 + $0x24] sm:$0xe]
  %v1327 = vld [vmem:[#allocation2 + $0x30] sm:$0xe]
  %v1328 = vld [vmem:[#allocation2 + $0x3c] sm:$0xe]
  %v1329 = vld [vmem:[#allocation2 + $0x48] sm:$0xe]
  %v1330 = vld [vmem:[#allocation2 + $0x54] sm:$0xe]
  %vm1347 = vcmask 1042432
  %vm1348 = vcmask 1046532
  %vm1349 = vmor %vm1347, %vm1348
  %v1350 = vrot.slane %v1323, 5
  %v1351 = vrot.slane %v1350, 4
  %v1352 = vrot.slane %v702, 5
  %v1353 = vsel %vm1349, %v1351, %v1352
  %v1354 = vrot.slane %v1352, 4
  %v1355 = vrot.slane %v733, 5
  %v1356 = vsel %vm1349, %v1354, %v1355
  %v1357 = vrot.slane %v1324, 5
  %v1358 = vrot.slane %v1357, 4
  %v1359 = vrot.slane %v704, 5
  %v1360 = vsel %vm1349, %v1358, %v1359
  %v1361 = vrot.slane %v1359, 4
  %v1362 = vrot.slane %v734, 5
  %v1363 = vsel %vm1349, %v1361, %v1362
  %v1364 = vrot.slane %v1325, 5
  %v1365 = vrot.slane %v1364, 4
  %v1366 = vrot.slane %v706, 5
  %v1367 = vsel %vm1349, %v1365, %v1366
  %v1368 = vrot.slane %v1366, 4
  %v1369 = vrot.slane %v735, 5
  %v1370 = vsel %vm1349, %v1368, %v1369
  %v1371 = vrot.slane %v1326, 5
  %v1372 = vrot.slane %v1371, 4
  %v1373 = vrot.slane %v708, 5
  %v1374 = vsel %vm1349, %v1372, %v1373
  %v1375 = vrot.slane %v1373, 4
  %v1376 = vrot.slane %v736, 5
  %v1377 = vsel %vm1349, %v1375, %v1376
  %v1378 = vrot.slane %v1327, 5
  %v1379 = vrot.slane %v1378, 4
  %v1380 = vrot.slane %v710, 5
  %v1381 = vsel %vm1349, %v1379, %v1380
  %v1382 = vrot.slane %v1380, 4
  %v1383 = vrot.slane %v737, 5
  %v1384 = vsel %vm1349, %v1382, %v1383
  %v1385 = vrot.slane %v1328, 5
  %v1386 = vrot.slane %v1385, 4
  %v1387 = vrot.slane %v712, 5
  %v1388 = vsel %vm1349, %v1386, %v1387
  %v1389 = vrot.slane %v1387, 4
  %v1390 = vrot.slane %v738, 5
  %v1391 = vsel %vm1349, %v1389, %v1390
  %v1392 = vrot.slane %v1329, 5
  %v1393 = vrot.slane %v1392, 4
  %v1394 = vrot.slane %v714, 5
  %v1395 = vsel %vm1349, %v1393, %v1394
  %v1396 = vrot.slane %v1394, 4
  %v1397 = vrot.slane %v739, 5
  %v1398 = vsel %vm1349, %v1396, %v1397
  %v1399 = vrot.slane %v1330, 5
  %v1400 = vrot.slane %v1399, 4
  %v1401 = vrot.slane %v716, 5
  %v1402 = vsel %vm1349, %v1400, %v1401
  %v1403 = vrot.slane %v1401, 4
  %v1404 = vrot.slane %v740, 5
  %v1405 = vsel %vm1349, %v1403, %v1404
  %s1406 = scalar_lea.vmem %s1, 128
  %v1407 = vld [vmem:[%s1406] sm:$0xf]
  %v1408 = vld [vmem:[%s1406 + $0x4] sm:$0xf]
  %v1409 = vld [vmem:[%s1406 + $0x8] sm:$0xf]
  %v1410 = vld [vmem:[%s1406 + $0xc] sm:$0xf]
  %v1411 = vld [vmem:[%s1406 + $0x10] sm:$0xf]
  %v1412 = vld [vmem:[%s1406 + $0x14] sm:$0xf]
  %v1413 = vld [vmem:[%s1406 + $0x18] sm:$0xf]
  %v1414 = vld [vmem:[%s1406 + $0x1c] sm:$0xf]
  %v1415 = vld [vmem:[%s1406 + $0x20] sm:$0xf]
  %v1416 = vld [vmem:[%s1406 + $0x24] sm:$0xf]
  %v1417 = vld [vmem:[%s1406 + $0x28] sm:$0xf]
  %v1418 = vld [vmem:[%s1406 + $0x2c] sm:$0xf]
  %v1419 = vld [vmem:[%s1406 + $0x30] sm:$0xf]
  %v1420 = vld [vmem:[%s1406 + $0x34] sm:$0xf]
  %v1421 = vld [vmem:[%s1406 + $0x38] sm:$0xf]
  %v1422 = vld [vmem:[%s1406 + $0x3c] sm:$0xf]
  %v1423 = vunpack.c.l.b16 %v1353
  %v1424 = vunpack.c.l.b16 %v1356
  %v1425 = vunpack.c.l.b16 %v1360
  %v1426 = vunpack.c.l.b16 %v1363
  %v1427 = vunpack.c.l.b16 %v1367
  %v1428 = vunpack.c.l.b16 %v1370
  %v1429 = vunpack.c.l.b16 %v1374
  %v1430 = vunpack.c.l.b16 %v1377
  %v1431 = vunpack.c.l.b16 %v1381
  %v1432 = vunpack.c.l.b16 %v1384
  %v1433 = vunpack.c.l.b16 %v1388
  %v1434 = vunpack.c.l.b16 %v1391
  %v1435 = vunpack.c.l.b16 %v1395
  %v1436 = vunpack.c.l.b16 %v1398
  %v1437 = vunpack.c.l.b16 %v1402
  %v1438 = vunpack.c.l.b16 %v1405
  %v1439 = vpack.c.b16 %v1424, %v1423
  %v1440 = vpack.c.b16 %v1426, %v1425
  %v1441 = vpack.c.b16 %v1428, %v1427
  %v1442 = vpack.c.b16 %v1430, %v1429
  %v1443 = vpack.c.b16 %v1432, %v1431
  %v1444 = vpack.c.b16 %v1434, %v1433
  %v1445 = vpack.c.b16 %v1436, %v1435
  %v1446 = vpack.c.b16 %v1438, %v1437
  %v1471 = vunpack.c.l.b16 %v1407
  %v1472 = vunpack.c.l.b16 %v1408
  %v1473 = vunpack.c.l.b16 %v1409
  %v1474 = vunpack.c.l.b16 %v1410
  %v1475 = vunpack.c.l.b16 %v1411
  %v1476 = vunpack.c.l.b16 %v1412
  %v1477 = vunpack.c.l.b16 %v1413
  %v1478 = vunpack.c.l.b16 %v1414
  %v1479 = vunpack.c.l.b16 %v1415
  %v1480 = vunpack.c.l.b16 %v1416
  %v1481 = vunpack.c.l.b16 %v1417
  %v1482 = vunpack.c.l.b16 %v1418
  %v1483 = vunpack.c.l.b16 %v1419
  %v1484 = vunpack.c.l.b16 %v1420
  %v1485 = vunpack.c.l.b16 %v1421
  %v1486 = vunpack.c.l.b16 %v1422
  %v1487 = vpack.c.b16 %v1472, %v1471
  %v1488 = vpack.c.b16 %v1474, %v1473
  %v1489 = vpack.c.b16 %v1476, %v1475
  %v1490 = vpack.c.b16 %v1478, %v1477
  %v1491 = vpack.c.b16 %v1480, %v1479
  %v1492 = vpack.c.b16 %v1482, %v1481
  %v1493 = vpack.c.b16 %v1484, %v1483
  %v1494 = vpack.c.b16 %v1486, %v1485
  %1503 = vmatprep.subr.bf16.mxu0 0
  %1504 = vmatpush1.bf16.msra.mxu0 %v1487
  %1505 = vmatprep.subr.bf16.mxu0 0
  %1506 = vmatpush1.bf16.msra.mxu0 %v1488
  %1507 = vmatprep.subr.bf16.mxu0 0
  %1508 = vmatpush1.bf16.msra.mxu0 %v1489
  %1509 = vmatprep.subr.bf16.mxu0 0
  %1510 = vmatpush1.bf16.msra.mxu0 %v1490
  %1511 = vmatprep.subr.bf16.mxu0 0
  %1512 = vmatpush1.bf16.msra.mxu0 %v1491
  %1513 = vmatprep.subr.bf16.mxu0 0
  %1514 = vmatpush1.bf16.msra.mxu0 %v1492
  %1515 = vmatprep.subr.bf16.mxu0 0
  %1516 = vmatpush1.bf16.msra.mxu0 %v1493
  %1517 = vmatprep.subr.bf16.mxu0 0
  %1518 = vmatpush1.bf16.msra.mxu0 %v1494
  %1519 = vmatprep.subr.bf16.mxu0 0
  %1520 = vmatpush1.bf16.msra.mxu0 0
  %1521 = vmatprep.subr.bf16.mxu0 0
  %1522 = vmatpush1.bf16.msra.mxu0 0
  %1523 = vmatprep.subr.bf16.mxu0 0
  %1524 = vmatpush1.bf16.msra.mxu0 0
  %1525 = vmatprep.subr.bf16.mxu0 0
  %1526 = vmatpush1.bf16.msra.mxu0 0
  %1527 = vmatprep.subr.bf16.mxu0 0
  %1528 = vmatpush1.bf16.msra.mxu0 0
  %1529 = vmatprep.subr.bf16.mxu0 0
  %1530 = vmatpush1.bf16.msra.mxu0 0
  %1531 = vmatprep.subr.bf16.mxu0 0
  %1532 = vmatpush1.bf16.msra.mxu0 0
  %1533 = vmatprep.subr.bf16.mxu0 0
  %1534 = vmatpush1.bf16.msra.mxu0 0
  %1535 = vmatprep.mubr.bf16.mxu0 0
  %1536 = vmatmul.mubr.bf16.gmra.mrb[0].mxu0 %v1439
  %v1537 = vpop.f32.mrb[0].mxu0
  %v1538 = vadd.f32 0.0, %v1537
  %v1539 = vpop.f32.mrb[0].mxu0
  %v1540 = vpop.f32.mrb[0].mxu0
  %v1541 = vadd.f32 0.0, %v1540
  %v1542 = vpop.f32.mrb[0].mxu0
  %1543 = vmatprep.mubr.bf16.mxu0 0
  %1544 = vmatmul.mubr.bf16.gmra.mrb[0].mxu0 %v1440
  %v1545 = vpop.f32.mrb[0].mxu0
  %v1546 = vadd.f32 0.0, %v1545
  %v1547 = vpop.f32.mrb[0].mxu0
  %v1548 = vpop.f32.mrb[0].mxu0
  %v1549 = vadd.f32 0.0, %v1548
  %v1550 = vpop.f32.mrb[0].mxu0
  %1551 = vmatprep.mubr.bf16.mxu0 0
  %1552 = vmatmul.mubr.bf16.gmra.mrb[0].mxu0 %v1441
  %v1553 = vpop.f32.mrb[0].mxu0
  %v1554 = vadd.f32 0.0, %v1553
  %v1555 = vpop.f32.mrb[0].mxu0
  %v1556 = vpop.f32.mrb[0].mxu0
  %v1557 = vadd.f32 0.0, %v1556
  %v1558 = vpop.f32.mrb[0].mxu0
  %1559 = vmatprep.mubr.bf16.mxu0 0
  %1560 = vmatmul.mubr.bf16.gmra.mrb[0].mxu0 %v1442
  %v1561 = vpop.f32.mrb[0].mxu0
  %v1562 = vadd.f32 0.0, %v1561
  %v1563 = vpop.f32.mrb[0].mxu0
  %v1564 = vpop.f32.mrb[0].mxu0
  %v1565 = vadd.f32 0.0, %v1564
  %v1566 = vpop.f32.mrb[0].mxu0
  %1567 = vmatprep.mubr.bf16.mxu0 0
  %1568 = vmatmul.mubr.bf16.gmra.mrb[0].mxu0 %v1443
  %v1569 = vpop.f32.mrb[0].mxu0
  %v1570 = vadd.f32 0.0, %v1569
  %v1571 = vpop.f32.mrb[0].mxu0
  %v1572 = vpop.f32.mrb[0].mxu0
  %v1573 = vadd.f32 0.0, %v1572
  %v1574 = vpop.f32.mrb[0].mxu0
  %1575 = vmatprep.mubr.bf16.mxu0 0
  %1576 = vmatmul.mubr.bf16.gmra.mrb[0].mxu0 %v1444
  %v1577 = vpop.f32.mrb[0].mxu0
  %v1578 = vadd.f32 0.0, %v1577
  %v1579 = vpop.f32.mrb[0].mxu0
  %v1580 = vpop.f32.mrb[0].mxu0
  %v1581 = vadd.f32 0.0, %v1580
  %v1582 = vpop.f32.mrb[0].mxu0
  %1583 = vmatprep.mubr.bf16.mxu0 0
  %1584 = vmatmul.mubr.bf16.gmra.mrb[0].mxu0 %v1445
  %v1585 = vpop.f32.mrb[0].mxu0
  %v1586 = vadd.f32 0.0, %v1585
  %v1587 = vpop.f32.mrb[0].mxu0
  %v1588 = vpop.f32.mrb[0].mxu0
  %v1589 = vadd.f32 0.0, %v1588
  %v1590 = vpop.f32.mrb[0].mxu0
  %1591 = vmatprep.mubr.bf16.mxu0 0
  %1592 = vmatmul.mubr.bf16.gmra.mrb[0].mxu0 %v1446
  %v1593 = vpop.f32.mrb[0].mxu0
  %v1594 = vadd.f32 0.0, %v1593
  %v1595 = vpop.f32.mrb[0].mxu0
  %v1596 = vpop.f32.mrb[0].mxu0
  %v1597 = vadd.f32 0.0, %v1596
  %v1598 = vpop.f32.mrb[0].mxu0
  %1599 = vdwg.mxu0
  %v1600 = vadd.f32 %v1261, %v1538
  %v1601 = vadd.f32 %v1264, %v1541
  %v1602 = vadd.f32 %v1269, %v1546
  %v1603 = vadd.f32 %v1272, %v1549
  %v1604 = vadd.f32 %v1277, %v1554
  %v1605 = vadd.f32 %v1280, %v1557
  %v1606 = vadd.f32 %v1285, %v1562
  %v1607 = vadd.f32 %v1288, %v1565
  %v1608 = vadd.f32 %v1293, %v1570
  %v1609 = vadd.f32 %v1296, %v1573
  %v1610 = vadd.f32 %v1301, %v1578
  %v1611 = vadd.f32 %v1304, %v1581
  %v1612 = vadd.f32 %v1309, %v1586
  %v1613 = vadd.f32 %v1312, %v1589
  %v1614 = vadd.f32 %v1317, %v1594
  %v1615 = vadd.f32 %v1320, %v1597
  %v1616 = vld [vmem:[%s361] sm:$0xf]
  %v1617 = vld [vmem:[%s361 + $0x4] sm:$0xf]
  %v1618 = vld [vmem:[%s361 + $0xc] sm:$0xf]
  %v1619 = vld [vmem:[%s361 + $0x10] sm:$0xf]
  %v1620 = vld [vmem:[%s361 + $0x18] sm:$0xf]
  %v1621 = vld [vmem:[%s361 + $0x1c] sm:$0xf]
  %v1622 = vld [vmem:[%s361 + $0x24] sm:$0xf]
  %v1623 = vld [vmem:[%s361 + $0x28] sm:$0xf]
  %v1624 = vld [vmem:[%s361 + $0x30] sm:$0xf]
  %v1625 = vld [vmem:[%s361 + $0x34] sm:$0xf]
  %v1626 = vld [vmem:[%s361 + $0x3c] sm:$0xf]
  %v1627 = vld [vmem:[%s361 + $0x40] sm:$0xf]
  %v1628 = vld [vmem:[%s361 + $0x48] sm:$0xf]
  %v1629 = vld [vmem:[%s361 + $0x4c] sm:$0xf]
  %v1630 = vld [vmem:[%s361 + $0x54] sm:$0xf]
  %v1631 = vld [vmem:[%s361 + $0x58] sm:$0xf]
  %s1632 = scalar_lea.vmem %s1, 192
  %v1633 = vld [vmem:[%s1632] sm:$0xf]
  %v1634 = vld [vmem:[%s1632 + $0x4] sm:$0xf]
  %v1635 = vld [vmem:[%s1632 + $0x8] sm:$0xf]
  %v1636 = vld [vmem:[%s1632 + $0xc] sm:$0xf]
  %v1637 = vld [vmem:[%s1632 + $0x10] sm:$0xf]
  %v1638 = vld [vmem:[%s1632 + $0x14] sm:$0xf]
  %v1639 = vld [vmem:[%s1632 + $0x18] sm:$0xf]
  %v1640 = vld [vmem:[%s1632 + $0x1c] sm:$0xf]
  %v1641 = vld [vmem:[%s1632 + $0x20] sm:$0xf]
  %v1642 = vld [vmem:[%s1632 + $0x24] sm:$0xf]
  %v1643 = vld [vmem:[%s1632 + $0x28] sm:$0xf]
  %v1644 = vld [vmem:[%s1632 + $0x2c] sm:$0xf]
  %v1645 = vld [vmem:[%s1632 + $0x30] sm:$0xf]
  %v1646 = vld [vmem:[%s1632 + $0x34] sm:$0xf]
  %v1647 = vld [vmem:[%s1632 + $0x38] sm:$0xf]
  %v1648 = vld [vmem:[%s1632 + $0x3c] sm:$0xf]
  %v1665 = vunpack.c.l.b16 %v1616
  %v1666 = vunpack.c.l.b16 %v1617
  %v1667 = vunpack.c.l.b16 %v1618
  %v1668 = vunpack.c.l.b16 %v1619
  %v1669 = vunpack.c.l.b16 %v1620
  %v1670 = vunpack.c.l.b16 %v1621
  %v1671 = vunpack.c.l.b16 %v1622
  %v1672 = vunpack.c.l.b16 %v1623
  %v1673 = vunpack.c.l.b16 %v1624
  %v1674 = vunpack.c.l.b16 %v1625
  %v1675 = vunpack.c.l.b16 %v1626
  %v1676 = vunpack.c.l.b16 %v1627
  %v1677 = vunpack.c.l.b16 %v1628
  %v1678 = vunpack.c.l.b16 %v1629
  %v1679 = vunpack.c.l.b16 %v1630
  %v1680 = vunpack.c.l.b16 %v1631
  %v1681 = vpack.c.b16 %v1666, %v1665
  %v1682 = vpack.c.b16 %v1668, %v1667
  %v1683 = vpack.c.b16 %v1670, %v1669
  %v1684 = vpack.c.b16 %v1672, %v1671
  %v1685 = vpack.c.b16 %v1674, %v1673
  %v1686 = vpack.c.b16 %v1676, %v1675
  %v1687 = vpack.c.b16 %v1678, %v1677
  %v1688 = vpack.c.b16 %v1680, %v1679
  %v1713 = vunpack.c.l.b16 %v1633
  %v1714 = vunpack.c.l.b16 %v1634
  %v1715 = vunpack.c.l.b16 %v1635
  %v1716 = vunpack.c.l.b16 %v1636
  %v1717 = vunpack.c.l.b16 %v1637
  %v1718 = vunpack.c.l.b16 %v1638
  %v1719 = vunpack.c.l.b16 %v1639
  %v1720 = vunpack.c.l.b16 %v1640
  %v1721 = vunpack.c.l.b16 %v1641
  %v1722 = vunpack.c.l.b16 %v1642
  %v1723 = vunpack.c.l.b16 %v1643
  %v1724 = vunpack.c.l.b16 %v1644
  %v1725 = vunpack.c.l.b16 %v1645
  %v1726 = vunpack.c.l.b16 %v1646
  %v1727 = vunpack.c.l.b16 %v1647
  %v1728 = vunpack.c.l.b16 %v1648
  %v1729 = vpack.c.b16 %v1714, %v1713
  %v1730 = vpack.c.b16 %v1716, %v1715
  %v1731 = vpack.c.b16 %v1718, %v1717
  %v1732 = vpack.c.b16 %v1720, %v1719
  %v1733 = vpack.c.b16 %v1722, %v1721
  %v1734 = vpack.c.b16 %v1724, %v1723
  %v1735 = vpack.c.b16 %v1726, %v1725
  %v1736 = vpack.c.b16 %v1728, %v1727
  %1745 = vmatprep.subr.bf16.mxu0 0
  %1746 = vmatpush1.bf16.msra.mxu0 %v1729
  %1747 = vmatprep.subr.bf16.mxu0 0
  %1748 = vmatpush1.bf16.msra.mxu0 %v1730
  %1749 = vmatprep.subr.bf16.mxu0 0
  %1750 = vmatpush1.bf16.msra.mxu0 %v1731
  %1751 = vmatprep.subr.bf16.mxu0 0
  %1752 = vmatpush1.bf16.msra.mxu0 %v1732
  %1753 = vmatprep.subr.bf16.mxu0 0
  %1754 = vmatpush1.bf16.msra.mxu0 %v1733
  %1755 = vmatprep.subr.bf16.mxu0 0
  %1756 = vmatpush1.bf16.msra.mxu0 %v1734
  %1757 = vmatprep.subr.bf16.mxu0 0
  %1758 = vmatpush1.bf16.msra.mxu0 %v1735
  %1759 = vmatprep.subr.bf16.mxu0 0
  %1760 = vmatpush1.bf16.msra.mxu0 %v1736
  %1761 = vmatprep.subr.bf16.mxu0 0
  %1762 = vmatpush1.bf16.msra.mxu0 0
  %1763 = vmatprep.subr.bf16.mxu0 0
  %1764 = vmatpush1.bf16.msra.mxu0 0
  %1765 = vmatprep.subr.bf16.mxu0 0
  %1766 = vmatpush1.bf16.msra.mxu0 0
  %1767 = vmatprep.subr.bf16.mxu0 0
  %1768 = vmatpush1.bf16.msra.mxu0 0
  %1769 = vmatprep.subr.bf16.mxu0 0
  %1770 = vmatpush1.bf16.msra.mxu0 0
  %1771 = vmatprep.subr.bf16.mxu0 0
  %1772 = vmatpush1.bf16.msra.mxu0 0
  %1773 = vmatprep.subr.bf16.mxu0 0
  %1774 = vmatpush1.bf16.msra.mxu0 0
  %1775 = vmatprep.subr.bf16.mxu0 0
  %1776 = vmatpush1.bf16.msra.mxu0 0
  %1777 = vmatprep.mubr.bf16.mxu0 0
  %1778 = vmatmul.mubr.bf16.gmra.mrb[0].mxu0 %v1681
  %v1779 = vpop.f32.mrb[0].mxu0
  %v1780 = vadd.f32 0.0, %v1779
  %v1781 = vpop.f32.mrb[0].mxu0
  %v1782 = vpop.f32.mrb[0].mxu0
  %v1783 = vadd.f32 0.0, %v1782
  %v1784 = vpop.f32.mrb[0].mxu0
  %1785 = vmatprep.mubr.bf16.mxu0 0
  %1786 = vmatmul.mubr.bf16.gmra.mrb[0].mxu0 %v1682
  %v1787 = vpop.f32.mrb[0].mxu0
  %v1788 = vadd.f32 0.0, %v1787
  %v1789 = vpop.f32.mrb[0].mxu0
  %v1790 = vpop.f32.mrb[0].mxu0
  %v1791 = vadd.f32 0.0, %v1790
  %v1792 = vpop.f32.mrb[0].mxu0
  %1793 = vmatprep.mubr.bf16.mxu0 0
  %1794 = vmatmul.mubr.bf16.gmra.mrb[0].mxu0 %v1683
  %v1795 = vpop.f32.mrb[0].mxu0
  %v1796 = vadd.f32 0.0, %v1795
  %v1797 = vpop.f32.mrb[0].mxu0
  %v1798 = vpop.f32.mrb[0].mxu0
  %v1799 = vadd.f32 0.0, %v1798
  %v1800 = vpop.f32.mrb[0].mxu0
  %1801 = vmatprep.mubr.bf16.mxu0 0
  %1802 = vmatmul.mubr.bf16.gmra.mrb[0].mxu0 %v1684
  %v1803 = vpop.f32.mrb[0].mxu0
  %v1804 = vadd.f32 0.0, %v1803
  %v1805 = vpop.f32.mrb[0].mxu0
  %v1806 = vpop.f32.mrb[0].mxu0
  %v1807 = vadd.f32 0.0, %v1806
  %v1808 = vpop.f32.mrb[0].mxu0
  %1809 = vmatprep.mubr.bf16.mxu0 0
  %1810 = vmatmul.mubr.bf16.gmra.mrb[0].mxu0 %v1685
  %v1811 = vpop.f32.mrb[0].mxu0
  %v1812 = vadd.f32 0.0, %v1811
  %v1813 = vpop.f32.mrb[0].mxu0
  %v1814 = vpop.f32.mrb[0].mxu0
  %v1815 = vadd.f32 0.0, %v1814
  %v1816 = vpop.f32.mrb[0].mxu0
  %1817 = vmatprep.mubr.bf16.mxu0 0
  %1818 = vmatmul.mubr.bf16.gmra.mrb[0].mxu0 %v1686
  %v1819 = vpop.f32.mrb[0].mxu0
  %v1820 = vadd.f32 0.0, %v1819
  %v1821 = vpop.f32.mrb[0].mxu0
  %v1822 = vpop.f32.mrb[0].mxu0
  %v1823 = vadd.f32 0.0, %v1822
  %v1824 = vpop.f32.mrb[0].mxu0
  %1825 = vmatprep.mubr.bf16.mxu0 0
  %1826 = vmatmul.mubr.bf16.gmra.mrb[0].mxu0 %v1687
  %v1827 = vpop.f32.mrb[0].mxu0
  %v1828 = vadd.f32 0.0, %v1827
  %v1829 = vpop.f32.mrb[0].mxu0
  %v1830 = vpop.f32.mrb[0].mxu0
  %v1831 = vadd.f32 0.0, %v1830
  %v1832 = vpop.f32.mrb[0].mxu0
  %1833 = vmatprep.mubr.bf16.mxu0 0
  %1834 = vmatmul.mubr.bf16.gmra.mrb[0].mxu0 %v1688
  %v1835 = vpop.f32.mrb[0].mxu0
  %v1836 = vadd.f32 0.0, %v1835
  %v1837 = vpop.f32.mrb[0].mxu0
  %v1838 = vpop.f32.mrb[0].mxu0
  %v1839 = vadd.f32 0.0, %v1838
  %v1840 = vpop.f32.mrb[0].mxu0
  %1841 = vdwg.mxu0
  %v1842 = vadd.f32 %v1600, %v1780
  %v1843 = vadd.f32 %v1601, %v1783
  %v1844 = vadd.f32 %v1602, %v1788
  %v1845 = vadd.f32 %v1603, %v1791
  %v1846 = vadd.f32 %v1604, %v1796
  %v1847 = vadd.f32 %v1605, %v1799
  %v1848 = vadd.f32 %v1606, %v1804
  %v1849 = vadd.f32 %v1607, %v1807
  %v1850 = vadd.f32 %v1608, %v1812
  %v1851 = vadd.f32 %v1609, %v1815
  %v1852 = vadd.f32 %v1610, %v1820
  %v1853 = vadd.f32 %v1611, %v1823
  %v1854 = vadd.f32 %v1612, %v1828
  %v1855 = vadd.f32 %v1613, %v1831
  %v1856 = vadd.f32 %v1614, %v1836
  %v1857 = vadd.f32 %v1615, %v1839
  %v1858 = vld [vmem:[%s361] sm:$0xf]
  %v1859 = vld [vmem:[%s361 + $0x4] sm:$0xf]
  %v1860 = vld [vmem:[%s361 + $0x8] sm:$0x1]
  %v1861 = vld [vmem:[%s361 + $0xc] sm:$0xf]
  %v1862 = vld [vmem:[%s361 + $0x10] sm:$0xf]
  %v1863 = vld [vmem:[%s361 + $0x14] sm:$0x1]
  %v1864 = vld [vmem:[%s361 + $0x18] sm:$0xf]
  %v1865 = vld [vmem:[%s361 + $0x1c] sm:$0xf]
  %v1866 = vld [vmem:[%s361 + $0x20] sm:$0x1]
  %v1867 = vld [vmem:[%s361 + $0x24] sm:$0xf]
  %v1868 = vld [vmem:[%s361 + $0x28] sm:$0xf]
  %v1869 = vld [vmem:[%s361 + $0x2c] sm:$0x1]
  %v1870 = vld [vmem:[%s361 + $0x30] sm:$0xf]
  %v1871 = vld [vmem:[%s361 + $0x34] sm:$0xf]
  %v1872 = vld [vmem:[%s361 + $0x38] sm:$0x1]
  %v1873 = vld [vmem:[%s361 + $0x3c] sm:$0xf]
  %v1874 = vld [vmem:[%s361 + $0x40] sm:$0xf]
  %v1875 = vld [vmem:[%s361 + $0x44] sm:$0x1]
  %v1876 = vld [vmem:[%s361 + $0x48] sm:$0xf]
  %v1877 = vld [vmem:[%s361 + $0x4c] sm:$0xf]
  %v1878 = vld [vmem:[%s361 + $0x50] sm:$0x1]
  %v1879 = vld [vmem:[%s361 + $0x54] sm:$0xf]
  %v1880 = vld [vmem:[%s361 + $0x58] sm:$0xf]
  %v1881 = vld [vmem:[%s361 + $0x5c] sm:$0x1]
  %v1883 = vshrl.u32 %v1858, 16
  %v1885 = vrot.slane %v1883, 4
  %v1886 = vshll.u32 %v1858, 16
  %v1888 = vrot.slane %v1886, 5
  %v1889 = vor.u32 %v1885, %v1888
  %v1890 = vrot.slane %v1889, 4
  %v1892 = vshll.u32 %v1859, 16
  %v1894 = vrot.slane %v1892, 5
  %v1895 = vsel %vm743, %v1890, %v1894
  %v1896 = vshrl.u32 %v1859, 16
  %v1898 = vrot.slane %v1896, 4
  %v1899 = vor.u32 %v1898, %v1894
  %v1900 = vrot.slane %v1899, 4
  %v1902 = vshll.u32 %v1860, 16
  %v1904 = vrot.slane %v1902, 5
  %v1905 = vsel %vm743, %v1900, %v1904
  %v1907 = vshrl.u32 %v1861, 16
  %v1909 = vrot.slane %v1907, 4
  %v1910 = vshll.u32 %v1861, 16
  %v1912 = vrot.slane %v1910, 5
  %v1913 = vor.u32 %v1909, %v1912
  %v1914 = vrot.slane %v1913, 4
  %v1916 = vshll.u32 %v1862, 16
  %v1918 = vrot.slane %v1916, 5
  %v1919 = vsel %vm743, %v1914, %v1918
  %v1920 = vshrl.u32 %v1862, 16
  %v1922 = vrot.slane %v1920, 4
  %v1923 = vor.u32 %v1922, %v1918
  %v1924 = vrot.slane %v1923, 4
  %v1926 = vshll.u32 %v1863, 16
  %v1928 = vrot.slane %v1926, 5
  %v1929 = vsel %vm743, %v1924, %v1928
  %v1931 = vshrl.u32 %v1864, 16
  %v1933 = vrot.slane %v1931, 4
  %v1934 = vshll.u32 %v1864, 16
  %v1936 = vrot.slane %v1934, 5
  %v1937 = vor.u32 %v1933, %v1936
  %v1938 = vrot.slane %v1937, 4
  %v1940 = vshll.u32 %v1865, 16
  %v1942 = vrot.slane %v1940, 5
  %v1943 = vsel %vm743, %v1938, %v1942
  %v1944 = vshrl.u32 %v1865, 16
  %v1946 = vrot.slane %v1944, 4
  %v1947 = vor.u32 %v1946, %v1942
  %v1948 = vrot.slane %v1947, 4
  %v1950 = vshll.u32 %v1866, 16
  %v1952 = vrot.slane %v1950, 5
  %v1953 = vsel %vm743, %v1948, %v1952
  %v1955 = vshrl.u32 %v1867, 16
  %v1957 = vrot.slane %v1955, 4
  %v1958 = vshll.u32 %v1867, 16
  %v1960 = vrot.slane %v1958, 5
  %v1961 = vor.u32 %v1957, %v1960
  %v1962 = vrot.slane %v1961, 4
  %v1964 = vshll.u32 %v1868, 16
  %v1966 = vrot.slane %v1964, 5
  %v1967 = vsel %vm743, %v1962, %v1966
  %v1968 = vshrl.u32 %v1868, 16
  %v1970 = vrot.slane %v1968, 4
  %v1971 = vor.u32 %v1970, %v1966
  %v1972 = vrot.slane %v1971, 4
  %v1974 = vshll.u32 %v1869, 16
  %v1976 = vrot.slane %v1974, 5
  %v1977 = vsel %vm743, %v1972, %v1976
  %v1979 = vshrl.u32 %v1870, 16
  %v1981 = vrot.slane %v1979, 4
  %v1982 = vshll.u32 %v1870, 16
  %v1984 = vrot.slane %v1982, 5
  %v1985 = vor.u32 %v1981, %v1984
  %v1986 = vrot.slane %v1985, 4
  %v1988 = vshll.u32 %v1871, 16
  %v1990 = vrot.slane %v1988, 5
  %v1991 = vsel %vm743, %v1986, %v1990
  %v1992 = vshrl.u32 %v1871, 16
  %v1994 = vrot.slane %v1992, 4
  %v1995 = vor.u32 %v1994, %v1990
  %v1996 = vrot.slane %v1995, 4
  %v1998 = vshll.u32 %v1872, 16
  %v2000 = vrot.slane %v1998, 5
  %v2001 = vsel %vm743, %v1996, %v2000
  %v2003 = vshrl.u32 %v1873, 16
  %v2005 = vrot.slane %v2003, 4
  %v2006 = vshll.u32 %v1873, 16
  %v2008 = vrot.slane %v2006, 5
  %v2009 = vor.u32 %v2005, %v2008
  %v2010 = vrot.slane %v2009, 4
  %v2012 = vshll.u32 %v1874, 16
  %v2014 = vrot.slane %v2012, 5
  %v2015 = vsel %vm743, %v2010, %v2014
  %v2016 = vshrl.u32 %v1874, 16
  %v2018 = vrot.slane %v2016, 4
  %v2019 = vor.u32 %v2018, %v2014
  %v2020 = vrot.slane %v2019, 4
  %v2022 = vshll.u32 %v1875, 16
  %v2024 = vrot.slane %v2022, 5
  %v2025 = vsel %vm743, %v2020, %v2024
  %v2027 = vshrl.u32 %v1876, 16
  %v2029 = vrot.slane %v2027, 4
  %v2030 = vshll.u32 %v1876, 16
  %v2032 = vrot.slane %v2030, 5
  %v2033 = vor.u32 %v2029, %v2032
  %v2034 = vrot.slane %v2033, 4
  %v2036 = vshll.u32 %v1877, 16
  %v2038 = vrot.slane %v2036, 5
  %v2039 = vsel %vm743, %v2034, %v2038
  %v2040 = vshrl.u32 %v1877, 16
  %v2042 = vrot.slane %v2040, 4
  %v2043 = vor.u32 %v2042, %v2038
  %v2044 = vrot.slane %v2043, 4
  %v2046 = vshll.u32 %v1878, 16
  %v2048 = vrot.slane %v2046, 5
  %v2049 = vsel %vm743, %v2044, %v2048
  %v2051 = vshrl.u32 %v1879, 16
  %v2053 = vrot.slane %v2051, 4
  %v2054 = vshll.u32 %v1879, 16
  %v2056 = vrot.slane %v2054, 5
  %v2057 = vor.u32 %v2053, %v2056
  %v2058 = vrot.slane %v2057, 4
  %v2060 = vshll.u32 %v1880, 16
  %v2062 = vrot.slane %v2060, 5
  %v2063 = vsel %vm743, %v2058, %v2062
  %v2064 = vshrl.u32 %v1880, 16
  %v2066 = vrot.slane %v2064, 4
  %v2067 = vor.u32 %v2066, %v2062
  %v2068 = vrot.slane %v2067, 4
  %v2070 = vshll.u32 %v1881, 16
  %v2072 = vrot.slane %v2070, 5
  %v2073 = vsel %vm743, %v2068, %v2072
  %s2074 = scalar_lea.vmem %s1, 256
  %v2075 = vld [vmem:[%s2074] sm:$0xf]
  %v2076 = vld [vmem:[%s2074 + $0x4] sm:$0xf]
  %v2077 = vld [vmem:[%s2074 + $0x8] sm:$0xf]
  %v2078 = vld [vmem:[%s2074 + $0xc] sm:$0xf]
  %v2079 = vld [vmem:[%s2074 + $0x10] sm:$0xf]
  %v2080 = vld [vmem:[%s2074 + $0x14] sm:$0xf]
  %v2081 = vld [vmem:[%s2074 + $0x18] sm:$0xf]
  %v2082 = vld [vmem:[%s2074 + $0x1c] sm:$0xf]
  %v2083 = vld [vmem:[%s2074 + $0x20] sm:$0xf]
  %v2084 = vld [vmem:[%s2074 + $0x24] sm:$0xf]
  %v2085 = vld [vmem:[%s2074 + $0x28] sm:$0xf]
  %v2086 = vld [vmem:[%s2074 + $0x2c] sm:$0xf]
  %v2087 = vld [vmem:[%s2074 + $0x30] sm:$0xf]
  %v2088 = vld [vmem:[%s2074 + $0x34] sm:$0xf]
  %v2089 = vld [vmem:[%s2074 + $0x38] sm:$0xf]
  %v2090 = vld [vmem:[%s2074 + $0x3c] sm:$0xf]
  %v2091 = vunpack.c.l.b16 %v1895
  %v2092 = vunpack.c.l.b16 %v1905
  %v2093 = vunpack.c.l.b16 %v1919
  %v2094 = vunpack.c.l.b16 %v1929
  %v2095 = vunpack.c.l.b16 %v1943
  %v2096 = vunpack.c.l.b16 %v1953
  %v2097 = vunpack.c.l.b16 %v1967
  %v2098 = vunpack.c.l.b16 %v1977
  %v2099 = vunpack.c.l.b16 %v1991
  %v2100 = vunpack.c.l.b16 %v2001
  %v2101 = vunpack.c.l.b16 %v2015
  %v2102 = vunpack.c.l.b16 %v2025
  %v2103 = vunpack.c.l.b16 %v2039
  %v2104 = vunpack.c.l.b16 %v2049
  %v2105 = vunpack.c.l.b16 %v2063
  %v2106 = vunpack.c.l.b16 %v2073
  %v2107 = vpack.c.b16 %v2092, %v2091
  %v2108 = vpack.c.b16 %v2094, %v2093
  %v2109 = vpack.c.b16 %v2096, %v2095
  %v2110 = vpack.c.b16 %v2098, %v2097
  %v2111 = vpack.c.b16 %v2100, %v2099
  %v2112 = vpack.c.b16 %v2102, %v2101
  %v2113 = vpack.c.b16 %v2104, %v2103
  %v2114 = vpack.c.b16 %v2106, %v2105
  %v2139 = vunpack.c.l.b16 %v2075
  %v2140 = vunpack.c.l.b16 %v2076
  %v2141 = vunpack.c.l.b16 %v2077
  %v2142 = vunpack.c.l.b16 %v2078
  %v2143 = vunpack.c.l.b16 %v2079
  %v2144 = vunpack.c.l.b16 %v2080
  %v2145 = vunpack.c.l.b16 %v2081
  %v2146 = vunpack.c.l.b16 %v2082
  %v2147 = vunpack.c.l.b16 %v2083
  %v2148 = vunpack.c.l.b16 %v2084
  %v2149 = vunpack.c.l.b16 %v2085
  %v2150 = vunpack.c.l.b16 %v2086
  %v2151 = vunpack.c.l.b16 %v2087
  %v2152 = vunpack.c.l.b16 %v2088
  %v2153 = vunpack.c.l.b16 %v2089
  %v2154 = vunpack.c.l.b16 %v2090
  %v2155 = vpack.c.b16 %v2140, %v2139
  %v2156 = vpack.c.b16 %v2142, %v2141
  %v2157 = vpack.c.b16 %v2144, %v2143
  %v2158 = vpack.c.b16 %v2146, %v2145
  %v2159 = vpack.c.b16 %v2148, %v2147
  %v2160 = vpack.c.b16 %v2150, %v2149
  %v2161 = vpack.c.b16 %v2152, %v2151
  %v2162 = vpack.c.b16 %v2154, %v2153
  %2171 = vmatprep.subr.bf16.mxu0 0
  %2172 = vmatpush1.bf16.msra.mxu0 %v2155
  %2173 = vmatprep.subr.bf16.mxu0 0
  %2174 = vmatpush1.bf16.msra.mxu0 %v2156
  %2175 = vmatprep.subr.bf16.mxu0 0
  %2176 = vmatpush1.bf16.msra.mxu0 %v2157
  %2177 = vmatprep.subr.bf16.mxu0 0
  %2178 = vmatpush1.bf16.msra.mxu0 %v2158
  %2179 = vmatprep.subr.bf16.mxu0 0
  %2180 = vmatpush1.bf16.msra.mxu0 %v2159
  %2181 = vmatprep.subr.bf16.mxu0 0
  %2182 = vmatpush1.bf16.msra.mxu0 %v2160
  %2183 = vmatprep.subr.bf16.mxu0 0
  %2184 = vmatpush1.bf16.msra.mxu0 %v2161
  %2185 = vmatprep.subr.bf16.mxu0 0
  %2186 = vmatpush1.bf16.msra.mxu0 %v2162
  %2187 = vmatprep.subr.bf16.mxu0 0
  %2188 = vmatpush1.bf16.msra.mxu0 0
  %2189 = vmatprep.subr.bf16.mxu0 0
  %2190 = vmatpush1.bf16.msra.mxu0 0
  %2191 = vmatprep.subr.bf16.mxu0 0
  %2192 = vmatpush1.bf16.msra.mxu0 0
  %2193 = vmatprep.subr.bf16.mxu0 0
  %2194 = vmatpush1.bf16.msra.mxu0 0
  %2195 = vmatprep.subr.bf16.mxu0 0
  %2196 = vmatpush1.bf16.msra.mxu0 0
  %2197 = vmatprep.subr.bf16.mxu0 0
  %2198 = vmatpush1.bf16.msra.mxu0 0
  %2199 = vmatprep.subr.bf16.mxu0 0
  %2200 = vmatpush1.bf16.msra.mxu0 0
  %2201 = vmatprep.subr.bf16.mxu0 0
  %2202 = vmatpush1.bf16.msra.mxu0 0
  %2203 = vmatprep.mubr.bf16.mxu0 0
  %2204 = vmatmul.mubr.bf16.gmra.mrb[0].mxu0 %v2107
  %v2205 = vpop.f32.mrb[0].mxu0
  %v2206 = vadd.f32 0.0, %v2205
  %v2207 = vpop.f32.mrb[0].mxu0
  %v2208 = vpop.f32.mrb[0].mxu0
  %v2209 = vadd.f32 0.0, %v2208
  %v2210 = vpop.f32.mrb[0].mxu0
  %2211 = vmatprep.mubr.bf16.mxu0 0
  %2212 = vmatmul.mubr.bf16.gmra.mrb[0].mxu0 %v2108
  %v2213 = vpop.f32.mrb[0].mxu0
  %v2214 = vadd.f32 0.0, %v2213
  %v2215 = vpop.f32.mrb[0].mxu0
  %v2216 = vpop.f32.mrb[0].mxu0
  %v2217 = vadd.f32 0.0, %v2216
  %v2218 = vpop.f32.mrb[0].mxu0
  %2219 = vmatprep.mubr.bf16.mxu0 0
  %2220 = vmatmul.mubr.bf16.gmra.mrb[0].mxu0 %v2109
  %v2221 = vpop.f32.mrb[0].mxu0
  %v2222 = vadd.f32 0.0, %v2221
  %v2223 = vpop.f32.mrb[0].mxu0
  %v2224 = vpop.f32.mrb[0].mxu0
  %v2225 = vadd.f32 0.0, %v2224
  %v2226 = vpop.f32.mrb[0].mxu0
  %2227 = vmatprep.mubr.bf16.mxu0 0
  %2228 = vmatmul.mubr.bf16.gmra.mrb[0].mxu0 %v2110
  %v2229 = vpop.f32.mrb[0].mxu0
  %v2230 = vadd.f32 0.0, %v2229
  %v2231 = vpop.f32.mrb[0].mxu0
  %v2232 = vpop.f32.mrb[0].mxu0
  %v2233 = vadd.f32 0.0, %v2232
  %v2234 = vpop.f32.mrb[0].mxu0
  %2235 = vmatprep.mubr.bf16.mxu0 0
  %2236 = vmatmul.mubr.bf16.gmra.mrb[0].mxu0 %v2111
  %v2237 = vpop.f32.mrb[0].mxu0
  %v2238 = vadd.f32 0.0, %v2237
  %v2239 = vpop.f32.mrb[0].mxu0
  %v2240 = vpop.f32.mrb[0].mxu0
  %v2241 = vadd.f32 0.0, %v2240
  %v2242 = vpop.f32.mrb[0].mxu0
  %2243 = vmatprep.mubr.bf16.mxu0 0
  %2244 = vmatmul.mubr.bf16.gmra.mrb[0].mxu0 %v2112
  %v2245 = vpop.f32.mrb[0].mxu0
  %v2246 = vadd.f32 0.0, %v2245
  %v2247 = vpop.f32.mrb[0].mxu0
  %v2248 = vpop.f32.mrb[0].mxu0
  %v2249 = vadd.f32 0.0, %v2248
  %v2250 = vpop.f32.mrb[0].mxu0
  %2251 = vmatprep.mubr.bf16.mxu0 0
  %2252 = vmatmul.mubr.bf16.gmra.mrb[0].mxu0 %v2113
  %v2253 = vpop.f32.mrb[0].mxu0
  %v2254 = vadd.f32 0.0, %v2253
  %v2255 = vpop.f32.mrb[0].mxu0
  %v2256 = vpop.f32.mrb[0].mxu0
  %v2257 = vadd.f32 0.0, %v2256
  %v2258 = vpop.f32.mrb[0].mxu0
  %2259 = vmatprep.mubr.bf16.mxu0 0
  %2260 = vmatmul.mubr.bf16.gmra.mrb[0].mxu0 %v2114
  %v2261 = vpop.f32.mrb[0].mxu0
  %v2262 = vadd.f32 0.0, %v2261
  %v2263 = vpop.f32.mrb[0].mxu0
  %v2264 = vpop.f32.mrb[0].mxu0
  %v2265 = vadd.f32 0.0, %v2264
  %v2266 = vpop.f32.mrb[0].mxu0
  %2267 = vdwg.mxu0
  %v2268 = vadd.f32 %v1842, %v2206
  %v2269 = vadd.f32 %v1843, %v2209
  %v2270 = vadd.f32 %v1844, %v2214
  %v2271 = vadd.f32 %v1845, %v2217
  %v2272 = vadd.f32 %v1846, %v2222
  %v2273 = vadd.f32 %v1847, %v2225
  %v2274 = vadd.f32 %v1848, %v2230
  %v2275 = vadd.f32 %v1849, %v2233
  %v2276 = vadd.f32 %v1850, %v2238
  %v2277 = vadd.f32 %v1851, %v2241
  %v2278 = vadd.f32 %v1852, %v2246
  %v2279 = vadd.f32 %v1853, %v2249
  %v2280 = vadd.f32 %v1854, %v2254
  %v2281 = vadd.f32 %v1855, %v2257
  %v2282 = vadd.f32 %v1856, %v2262
  %v2283 = vadd.f32 %v1857, %v2265
  %v2284 = vld [vmem:[%s361] sm:$0xe]
  %v2285 = vld [vmem:[%s361 + $0xc] sm:$0xe]
  %v2286 = vld [vmem:[%s361 + $0x18] sm:$0xe]
  %v2287 = vld [vmem:[%s361 + $0x24] sm:$0xe]
  %v2288 = vld [vmem:[%s361 + $0x30] sm:$0xe]
  %v2289 = vld [vmem:[%s361 + $0x3c] sm:$0xe]
  %v2290 = vld [vmem:[%s361 + $0x48] sm:$0xe]
  %v2291 = vld [vmem:[%s361 + $0x54] sm:$0xe]
  %v2316 = vrot.slane %v2284, 5
  %v2317 = vrot.slane %v2316, 4
  %v2318 = vrot.slane %v1859, 5
  %v2319 = vsel %vm1349, %v2317, %v2318
  %v2320 = vrot.slane %v2318, 4
  %v2321 = vrot.slane %v1860, 5
  %v2322 = vsel %vm1349, %v2320, %v2321
  %v2323 = vrot.slane %v2285, 5
  %v2324 = vrot.slane %v2323, 4
  %v2325 = vrot.slane %v1862, 5
  %v2326 = vsel %vm1349, %v2324, %v2325
  %v2327 = vrot.slane %v2325, 4
  %v2328 = vrot.slane %v1863, 5
  %v2329 = vsel %vm1349, %v2327, %v2328
  %v2330 = vrot.slane %v2286, 5
  %v2331 = vrot.slane %v2330, 4
  %v2332 = vrot.slane %v1865, 5
  %v2333 = vsel %vm1349, %v2331, %v2332
  %v2334 = vrot.slane %v2332, 4
  %v2335 = vrot.slane %v1866, 5
  %v2336 = vsel %vm1349, %v2334, %v2335
  %v2337 = vrot.slane %v2287, 5
  %v2338 = vrot.slane %v2337, 4
  %v2339 = vrot.slane %v1868, 5
  %v2340 = vsel %vm1349, %v2338, %v2339
  %v2341 = vrot.slane %v2339, 4
  %v2342 = vrot.slane %v1869, 5
  %v2343 = vsel %vm1349, %v2341, %v2342
  %v2344 = vrot.slane %v2288, 5
  %v2345 = vrot.slane %v2344, 4
  %v2346 = vrot.slane %v1871, 5
  %v2347 = vsel %vm1349, %v2345, %v2346
  %v2348 = vrot.slane %v2346, 4
  %v2349 = vrot.slane %v1872, 5
  %v2350 = vsel %vm1349, %v2348, %v2349
  %v2351 = vrot.slane %v2289, 5
  %v2352 = vrot.slane %v2351, 4
  %v2353 = vrot.slane %v1874, 5
  %v2354 = vsel %vm1349, %v2352, %v2353
  %v2355 = vrot.slane %v2353, 4
  %v2356 = vrot.slane %v1875, 5
  %v2357 = vsel %vm1349, %v2355, %v2356
  %v2358 = vrot.slane %v2290, 5
  %v2359 = vrot.slane %v2358, 4
  %v2360 = vrot.slane %v1877, 5
  %v2361 = vsel %vm1349, %v2359, %v2360
  %v2362 = vrot.slane %v2360, 4
  %v2363 = vrot.slane %v1878, 5
  %v2364 = vsel %vm1349, %v2362, %v2363
  %v2365 = vrot.slane %v2291, 5
  %v2366 = vrot.slane %v2365, 4
  %v2367 = vrot.slane %v1880, 5
  %v2368 = vsel %vm1349, %v2366, %v2367
  %v2369 = vrot.slane %v2367, 4
  %v2370 = vrot.slane %v1881, 5
  %v2371 = vsel %vm1349, %v2369, %v2370
  %s2372 = scalar_lea.vmem %s1, 320
  %v2373 = vld [vmem:[%s2372] sm:$0xf]
  %v2374 = vld [vmem:[%s2372 + $0x4] sm:$0xf]
  %v2375 = vld [vmem:[%s2372 + $0x8] sm:$0xf]
  %v2376 = vld [vmem:[%s2372 + $0xc] sm:$0xf]
  %v2377 = vld [vmem:[%s2372 + $0x10] sm:$0xf]
  %v2378 = vld [vmem:[%s2372 + $0x14] sm:$0xf]
  %v2379 = vld [vmem:[%s2372 + $0x18] sm:$0xf]
  %v2380 = vld [vmem:[%s2372 + $0x1c] sm:$0xf]
  %v2381 = vld [vmem:[%s2372 + $0x20] sm:$0xf]
  %v2382 = vld [vmem:[%s2372 + $0x24] sm:$0xf]
  %v2383 = vld [vmem:[%s2372 + $0x28] sm:$0xf]
  %v2384 = vld [vmem:[%s2372 + $0x2c] sm:$0xf]
  %v2385 = vld [vmem:[%s2372 + $0x30] sm:$0xf]
  %v2386 = vld [vmem:[%s2372 + $0x34] sm:$0xf]
  %v2387 = vld [vmem:[%s2372 + $0x38] sm:$0xf]
  %v2388 = vld [vmem:[%s2372 + $0x3c] sm:$0xf]
  %v2389 = vunpack.c.l.b16 %v2319
  %v2390 = vunpack.c.l.b16 %v2322
  %v2391 = vunpack.c.l.b16 %v2326
  %v2392 = vunpack.c.l.b16 %v2329
  %v2393 = vunpack.c.l.b16 %v2333
  %v2394 = vunpack.c.l.b16 %v2336
  %v2395 = vunpack.c.l.b16 %v2340
  %v2396 = vunpack.c.l.b16 %v2343
  %v2397 = vunpack.c.l.b16 %v2347
  %v2398 = vunpack.c.l.b16 %v2350
  %v2399 = vunpack.c.l.b16 %v2354
  %v2400 = vunpack.c.l.b16 %v2357
  %v2401 = vunpack.c.l.b16 %v2361
  %v2402 = vunpack.c.l.b16 %v2364
  %v2403 = vunpack.c.l.b16 %v2368
  %v2404 = vunpack.c.l.b16 %v2371
  %v2405 = vpack.c.b16 %v2390, %v2389
  %v2406 = vpack.c.b16 %v2392, %v2391
  %v2407 = vpack.c.b16 %v2394, %v2393
  %v2408 = vpack.c.b16 %v2396, %v2395
  %v2409 = vpack.c.b16 %v2398, %v2397
  %v2410 = vpack.c.b16 %v2400, %v2399
  %v2411 = vpack.c.b16 %v2402, %v2401
  %v2412 = vpack.c.b16 %v2404, %v2403
  %v2437 = vunpack.c.l.b16 %v2373
  %v2438 = vunpack.c.l.b16 %v2374
  %v2439 = vunpack.c.l.b16 %v2375
  %v2440 = vunpack.c.l.b16 %v2376
  %v2441 = vunpack.c.l.b16 %v2377
  %v2442 = vunpack.c.l.b16 %v2378
  %v2443 = vunpack.c.l.b16 %v2379
  %v2444 = vunpack.c.l.b16 %v2380
  %v2445 = vunpack.c.l.b16 %v2381
  %v2446 = vunpack.c.l.b16 %v2382
  %v2447 = vunpack.c.l.b16 %v2383
  %v2448 = vunpack.c.l.b16 %v2384
  %v2449 = vunpack.c.l.b16 %v2385
  %v2450 = vunpack.c.l.b16 %v2386
  %v2451 = vunpack.c.l.b16 %v2387
  %v2452 = vunpack.c.l.b16 %v2388
  %v2453 = vpack.c.b16 %v2438, %v2437
  %v2454 = vpack.c.b16 %v2440, %v2439
  %v2455 = vpack.c.b16 %v2442, %v2441
  %v2456 = vpack.c.b16 %v2444, %v2443
  %v2457 = vpack.c.b16 %v2446, %v2445
  %v2458 = vpack.c.b16 %v2448, %v2447
  %v2459 = vpack.c.b16 %v2450, %v2449
  %v2460 = vpack.c.b16 %v2452, %v2451
  %2469 = vmatprep.subr.bf16.mxu0 0
  %2470 = vmatpush1.bf16.msra.mxu0 %v2453
  %2471 = vmatprep.subr.bf16.mxu0 0
  %2472 = vmatpush1.bf16.msra.mxu0 %v2454
  %2473 = vmatprep.subr.bf16.mxu0 0
  %2474 = vmatpush1.bf16.msra.mxu0 %v2455
  %2475 = vmatprep.subr.bf16.mxu0 0
  %2476 = vmatpush1.bf16.msra.mxu0 %v2456
  %2477 = vmatprep.subr.bf16.mxu0 0
  %2478 = vmatpush1.bf16.msra.mxu0 %v2457
  %2479 = vmatprep.subr.bf16.mxu0 0
  %2480 = vmatpush1.bf16.msra.mxu0 %v2458
  %2481 = vmatprep.subr.bf16.mxu0 0
  %2482 = vmatpush1.bf16.msra.mxu0 %v2459
  %2483 = vmatprep.subr.bf16.mxu0 0
  %2484 = vmatpush1.bf16.msra.mxu0 %v2460
  %2485 = vmatprep.subr.bf16.mxu0 0
  %2486 = vmatpush1.bf16.msra.mxu0 0
  %2487 = vmatprep.subr.bf16.mxu0 0
  %2488 = vmatpush1.bf16.msra.mxu0 0
  %2489 = vmatprep.subr.bf16.mxu0 0
  %2490 = vmatpush1.bf16.msra.mxu0 0
  %2491 = vmatprep.subr.bf16.mxu0 0
  %2492 = vmatpush1.bf16.msra.mxu0 0
  %2493 = vmatprep.subr.bf16.mxu0 0
  %2494 = vmatpush1.bf16.msra.mxu0 0
  %2495 = vmatprep.subr.bf16.mxu0 0
  %2496 = vmatpush1.bf16.msra.mxu0 0
  %2497 = vmatprep.subr.bf16.mxu0 0
  %2498 = vmatpush1.bf16.msra.mxu0 0
  %2499 = vmatprep.subr.bf16.mxu0 0
  %2500 = vmatpush1.bf16.msra.mxu0 0
  %2501 = vmatprep.mubr.bf16.mxu0 0
  %2502 = vmatmul.mubr.bf16.gmra.mrb[0].mxu0 %v2405
  %v2503 = vpop.f32.mrb[0].mxu0
  %v2504 = vadd.f32 0.0, %v2503
  %v2505 = vpop.f32.mrb[0].mxu0
  %v2506 = vpop.f32.mrb[0].mxu0
  %v2507 = vadd.f32 0.0, %v2506
  %v2508 = vpop.f32.mrb[0].mxu0
  %2509 = vmatprep.mubr.bf16.mxu0 0
  %2510 = vmatmul.mubr.bf16.gmra.mrb[0].mxu0 %v2406
  %v2511 = vpop.f32.mrb[0].mxu0
  %v2512 = vadd.f32 0.0, %v2511
  %v2513 = vpop.f32.mrb[0].mxu0
  %v2514 = vpop.f32.mrb[0].mxu0
  %v2515 = vadd.f32 0.0, %v2514
  %v2516 = vpop.f32.mrb[0].mxu0
  %2517 = vmatprep.mubr.bf16.mxu0 0
  %2518 = vmatmul.mubr.bf16.gmra.mrb[0].mxu0 %v2407
  %v2519 = vpop.f32.mrb[0].mxu0
  %v2520 = vadd.f32 0.0, %v2519
  %v2521 = vpop.f32.mrb[0].mxu0
  %v2522 = vpop.f32.mrb[0].mxu0
  %v2523 = vadd.f32 0.0, %v2522
  %v2524 = vpop.f32.mrb[0].mxu0
  %2525 = vmatprep.mubr.bf16.mxu0 0
  %2526 = vmatmul.mubr.bf16.gmra.mrb[0].mxu0 %v2408
  %v2527 = vpop.f32.mrb[0].mxu0
  %v2528 = vadd.f32 0.0, %v2527
  %v2529 = vpop.f32.mrb[0].mxu0
  %v2530 = vpop.f32.mrb[0].mxu0
  %v2531 = vadd.f32 0.0, %v2530
  %v2532 = vpop.f32.mrb[0].mxu0
  %2533 = vmatprep.mubr.bf16.mxu0 0
  %2534 = vmatmul.mubr.bf16.gmra.mrb[0].mxu0 %v2409
  %v2535 = vpop.f32.mrb[0].mxu0
  %v2536 = vadd.f32 0.0, %v2535
  %v2537 = vpop.f32.mrb[0].mxu0
  %v2538 = vpop.f32.mrb[0].mxu0
  %v2539 = vadd.f32 0.0, %v2538
  %v2540 = vpop.f32.mrb[0].mxu0
  %2541 = vmatprep.mubr.bf16.mxu0 0
  %2542 = vmatmul.mubr.bf16.gmra.mrb[0].mxu0 %v2410
  %v2543 = vpop.f32.mrb[0].mxu0
  %v2544 = vadd.f32 0.0, %v2543
  %v2545 = vpop.f32.mrb[0].mxu0
  %v2546 = vpop.f32.mrb[0].mxu0
  %v2547 = vadd.f32 0.0, %v2546
  %v2548 = vpop.f32.mrb[0].mxu0
  %2549 = vmatprep.mubr.bf16.mxu0 0
  %2550 = vmatmul.mubr.bf16.gmra.mrb[0].mxu0 %v2411
  %v2551 = vpop.f32.mrb[0].mxu0
  %v2552 = vadd.f32 0.0, %v2551
  %v2553 = vpop.f32.mrb[0].mxu0
  %v2554 = vpop.f32.mrb[0].mxu0
  %v2555 = vadd.f32 0.0, %v2554
  %v2556 = vpop.f32.mrb[0].mxu0
  %2557 = vmatprep.mubr.bf16.mxu0 0
  %2558 = vmatmul.mubr.bf16.gmra.mrb[0].mxu0 %v2412
  %v2559 = vpop.f32.mrb[0].mxu0
  %v2560 = vadd.f32 0.0, %v2559
  %v2561 = vpop.f32.mrb[0].mxu0
  %v2562 = vpop.f32.mrb[0].mxu0
  %v2563 = vadd.f32 0.0, %v2562
  %v2564 = vpop.f32.mrb[0].mxu0
  %2565 = vdwg.mxu0
  %v2566 = vadd.f32 %v2268, %v2504
  %v2567 = vadd.f32 %v2269, %v2507
  %v2568 = vadd.f32 %v2270, %v2512
  %v2569 = vadd.f32 %v2271, %v2515
  %v2570 = vadd.f32 %v2272, %v2520
  %v2571 = vadd.f32 %v2273, %v2523
  %v2572 = vadd.f32 %v2274, %v2528
  %v2573 = vadd.f32 %v2275, %v2531
  %v2574 = vadd.f32 %v2276, %v2536
  %v2575 = vadd.f32 %v2277, %v2539
  %v2576 = vadd.f32 %v2278, %v2544
  %v2577 = vadd.f32 %v2279, %v2547
  %v2578 = vadd.f32 %v2280, %v2552
  %v2579 = vadd.f32 %v2281, %v2555
  %v2580 = vadd.f32 %v2282, %v2560
  %v2581 = vadd.f32 %v2283, %v2563
  %s2582 = scalar_lea.vmem [#allocation2], 24
  %v2583 = vld [vmem:[%s2582] sm:$0xf]
  %v2584 = vld [vmem:[%s2582 + $0x4] sm:$0xf]
  %v2585 = vld [vmem:[%s2582 + $0xc] sm:$0xf]
  %v2586 = vld [vmem:[%s2582 + $0x10] sm:$0xf]
  %v2587 = vld [vmem:[%s2582 + $0x18] sm:$0xf]
  %v2588 = vld [vmem:[%s2582 + $0x1c] sm:$0xf]
  %v2589 = vld [vmem:[%s2582 + $0x24] sm:$0xf]
  %v2590 = vld [vmem:[%s2582 + $0x28] sm:$0xf]
  %v2591 = vld [vmem:[%s2582 + $0x30] sm:$0xf]
  %v2592 = vld [vmem:[%s2582 + $0x34] sm:$0xf]
  %v2593 = vld [vmem:[%s2582 + $0x3c] sm:$0xf]
  %v2594 = vld [vmem:[%s2582 + $0x40] sm:$0xf]
  %v2595 = vld [vmem:[%s2582 + $0x48] sm:$0xf]
  %v2596 = vld [vmem:[%s2582 + $0x4c] sm:$0xf]
  %v2597 = vld [vmem:[%s2582 + $0x54] sm:$0xf]
  %v2598 = vld [vmem:[%s2582 + $0x58] sm:$0xf]
  %s2599 = scalar_lea.vmem %s1, 384
  %v2600 = vld [vmem:[%s2599] sm:$0xf]
  %v2601 = vld [vmem:[%s2599 + $0x4] sm:$0xf]
  %v2602 = vld [vmem:[%s2599 + $0x8] sm:$0xf]
  %v2603 = vld [vmem:[%s2599 + $0xc] sm:$0xf]
  %v2604 = vld [vmem:[%s2599 + $0x10] sm:$0xf]
  %v2605 = vld [vmem:[%s2599 + $0x14] sm:$0xf]
  %v2606 = vld [vmem:[%s2599 + $0x18] sm:$0xf]
  %v2607 = vld [vmem:[%s2599 + $0x1c] sm:$0xf]
  %v2608 = vld [vmem:[%s2599 + $0x20] sm:$0xf]
  %v2609 = vld [vmem:[%s2599 + $0x24] sm:$0xf]
  %v2610 = vld [vmem:[%s2599 + $0x28] sm:$0xf]
  %v2611 = vld [vmem:[%s2599 + $0x2c] sm:$0xf]
  %v2612 = vld [vmem:[%s2599 + $0x30] sm:$0xf]
  %v2613 = vld [vmem:[%s2599 + $0x34] sm:$0xf]
  %v2614 = vld [vmem:[%s2599 + $0x38] sm:$0xf]
  %v2615 = vld [vmem:[%s2599 + $0x3c] sm:$0xf]
  %v2632 = vunpack.c.l.b16 %v2583
  %v2633 = vunpack.c.l.b16 %v2584
  %v2634 = vunpack.c.l.b16 %v2585
  %v2635 = vunpack.c.l.b16 %v2586
  %v2636 = vunpack.c.l.b16 %v2587
  %v2637 = vunpack.c.l.b16 %v2588
  %v2638 = vunpack.c.l.b16 %v2589
  %v2639 = vunpack.c.l.b16 %v2590
  %v2640 = vunpack.c.l.b16 %v2591
  %v2641 = vunpack.c.l.b16 %v2592
  %v2642 = vunpack.c.l.b16 %v2593
  %v2643 = vunpack.c.l.b16 %v2594
  %v2644 = vunpack.c.l.b16 %v2595
  %v2645 = vunpack.c.l.b16 %v2596
  %v2646 = vunpack.c.l.b16 %v2597
  %v2647 = vunpack.c.l.b16 %v2598
  %v2648 = vpack.c.b16 %v2633, %v2632
  %v2649 = vpack.c.b16 %v2635, %v2634
  %v2650 = vpack.c.b16 %v2637, %v2636
  %v2651 = vpack.c.b16 %v2639, %v2638
  %v2652 = vpack.c.b16 %v2641, %v2640
  %v2653 = vpack.c.b16 %v2643, %v2642
  %v2654 = vpack.c.b16 %v2645, %v2644
  %v2655 = vpack.c.b16 %v2647, %v2646
  %v2680 = vunpack.c.l.b16 %v2600
  %v2681 = vunpack.c.l.b16 %v2601
  %v2682 = vunpack.c.l.b16 %v2602
  %v2683 = vunpack.c.l.b16 %v2603
  %v2684 = vunpack.c.l.b16 %v2604
  %v2685 = vunpack.c.l.b16 %v2605
  %v2686 = vunpack.c.l.b16 %v2606
  %v2687 = vunpack.c.l.b16 %v2607
  %v2688 = vunpack.c.l.b16 %v2608
  %v2689 = vunpack.c.l.b16 %v2609
  %v2690 = vunpack.c.l.b16 %v2610
  %v2691 = vunpack.c.l.b16 %v2611
  %v2692 = vunpack.c.l.b16 %v2612
  %v2693 = vunpack.c.l.b16 %v2613
  %v2694 = vunpack.c.l.b16 %v2614
  %v2695 = vunpack.c.l.b16 %v2615
  %v2696 = vpack.c.b16 %v2681, %v2680
  %v2697 = vpack.c.b16 %v2683, %v2682
  %v2698 = vpack.c.b16 %v2685, %v2684
  %v2699 = vpack.c.b16 %v2687, %v2686
  %v2700 = vpack.c.b16 %v2689, %v2688
  %v2701 = vpack.c.b16 %v2691, %v2690
  %v2702 = vpack.c.b16 %v2693, %v2692
  %v2703 = vpack.c.b16 %v2695, %v2694
  %2712 = vmatprep.subr.bf16.mxu0 0
  %2713 = vmatpush1.bf16.msra.mxu0 %v2696
  %2714 = vmatprep.subr.bf16.mxu0 0
  %2715 = vmatpush1.bf16.msra.mxu0 %v2697
  %2716 = vmatprep.subr.bf16.mxu0 0
  %2717 = vmatpush1.bf16.msra.mxu0 %v2698
  %2718 = vmatprep.subr.bf16.mxu0 0
  %2719 = vmatpush1.bf16.msra.mxu0 %v2699
  %2720 = vmatprep.subr.bf16.mxu0 0
  %2721 = vmatpush1.bf16.msra.mxu0 %v2700
  %2722 = vmatprep.subr.bf16.mxu0 0
  %2723 = vmatpush1.bf16.msra.mxu0 %v2701
  %2724 = vmatprep.subr.bf16.mxu0 0
  %2725 = vmatpush1.bf16.msra.mxu0 %v2702
  %2726 = vmatprep.subr.bf16.mxu0 0
  %2727 = vmatpush1.bf16.msra.mxu0 %v2703
  %2728 = vmatprep.subr.bf16.mxu0 0
  %2729 = vmatpush1.bf16.msra.mxu0 0
  %2730 = vmatprep.subr.bf16.mxu0 0
  %2731 = vmatpush1.bf16.msra.mxu0 0
  %2732 = vmatprep.subr.bf16.mxu0 0
  %2733 = vmatpush1.bf16.msra.mxu0 0
  %2734 = vmatprep.subr.bf16.mxu0 0
  %2735 = vmatpush1.bf16.msra.mxu0 0
  %2736 = vmatprep.subr.bf16.mxu0 0
  %2737 = vmatpush1.bf16.msra.mxu0 0
  %2738 = vmatprep.subr.bf16.mxu0 0
  %2739 = vmatpush1.bf16.msra.mxu0 0
  %2740 = vmatprep.subr.bf16.mxu0 0
  %2741 = vmatpush1.bf16.msra.mxu0 0
  %2742 = vmatprep.subr.bf16.mxu0 0
  %2743 = vmatpush1.bf16.msra.mxu0 0
  %2744 = vmatprep.mubr.bf16.mxu0 0
  %2745 = vmatmul.mubr.bf16.gmra.mrb[0].mxu0 %v2648
  %v2746 = vpop.f32.mrb[0].mxu0
  %v2747 = vadd.f32 0.0, %v2746
  %v2748 = vpop.f32.mrb[0].mxu0
  %v2749 = vpop.f32.mrb[0].mxu0
  %v2750 = vadd.f32 0.0, %v2749
  %v2751 = vpop.f32.mrb[0].mxu0
  %2752 = vmatprep.mubr.bf16.mxu0 0
  %2753 = vmatmul.mubr.bf16.gmra.mrb[0].mxu0 %v2649
  %v2754 = vpop.f32.mrb[0].mxu0
  %v2755 = vadd.f32 0.0, %v2754
  %v2756 = vpop.f32.mrb[0].mxu0
  %v2757 = vpop.f32.mrb[0].mxu0
  %v2758 = vadd.f32 0.0, %v2757
  %v2759 = vpop.f32.mrb[0].mxu0
  %2760 = vmatprep.mubr.bf16.mxu0 0
  %2761 = vmatmul.mubr.bf16.gmra.mrb[0].mxu0 %v2650
  %v2762 = vpop.f32.mrb[0].mxu0
  %v2763 = vadd.f32 0.0, %v2762
  %v2764 = vpop.f32.mrb[0].mxu0
  %v2765 = vpop.f32.mrb[0].mxu0
  %v2766 = vadd.f32 0.0, %v2765
  %v2767 = vpop.f32.mrb[0].mxu0
  %2768 = vmatprep.mubr.bf16.mxu0 0
  %2769 = vmatmul.mubr.bf16.gmra.mrb[0].mxu0 %v2651
  %v2770 = vpop.f32.mrb[0].mxu0
  %v2771 = vadd.f32 0.0, %v2770
  %v2772 = vpop.f32.mrb[0].mxu0
  %v2773 = vpop.f32.mrb[0].mxu0
  %v2774 = vadd.f32 0.0, %v2773
  %v2775 = vpop.f32.mrb[0].mxu0
  %2776 = vmatprep.mubr.bf16.mxu0 0
  %2777 = vmatmul.mubr.bf16.gmra.mrb[0].mxu0 %v2652
  %v2778 = vpop.f32.mrb[0].mxu0
  %v2779 = vadd.f32 0.0, %v2778
  %v2780 = vpop.f32.mrb[0].mxu0
  %v2781 = vpop.f32.mrb[0].mxu0
  %v2782 = vadd.f32 0.0, %v2781
  %v2783 = vpop.f32.mrb[0].mxu0
  %2784 = vmatprep.mubr.bf16.mxu0 0
  %2785 = vmatmul.mubr.bf16.gmra.mrb[0].mxu0 %v2653
  %v2786 = vpop.f32.mrb[0].mxu0
  %v2787 = vadd.f32 0.0, %v2786
  %v2788 = vpop.f32.mrb[0].mxu0
  %v2789 = vpop.f32.mrb[0].mxu0
  %v2790 = vadd.f32 0.0, %v2789
  %v2791 = vpop.f32.mrb[0].mxu0
  %2792 = vmatprep.mubr.bf16.mxu0 0
  %2793 = vmatmul.mubr.bf16.gmra.mrb[0].mxu0 %v2654
  %v2794 = vpop.f32.mrb[0].mxu0
  %v2795 = vadd.f32 0.0, %v2794
  %v2796 = vpop.f32.mrb[0].mxu0
  %v2797 = vpop.f32.mrb[0].mxu0
  %v2798 = vadd.f32 0.0, %v2797
  %v2799 = vpop.f32.mrb[0].mxu0
  %2800 = vmatprep.mubr.bf16.mxu0 0
  %2801 = vmatmul.mubr.bf16.gmra.mrb[0].mxu0 %v2655
  %v2802 = vpop.f32.mrb[0].mxu0
  %v2803 = vadd.f32 0.0, %v2802
  %v2804 = vpop.f32.mrb[0].mxu0
  %v2805 = vpop.f32.mrb[0].mxu0
  %v2806 = vadd.f32 0.0, %v2805
  %v2807 = vpop.f32.mrb[0].mxu0
  %2808 = vdwg.mxu0
  %v2809 = vadd.f32 %v2566, %v2747
  %v2810 = vadd.f32 %v2567, %v2750
  %v2811 = vadd.f32 %v2568, %v2755
  %v2812 = vadd.f32 %v2569, %v2758
  %v2813 = vadd.f32 %v2570, %v2763
  %v2814 = vadd.f32 %v2571, %v2766
  %v2815 = vadd.f32 %v2572, %v2771
  %v2816 = vadd.f32 %v2573, %v2774
  %v2817 = vadd.f32 %v2574, %v2779
  %v2818 = vadd.f32 %v2575, %v2782
  %v2819 = vadd.f32 %v2576, %v2787
  %v2820 = vadd.f32 %v2577, %v2790
  %v2821 = vadd.f32 %v2578, %v2795
  %v2822 = vadd.f32 %v2579, %v2798
  %v2823 = vadd.f32 %v2580, %v2803
  %v2824 = vadd.f32 %v2581, %v2806
  %v2825 = vld [vmem:[%s2582] sm:$0xf]
  %v2826 = vld [vmem:[%s2582 + $0x4] sm:$0xf]
  %v2827 = vld [vmem:[%s2582 + $0x8] sm:$0x1]
  %v2828 = vld [vmem:[%s2582 + $0xc] sm:$0xf]
  %v2829 = vld [vmem:[%s2582 + $0x10] sm:$0xf]
  %v2830 = vld [vmem:[%s2582 + $0x14] sm:$0x1]
  %v2831 = vld [vmem:[%s2582 + $0x18] sm:$0xf]
  %v2832 = vld [vmem:[%s2582 + $0x1c] sm:$0xf]
  %v2833 = vld [vmem:[%s2582 + $0x20] sm:$0x1]
  %v2834 = vld [vmem:[%s2582 + $0x24] sm:$0xf]
  %v2835 = vld [vmem:[%s2582 + $0x28] sm:$0xf]
  %v2836 = vld [vmem:[%s2582 + $0x2c] sm:$0x1]
  %v2837 = vld [vmem:[%s2582 + $0x30] sm:$0xf]
  %v2838 = vld [vmem:[%s2582 + $0x34] sm:$0xf]
  %v2839 = vld [vmem:[%s2582 + $0x38] sm:$0x1]
  %v2840 = vld [vmem:[%s2582 + $0x3c] sm:$0xf]
  %v2841 = vld [vmem:[%s2582 + $0x40] sm:$0xf]
  %v2842 = vld [vmem:[%s2582 + $0x44] sm:$0x1]
  %v2843 = vld [vmem:[%s2582 + $0x48] sm:$0xf]
  %v2844 = vld [vmem:[%s2582 + $0x4c] sm:$0xf]
  %v2845 = vld [vmem:[%s2582 + $0x50] sm:$0x1]
  %v2846 = vld [vmem:[%s2582 + $0x54] sm:$0xf]
  %v2847 = vld [vmem:[%s2582 + $0x58] sm:$0xf]
  %v2848 = vld [vmem:[%s2582 + $0x5c] sm:$0x1]
  %v2850 = vshrl.u32 %v2825, 16
  %v2852 = vrot.slane %v2850, 4
  %v2853 = vshll.u32 %v2825, 16
  %v2855 = vrot.slane %v2853, 5
  %v2856 = vor.u32 %v2852, %v2855
  %v2857 = vrot.slane %v2856, 4
  %v2859 = vshll.u32 %v2826, 16
  %v2861 = vrot.slane %v2859, 5
  %v2862 = vsel %vm743, %v2857, %v2861
  %v2863 = vshrl.u32 %v2826, 16
  %v2865 = vrot.slane %v2863, 4
  %v2866 = vor.u32 %v2865, %v2861
  %v2867 = vrot.slane %v2866, 4
  %v2869 = vshll.u32 %v2827, 16
  %v2871 = vrot.slane %v2869, 5
  %v2872 = vsel %vm743, %v2867, %v2871
  %v2874 = vshrl.u32 %v2828, 16
  %v2876 = vrot.slane %v2874, 4
  %v2877 = vshll.u32 %v2828, 16
  %v2879 = vrot.slane %v2877, 5
  %v2880 = vor.u32 %v2876, %v2879
  %v2881 = vrot.slane %v2880, 4
  %v2883 = vshll.u32 %v2829, 16
  %v2885 = vrot.slane %v2883, 5
  %v2886 = vsel %vm743, %v2881, %v2885
  %v2887 = vshrl.u32 %v2829, 16
  %v2889 = vrot.slane %v2887, 4
  %v2890 = vor.u32 %v2889, %v2885
  %v2891 = vrot.slane %v2890, 4
  %v2893 = vshll.u32 %v2830, 16
  %v2895 = vrot.slane %v2893, 5
  %v2896 = vsel %vm743, %v2891, %v2895
  %v2898 = vshrl.u32 %v2831, 16
  %v2900 = vrot.slane %v2898, 4
  %v2901 = vshll.u32 %v2831, 16
  %v2903 = vrot.slane %v2901, 5
  %v2904 = vor.u32 %v2900, %v2903
  %v2905 = vrot.slane %v2904, 4
  %v2907 = vshll.u32 %v2832, 16
  %v2909 = vrot.slane %v2907, 5
  %v2910 = vsel %vm743, %v2905, %v2909
  %v2911 = vshrl.u32 %v2832, 16
  %v2913 = vrot.slane %v2911, 4
  %v2914 = vor.u32 %v2913, %v2909
  %v2915 = vrot.slane %v2914, 4
  %v2917 = vshll.u32 %v2833, 16
  %v2919 = vrot.slane %v2917, 5
  %v2920 = vsel %vm743, %v2915, %v2919
  %v2922 = vshrl.u32 %v2834, 16
  %v2924 = vrot.slane %v2922, 4
  %v2925 = vshll.u32 %v2834, 16
  %v2927 = vrot.slane %v2925, 5
  %v2928 = vor.u32 %v2924, %v2927
  %v2929 = vrot.slane %v2928, 4
  %v2931 = vshll.u32 %v2835, 16
  %v2933 = vrot.slane %v2931, 5
  %v2934 = vsel %vm743, %v2929, %v2933
  %v2935 = vshrl.u32 %v2835, 16
  %v2937 = vrot.slane %v2935, 4
  %v2938 = vor.u32 %v2937, %v2933
  %v2939 = vrot.slane %v2938, 4
  %v2941 = vshll.u32 %v2836, 16
  %v2943 = vrot.slane %v2941, 5
  %v2944 = vsel %vm743, %v2939, %v2943
  %v2946 = vshrl.u32 %v2837, 16
  %v2948 = vrot.slane %v2946, 4
  %v2949 = vshll.u32 %v2837, 16
  %v2951 = vrot.slane %v2949, 5
  %v2952 = vor.u32 %v2948, %v2951
  %v2953 = vrot.slane %v2952, 4
  %v2955 = vshll.u32 %v2838, 16
  %v2957 = vrot.slane %v2955, 5
  %v2958 = vsel %vm743, %v2953, %v2957
  %v2959 = vshrl.u32 %v2838, 16
  %v2961 = vrot.slane %v2959, 4
  %v2962 = vor.u32 %v2961, %v2957
  %v2963 = vrot.slane %v2962, 4
  %v2965 = vshll.u32 %v2839, 16
  %v2967 = vrot.slane %v2965, 5
  %v2968 = vsel %vm743, %v2963, %v2967
  %v2970 = vshrl.u32 %v2840, 16
  %v2972 = vrot.slane %v2970, 4
  %v2973 = vshll.u32 %v2840, 16
  %v2975 = vrot.slane %v2973, 5
  %v2976 = vor.u32 %v2972, %v2975
  %v2977 = vrot.slane %v2976, 4
  %v2979 = vshll.u32 %v2841, 16
  %v2981 = vrot.slane %v2979, 5
  %v2982 = vsel %vm743, %v2977, %v2981
  %v2983 = vshrl.u32 %v2841, 16
  %v2985 = vrot.slane %v2983, 4
  %v2986 = vor.u32 %v2985, %v2981
  %v2987 = vrot.slane %v2986, 4
  %v2989 = vshll.u32 %v2842, 16
  %v2991 = vrot.slane %v2989, 5
  %v2992 = vsel %vm743, %v2987, %v2991
  %v2994 = vshrl.u32 %v2843, 16
  %v2996 = vrot.slane %v2994, 4
  %v2997 = vshll.u32 %v2843, 16
  %v2999 = vrot.slane %v2997, 5
  %v3000 = vor.u32 %v2996, %v2999
  %v3001 = vrot.slane %v3000, 4
  %v3003 = vshll.u32 %v2844, 16
  %v3005 = vrot.slane %v3003, 5
  %v3006 = vsel %vm743, %v3001, %v3005
  %v3007 = vshrl.u32 %v2844, 16
  %v3009 = vrot.slane %v3007, 4
  %v3010 = vor.u32 %v3009, %v3005
  %v3011 = vrot.slane %v3010, 4
  %v3013 = vshll.u32 %v2845, 16
  %v3015 = vrot.slane %v3013, 5
  %v3016 = vsel %vm743, %v3011, %v3015
  %v3018 = vshrl.u32 %v2846, 16
  %v3020 = vrot.slane %v3018, 4
  %v3021 = vshll.u32 %v2846, 16
  %v3023 = vrot.slane %v3021, 5
  %v3024 = vor.u32 %v3020, %v3023
  %v3025 = vrot.slane %v3024, 4
  %v3027 = vshll.u32 %v2847, 16
  %v3029 = vrot.slane %v3027, 5
  %v3030 = vsel %vm743, %v3025, %v3029
  %v3031 = vshrl.u32 %v2847, 16
  %v3033 = vrot.slane %v3031, 4
  %v3034 = vor.u32 %v3033, %v3029
  %v3035 = vrot.slane %v3034, 4
  %v3037 = vshll.u32 %v2848, 16
  %v3039 = vrot.slane %v3037, 5
  %v3040 = vsel %vm743, %v3035, %v3039
  %s3041 = scalar_lea.vmem %s1, 448
  %v3042 = vld [vmem:[%s3041] sm:$0xf]
  %v3043 = vld [vmem:[%s3041 + $0x4] sm:$0xf]
  %v3044 = vld [vmem:[%s3041 + $0x8] sm:$0xf]
  %v3045 = vld [vmem:[%s3041 + $0xc] sm:$0xf]
  %v3046 = vld [vmem:[%s3041 + $0x10] sm:$0xf]
  %v3047 = vld [vmem:[%s3041 + $0x14] sm:$0xf]
  %v3048 = vld [vmem:[%s3041 + $0x18] sm:$0xf]
  %v3049 = vld [vmem:[%s3041 + $0x1c] sm:$0xf]
  %v3050 = vld [vmem:[%s3041 + $0x20] sm:$0xf]
  %v3051 = vld [vmem:[%s3041 + $0x24] sm:$0xf]
  %v3052 = vld [vmem:[%s3041 + $0x28] sm:$0xf]
  %v3053 = vld [vmem:[%s3041 + $0x2c] sm:$0xf]
  %v3054 = vld [vmem:[%s3041 + $0x30] sm:$0xf]
  %v3055 = vld [vmem:[%s3041 + $0x34] sm:$0xf]
  %v3056 = vld [vmem:[%s3041 + $0x38] sm:$0xf]
  %v3057 = vld [vmem:[%s3041 + $0x3c] sm:$0xf]
  %v3058 = vunpack.c.l.b16 %v2862
  %v3059 = vunpack.c.l.b16 %v2872
  %v3060 = vunpack.c.l.b16 %v2886
  %v3061 = vunpack.c.l.b16 %v2896
  %v3062 = vunpack.c.l.b16 %v2910
  %v3063 = vunpack.c.l.b16 %v2920
  %v3064 = vunpack.c.l.b16 %v2934
  %v3065 = vunpack.c.l.b16 %v2944
  %v3066 = vunpack.c.l.b16 %v2958
  %v3067 = vunpack.c.l.b16 %v2968
  %v3068 = vunpack.c.l.b16 %v2982
  %v3069 = vunpack.c.l.b16 %v2992
  %v3070 = vunpack.c.l.b16 %v3006
  %v3071 = vunpack.c.l.b16 %v3016
  %v3072 = vunpack.c.l.b16 %v3030
  %v3073 = vunpack.c.l.b16 %v3040
  %v3074 = vpack.c.b16 %v3059, %v3058
  %v3075 = vpack.c.b16 %v3061, %v3060
  %v3076 = vpack.c.b16 %v3063, %v3062
  %v3077 = vpack.c.b16 %v3065, %v3064
  %v3078 = vpack.c.b16 %v3067, %v3066
  %v3079 = vpack.c.b16 %v3069, %v3068
  %v3080 = vpack.c.b16 %v3071, %v3070
  %v3081 = vpack.c.b16 %v3073, %v3072
  %v3106 = vunpack.c.l.b16 %v3042
  %v3107 = vunpack.c.l.b16 %v3043
  %v3108 = vunpack.c.l.b16 %v3044
  %v3109 = vunpack.c.l.b16 %v3045
  %v3110 = vunpack.c.l.b16 %v3046
  %v3111 = vunpack.c.l.b16 %v3047
  %v3112 = vunpack.c.l.b16 %v3048
  %v3113 = vunpack.c.l.b16 %v3049
  %v3114 = vunpack.c.l.b16 %v3050
  %v3115 = vunpack.c.l.b16 %v3051
  %v3116 = vunpack.c.l.b16 %v3052
  %v3117 = vunpack.c.l.b16 %v3053
  %v3118 = vunpack.c.l.b16 %v3054
  %v3119 = vunpack.c.l.b16 %v3055
  %v3120 = vunpack.c.l.b16 %v3056
  %v3121 = vunpack.c.l.b16 %v3057
  %v3122 = vpack.c.b16 %v3107, %v3106
  %v3123 = vpack.c.b16 %v3109, %v3108
  %v3124 = vpack.c.b16 %v3111, %v3110
  %v3125 = vpack.c.b16 %v3113, %v3112
  %v3126 = vpack.c.b16 %v3115, %v3114
  %v3127 = vpack.c.b16 %v3117, %v3116
  %v3128 = vpack.c.b16 %v3119, %v3118
  %v3129 = vpack.c.b16 %v3121, %v3120
  %3138 = vmatprep.subr.bf16.mxu0 0
  %3139 = vmatpush1.bf16.msra.mxu0 %v3122
  %3140 = vmatprep.subr.bf16.mxu0 0
  %3141 = vmatpush1.bf16.msra.mxu0 %v3123
  %3142 = vmatprep.subr.bf16.mxu0 0
  %3143 = vmatpush1.bf16.msra.mxu0 %v3124
  %3144 = vmatprep.subr.bf16.mxu0 0
  %3145 = vmatpush1.bf16.msra.mxu0 %v3125
  %3146 = vmatprep.subr.bf16.mxu0 0
  %3147 = vmatpush1.bf16.msra.mxu0 %v3126
  %3148 = vmatprep.subr.bf16.mxu0 0
  %3149 = vmatpush1.bf16.msra.mxu0 %v3127
  %3150 = vmatprep.subr.bf16.mxu0 0
  %3151 = vmatpush1.bf16.msra.mxu0 %v3128
  %3152 = vmatprep.subr.bf16.mxu0 0
  %3153 = vmatpush1.bf16.msra.mxu0 %v3129
  %3154 = vmatprep.subr.bf16.mxu0 0
  %3155 = vmatpush1.bf16.msra.mxu0 0
  %3156 = vmatprep.subr.bf16.mxu0 0
  %3157 = vmatpush1.bf16.msra.mxu0 0
  %3158 = vmatprep.subr.bf16.mxu0 0
  %3159 = vmatpush1.bf16.msra.mxu0 0
  %3160 = vmatprep.subr.bf16.mxu0 0
  %3161 = vmatpush1.bf16.msra.mxu0 0
  %3162 = vmatprep.subr.bf16.mxu0 0
  %3163 = vmatpush1.bf16.msra.mxu0 0
  %3164 = vmatprep.subr.bf16.mxu0 0
  %3165 = vmatpush1.bf16.msra.mxu0 0
  %3166 = vmatprep.subr.bf16.mxu0 0
  %3167 = vmatpush1.bf16.msra.mxu0 0
  %3168 = vmatprep.subr.bf16.mxu0 0
  %3169 = vmatpush1.bf16.msra.mxu0 0
  %3170 = vmatprep.mubr.bf16.mxu0 0
  %3171 = vmatmul.mubr.bf16.gmra.mrb[0].mxu0 %v3074
  %v3172 = vpop.f32.mrb[0].mxu0
  %v3173 = vadd.f32 0.0, %v3172
  %v3174 = vpop.f32.mrb[0].mxu0
  %v3175 = vpop.f32.mrb[0].mxu0
  %v3176 = vadd.f32 0.0, %v3175
  %v3177 = vpop.f32.mrb[0].mxu0
  %3178 = vmatprep.mubr.bf16.mxu0 0
  %3179 = vmatmul.mubr.bf16.gmra.mrb[0].mxu0 %v3075
  %v3180 = vpop.f32.mrb[0].mxu0
  %v3181 = vadd.f32 0.0, %v3180
  %v3182 = vpop.f32.mrb[0].mxu0
  %v3183 = vpop.f32.mrb[0].mxu0
  %v3184 = vadd.f32 0.0, %v3183
  %v3185 = vpop.f32.mrb[0].mxu0
  %3186 = vmatprep.mubr.bf16.mxu0 0
  %3187 = vmatmul.mubr.bf16.gmra.mrb[0].mxu0 %v3076
  %v3188 = vpop.f32.mrb[0].mxu0
  %v3189 = vadd.f32 0.0, %v3188
  %v3190 = vpop.f32.mrb[0].mxu0
  %v3191 = vpop.f32.mrb[0].mxu0
  %v3192 = vadd.f32 0.0, %v3191
  %v3193 = vpop.f32.mrb[0].mxu0
  %3194 = vmatprep.mubr.bf16.mxu0 0
  %3195 = vmatmul.mubr.bf16.gmra.mrb[0].mxu0 %v3077
  %v3196 = vpop.f32.mrb[0].mxu0
  %v3197 = vadd.f32 0.0, %v3196
  %v3198 = vpop.f32.mrb[0].mxu0
  %v3199 = vpop.f32.mrb[0].mxu0
  %v3200 = vadd.f32 0.0, %v3199
  %v3201 = vpop.f32.mrb[0].mxu0
  %3202 = vmatprep.mubr.bf16.mxu0 0
  %3203 = vmatmul.mubr.bf16.gmra.mrb[0].mxu0 %v3078
  %v3204 = vpop.f32.mrb[0].mxu0
  %v3205 = vadd.f32 0.0, %v3204
  %v3206 = vpop.f32.mrb[0].mxu0
  %v3207 = vpop.f32.mrb[0].mxu0
  %v3208 = vadd.f32 0.0, %v3207
  %v3209 = vpop.f32.mrb[0].mxu0
  %3210 = vmatprep.mubr.bf16.mxu0 0
  %3211 = vmatmul.mubr.bf16.gmra.mrb[0].mxu0 %v3079
  %v3212 = vpop.f32.mrb[0].mxu0
  %v3213 = vadd.f32 0.0, %v3212
  %v3214 = vpop.f32.mrb[0].mxu0
  %v3215 = vpop.f32.mrb[0].mxu0
  %v3216 = vadd.f32 0.0, %v3215
  %v3217 = vpop.f32.mrb[0].mxu0
  %3218 = vmatprep.mubr.bf16.mxu0 0
  %3219 = vmatmul.mubr.bf16.gmra.mrb[0].mxu0 %v3080
  %v3220 = vpop.f32.mrb[0].mxu0
  %v3221 = vadd.f32 0.0, %v3220
  %v3222 = vpop.f32.mrb[0].mxu0
  %v3223 = vpop.f32.mrb[0].mxu0
  %v3224 = vadd.f32 0.0, %v3223
  %v3225 = vpop.f32.mrb[0].mxu0
  %3226 = vmatprep.mubr.bf16.mxu0 0
  %3227 = vmatmul.mubr.bf16.gmra.mrb[0].mxu0 %v3081
  %v3228 = vpop.f32.mrb[0].mxu0
  %v3229 = vadd.f32 0.0, %v3228
  %v3230 = vpop.f32.mrb[0].mxu0
  %v3231 = vpop.f32.mrb[0].mxu0
  %v3232 = vadd.f32 0.0, %v3231
  %v3233 = vpop.f32.mrb[0].mxu0
  %3234 = vdwg.mxu0
  %v3235 = vadd.f32 %v2809, %v3173
  %v3236 = vadd.f32 %v2810, %v3176
  %v3237 = vadd.f32 %v2811, %v3181
  %v3238 = vadd.f32 %v2812, %v3184
  %v3239 = vadd.f32 %v2813, %v3189
  %v3240 = vadd.f32 %v2814, %v3192
  %v3241 = vadd.f32 %v2815, %v3197
  %v3242 = vadd.f32 %v2816, %v3200
  %v3243 = vadd.f32 %v2817, %v3205
  %v3244 = vadd.f32 %v2818, %v3208
  %v3245 = vadd.f32 %v2819, %v3213
  %v3246 = vadd.f32 %v2820, %v3216
  %v3247 = vadd.f32 %v2821, %v3221
  %v3248 = vadd.f32 %v2822, %v3224
  %v3249 = vadd.f32 %v2823, %v3229
  %v3250 = vadd.f32 %v2824, %v3232
  %v3251 = vld [vmem:[%s2582] sm:$0xe]
  %v3252 = vld [vmem:[%s2582 + $0xc] sm:$0xe]
  %v3253 = vld [vmem:[%s2582 + $0x18] sm:$0xe]
  %v3254 = vld [vmem:[%s2582 + $0x24] sm:$0xe]
  %v3255 = vld [vmem:[%s2582 + $0x30] sm:$0xe]
  %v3256 = vld [vmem:[%s2582 + $0x3c] sm:$0xe]
  %v3257 = vld [vmem:[%s2582 + $0x48] sm:$0xe]
  %v3258 = vld [vmem:[%s2582 + $0x54] sm:$0xe]
  %v3283 = vrot.slane %v3251, 5
  %v3284 = vrot.slane %v3283, 4
  %v3285 = vrot.slane %v2826, 5
  %v3286 = vsel %vm1349, %v3284, %v3285
  %v3287 = vrot.slane %v3285, 4
  %v3288 = vrot.slane %v2827, 5
  %v3289 = vsel %vm1349, %v3287, %v3288
  %v3290 = vrot.slane %v3252, 5
  %v3291 = vrot.slane %v3290, 4
  %v3292 = vrot.slane %v2829, 5
  %v3293 = vsel %vm1349, %v3291, %v3292
  %v3294 = vrot.slane %v3292, 4
  %v3295 = vrot.slane %v2830, 5
  %v3296 = vsel %vm1349, %v3294, %v3295
  %v3297 = vrot.slane %v3253, 5
  %v3298 = vrot.slane %v3297, 4
  %v3299 = vrot.slane %v2832, 5
  %v3300 = vsel %vm1349, %v3298, %v3299
  %v3301 = vrot.slane %v3299, 4
  %v3302 = vrot.slane %v2833, 5
  %v3303 = vsel %vm1349, %v3301, %v3302
  %v3304 = vrot.slane %v3254, 5
  %v3305 = vrot.slane %v3304, 4
  %v3306 = vrot.slane %v2835, 5
  %v3307 = vsel %vm1349, %v3305, %v3306
  %v3308 = vrot.slane %v3306, 4
  %v3309 = vrot.slane %v2836, 5
  %v3310 = vsel %vm1349, %v3308, %v3309
  %v3311 = vrot.slane %v3255, 5
  %v3312 = vrot.slane %v3311, 4
  %v3313 = vrot.slane %v2838, 5
  %v3314 = vsel %vm1349, %v3312, %v3313
  %v3315 = vrot.slane %v3313, 4
  %v3316 = vrot.slane %v2839, 5
  %v3317 = vsel %vm1349, %v3315, %v3316
  %v3318 = vrot.slane %v3256, 5
  %v3319 = vrot.slane %v3318, 4
  %v3320 = vrot.slane %v2841, 5
  %v3321 = vsel %vm1349, %v3319, %v3320
  %v3322 = vrot.slane %v3320, 4
  %v3323 = vrot.slane %v2842, 5
  %v3324 = vsel %vm1349, %v3322, %v3323
  %v3325 = vrot.slane %v3257, 5
  %v3326 = vrot.slane %v3325, 4
  %v3327 = vrot.slane %v2844, 5
  %v3328 = vsel %vm1349, %v3326, %v3327
  %v3329 = vrot.slane %v3327, 4
  %v3330 = vrot.slane %v2845, 5
  %v3331 = vsel %vm1349, %v3329, %v3330
  %v3332 = vrot.slane %v3258, 5
  %v3333 = vrot.slane %v3332, 4
  %v3334 = vrot.slane %v2847, 5
  %v3335 = vsel %vm1349, %v3333, %v3334
  %v3336 = vrot.slane %v3334, 4
  %v3337 = vrot.slane %v2848, 5
  %v3338 = vsel %vm1349, %v3336, %v3337
  %s3339 = scalar_lea.vmem %s1, 512
  %v3340 = vld [vmem:[%s3339] sm:$0xf]
  %v3341 = vld [vmem:[%s3339 + $0x4] sm:$0xf]
  %v3342 = vld [vmem:[%s3339 + $0x8] sm:$0xf]
  %v3343 = vld [vmem:[%s3339 + $0xc] sm:$0xf]
  %v3344 = vld [vmem:[%s3339 + $0x10] sm:$0xf]
  %v3345 = vld [vmem:[%s3339 + $0x14] sm:$0xf]
  %v3346 = vld [vmem:[%s3339 + $0x18] sm:$0xf]
  %v3347 = vld [vmem:[%s3339 + $0x1c] sm:$0xf]
  %v3348 = vld [vmem:[%s3339 + $0x20] sm:$0xf]
  %v3349 = vld [vmem:[%s3339 + $0x24] sm:$0xf]
  %v3350 = vld [vmem:[%s3339 + $0x28] sm:$0xf]
  %v3351 = vld [vmem:[%s3339 + $0x2c] sm:$0xf]
  %v3352 = vld [vmem:[%s3339 + $0x30] sm:$0xf]
  %v3353 = vld [vmem:[%s3339 + $0x34] sm:$0xf]
  %v3354 = vld [vmem:[%s3339 + $0x38] sm:$0xf]
  %v3355 = vld [vmem:[%s3339 + $0x3c] sm:$0xf]
  %v3356 = vunpack.c.l.b16 %v3286
  %v3357 = vunpack.c.l.b16 %v3289
  %v3358 = vunpack.c.l.b16 %v3293
  %v3359 = vunpack.c.l.b16 %v3296
  %v3360 = vunpack.c.l.b16 %v3300
  %v3361 = vunpack.c.l.b16 %v3303
  %v3362 = vunpack.c.l.b16 %v3307
  %v3363 = vunpack.c.l.b16 %v3310
  %v3364 = vunpack.c.l.b16 %v3314
  %v3365 = vunpack.c.l.b16 %v3317
  %v3366 = vunpack.c.l.b16 %v3321
  %v3367 = vunpack.c.l.b16 %v3324
  %v3368 = vunpack.c.l.b16 %v3328
  %v3369 = vunpack.c.l.b16 %v3331
  %v3370 = vunpack.c.l.b16 %v3335
  %v3371 = vunpack.c.l.b16 %v3338
  %v3372 = vpack.c.b16 %v3357, %v3356
  %v3373 = vpack.c.b16 %v3359, %v3358
  %v3374 = vpack.c.b16 %v3361, %v3360
  %v3375 = vpack.c.b16 %v3363, %v3362
  %v3376 = vpack.c.b16 %v3365, %v3364
  %v3377 = vpack.c.b16 %v3367, %v3366
  %v3378 = vpack.c.b16 %v3369, %v3368
  %v3379 = vpack.c.b16 %v3371, %v3370
  %v3404 = vunpack.c.l.b16 %v3340
  %v3405 = vunpack.c.l.b16 %v3341
  %v3406 = vunpack.c.l.b16 %v3342
  %v3407 = vunpack.c.l.b16 %v3343
  %v3408 = vunpack.c.l.b16 %v3344
  %v3409 = vunpack.c.l.b16 %v3345
  %v3410 = vunpack.c.l.b16 %v3346
  %v3411 = vunpack.c.l.b16 %v3347
  %v3412 = vunpack.c.l.b16 %v3348
  %v3413 = vunpack.c.l.b16 %v3349
  %v3414 = vunpack.c.l.b16 %v3350
  %v3415 = vunpack.c.l.b16 %v3351
  %v3416 = vunpack.c.l.b16 %v3352
  %v3417 = vunpack.c.l.b16 %v3353
  %v3418 = vunpack.c.l.b16 %v3354
  %v3419 = vunpack.c.l.b16 %v3355
  %v3420 = vpack.c.b16 %v3405, %v3404
  %v3421 = vpack.c.b16 %v3407, %v3406
  %v3422 = vpack.c.b16 %v3409, %v3408
  %v3423 = vpack.c.b16 %v3411, %v3410
  %v3424 = vpack.c.b16 %v3413, %v3412
  %v3425 = vpack.c.b16 %v3415, %v3414
  %v3426 = vpack.c.b16 %v3417, %v3416
  %v3427 = vpack.c.b16 %v3419, %v3418
  %3436 = vmatprep.subr.bf16.mxu0 0
  %3437 = vmatpush1.bf16.msra.mxu0 %v3420
  %3438 = vmatprep.subr.bf16.mxu0 0
  %3439 = vmatpush1.bf16.msra.mxu0 %v3421
  %3440 = vmatprep.subr.bf16.mxu0 0
  %3441 = vmatpush1.bf16.msra.mxu0 %v3422
  %3442 = vmatprep.subr.bf16.mxu0 0
  %3443 = vmatpush1.bf16.msra.mxu0 %v3423
  %3444 = vmatprep.subr.bf16.mxu0 0
  %3445 = vmatpush1.bf16.msra.mxu0 %v3424
  %3446 = vmatprep.subr.bf16.mxu0 0
  %3447 = vmatpush1.bf16.msra.mxu0 %v3425
  %3448 = vmatprep.subr.bf16.mxu0 0
  %3449 = vmatpush1.bf16.msra.mxu0 %v3426
  %3450 = vmatprep.subr.bf16.mxu0 0
  %3451 = vmatpush1.bf16.msra.mxu0 %v3427
  %3452 = vmatprep.subr.bf16.mxu0 0
  %3453 = vmatpush1.bf16.msra.mxu0 0
  %3454 = vmatprep.subr.bf16.mxu0 0
  %3455 = vmatpush1.bf16.msra.mxu0 0
  %3456 = vmatprep.subr.bf16.mxu0 0
  %3457 = vmatpush1.bf16.msra.mxu0 0
  %3458 = vmatprep.subr.bf16.mxu0 0
  %3459 = vmatpush1.bf16.msra.mxu0 0
  %3460 = vmatprep.subr.bf16.mxu0 0
  %3461 = vmatpush1.bf16.msra.mxu0 0
  %3462 = vmatprep.subr.bf16.mxu0 0
  %3463 = vmatpush1.bf16.msra.mxu0 0
  %3464 = vmatprep.subr.bf16.mxu0 0
  %3465 = vmatpush1.bf16.msra.mxu0 0
  %3466 = vmatprep.subr.bf16.mxu0 0
  %3467 = vmatpush1.bf16.msra.mxu0 0
  %3468 = vmatprep.mubr.bf16.mxu0 0
  %3469 = vmatmul.mubr.bf16.gmra.mrb[0].mxu0 %v3372
  %v3470 = vpop.f32.mrb[0].mxu0
  %v3471 = vadd.f32 0.0, %v3470
  %v3472 = vpop.f32.mrb[0].mxu0
  %v3473 = vpop.f32.mrb[0].mxu0
  %v3474 = vadd.f32 0.0, %v3473
  %v3475 = vpop.f32.mrb[0].mxu0
  %3476 = vmatprep.mubr.bf16.mxu0 0
  %3477 = vmatmul.mubr.bf16.gmra.mrb[0].mxu0 %v3373
  %v3478 = vpop.f32.mrb[0].mxu0
  %v3479 = vadd.f32 0.0, %v3478
  %v3480 = vpop.f32.mrb[0].mxu0
  %v3481 = vpop.f32.mrb[0].mxu0
  %v3482 = vadd.f32 0.0, %v3481
  %v3483 = vpop.f32.mrb[0].mxu0
  %3484 = vmatprep.mubr.bf16.mxu0 0
  %3485 = vmatmul.mubr.bf16.gmra.mrb[0].mxu0 %v3374
  %v3486 = vpop.f32.mrb[0].mxu0
  %v3487 = vadd.f32 0.0, %v3486
  %v3488 = vpop.f32.mrb[0].mxu0
  %v3489 = vpop.f32.mrb[0].mxu0
  %v3490 = vadd.f32 0.0, %v3489
  %v3491 = vpop.f32.mrb[0].mxu0
  %3492 = vmatprep.mubr.bf16.mxu0 0
  %3493 = vmatmul.mubr.bf16.gmra.mrb[0].mxu0 %v3375
  %v3494 = vpop.f32.mrb[0].mxu0
  %v3495 = vadd.f32 0.0, %v3494
  %v3496 = vpop.f32.mrb[0].mxu0
  %v3497 = vpop.f32.mrb[0].mxu0
  %v3498 = vadd.f32 0.0, %v3497
  %v3499 = vpop.f32.mrb[0].mxu0
  %3500 = vmatprep.mubr.bf16.mxu0 0
  %3501 = vmatmul.mubr.bf16.gmra.mrb[0].mxu0 %v3376
  %v3502 = vpop.f32.mrb[0].mxu0
  %v3503 = vadd.f32 0.0, %v3502
  %v3504 = vpop.f32.mrb[0].mxu0
  %v3505 = vpop.f32.mrb[0].mxu0
  %v3506 = vadd.f32 0.0, %v3505
  %v3507 = vpop.f32.mrb[0].mxu0
  %3508 = vmatprep.mubr.bf16.mxu0 0
  %3509 = vmatmul.mubr.bf16.gmra.mrb[0].mxu0 %v3377
  %v3510 = vpop.f32.mrb[0].mxu0
  %v3511 = vadd.f32 0.0, %v3510
  %v3512 = vpop.f32.mrb[0].mxu0
  %v3513 = vpop.f32.mrb[0].mxu0
  %v3514 = vadd.f32 0.0, %v3513
  %v3515 = vpop.f32.mrb[0].mxu0
  %3516 = vmatprep.mubr.bf16.mxu0 0
  %3517 = vmatmul.mubr.bf16.gmra.mrb[0].mxu0 %v3378
  %v3518 = vpop.f32.mrb[0].mxu0
  %v3519 = vadd.f32 0.0, %v3518
  %v3520 = vpop.f32.mrb[0].mxu0
  %v3521 = vpop.f32.mrb[0].mxu0
  %v3522 = vadd.f32 0.0, %v3521
  %v3523 = vpop.f32.mrb[0].mxu0
  %3524 = vmatprep.mubr.bf16.mxu0 0
  %3525 = vmatmul.mubr.bf16.gmra.mrb[0].mxu0 %v3379
  %v3526 = vpop.f32.mrb[0].mxu0
  %v3527 = vadd.f32 0.0, %v3526
  %v3528 = vpop.f32.mrb[0].mxu0
  %v3529 = vpop.f32.mrb[0].mxu0
  %v3530 = vadd.f32 0.0, %v3529
  %v3531 = vpop.f32.mrb[0].mxu0
  %3532 = vdwg.mxu0
  %v3533 = vadd.f32 %v3235, %v3471
  %v3534 = vadd.f32 %v3236, %v3474
  %v3535 = vadd.f32 %v3237, %v3479
  %v3536 = vadd.f32 %v3238, %v3482
  %v3537 = vadd.f32 %v3239, %v3487
  %v3538 = vadd.f32 %v3240, %v3490
  %v3539 = vadd.f32 %v3241, %v3495
  %v3540 = vadd.f32 %v3242, %v3498
  %v3541 = vadd.f32 %v3243, %v3503
  %v3542 = vadd.f32 %v3244, %v3506
  %v3543 = vadd.f32 %v3245, %v3511
  %v3544 = vadd.f32 %v3246, %v3514
  %v3545 = vadd.f32 %v3247, %v3519
  %v3546 = vadd.f32 %v3248, %v3522
  %v3547 = vadd.f32 %v3249, %v3527
  %v3548 = vadd.f32 %v3250, %v3530
  %3549 = vst [vmem:[#allocation3] sm:$0xff] %v3533
  %3550 = vst [vmem:[#allocation3 + $0x8] sm:$0xff] %v3534
  %3551 = vst [vmem:[#allocation3 + $0x10] sm:$0xff] %v3535
  %3552 = vst [vmem:[#allocation3 + $0x18] sm:$0xff] %v3536
  %3553 = vst [vmem:[#allocation3 + $0x20] sm:$0xff] %v3537
  %3554 = vst [vmem:[#allocation3 + $0x28] sm:$0xff] %v3538
  %3555 = vst [vmem:[#allocation3 + $0x30] sm:$0xff] %v3539
  %3556 = vst [vmem:[#allocation3 + $0x38] sm:$0xff] %v3540
  %3557 = vst [vmem:[#allocation3 + $0x40] sm:$0xff] %v3541
  %3558 = vst [vmem:[#allocation3 + $0x48] sm:$0xff] %v3542
  %3559 = vst [vmem:[#allocation3 + $0x50] sm:$0xff] %v3543
  %3560 = vst [vmem:[#allocation3 + $0x58] sm:$0xff] %v3544
  %3561 = vst [vmem:[#allocation3 + $0x60] sm:$0xff] %v3545
  %3562 = vst [vmem:[#allocation3 + $0x68] sm:$0xff] %v3546
  %3563 = vst [vmem:[#allocation3 + $0x70] sm:$0xff] %v3547
  %3564 = vst [vmem:[#allocation3 + $0x78] sm:$0xff] %v3548
  %v3565 = vadd.f32 %v3533, %v3534
  %v3566 = vadd.f32 %v3565, %v3535
  %v3567 = vadd.f32 %v3566, %v3536
  %v3568 = vadd.f32 %v3567, %v3537
  %v3569 = vadd.f32 %v3568, %v3538
  %v3570 = vadd.f32 %v3569, %v3539
  %v3571 = vadd.f32 %v3570, %v3540
  %v3572 = vadd.f32 %v3571, %v3541
  %v3573 = vadd.f32 %v3572, %v3542
  %v3574 = vadd.f32 %v3573, %v3543
  %v3575 = vadd.f32 %v3574, %v3544
  %v3576 = vadd.f32 %v3575, %v3545
  %v3577 = vadd.f32 %v3576, %v3546
  %v3578 = vadd.f32 %v3577, %v3547
  %v3579 = vadd.f32 %v3578, %v3548
  %v3580 = vrot.slane %v3579, 4
  %v3581 = vadd.f32 %v3579, %v3580
  %v3582 = vrot.slane %v3581, 2
  %v3583 = vadd.f32 %v3581, %v3582
  %v3584 = vrot.slane %v3583, 1
  %v3585 = vadd.f32 %v3583, %v3584
  %v3586 = vadd.f32 %v3585, 0.0
  %v3587 = vmul.f32 %v3533, %v3533
  %v3588 = vmul.f32 %v3534, %v3534
  %v3589 = vmul.f32 %v3535, %v3535
  %v3590 = vmul.f32 %v3536, %v3536
  %v3591 = vmul.f32 %v3537, %v3537
  %v3592 = vmul.f32 %v3538, %v3538
  %v3593 = vmul.f32 %v3539, %v3539
  %v3594 = vmul.f32 %v3540, %v3540
  %v3595 = vmul.f32 %v3541, %v3541
  %v3596 = vmul.f32 %v3542, %v3542
  %v3597 = vmul.f32 %v3543, %v3543
  %v3598 = vmul.f32 %v3544, %v3544
  %v3599 = vmul.f32 %v3545, %v3545
  %v3600 = vmul.f32 %v3546, %v3546
  %v3601 = vmul.f32 %v3547, %v3547
  %v3602 = vmul.f32 %v3548, %v3548
  %v3603 = vadd.f32 %v3587, %v3588
  %v3604 = vadd.f32 %v3603, %v3589
  %v3605 = vadd.f32 %v3604, %v3590
  %v3606 = vadd.f32 %v3605, %v3591
  %v3607 = vadd.f32 %v3606, %v3592
  %v3608 = vadd.f32 %v3607, %v3593
  %v3609 = vadd.f32 %v3608, %v3594
  %v3610 = vadd.f32 %v3609, %v3595
  %v3611 = vadd.f32 %v3610, %v3596
  %v3612 = vadd.f32 %v3611, %v3597
  %v3613 = vadd.f32 %v3612, %v3598
  %v3614 = vadd.f32 %v3613, %v3599
  %v3615 = vadd.f32 %v3614, %v3600
  %v3616 = vadd.f32 %v3615, %v3601
  %v3617 = vadd.f32 %v3616, %v3602
  %v3618 = vrot.slane %v3617, 4
  %v3619 = vadd.f32 %v3617, %v3618
  %v3620 = vrot.slane %v3619, 2
  %v3621 = vadd.f32 %v3619, %v3620
  %v3622 = vrot.slane %v3621, 1
  %v3623 = vadd.f32 %v3621, %v3622
  %v3624 = vadd.f32 %v3623, 0.0
  %s3625 = scalar_lea.vmem [#allocation2], 96
  %v3626 = vld [vmem:[%s3625] sm:$0xf]
  %v3627 = vld [vmem:[%s3625 + $0x4] sm:$0xf]
  %v3628 = vld [vmem:[%s3625 + $0xc] sm:$0xf]
  %v3629 = vld [vmem:[%s3625 + $0x10] sm:$0xf]
  %v3630 = vld [vmem:[%s3625 + $0x18] sm:$0xf]
  %v3631 = vld [vmem:[%s3625 + $0x1c] sm:$0xf]
  %v3632 = vld [vmem:[%s3625 + $0x24] sm:$0xf]
  %v3633 = vld [vmem:[%s3625 + $0x28] sm:$0xf]
  %v3634 = vld [vmem:[%s3625 + $0x30] sm:$0xf]
  %v3635 = vld [vmem:[%s3625 + $0x34] sm:$0xf]
  %v3636 = vld [vmem:[%s3625 + $0x3c] sm:$0xf]
  %v3637 = vld [vmem:[%s3625 + $0x40] sm:$0xf]
  %v3638 = vld [vmem:[%s3625 + $0x48] sm:$0xf]
  %v3639 = vld [vmem:[%s3625 + $0x4c] sm:$0xf]
  %v3640 = vld [vmem:[%s3625 + $0x54] sm:$0xf]
  %v3641 = vld [vmem:[%s3625 + $0x58] sm:$0xf]
  %v3642 = vld [vmem:[%s1] sm:$0xf]
  %v3643 = vld [vmem:[%s1 + $0x4] sm:$0xf]
  %v3644 = vld [vmem:[%s1 + $0x8] sm:$0xf]
  %v3645 = vld [vmem:[%s1 + $0xc] sm:$0xf]
  %v3646 = vld [vmem:[%s1 + $0x10] sm:$0xf]
  %v3647 = vld [vmem:[%s1 + $0x14] sm:$0xf]
  %v3648 = vld [vmem:[%s1 + $0x18] sm:$0xf]
  %v3649 = vld [vmem:[%s1 + $0x1c] sm:$0xf]
  %v3650 = vld [vmem:[%s1 + $0x20] sm:$0xf]
  %v3651 = vld [vmem:[%s1 + $0x24] sm:$0xf]
  %v3652 = vld [vmem:[%s1 + $0x28] sm:$0xf]
  %v3653 = vld [vmem:[%s1 + $0x2c] sm:$0xf]
  %v3654 = vld [vmem:[%s1 + $0x30] sm:$0xf]
  %v3655 = vld [vmem:[%s1 + $0x34] sm:$0xf]
  %v3656 = vld [vmem:[%s1 + $0x38] sm:$0xf]
  %v3657 = vld [vmem:[%s1 + $0x3c] sm:$0xf]
  %v3658 = vld [vmem:[%s3625 + $0x8] sm:$0x1]
  %v3659 = vld [vmem:[%s3625 + $0x14] sm:$0x1]
  %v3660 = vld [vmem:[%s3625 + $0x20] sm:$0x1]
  %v3661 = vld [vmem:[%s3625 + $0x2c] sm:$0x1]
  %v3662 = vld [vmem:[%s3625 + $0x38] sm:$0x1]
  %v3663 = vld [vmem:[%s3625 + $0x44] sm:$0x1]
  %v3664 = vld [vmem:[%s3625 + $0x50] sm:$0x1]
  %v3665 = vld [vmem:[%s3625 + $0x5c] sm:$0x1]
  %v3667 = vshrl.u32 %v3626, 16
  %v3669 = vrot.slane %v3667, 4
  %v3670 = vshll.u32 %v3626, 16
  %v3672 = vrot.slane %v3670, 5
  %v3673 = vor.u32 %v3669, %v3672
  %v3674 = vrot.slane %v3673, 4
  %v3676 = vshll.u32 %v3627, 16
  %v3678 = vrot.slane %v3676, 5
  %v3679 = vsel %vm743, %v3674, %v3678
  %v3680 = vshrl.u32 %v3627, 16
  %v3682 = vrot.slane %v3680, 4
  %v3683 = vor.u32 %v3682, %v3678
  %v3684 = vrot.slane %v3683, 4
  %v3686 = vshll.u32 %v3658, 16
  %v3688 = vrot.slane %v3686, 5
  %v3689 = vsel %vm743, %v3684, %v3688
  %v3691 = vshrl.u32 %v3628, 16
  %v3693 = vrot.slane %v3691, 4
  %v3694 = vshll.u32 %v3628, 16
  %v3696 = vrot.slane %v3694, 5
  %v3697 = vor.u32 %v3693, %v3696
  %v3698 = vrot.slane %v3697, 4
  %v3700 = vshll.u32 %v3629, 16
  %v3702 = vrot.slane %v3700, 5
  %v3703 = vsel %vm743, %v3698, %v3702
  %v3704 = vshrl.u32 %v3629, 16
  %v3706 = vrot.slane %v3704, 4
  %v3707 = vor.u32 %v3706, %v3702
  %v3708 = vrot.slane %v3707, 4
  %v3710 = vshll.u32 %v3659, 16
  %v3712 = vrot.slane %v3710, 5
  %v3713 = vsel %vm743, %v3708, %v3712
  %v3715 = vshrl.u32 %v3630, 16
  %v3717 = vrot.slane %v3715, 4
  %v3718 = vshll.u32 %v3630, 16
  %v3720 = vrot.slane %v3718, 5
  %v3721 = vor.u32 %v3717, %v3720
  %v3722 = vrot.slane %v3721, 4
  %v3724 = vshll.u32 %v3631, 16
  %v3726 = vrot.slane %v3724, 5
  %v3727 = vsel %vm743, %v3722, %v3726
  %v3728 = vshrl.u32 %v3631, 16
  %v3730 = vrot.slane %v3728, 4
  %v3731 = vor.u32 %v3730, %v3726
  %v3732 = vrot.slane %v3731, 4
  %v3734 = vshll.u32 %v3660, 16
  %v3736 = vrot.slane %v3734, 5
  %v3737 = vsel %vm743, %v3732, %v3736
  %v3739 = vshrl.u32 %v3632, 16
  %v3741 = vrot.slane %v3739, 4
  %v3742 = vshll.u32 %v3632, 16
  %v3744 = vrot.slane %v3742, 5
  %v3745 = vor.u32 %v3741, %v3744
  %v3746 = vrot.slane %v3745, 4
  %v3748 = vshll.u32 %v3633, 16
  %v3750 = vrot.slane %v3748, 5
  %v3751 = vsel %vm743, %v3746, %v3750
  %v3752 = vshrl.u32 %v3633, 16
  %v3754 = vrot.slane %v3752, 4
  %v3755 = vor.u32 %v3754, %v3750
  %v3756 = vrot.slane %v3755, 4
  %v3758 = vshll.u32 %v3661, 16
  %v3760 = vrot.slane %v3758, 5
  %v3761 = vsel %vm743, %v3756, %v3760
  %v3763 = vshrl.u32 %v3634, 16
  %v3765 = vrot.slane %v3763, 4
  %v3766 = vshll.u32 %v3634, 16
  %v3768 = vrot.slane %v3766, 5
  %v3769 = vor.u32 %v3765, %v3768
  %v3770 = vrot.slane %v3769, 4
  %v3772 = vshll.u32 %v3635, 16
  %v3774 = vrot.slane %v3772, 5
  %v3775 = vsel %vm743, %v3770, %v3774
  %v3776 = vshrl.u32 %v3635, 16
  %v3778 = vrot.slane %v3776, 4
  %v3779 = vor.u32 %v3778, %v3774
  %v3780 = vrot.slane %v3779, 4
  %v3782 = vshll.u32 %v3662, 16
  %v3784 = vrot.slane %v3782, 5
  %v3785 = vsel %vm743, %v3780, %v3784
  %v3787 = vshrl.u32 %v3636, 16
  %v3789 = vrot.slane %v3787, 4
  %v3790 = vshll.u32 %v3636, 16
  %v3792 = vrot.slane %v3790, 5
  %v3793 = vor.u32 %v3789, %v3792
  %v3794 = vrot.slane %v3793, 4
  %v3796 = vshll.u32 %v3637, 16
  %v3798 = vrot.slane %v3796, 5
  %v3799 = vsel %vm743, %v3794, %v3798
  %v3800 = vshrl.u32 %v3637, 16
  %v3802 = vrot.slane %v3800, 4
  %v3803 = vor.u32 %v3802, %v3798
  %v3804 = vrot.slane %v3803, 4
  %v3806 = vshll.u32 %v3663, 16
  %v3808 = vrot.slane %v3806, 5
  %v3809 = vsel %vm743, %v3804, %v3808
  %v3811 = vshrl.u32 %v3638, 16
  %v3813 = vrot.slane %v3811, 4
  %v3814 = vshll.u32 %v3638, 16
  %v3816 = vrot.slane %v3814, 5
  %v3817 = vor.u32 %v3813, %v3816
  %v3818 = vrot.slane %v3817, 4
  %v3820 = vshll.u32 %v3639, 16
  %v3822 = vrot.slane %v3820, 5
  %v3823 = vsel %vm743, %v3818, %v3822
  %v3824 = vshrl.u32 %v3639, 16
  %v3826 = vrot.slane %v3824, 4
  %v3827 = vor.u32 %v3826, %v3822
  %v3828 = vrot.slane %v3827, 4
  %v3830 = vshll.u32 %v3664, 16
  %v3832 = vrot.slane %v3830, 5
  %v3833 = vsel %vm743, %v3828, %v3832
  %v3835 = vshrl.u32 %v3640, 16
  %v3837 = vrot.slane %v3835, 4
  %v3838 = vshll.u32 %v3640, 16
  %v3840 = vrot.slane %v3838, 5
  %v3841 = vor.u32 %v3837, %v3840
  %v3842 = vrot.slane %v3841, 4
  %v3844 = vshll.u32 %v3641, 16
  %v3846 = vrot.slane %v3844, 5
  %v3847 = vsel %vm743, %v3842, %v3846
  %v3848 = vshrl.u32 %v3641, 16
  %v3850 = vrot.slane %v3848, 4
  %v3851 = vor.u32 %v3850, %v3846
  %v3852 = vrot.slane %v3851, 4
  %v3854 = vshll.u32 %v3665, 16
  %v3856 = vrot.slane %v3854, 5
  %v3857 = vsel %vm743, %v3852, %v3856
  %v3858 = vld [vmem:[%s936] sm:$0xf]
  %v3859 = vld [vmem:[%s936 + $0x4] sm:$0xf]
  %v3860 = vld [vmem:[%s936 + $0x8] sm:$0xf]
  %v3861 = vld [vmem:[%s936 + $0xc] sm:$0xf]
  %v3862 = vld [vmem:[%s936 + $0x10] sm:$0xf]
  %v3863 = vld [vmem:[%s936 + $0x14] sm:$0xf]
  %v3864 = vld [vmem:[%s936 + $0x18] sm:$0xf]
  %v3865 = vld [vmem:[%s936 + $0x1c] sm:$0xf]
  %v3866 = vld [vmem:[%s936 + $0x20] sm:$0xf]
  %v3867 = vld [vmem:[%s936 + $0x24] sm:$0xf]
  %v3868 = vld [vmem:[%s936 + $0x28] sm:$0xf]
  %v3869 = vld [vmem:[%s936 + $0x2c] sm:$0xf]
  %v3870 = vld [vmem:[%s936 + $0x30] sm:$0xf]
  %v3871 = vld [vmem:[%s936 + $0x34] sm:$0xf]
  %v3872 = vld [vmem:[%s936 + $0x38] sm:$0xf]
  %v3873 = vld [vmem:[%s936 + $0x3c] sm:$0xf]
  %v3874 = vunpack.c.l.b16 %v3679
  %v3875 = vunpack.c.l.b16 %v3689
  %v3876 = vunpack.c.l.b16 %v3703
  %v3877 = vunpack.c.l.b16 %v3713
  %v3878 = vunpack.c.l.b16 %v3727
  %v3879 = vunpack.c.l.b16 %v3737
  %v3880 = vunpack.c.l.b16 %v3751
  %v3881 = vunpack.c.l.b16 %v3761
  %v3882 = vunpack.c.l.b16 %v3775
  %v3883 = vunpack.c.l.b16 %v3785
  %v3884 = vunpack.c.l.b16 %v3799
  %v3885 = vunpack.c.l.b16 %v3809
  %v3886 = vunpack.c.l.b16 %v3823
  %v3887 = vunpack.c.l.b16 %v3833
  %v3888 = vunpack.c.l.b16 %v3847
  %v3889 = vunpack.c.l.b16 %v3857
  %v3890 = vpack.c.b16 %v3875, %v3874
  %v3891 = vpack.c.b16 %v3877, %v3876
  %v3892 = vpack.c.b16 %v3879, %v3878
  %v3893 = vpack.c.b16 %v3881, %v3880
  %v3894 = vpack.c.b16 %v3883, %v3882
  %v3895 = vpack.c.b16 %v3885, %v3884
  %v3896 = vpack.c.b16 %v3887, %v3886
  %v3897 = vpack.c.b16 %v3889, %v3888
  %v3922 = vunpack.c.l.b16 %v3858
  %v3923 = vunpack.c.l.b16 %v3859
  %v3924 = vunpack.c.l.b16 %v3860
  %v3925 = vunpack.c.l.b16 %v3861
  %v3926 = vunpack.c.l.b16 %v3862
  %v3927 = vunpack.c.l.b16 %v3863
  %v3928 = vunpack.c.l.b16 %v3864
  %v3929 = vunpack.c.l.b16 %v3865
  %v3930 = vunpack.c.l.b16 %v3866
  %v3931 = vunpack.c.l.b16 %v3867
  %v3932 = vunpack.c.l.b16 %v3868
  %v3933 = vunpack.c.l.b16 %v3869
  %v3934 = vunpack.c.l.b16 %v3870
  %v3935 = vunpack.c.l.b16 %v3871
  %v3936 = vunpack.c.l.b16 %v3872
  %v3937 = vunpack.c.l.b16 %v3873
  %v3938 = vpack.c.b16 %v3923, %v3922
  %v3939 = vpack.c.b16 %v3925, %v3924
  %v3940 = vpack.c.b16 %v3927, %v3926
  %v3941 = vpack.c.b16 %v3929, %v3928
  %v3942 = vpack.c.b16 %v3931, %v3930
  %v3943 = vpack.c.b16 %v3933, %v3932
  %v3944 = vpack.c.b16 %v3935, %v3934
  %v3945 = vpack.c.b16 %v3937, %v3936
  %3954 = vmatprep.subr.bf16.mxu0 0
  %3955 = vmatpush1.bf16.msra.mxu0 %v3938
  %3956 = vmatprep.subr.bf16.mxu0 0
  %3957 = vmatpush1.bf16.msra.mxu0 %v3939
  %3958 = vmatprep.subr.bf16.mxu0 0
  %3959 = vmatpush1.bf16.msra.mxu0 %v3940
  %3960 = vmatprep.subr.bf16.mxu0 0
  %3961 = vmatpush1.bf16.msra.mxu0 %v3941
  %3962 = vmatprep.subr.bf16.mxu0 0
  %3963 = vmatpush1.bf16.msra.mxu0 %v3942
  %3964 = vmatprep.subr.bf16.mxu0 0
  %3965 = vmatpush1.bf16.msra.mxu0 %v3943
  %3966 = vmatprep.subr.bf16.mxu0 0
  %3967 = vmatpush1.bf16.msra.mxu0 %v3944
  %3968 = vmatprep.subr.bf16.mxu0 0
  %3969 = vmatpush1.bf16.msra.mxu0 %v3945
  %3970 = vmatprep.subr.bf16.mxu0 0
  %3971 = vmatpush1.bf16.msra.mxu0 0
  %3972 = vmatprep.subr.bf16.mxu0 0
  %3973 = vmatpush1.bf16.msra.mxu0 0
  %3974 = vmatprep.subr.bf16.mxu0 0
  %3975 = vmatpush1.bf16.msra.mxu0 0
  %3976 = vmatprep.subr.bf16.mxu0 0
  %3977 = vmatpush1.bf16.msra.mxu0 0
  %3978 = vmatprep.subr.bf16.mxu0 0
  %3979 = vmatpush1.bf16.msra.mxu0 0
  %3980 = vmatprep.subr.bf16.mxu0 0
  %3981 = vmatpush1.bf16.msra.mxu0 0
  %3982 = vmatprep.subr.bf16.mxu0 0
  %3983 = vmatpush1.bf16.msra.mxu0 0
  %3984 = vmatprep.subr.bf16.mxu0 0
  %3985 = vmatpush1.bf16.msra.mxu0 0
  %3986 = vmatprep.mubr.bf16.mxu0 0
  %3987 = vmatmul.mubr.bf16.gmra.mrb[0].mxu0 %v3890
  %v3988 = vpop.f32.mrb[0].mxu0
  %v3989 = vadd.f32 0.0, %v3988
  %v3990 = vpop.f32.mrb[0].mxu0
  %v3991 = vpop.f32.mrb[0].mxu0
  %v3992 = vadd.f32 0.0, %v3991
  %v3993 = vpop.f32.mrb[0].mxu0
  %3994 = vmatprep.mubr.bf16.mxu0 0
  %3995 = vmatmul.mubr.bf16.gmra.mrb[0].mxu0 %v3891
  %v3996 = vpop.f32.mrb[0].mxu0
  %v3997 = vadd.f32 0.0, %v3996
  %v3998 = vpop.f32.mrb[0].mxu0
  %v3999 = vpop.f32.mrb[0].mxu0
  %v4000 = vadd.f32 0.0, %v3999
  %v4001 = vpop.f32.mrb[0].mxu0
  %4002 = vmatprep.mubr.bf16.mxu0 0
  %4003 = vmatmul.mubr.bf16.gmra.mrb[0].mxu0 %v3892
  %v4004 = vpop.f32.mrb[0].mxu0
  %v4005 = vadd.f32 0.0, %v4004
  %v4006 = vpop.f32.mrb[0].mxu0
  %v4007 = vpop.f32.mrb[0].mxu0
  %v4008 = vadd.f32 0.0, %v4007
  %v4009 = vpop.f32.mrb[0].mxu0
  %4010 = vmatprep.mubr.bf16.mxu0 0
  %4011 = vmatmul.mubr.bf16.gmra.mrb[0].mxu0 %v3893
  %v4012 = vpop.f32.mrb[0].mxu0
  %v4013 = vadd.f32 0.0, %v4012
  %v4014 = vpop.f32.mrb[0].mxu0
  %v4015 = vpop.f32.mrb[0].mxu0
  %v4016 = vadd.f32 0.0, %v4015
  %v4017 = vpop.f32.mrb[0].mxu0
  %4018 = vmatprep.mubr.bf16.mxu0 0
  %4019 = vmatmul.mubr.bf16.gmra.mrb[0].mxu0 %v3894
  %v4020 = vpop.f32.mrb[0].mxu0
  %v4021 = vadd.f32 0.0, %v4020
  %v4022 = vpop.f32.mrb[0].mxu0
  %v4023 = vpop.f32.mrb[0].mxu0
  %v4024 = vadd.f32 0.0, %v4023
  %v4025 = vpop.f32.mrb[0].mxu0
  %4026 = vmatprep.mubr.bf16.mxu0 0
  %4027 = vmatmul.mubr.bf16.gmra.mrb[0].mxu0 %v3895
  %v4028 = vpop.f32.mrb[0].mxu0
  %v4029 = vadd.f32 0.0, %v4028
  %v4030 = vpop.f32.mrb[0].mxu0
  %v4031 = vpop.f32.mrb[0].mxu0
  %v4032 = vadd.f32 0.0, %v4031
  %v4033 = vpop.f32.mrb[0].mxu0
  %4034 = vmatprep.mubr.bf16.mxu0 0
  %4035 = vmatmul.mubr.bf16.gmra.mrb[0].mxu0 %v3896
  %v4036 = vpop.f32.mrb[0].mxu0
  %v4037 = vadd.f32 0.0, %v4036
  %v4038 = vpop.f32.mrb[0].mxu0
  %v4039 = vpop.f32.mrb[0].mxu0
  %v4040 = vadd.f32 0.0, %v4039
  %v4041 = vpop.f32.mrb[0].mxu0
  %4042 = vmatprep.mubr.bf16.mxu0 0
  %4043 = vmatmul.mubr.bf16.gmra.mrb[0].mxu0 %v3897
  %v4044 = vpop.f32.mrb[0].mxu0
  %v4045 = vadd.f32 0.0, %v4044
  %v4046 = vpop.f32.mrb[0].mxu0
  %v4047 = vpop.f32.mrb[0].mxu0
  %v4048 = vadd.f32 0.0, %v4047
  %v4049 = vpop.f32.mrb[0].mxu0
  %4050 = vdwg.mxu0
  %v4067 = vunpack.c.l.b16 %v3626
  %v4068 = vunpack.c.l.b16 %v3627
  %v4069 = vunpack.c.l.b16 %v3628
  %v4070 = vunpack.c.l.b16 %v3629
  %v4071 = vunpack.c.l.b16 %v3630
  %v4072 = vunpack.c.l.b16 %v3631
  %v4073 = vunpack.c.l.b16 %v3632
  %v4074 = vunpack.c.l.b16 %v3633
  %v4075 = vunpack.c.l.b16 %v3634
  %v4076 = vunpack.c.l.b16 %v3635
  %v4077 = vunpack.c.l.b16 %v3636
  %v4078 = vunpack.c.l.b16 %v3637
  %v4079 = vunpack.c.l.b16 %v3638
  %v4080 = vunpack.c.l.b16 %v3639
  %v4081 = vunpack.c.l.b16 %v3640
  %v4082 = vunpack.c.l.b16 %v3641
  %v4083 = vpack.c.b16 %v4068, %v4067
  %v4084 = vpack.c.b16 %v4070, %v4069
  %v4085 = vpack.c.b16 %v4072, %v4071
  %v4086 = vpack.c.b16 %v4074, %v4073
  %v4087 = vpack.c.b16 %v4076, %v4075
  %v4088 = vpack.c.b16 %v4078, %v4077
  %v4089 = vpack.c.b16 %v4080, %v4079
  %v4090 = vpack.c.b16 %v4082, %v4081
  %v4115 = vunpack.c.l.b16 %v3642
  %v4116 = vunpack.c.l.b16 %v3643
  %v4117 = vunpack.c.l.b16 %v3644
  %v4118 = vunpack.c.l.b16 %v3645
  %v4119 = vunpack.c.l.b16 %v3646
  %v4120 = vunpack.c.l.b16 %v3647
  %v4121 = vunpack.c.l.b16 %v3648
  %v4122 = vunpack.c.l.b16 %v3649
  %v4123 = vunpack.c.l.b16 %v3650
  %v4124 = vunpack.c.l.b16 %v3651
  %v4125 = vunpack.c.l.b16 %v3652
  %v4126 = vunpack.c.l.b16 %v3653
  %v4127 = vunpack.c.l.b16 %v3654
  %v4128 = vunpack.c.l.b16 %v3655
  %v4129 = vunpack.c.l.b16 %v3656
  %v4130 = vunpack.c.l.b16 %v3657
  %v4131 = vpack.c.b16 %v4116, %v4115
  %v4132 = vpack.c.b16 %v4118, %v4117
  %v4133 = vpack.c.b16 %v4120, %v4119
  %v4134 = vpack.c.b16 %v4122, %v4121
  %v4135 = vpack.c.b16 %v4124, %v4123
  %v4136 = vpack.c.b16 %v4126, %v4125
  %v4137 = vpack.c.b16 %v4128, %v4127
  %v4138 = vpack.c.b16 %v4130, %v4129
  %4147 = vmatprep.subr.bf16.mxu0 0
  %4148 = vmatpush1.bf16.msra.mxu0 %v4131
  %4149 = vmatprep.subr.bf16.mxu0 0
  %4150 = vmatpush1.bf16.msra.mxu0 %v4132
  %4151 = vmatprep.subr.bf16.mxu0 0
  %4152 = vmatpush1.bf16.msra.mxu0 %v4133
  %4153 = vmatprep.subr.bf16.mxu0 0
  %4154 = vmatpush1.bf16.msra.mxu0 %v4134
  %4155 = vmatprep.subr.bf16.mxu0 0
  %4156 = vmatpush1.bf16.msra.mxu0 %v4135
  %4157 = vmatprep.subr.bf16.mxu0 0
  %4158 = vmatpush1.bf16.msra.mxu0 %v4136
  %4159 = vmatprep.subr.bf16.mxu0 0
  %4160 = vmatpush1.bf16.msra.mxu0 %v4137
  %4161 = vmatprep.subr.bf16.mxu0 0
  %4162 = vmatpush1.bf16.msra.mxu0 %v4138
  %4163 = vmatprep.subr.bf16.mxu0 0
  %4164 = vmatpush1.bf16.msra.mxu0 0
  %4165 = vmatprep.subr.bf16.mxu0 0
  %4166 = vmatpush1.bf16.msra.mxu0 0
  %4167 = vmatprep.subr.bf16.mxu0 0
  %4168 = vmatpush1.bf16.msra.mxu0 0
  %4169 = vmatprep.subr.bf16.mxu0 0
  %4170 = vmatpush1.bf16.msra.mxu0 0
  %4171 = vmatprep.subr.bf16.mxu0 0
  %4172 = vmatpush1.bf16.msra.mxu0 0
  %4173 = vmatprep.subr.bf16.mxu0 0
  %4174 = vmatpush1.bf16.msra.mxu0 0
  %4175 = vmatprep.subr.bf16.mxu0 0
  %4176 = vmatpush1.bf16.msra.mxu0 0
  %4177 = vmatprep.subr.bf16.mxu0 0
  %4178 = vmatpush1.bf16.msra.mxu0 0
  %4179 = vmatprep.mubr.bf16.mxu0 0
  %4180 = vmatmul.mubr.bf16.gmra.mrb[0].mxu0 %v4083
  %v4181 = vpop.f32.mrb[0].mxu0
  %v4182 = vadd.f32 %v3989, %v4181
  %v4183 = vpop.f32.mrb[0].mxu0
  %v4184 = vpop.f32.mrb[0].mxu0
  %v4185 = vadd.f32 %v3992, %v4184
  %v4186 = vpop.f32.mrb[0].mxu0
  %4187 = vmatprep.mubr.bf16.mxu0 0
  %4188 = vmatmul.mubr.bf16.gmra.mrb[0].mxu0 %v4084
  %v4189 = vpop.f32.mrb[0].mxu0
  %v4190 = vadd.f32 %v3997, %v4189
  %v4191 = vpop.f32.mrb[0].mxu0
  %v4192 = vpop.f32.mrb[0].mxu0
  %v4193 = vadd.f32 %v4000, %v4192
  %v4194 = vpop.f32.mrb[0].mxu0
  %4195 = vmatprep.mubr.bf16.mxu0 0
  %4196 = vmatmul.mubr.bf16.gmra.mrb[0].mxu0 %v4085
  %v4197 = vpop.f32.mrb[0].mxu0
  %v4198 = vadd.f32 %v4005, %v4197
  %v4199 = vpop.f32.mrb[0].mxu0
  %v4200 = vpop.f32.mrb[0].mxu0
  %v4201 = vadd.f32 %v4008, %v4200
  %v4202 = vpop.f32.mrb[0].mxu0
  %4203 = vmatprep.mubr.bf16.mxu0 0
  %4204 = vmatmul.mubr.bf16.gmra.mrb[0].mxu0 %v4086
  %v4205 = vpop.f32.mrb[0].mxu0
  %v4206 = vadd.f32 %v4013, %v4205
  %v4207 = vpop.f32.mrb[0].mxu0
  %v4208 = vpop.f32.mrb[0].mxu0
  %v4209 = vadd.f32 %v4016, %v4208
  %v4210 = vpop.f32.mrb[0].mxu0
  %4211 = vmatprep.mubr.bf16.mxu0 0
  %4212 = vmatmul.mubr.bf16.gmra.mrb[0].mxu0 %v4087
  %v4213 = vpop.f32.mrb[0].mxu0
  %v4214 = vadd.f32 %v4021, %v4213
  %v4215 = vpop.f32.mrb[0].mxu0
  %v4216 = vpop.f32.mrb[0].mxu0
  %v4217 = vadd.f32 %v4024, %v4216
  %v4218 = vpop.f32.mrb[0].mxu0
  %4219 = vmatprep.mubr.bf16.mxu0 0
  %4220 = vmatmul.mubr.bf16.gmra.mrb[0].mxu0 %v4088
  %v4221 = vpop.f32.mrb[0].mxu0
  %v4222 = vadd.f32 %v4029, %v4221
  %v4223 = vpop.f32.mrb[0].mxu0
  %v4224 = vpop.f32.mrb[0].mxu0
  %v4225 = vadd.f32 %v4032, %v4224
  %v4226 = vpop.f32.mrb[0].mxu0
  %4227 = vmatprep.mubr.bf16.mxu0 0
  %4228 = vmatmul.mubr.bf16.gmra.mrb[0].mxu0 %v4089
  %v4229 = vpop.f32.mrb[0].mxu0
  %v4230 = vadd.f32 %v4037, %v4229
  %v4231 = vpop.f32.mrb[0].mxu0
  %v4232 = vpop.f32.mrb[0].mxu0
  %v4233 = vadd.f32 %v4040, %v4232
  %v4234 = vpop.f32.mrb[0].mxu0
  %4235 = vmatprep.mubr.bf16.mxu0 0
  %4236 = vmatmul.mubr.bf16.gmra.mrb[0].mxu0 %v4090
  %v4237 = vpop.f32.mrb[0].mxu0
  %v4238 = vadd.f32 %v4045, %v4237
  %v4239 = vpop.f32.mrb[0].mxu0
  %v4240 = vpop.f32.mrb[0].mxu0
  %v4241 = vadd.f32 %v4048, %v4240
  %v4242 = vpop.f32.mrb[0].mxu0
  %4243 = vdwg.mxu0
  %v4244 = vld [vmem:[%s3625] sm:$0xe]
  %v4245 = vld [vmem:[%s3625 + $0xc] sm:$0xe]
  %v4246 = vld [vmem:[%s3625 + $0x18] sm:$0xe]
  %v4247 = vld [vmem:[%s3625 + $0x24] sm:$0xe]
  %v4248 = vld [vmem:[%s3625 + $0x30] sm:$0xe]
  %v4249 = vld [vmem:[%s3625 + $0x3c] sm:$0xe]
  %v4250 = vld [vmem:[%s3625 + $0x48] sm:$0xe]
  %v4251 = vld [vmem:[%s3625 + $0x54] sm:$0xe]
  %v4268 = vrot.slane %v4244, 5
  %v4269 = vrot.slane %v4268, 4
  %v4270 = vrot.slane %v3627, 5
  %v4271 = vsel %vm1349, %v4269, %v4270
  %v4272 = vrot.slane %v4270, 4
  %v4273 = vrot.slane %v3658, 5
  %v4274 = vsel %vm1349, %v4272, %v4273
  %v4275 = vrot.slane %v4245, 5
  %v4276 = vrot.slane %v4275, 4
  %v4277 = vrot.slane %v3629, 5
  %v4278 = vsel %vm1349, %v4276, %v4277
  %v4279 = vrot.slane %v4277, 4
  %v4280 = vrot.slane %v3659, 5
  %v4281 = vsel %vm1349, %v4279, %v4280
  %v4282 = vrot.slane %v4246, 5
  %v4283 = vrot.slane %v4282, 4
  %v4284 = vrot.slane %v3631, 5
  %v4285 = vsel %vm1349, %v4283, %v4284
  %v4286 = vrot.slane %v4284, 4
  %v4287 = vrot.slane %v3660, 5
  %v4288 = vsel %vm1349, %v4286, %v4287
  %v4289 = vrot.slane %v4247, 5
  %v4290 = vrot.slane %v4289, 4
  %v4291 = vrot.slane %v3633, 5
  %v4292 = vsel %vm1349, %v4290, %v4291
  %v4293 = vrot.slane %v4291, 4
  %v4294 = vrot.slane %v3661, 5
  %v4295 = vsel %vm1349, %v4293, %v4294
  %v4296 = vrot.slane %v4248, 5
  %v4297 = vrot.slane %v4296, 4
  %v4298 = vrot.slane %v3635, 5
  %v4299 = vsel %vm1349, %v4297, %v4298
  %v4300 = vrot.slane %v4298, 4
  %v4301 = vrot.slane %v3662, 5
  %v4302 = vsel %vm1349, %v4300, %v4301
  %v4303 = vrot.slane %v4249, 5
  %v4304 = vrot.slane %v4303, 4
  %v4305 = vrot.slane %v3637, 5
  %v4306 = vsel %vm1349, %v4304, %v4305
  %v4307 = vrot.slane %v4305, 4
  %v4308 = vrot.slane %v3663, 5
  %v4309 = vsel %vm1349, %v4307, %v4308
  %v4310 = vrot.slane %v4250, 5
  %v4311 = vrot.slane %v4310, 4
  %v4312 = vrot.slane %v3639, 5
  %v4313 = vsel %vm1349, %v4311, %v4312
  %v4314 = vrot.slane %v4312, 4
  %v4315 = vrot.slane %v3664, 5
  %v4316 = vsel %vm1349, %v4314, %v4315
  %v4317 = vrot.slane %v4251, 5
  %v4318 = vrot.slane %v4317, 4
  %v4319 = vrot.slane %v3641, 5
  %v4320 = vsel %vm1349, %v4318, %v4319
  %v4321 = vrot.slane %v4319, 4
  %v4322 = vrot.slane %v3665, 5
  %v4323 = vsel %vm1349, %v4321, %v4322
  %v4324 = vld [vmem:[%s1406] sm:$0xf]
  %v4325 = vld [vmem:[%s1406 + $0x4] sm:$0xf]
  %v4326 = vld [vmem:[%s1406 + $0x8] sm:$0xf]
  %v4327 = vld [vmem:[%s1406 + $0xc] sm:$0xf]
  %v4328 = vld [vmem:[%s1406 + $0x10] sm:$0xf]
  %v4329 = vld [vmem:[%s1406 + $0x14] sm:$0xf]
  %v4330 = vld [vmem:[%s1406 + $0x18] sm:$0xf]
  %v4331 = vld [vmem:[%s1406 + $0x1c] sm:$0xf]
  %v4332 = vld [vmem:[%s1406 + $0x20] sm:$0xf]
  %v4333 = vld [vmem:[%s1406 + $0x24] sm:$0xf]
  %v4334 = vld [vmem:[%s1406 + $0x28] sm:$0xf]
  %v4335 = vld [vmem:[%s1406 + $0x2c] sm:$0xf]
  %v4336 = vld [vmem:[%s1406 + $0x30] sm:$0xf]
  %v4337 = vld [vmem:[%s1406 + $0x34] sm:$0xf]
  %v4338 = vld [vmem:[%s1406 + $0x38] sm:$0xf]
  %v4339 = vld [vmem:[%s1406 + $0x3c] sm:$0xf]
  %v4340 = vunpack.c.l.b16 %v4271
  %v4341 = vunpack.c.l.b16 %v4274
  %v4342 = vunpack.c.l.b16 %v4278
  %v4343 = vunpack.c.l.b16 %v4281
  %v4344 = vunpack.c.l.b16 %v4285
  %v4345 = vunpack.c.l.b16 %v4288
  %v4346 = vunpack.c.l.b16 %v4292
  %v4347 = vunpack.c.l.b16 %v4295
  %v4348 = vunpack.c.l.b16 %v4299
  %v4349 = vunpack.c.l.b16 %v4302
  %v4350 = vunpack.c.l.b16 %v4306
  %v4351 = vunpack.c.l.b16 %v4309
  %v4352 = vunpack.c.l.b16 %v4313
  %v4353 = vunpack.c.l.b16 %v4316
  %v4354 = vunpack.c.l.b16 %v4320
  %v4355 = vunpack.c.l.b16 %v4323
  %v4356 = vpack.c.b16 %v4341, %v4340
  %v4357 = vpack.c.b16 %v4343, %v4342
  %v4358 = vpack.c.b16 %v4345, %v4344
  %v4359 = vpack.c.b16 %v4347, %v4346
  %v4360 = vpack.c.b16 %v4349, %v4348
  %v4361 = vpack.c.b16 %v4351, %v4350
  %v4362 = vpack.c.b16 %v4353, %v4352
  %v4363 = vpack.c.b16 %v4355, %v4354
  %v4388 = vunpack.c.l.b16 %v4324
  %v4389 = vunpack.c.l.b16 %v4325
  %v4390 = vunpack.c.l.b16 %v4326
  %v4391 = vunpack.c.l.b16 %v4327
  %v4392 = vunpack.c.l.b16 %v4328
  %v4393 = vunpack.c.l.b16 %v4329
  %v4394 = vunpack.c.l.b16 %v4330
  %v4395 = vunpack.c.l.b16 %v4331
  %v4396 = vunpack.c.l.b16 %v4332
  %v4397 = vunpack.c.l.b16 %v4333
  %v4398 = vunpack.c.l.b16 %v4334
  %v4399 = vunpack.c.l.b16 %v4335
  %v4400 = vunpack.c.l.b16 %v4336
  %v4401 = vunpack.c.l.b16 %v4337
  %v4402 = vunpack.c.l.b16 %v4338
  %v4403 = vunpack.c.l.b16 %v4339
  %v4404 = vpack.c.b16 %v4389, %v4388
  %v4405 = vpack.c.b16 %v4391, %v4390
  %v4406 = vpack.c.b16 %v4393, %v4392
  %v4407 = vpack.c.b16 %v4395, %v4394
  %v4408 = vpack.c.b16 %v4397, %v4396
  %v4409 = vpack.c.b16 %v4399, %v4398
  %v4410 = vpack.c.b16 %v4401, %v4400
  %v4411 = vpack.c.b16 %v4403, %v4402
  %4420 = vmatprep.subr.bf16.mxu0 0
  %4421 = vmatpush1.bf16.msra.mxu0 %v4404
  %4422 = vmatprep.subr.bf16.mxu0 0
  %4423 = vmatpush1.bf16.msra.mxu0 %v4405
  %4424 = vmatprep.subr.bf16.mxu0 0
  %4425 = vmatpush1.bf16.msra.mxu0 %v4406
  %4426 = vmatprep.subr.bf16.mxu0 0
  %4427 = vmatpush1.bf16.msra.mxu0 %v4407
  %4428 = vmatprep.subr.bf16.mxu0 0
  %4429 = vmatpush1.bf16.msra.mxu0 %v4408
  %4430 = vmatprep.subr.bf16.mxu0 0
  %4431 = vmatpush1.bf16.msra.mxu0 %v4409
  %4432 = vmatprep.subr.bf16.mxu0 0
  %4433 = vmatpush1.bf16.msra.mxu0 %v4410
  %4434 = vmatprep.subr.bf16.mxu0 0
  %4435 = vmatpush1.bf16.msra.mxu0 %v4411
  %4436 = vmatprep.subr.bf16.mxu0 0
  %4437 = vmatpush1.bf16.msra.mxu0 0
  %4438 = vmatprep.subr.bf16.mxu0 0
  %4439 = vmatpush1.bf16.msra.mxu0 0
  %4440 = vmatprep.subr.bf16.mxu0 0
  %4441 = vmatpush1.bf16.msra.mxu0 0
  %4442 = vmatprep.subr.bf16.mxu0 0
  %4443 = vmatpush1.bf16.msra.mxu0 0
  %4444 = vmatprep.subr.bf16.mxu0 0
  %4445 = vmatpush1.bf16.msra.mxu0 0
  %4446 = vmatprep.subr.bf16.mxu0 0
  %4447 = vmatpush1.bf16.msra.mxu0 0
  %4448 = vmatprep.subr.bf16.mxu0 0
  %4449 = vmatpush1.bf16.msra.mxu0 0
  %4450 = vmatprep.subr.bf16.mxu0 0
  %4451 = vmatpush1.bf16.msra.mxu0 0
  %4452 = vmatprep.mubr.bf16.mxu0 0
  %4453 = vmatmul.mubr.bf16.gmra.mrb[0].mxu0 %v4356
  %v4454 = vpop.f32.mrb[0].mxu0
  %v4455 = vadd.f32 0.0, %v4454
  %v4456 = vpop.f32.mrb[0].mxu0
  %v4457 = vpop.f32.mrb[0].mxu0
  %v4458 = vadd.f32 0.0, %v4457
  %v4459 = vpop.f32.mrb[0].mxu0
  %4460 = vmatprep.mubr.bf16.mxu0 0
  %4461 = vmatmul.mubr.bf16.gmra.mrb[0].mxu0 %v4357
  %v4462 = vpop.f32.mrb[0].mxu0
  %v4463 = vadd.f32 0.0, %v4462
  %v4464 = vpop.f32.mrb[0].mxu0
  %v4465 = vpop.f32.mrb[0].mxu0
  %v4466 = vadd.f32 0.0, %v4465
  %v4467 = vpop.f32.mrb[0].mxu0
  %4468 = vmatprep.mubr.bf16.mxu0 0
  %4469 = vmatmul.mubr.bf16.gmra.mrb[0].mxu0 %v4358
  %v4470 = vpop.f32.mrb[0].mxu0
  %v4471 = vadd.f32 0.0, %v4470
  %v4472 = vpop.f32.mrb[0].mxu0
  %v4473 = vpop.f32.mrb[0].mxu0
  %v4474 = vadd.f32 0.0, %v4473
  %v4475 = vpop.f32.mrb[0].mxu0
  %4476 = vmatprep.mubr.bf16.mxu0 0
  %4477 = vmatmul.mubr.bf16.gmra.mrb[0].mxu0 %v4359
  %v4478 = vpop.f32.mrb[0].mxu0
  %v4479 = vadd.f32 0.0, %v4478
  %v4480 = vpop.f32.mrb[0].mxu0
  %v4481 = vpop.f32.mrb[0].mxu0
  %v4482 = vadd.f32 0.0, %v4481
  %v4483 = vpop.f32.mrb[0].mxu0
  %4484 = vmatprep.mubr.bf16.mxu0 0
  %4485 = vmatmul.mubr.bf16.gmra.mrb[0].mxu0 %v4360
  %v4486 = vpop.f32.mrb[0].mxu0
  %v4487 = vadd.f32 0.0, %v4486
  %v4488 = vpop.f32.mrb[0].mxu0
  %v4489 = vpop.f32.mrb[0].mxu0
  %v4490 = vadd.f32 0.0, %v4489
  %v4491 = vpop.f32.mrb[0].mxu0
  %4492 = vmatprep.mubr.bf16.mxu0 0
  %4493 = vmatmul.mubr.bf16.gmra.mrb[0].mxu0 %v4361
  %v4494 = vpop.f32.mrb[0].mxu0
  %v4495 = vadd.f32 0.0, %v4494
  %v4496 = vpop.f32.mrb[0].mxu0
  %v4497 = vpop.f32.mrb[0].mxu0
  %v4498 = vadd.f32 0.0, %v4497
  %v4499 = vpop.f32.mrb[0].mxu0
  %4500 = vmatprep.mubr.bf16.mxu0 0
  %4501 = vmatmul.mubr.bf16.gmra.mrb[0].mxu0 %v4362
  %v4502 = vpop.f32.mrb[0].mxu0
  %v4503 = vadd.f32 0.0, %v4502
  %v4504 = vpop.f32.mrb[0].mxu0
  %v4505 = vpop.f32.mrb[0].mxu0
  %v4506 = vadd.f32 0.0, %v4505
  %v4507 = vpop.f32.mrb[0].mxu0
  %4508 = vmatprep.mubr.bf16.mxu0 0
  %4509 = vmatmul.mubr.bf16.gmra.mrb[0].mxu0 %v4363
  %v4510 = vpop.f32.mrb[0].mxu0
  %v4511 = vadd.f32 0.0, %v4510
  %v4512 = vpop.f32.mrb[0].mxu0
  %v4513 = vpop.f32.mrb[0].mxu0
  %v4514 = vadd.f32 0.0, %v4513
  %v4515 = vpop.f32.mrb[0].mxu0
  %4516 = vdwg.mxu0
  %v4517 = vadd.f32 %v4182, %v4455
  %v4518 = vadd.f32 %v4185, %v4458
  %v4519 = vadd.f32 %v4190, %v4463
  %v4520 = vadd.f32 %v4193, %v4466
  %v4521 = vadd.f32 %v4198, %v4471
  %v4522 = vadd.f32 %v4201, %v4474
  %v4523 = vadd.f32 %v4206, %v4479
  %v4524 = vadd.f32 %v4209, %v4482
  %v4525 = vadd.f32 %v4214, %v4487
  %v4526 = vadd.f32 %v4217, %v4490
  %v4527 = vadd.f32 %v4222, %v4495
  %v4528 = vadd.f32 %v4225, %v4498
  %v4529 = vadd.f32 %v4230, %v4503
  %v4530 = vadd.f32 %v4233, %v4506
  %v4531 = vadd.f32 %v4238, %v4511
  %v4532 = vadd.f32 %v4241, %v4514
  %v4533 = vld [vmem:[%s644] sm:$0xf]
  %v4534 = vld [vmem:[%s644 + $0x4] sm:$0xf]
  %v4535 = vld [vmem:[%s644 + $0xc] sm:$0xf]
  %v4536 = vld [vmem:[%s644 + $0x10] sm:$0xf]
  %v4537 = vld [vmem:[%s644 + $0x18] sm:$0xf]
  %v4538 = vld [vmem:[%s644 + $0x1c] sm:$0xf]
  %v4539 = vld [vmem:[%s644 + $0x24] sm:$0xf]
  %v4540 = vld [vmem:[%s644 + $0x28] sm:$0xf]
  %v4541 = vld [vmem:[%s644 + $0x30] sm:$0xf]
  %v4542 = vld [vmem:[%s644 + $0x34] sm:$0xf]
  %v4543 = vld [vmem:[%s644 + $0x3c] sm:$0xf]
  %v4544 = vld [vmem:[%s644 + $0x40] sm:$0xf]
  %v4545 = vld [vmem:[%s644 + $0x48] sm:$0xf]
  %v4546 = vld [vmem:[%s644 + $0x4c] sm:$0xf]
  %v4547 = vld [vmem:[%s644 + $0x54] sm:$0xf]
  %v4548 = vld [vmem:[%s644 + $0x58] sm:$0xf]
  %v4549 = vld [vmem:[%s1632] sm:$0xf]
  %v4550 = vld [vmem:[%s1632 + $0x4] sm:$0xf]
  %v4551 = vld [vmem:[%s1632 + $0x8] sm:$0xf]
  %v4552 = vld [vmem:[%s1632 + $0xc] sm:$0xf]
  %v4553 = vld [vmem:[%s1632 + $0x10] sm:$0xf]
  %v4554 = vld [vmem:[%s1632 + $0x14] sm:$0xf]
  %v4555 = vld [vmem:[%s1632 + $0x18] sm:$0xf]
  %v4556 = vld [vmem:[%s1632 + $0x1c] sm:$0xf]
  %v4557 = vld [vmem:[%s1632 + $0x20] sm:$0xf]
  %v4558 = vld [vmem:[%s1632 + $0x24] sm:$0xf]
  %v4559 = vld [vmem:[%s1632 + $0x28] sm:$0xf]
  %v4560 = vld [vmem:[%s1632 + $0x2c] sm:$0xf]
  %v4561 = vld [vmem:[%s1632 + $0x30] sm:$0xf]
  %v4562 = vld [vmem:[%s1632 + $0x34] sm:$0xf]
  %v4563 = vld [vmem:[%s1632 + $0x38] sm:$0xf]
  %v4564 = vld [vmem:[%s1632 + $0x3c] sm:$0xf]
  %v4581 = vunpack.c.l.b16 %v4533
  %v4582 = vunpack.c.l.b16 %v4534
  %v4583 = vunpack.c.l.b16 %v4535
  %v4584 = vunpack.c.l.b16 %v4536
  %v4585 = vunpack.c.l.b16 %v4537
  %v4586 = vunpack.c.l.b16 %v4538
  %v4587 = vunpack.c.l.b16 %v4539
  %v4588 = vunpack.c.l.b16 %v4540
  %v4589 = vunpack.c.l.b16 %v4541
  %v4590 = vunpack.c.l.b16 %v4542
  %v4591 = vunpack.c.l.b16 %v4543
  %v4592 = vunpack.c.l.b16 %v4544
  %v4593 = vunpack.c.l.b16 %v4545
  %v4594 = vunpack.c.l.b16 %v4546
  %v4595 = vunpack.c.l.b16 %v4547
  %v4596 = vunpack.c.l.b16 %v4548
  %v4597 = vpack.c.b16 %v4582, %v4581
  %v4598 = vpack.c.b16 %v4584, %v4583
  %v4599 = vpack.c.b16 %v4586, %v4585
  %v4600 = vpack.c.b16 %v4588, %v4587
  %v4601 = vpack.c.b16 %v4590, %v4589
  %v4602 = vpack.c.b16 %v4592, %v4591
  %v4603 = vpack.c.b16 %v4594, %v4593
  %v4604 = vpack.c.b16 %v4596, %v4595
  %v4629 = vunpack.c.l.b16 %v4549
  %v4630 = vunpack.c.l.b16 %v4550
  %v4631 = vunpack.c.l.b16 %v4551
  %v4632 = vunpack.c.l.b16 %v4552
  %v4633 = vunpack.c.l.b16 %v4553
  %v4634 = vunpack.c.l.b16 %v4554
  %v4635 = vunpack.c.l.b16 %v4555
  %v4636 = vunpack.c.l.b16 %v4556
  %v4637 = vunpack.c.l.b16 %v4557
  %v4638 = vunpack.c.l.b16 %v4558
  %v4639 = vunpack.c.l.b16 %v4559
  %v4640 = vunpack.c.l.b16 %v4560
  %v4641 = vunpack.c.l.b16 %v4561
  %v4642 = vunpack.c.l.b16 %v4562
  %v4643 = vunpack.c.l.b16 %v4563
  %v4644 = vunpack.c.l.b16 %v4564
  %v4645 = vpack.c.b16 %v4630, %v4629
  %v4646 = vpack.c.b16 %v4632, %v4631
  %v4647 = vpack.c.b16 %v4634, %v4633
  %v4648 = vpack.c.b16 %v4636, %v4635
  %v4649 = vpack.c.b16 %v4638, %v4637
  %v4650 = vpack.c.b16 %v4640, %v4639
  %v4651 = vpack.c.b16 %v4642, %v4641
  %v4652 = vpack.c.b16 %v4644, %v4643
  %4661 = vmatprep.subr.bf16.mxu0 0
  %4662 = vmatpush1.bf16.msra.mxu0 %v4645
  %4663 = vmatprep.subr.bf16.mxu0 0
  %4664 = vmatpush1.bf16.msra.mxu0 %v4646
  %4665 = vmatprep.subr.bf16.mxu0 0
  %4666 = vmatpush1.bf16.msra.mxu0 %v4647
  %4667 = vmatprep.subr.bf16.mxu0 0
  %4668 = vmatpush1.bf16.msra.mxu0 %v4648
  %4669 = vmatprep.subr.bf16.mxu0 0
  %4670 = vmatpush1.bf16.msra.mxu0 %v4649
  %4671 = vmatprep.subr.bf16.mxu0 0
  %4672 = vmatpush1.bf16.msra.mxu0 %v4650
  %4673 = vmatprep.subr.bf16.mxu0 0
  %4674 = vmatpush1.bf16.msra.mxu0 %v4651
  %4675 = vmatprep.subr.bf16.mxu0 0
  %4676 = vmatpush1.bf16.msra.mxu0 %v4652
  %4677 = vmatprep.subr.bf16.mxu0 0
  %4678 = vmatpush1.bf16.msra.mxu0 0
  %4679 = vmatprep.subr.bf16.mxu0 0
  %4680 = vmatpush1.bf16.msra.mxu0 0
  %4681 = vmatprep.subr.bf16.mxu0 0
  %4682 = vmatpush1.bf16.msra.mxu0 0
  %4683 = vmatprep.subr.bf16.mxu0 0
  %4684 = vmatpush1.bf16.msra.mxu0 0
  %4685 = vmatprep.subr.bf16.mxu0 0
  %4686 = vmatpush1.bf16.msra.mxu0 0
  %4687 = vmatprep.subr.bf16.mxu0 0
  %4688 = vmatpush1.bf16.msra.mxu0 0
  %4689 = vmatprep.subr.bf16.mxu0 0
  %4690 = vmatpush1.bf16.msra.mxu0 0
  %4691 = vmatprep.subr.bf16.mxu0 0
  %4692 = vmatpush1.bf16.msra.mxu0 0
  %4693 = vmatprep.mubr.bf16.mxu0 0
  %4694 = vmatmul.mubr.bf16.gmra.mrb[0].mxu0 %v4597
  %v4695 = vpop.f32.mrb[0].mxu0
  %v4696 = vadd.f32 0.0, %v4695
  %v4697 = vpop.f32.mrb[0].mxu0
  %v4698 = vpop.f32.mrb[0].mxu0
  %v4699 = vadd.f32 0.0, %v4698
  %v4700 = vpop.f32.mrb[0].mxu0
  %4701 = vmatprep.mubr.bf16.mxu0 0
  %4702 = vmatmul.mubr.bf16.gmra.mrb[0].mxu0 %v4598
  %v4703 = vpop.f32.mrb[0].mxu0
  %v4704 = vadd.f32 0.0, %v4703
  %v4705 = vpop.f32.mrb[0].mxu0
  %v4706 = vpop.f32.mrb[0].mxu0
  %v4707 = vadd.f32 0.0, %v4706
  %v4708 = vpop.f32.mrb[0].mxu0
  %4709 = vmatprep.mubr.bf16.mxu0 0
  %4710 = vmatmul.mubr.bf16.gmra.mrb[0].mxu0 %v4599
  %v4711 = vpop.f32.mrb[0].mxu0
  %v4712 = vadd.f32 0.0, %v4711
  %v4713 = vpop.f32.mrb[0].mxu0
  %v4714 = vpop.f32.mrb[0].mxu0
  %v4715 = vadd.f32 0.0, %v4714
  %v4716 = vpop.f32.mrb[0].mxu0
  %4717 = vmatprep.mubr.bf16.mxu0 0
  %4718 = vmatmul.mubr.bf16.gmra.mrb[0].mxu0 %v4600
  %v4719 = vpop.f32.mrb[0].mxu0
  %v4720 = vadd.f32 0.0, %v4719
  %v4721 = vpop.f32.mrb[0].mxu0
  %v4722 = vpop.f32.mrb[0].mxu0
  %v4723 = vadd.f32 0.0, %v4722
  %v4724 = vpop.f32.mrb[0].mxu0
  %4725 = vmatprep.mubr.bf16.mxu0 0
  %4726 = vmatmul.mubr.bf16.gmra.mrb[0].mxu0 %v4601
  %v4727 = vpop.f32.mrb[0].mxu0
  %v4728 = vadd.f32 0.0, %v4727
  %v4729 = vpop.f32.mrb[0].mxu0
  %v4730 = vpop.f32.mrb[0].mxu0
  %v4731 = vadd.f32 0.0, %v4730
  %v4732 = vpop.f32.mrb[0].mxu0
  %4733 = vmatprep.mubr.bf16.mxu0 0
  %4734 = vmatmul.mubr.bf16.gmra.mrb[0].mxu0 %v4602
  %v4735 = vpop.f32.mrb[0].mxu0
  %v4736 = vadd.f32 0.0, %v4735
  %v4737 = vpop.f32.mrb[0].mxu0
  %v4738 = vpop.f32.mrb[0].mxu0
  %v4739 = vadd.f32 0.0, %v4738
  %v4740 = vpop.f32.mrb[0].mxu0
  %4741 = vmatprep.mubr.bf16.mxu0 0
  %4742 = vmatmul.mubr.bf16.gmra.mrb[0].mxu0 %v4603
  %v4743 = vpop.f32.mrb[0].mxu0
  %v4744 = vadd.f32 0.0, %v4743
  %v4745 = vpop.f32.mrb[0].mxu0
  %v4746 = vpop.f32.mrb[0].mxu0
  %v4747 = vadd.f32 0.0, %v4746
  %v4748 = vpop.f32.mrb[0].mxu0
  %4749 = vmatprep.mubr.bf16.mxu0 0
  %4750 = vmatmul.mubr.bf16.gmra.mrb[0].mxu0 %v4604
  %v4751 = vpop.f32.mrb[0].mxu0
  %v4752 = vadd.f32 0.0, %v4751
  %v4753 = vpop.f32.mrb[0].mxu0
  %v4754 = vpop.f32.mrb[0].mxu0
  %v4755 = vadd.f32 0.0, %v4754
  %v4756 = vpop.f32.mrb[0].mxu0
  %4757 = vdwg.mxu0
  %v4758 = vadd.f32 %v4517, %v4696
  %v4759 = vadd.f32 %v4518, %v4699
  %v4760 = vadd.f32 %v4519, %v4704
  %v4761 = vadd.f32 %v4520, %v4707
  %v4762 = vadd.f32 %v4521, %v4712
  %v4763 = vadd.f32 %v4522, %v4715
  %v4764 = vadd.f32 %v4523, %v4720
  %v4765 = vadd.f32 %v4524, %v4723
  %v4766 = vadd.f32 %v4525, %v4728
  %v4767 = vadd.f32 %v4526, %v4731
  %v4768 = vadd.f32 %v4527, %v4736
  %v4769 = vadd.f32 %v4528, %v4739
  %v4770 = vadd.f32 %v4529, %v4744
  %v4771 = vadd.f32 %v4530, %v4747
  %v4772 = vadd.f32 %v4531, %v4752
  %v4773 = vadd.f32 %v4532, %v4755
  %v4774 = vld [vmem:[%s644] sm:$0xf]
  %v4775 = vld [vmem:[%s644 + $0x4] sm:$0xf]
  %v4776 = vld [vmem:[%s644 + $0x8] sm:$0x1]
  %v4777 = vld [vmem:[%s644 + $0xc] sm:$0xf]
  %v4778 = vld [vmem:[%s644 + $0x10] sm:$0xf]
  %v4779 = vld [vmem:[%s644 + $0x14] sm:$0x1]
  %v4780 = vld [vmem:[%s644 + $0x18] sm:$0xf]
  %v4781 = vld [vmem:[%s644 + $0x1c] sm:$0xf]
  %v4782 = vld [vmem:[%s644 + $0x20] sm:$0x1]
  %v4783 = vld [vmem:[%s644 + $0x24] sm:$0xf]
  %v4784 = vld [vmem:[%s644 + $0x28] sm:$0xf]
  %v4785 = vld [vmem:[%s644 + $0x2c] sm:$0x1]
  %v4786 = vld [vmem:[%s644 + $0x30] sm:$0xf]
  %v4787 = vld [vmem:[%s644 + $0x34] sm:$0xf]
  %v4788 = vld [vmem:[%s644 + $0x38] sm:$0x1]
  %v4789 = vld [vmem:[%s644 + $0x3c] sm:$0xf]
  %v4790 = vld [vmem:[%s644 + $0x40] sm:$0xf]
  %v4791 = vld [vmem:[%s644 + $0x44] sm:$0x1]
  %v4792 = vld [vmem:[%s644 + $0x48] sm:$0xf]
  %v4793 = vld [vmem:[%s644 + $0x4c] sm:$0xf]
  %v4794 = vld [vmem:[%s644 + $0x50] sm:$0x1]
  %v4795 = vld [vmem:[%s644 + $0x54] sm:$0xf]
  %v4796 = vld [vmem:[%s644 + $0x58] sm:$0xf]
  %v4797 = vld [vmem:[%s644 + $0x5c] sm:$0x1]
  %v4799 = vshrl.u32 %v4774, 16
  %v4801 = vrot.slane %v4799, 4
  %v4802 = vshll.u32 %v4774, 16
  %v4804 = vrot.slane %v4802, 5
  %v4805 = vor.u32 %v4801, %v4804
  %v4806 = vrot.slane %v4805, 4
  %v4808 = vshll.u32 %v4775, 16
  %v4810 = vrot.slane %v4808, 5
  %v4811 = vsel %vm743, %v4806, %v4810
  %v4812 = vshrl.u32 %v4775, 16
  %v4814 = vrot.slane %v4812, 4
  %v4815 = vor.u32 %v4814, %v4810
  %v4816 = vrot.slane %v4815, 4
  %v4818 = vshll.u32 %v4776, 16
  %v4820 = vrot.slane %v4818, 5
  %v4821 = vsel %vm743, %v4816, %v4820
  %v4823 = vshrl.u32 %v4777, 16
  %v4825 = vrot.slane %v4823, 4
  %v4826 = vshll.u32 %v4777, 16
  %v4828 = vrot.slane %v4826, 5
  %v4829 = vor.u32 %v4825, %v4828
  %v4830 = vrot.slane %v4829, 4
  %v4832 = vshll.u32 %v4778, 16
  %v4834 = vrot.slane %v4832, 5
  %v4835 = vsel %vm743, %v4830, %v4834
  %v4836 = vshrl.u32 %v4778, 16
  %v4838 = vrot.slane %v4836, 4
  %v4839 = vor.u32 %v4838, %v4834
  %v4840 = vrot.slane %v4839, 4
  %v4842 = vshll.u32 %v4779, 16
  %v4844 = vrot.slane %v4842, 5
  %v4845 = vsel %vm743, %v4840, %v4844
  %v4847 = vshrl.u32 %v4780, 16
  %v4849 = vrot.slane %v4847, 4
  %v4850 = vshll.u32 %v4780, 16
  %v4852 = vrot.slane %v4850, 5
  %v4853 = vor.u32 %v4849, %v4852
  %v4854 = vrot.slane %v4853, 4
  %v4856 = vshll.u32 %v4781, 16
  %v4858 = vrot.slane %v4856, 5
  %v4859 = vsel %vm743, %v4854, %v4858
  %v4860 = vshrl.u32 %v4781, 16
  %v4862 = vrot.slane %v4860, 4
  %v4863 = vor.u32 %v4862, %v4858
  %v4864 = vrot.slane %v4863, 4
  %v4866 = vshll.u32 %v4782, 16
  %v4868 = vrot.slane %v4866, 5
  %v4869 = vsel %vm743, %v4864, %v4868
  %v4871 = vshrl.u32 %v4783, 16
  %v4873 = vrot.slane %v4871, 4
  %v4874 = vshll.u32 %v4783, 16
  %v4876 = vrot.slane %v4874, 5
  %v4877 = vor.u32 %v4873, %v4876
  %v4878 = vrot.slane %v4877, 4
  %v4880 = vshll.u32 %v4784, 16
  %v4882 = vrot.slane %v4880, 5
  %v4883 = vsel %vm743, %v4878, %v4882
  %v4884 = vshrl.u32 %v4784, 16
  %v4886 = vrot.slane %v4884, 4
  %v4887 = vor.u32 %v4886, %v4882
  %v4888 = vrot.slane %v4887, 4
  %v4890 = vshll.u32 %v4785, 16
  %v4892 = vrot.slane %v4890, 5
  %v4893 = vsel %vm743, %v4888, %v4892
  %v4895 = vshrl.u32 %v4786, 16
  %v4897 = vrot.slane %v4895, 4
  %v4898 = vshll.u32 %v4786, 16
  %v4900 = vrot.slane %v4898, 5
  %v4901 = vor.u32 %v4897, %v4900
  %v4902 = vrot.slane %v4901, 4
  %v4904 = vshll.u32 %v4787, 16
  %v4906 = vrot.slane %v4904, 5
  %v4907 = vsel %vm743, %v4902, %v4906
  %v4908 = vshrl.u32 %v4787, 16
  %v4910 = vrot.slane %v4908, 4
  %v4911 = vor.u32 %v4910, %v4906
  %v4912 = vrot.slane %v4911, 4
  %v4914 = vshll.u32 %v4788, 16
  %v4916 = vrot.slane %v4914, 5
  %v4917 = vsel %vm743, %v4912, %v4916
  %v4919 = vshrl.u32 %v4789, 16
  %v4921 = vrot.slane %v4919, 4
  %v4922 = vshll.u32 %v4789, 16
  %v4924 = vrot.slane %v4922, 5
  %v4925 = vor.u32 %v4921, %v4924
  %v4926 = vrot.slane %v4925, 4
  %v4928 = vshll.u32 %v4790, 16
  %v4930 = vrot.slane %v4928, 5
  %v4931 = vsel %vm743, %v4926, %v4930
  %v4932 = vshrl.u32 %v4790, 16
  %v4934 = vrot.slane %v4932, 4
  %v4935 = vor.u32 %v4934, %v4930
  %v4936 = vrot.slane %v4935, 4
  %v4938 = vshll.u32 %v4791, 16
  %v4940 = vrot.slane %v4938, 5
  %v4941 = vsel %vm743, %v4936, %v4940
  %v4943 = vshrl.u32 %v4792, 16
  %v4945 = vrot.slane %v4943, 4
  %v4946 = vshll.u32 %v4792, 16
  %v4948 = vrot.slane %v4946, 5
  %v4949 = vor.u32 %v4945, %v4948
  %v4950 = vrot.slane %v4949, 4
  %v4952 = vshll.u32 %v4793, 16
  %v4954 = vrot.slane %v4952, 5
  %v4955 = vsel %vm743, %v4950, %v4954
  %v4956 = vshrl.u32 %v4793, 16
  %v4958 = vrot.slane %v4956, 4
  %v4959 = vor.u32 %v4958, %v4954
  %v4960 = vrot.slane %v4959, 4
  %v4962 = vshll.u32 %v4794, 16
  %v4964 = vrot.slane %v4962, 5
  %v4965 = vsel %vm743, %v4960, %v4964
  %v4967 = vshrl.u32 %v4795, 16
  %v4969 = vrot.slane %v4967, 4
  %v4970 = vshll.u32 %v4795, 16
  %v4972 = vrot.slane %v4970, 5
  %v4973 = vor.u32 %v4969, %v4972
  %v4974 = vrot.slane %v4973, 4
  %v4976 = vshll.u32 %v4796, 16
  %v4978 = vrot.slane %v4976, 5
  %v4979 = vsel %vm743, %v4974, %v4978
  %v4980 = vshrl.u32 %v4796, 16
  %v4982 = vrot.slane %v4980, 4
  %v4983 = vor.u32 %v4982, %v4978
  %v4984 = vrot.slane %v4983, 4
  %v4986 = vshll.u32 %v4797, 16
  %v4988 = vrot.slane %v4986, 5
  %v4989 = vsel %vm743, %v4984, %v4988
  %v4990 = vld [vmem:[%s2074] sm:$0xf]
  %v4991 = vld [vmem:[%s2074 + $0x4] sm:$0xf]
  %v4992 = vld [vmem:[%s2074 + $0x8] sm:$0xf]
  %v4993 = vld [vmem:[%s2074 + $0xc] sm:$0xf]
  %v4994 = vld [vmem:[%s2074 + $0x10] sm:$0xf]
  %v4995 = vld [vmem:[%s2074 + $0x14] sm:$0xf]
  %v4996 = vld [vmem:[%s2074 + $0x18] sm:$0xf]
  %v4997 = vld [vmem:[%s2074 + $0x1c] sm:$0xf]
  %v4998 = vld [vmem:[%s2074 + $0x20] sm:$0xf]
  %v4999 = vld [vmem:[%s2074 + $0x24] sm:$0xf]
  %v5000 = vld [vmem:[%s2074 + $0x28] sm:$0xf]
  %v5001 = vld [vmem:[%s2074 + $0x2c] sm:$0xf]
  %v5002 = vld [vmem:[%s2074 + $0x30] sm:$0xf]
  %v5003 = vld [vmem:[%s2074 + $0x34] sm:$0xf]
  %v5004 = vld [vmem:[%s2074 + $0x38] sm:$0xf]
  %v5005 = vld [vmem:[%s2074 + $0x3c] sm:$0xf]
  %v5006 = vunpack.c.l.b16 %v4811
  %v5007 = vunpack.c.l.b16 %v4821
  %v5008 = vunpack.c.l.b16 %v4835
  %v5009 = vunpack.c.l.b16 %v4845
  %v5010 = vunpack.c.l.b16 %v4859
  %v5011 = vunpack.c.l.b16 %v4869
  %v5012 = vunpack.c.l.b16 %v4883
  %v5013 = vunpack.c.l.b16 %v4893
  %v5014 = vunpack.c.l.b16 %v4907
  %v5015 = vunpack.c.l.b16 %v4917
  %v5016 = vunpack.c.l.b16 %v4931
  %v5017 = vunpack.c.l.b16 %v4941
  %v5018 = vunpack.c.l.b16 %v4955
  %v5019 = vunpack.c.l.b16 %v4965
  %v5020 = vunpack.c.l.b16 %v4979
  %v5021 = vunpack.c.l.b16 %v4989
  %v5022 = vpack.c.b16 %v5007, %v5006
  %v5023 = vpack.c.b16 %v5009, %v5008
  %v5024 = vpack.c.b16 %v5011, %v5010
  %v5025 = vpack.c.b16 %v5013, %v5012
  %v5026 = vpack.c.b16 %v5015, %v5014
  %v5027 = vpack.c.b16 %v5017, %v5016
  %v5028 = vpack.c.b16 %v5019, %v5018
  %v5029 = vpack.c.b16 %v5021, %v5020
  %v5054 = vunpack.c.l.b16 %v4990
  %v5055 = vunpack.c.l.b16 %v4991
  %v5056 = vunpack.c.l.b16 %v4992
  %v5057 = vunpack.c.l.b16 %v4993
  %v5058 = vunpack.c.l.b16 %v4994
  %v5059 = vunpack.c.l.b16 %v4995
  %v5060 = vunpack.c.l.b16 %v4996
  %v5061 = vunpack.c.l.b16 %v4997
  %v5062 = vunpack.c.l.b16 %v4998
  %v5063 = vunpack.c.l.b16 %v4999
  %v5064 = vunpack.c.l.b16 %v5000
  %v5065 = vunpack.c.l.b16 %v5001
  %v5066 = vunpack.c.l.b16 %v5002
  %v5067 = vunpack.c.l.b16 %v5003
  %v5068 = vunpack.c.l.b16 %v5004
  %v5069 = vunpack.c.l.b16 %v5005
  %v5070 = vpack.c.b16 %v5055, %v5054
  %v5071 = vpack.c.b16 %v5057, %v5056
  %v5072 = vpack.c.b16 %v5059, %v5058
  %v5073 = vpack.c.b16 %v5061, %v5060
  %v5074 = vpack.c.b16 %v5063, %v5062
  %v5075 = vpack.c.b16 %v5065, %v5064
  %v5076 = vpack.c.b16 %v5067, %v5066
  %v5077 = vpack.c.b16 %v5069, %v5068
  %5086 = vmatprep.subr.bf16.mxu0 0
  %5087 = vmatpush1.bf16.msra.mxu0 %v5070
  %5088 = vmatprep.subr.bf16.mxu0 0
  %5089 = vmatpush1.bf16.msra.mxu0 %v5071
  %5090 = vmatprep.subr.bf16.mxu0 0
  %5091 = vmatpush1.bf16.msra.mxu0 %v5072
  %5092 = vmatprep.subr.bf16.mxu0 0
  %5093 = vmatpush1.bf16.msra.mxu0 %v5073
  %5094 = vmatprep.subr.bf16.mxu0 0
  %5095 = vmatpush1.bf16.msra.mxu0 %v5074
  %5096 = vmatprep.subr.bf16.mxu0 0
  %5097 = vmatpush1.bf16.msra.mxu0 %v5075
  %5098 = vmatprep.subr.bf16.mxu0 0
  %5099 = vmatpush1.bf16.msra.mxu0 %v5076
  %5100 = vmatprep.subr.bf16.mxu0 0
  %5101 = vmatpush1.bf16.msra.mxu0 %v5077
  %5102 = vmatprep.subr.bf16.mxu0 0
  %5103 = vmatpush1.bf16.msra.mxu0 0
  %5104 = vmatprep.subr.bf16.mxu0 0
  %5105 = vmatpush1.bf16.msra.mxu0 0
  %5106 = vmatprep.subr.bf16.mxu0 0
  %5107 = vmatpush1.bf16.msra.mxu0 0
  %5108 = vmatprep.subr.bf16.mxu0 0
  %5109 = vmatpush1.bf16.msra.mxu0 0
  %5110 = vmatprep.subr.bf16.mxu0 0
  %5111 = vmatpush1.bf16.msra.mxu0 0
  %5112 = vmatprep.subr.bf16.mxu0 0
  %5113 = vmatpush1.bf16.msra.mxu0 0
  %5114 = vmatprep.subr.bf16.mxu0 0
  %5115 = vmatpush1.bf16.msra.mxu0 0
  %5116 = vmatprep.subr.bf16.mxu0 0
  %5117 = vmatpush1.bf16.msra.mxu0 0
  %5118 = vmatprep.mubr.bf16.mxu0 0
  %5119 = vmatmul.mubr.bf16.gmra.mrb[0].mxu0 %v5022
  %v5120 = vpop.f32.mrb[0].mxu0
  %v5121 = vadd.f32 0.0, %v5120
  %v5122 = vpop.f32.mrb[0].mxu0
  %v5123 = vpop.f32.mrb[0].mxu0
  %v5124 = vadd.f32 0.0, %v5123
  %v5125 = vpop.f32.mrb[0].mxu0
  %5126 = vmatprep.mubr.bf16.mxu0 0
  %5127 = vmatmul.mubr.bf16.gmra.mrb[0].mxu0 %v5023
  %v5128 = vpop.f32.mrb[0].mxu0
  %v5129 = vadd.f32 0.0, %v5128
  %v5130 = vpop.f32.mrb[0].mxu0
  %v5131 = vpop.f32.mrb[0].mxu0
  %v5132 = vadd.f32 0.0, %v5131
  %v5133 = vpop.f32.mrb[0].mxu0
  %5134 = vmatprep.mubr.bf16.mxu0 0
  %5135 = vmatmul.mubr.bf16.gmra.mrb[0].mxu0 %v5024
  %v5136 = vpop.f32.mrb[0].mxu0
  %v5137 = vadd.f32 0.0, %v5136
  %v5138 = vpop.f32.mrb[0].mxu0
  %v5139 = vpop.f32.mrb[0].mxu0
  %v5140 = vadd.f32 0.0, %v5139
  %v5141 = vpop.f32.mrb[0].mxu0
  %5142 = vmatprep.mubr.bf16.mxu0 0
  %5143 = vmatmul.mubr.bf16.gmra.mrb[0].mxu0 %v5025
  %v5144 = vpop.f32.mrb[0].mxu0
  %v5145 = vadd.f32 0.0, %v5144
  %v5146 = vpop.f32.mrb[0].mxu0
  %v5147 = vpop.f32.mrb[0].mxu0
  %v5148 = vadd.f32 0.0, %v5147
  %v5149 = vpop.f32.mrb[0].mxu0
  %5150 = vmatprep.mubr.bf16.mxu0 0
  %5151 = vmatmul.mubr.bf16.gmra.mrb[0].mxu0 %v5026
  %v5152 = vpop.f32.mrb[0].mxu0
  %v5153 = vadd.f32 0.0, %v5152
  %v5154 = vpop.f32.mrb[0].mxu0
  %v5155 = vpop.f32.mrb[0].mxu0
  %v5156 = vadd.f32 0.0, %v5155
  %v5157 = vpop.f32.mrb[0].mxu0
  %5158 = vmatprep.mubr.bf16.mxu0 0
  %5159 = vmatmul.mubr.bf16.gmra.mrb[0].mxu0 %v5027
  %v5160 = vpop.f32.mrb[0].mxu0
  %v5161 = vadd.f32 0.0, %v5160
  %v5162 = vpop.f32.mrb[0].mxu0
  %v5163 = vpop.f32.mrb[0].mxu0
  %v5164 = vadd.f32 0.0, %v5163
  %v5165 = vpop.f32.mrb[0].mxu0
  %5166 = vmatprep.mubr.bf16.mxu0 0
  %5167 = vmatmul.mubr.bf16.gmra.mrb[0].mxu0 %v5028
  %v5168 = vpop.f32.mrb[0].mxu0
  %v5169 = vadd.f32 0.0, %v5168
  %v5170 = vpop.f32.mrb[0].mxu0
  %v5171 = vpop.f32.mrb[0].mxu0
  %v5172 = vadd.f32 0.0, %v5171
  %v5173 = vpop.f32.mrb[0].mxu0
  %5174 = vmatprep.mubr.bf16.mxu0 0
  %5175 = vmatmul.mubr.bf16.gmra.mrb[0].mxu0 %v5029
  %v5176 = vpop.f32.mrb[0].mxu0
  %v5177 = vadd.f32 0.0, %v5176
  %v5178 = vpop.f32.mrb[0].mxu0
  %v5179 = vpop.f32.mrb[0].mxu0
  %v5180 = vadd.f32 0.0, %v5179
  %v5181 = vpop.f32.mrb[0].mxu0
  %5182 = vdwg.mxu0
  %v5183 = vadd.f32 %v4758, %v5121
  %v5184 = vadd.f32 %v4759, %v5124
  %v5185 = vadd.f32 %v4760, %v5129
  %v5186 = vadd.f32 %v4761, %v5132
  %v5187 = vadd.f32 %v4762, %v5137
  %v5188 = vadd.f32 %v4763, %v5140
  %v5189 = vadd.f32 %v4764, %v5145
  %v5190 = vadd.f32 %v4765, %v5148
  %v5191 = vadd.f32 %v4766, %v5153
  %v5192 = vadd.f32 %v4767, %v5156
  %v5193 = vadd.f32 %v4768, %v5161
  %v5194 = vadd.f32 %v4769, %v5164
  %v5195 = vadd.f32 %v4770, %v5169
  %v5196 = vadd.f32 %v4771, %v5172
  %v5197 = vadd.f32 %v4772, %v5177
  %v5198 = vadd.f32 %v4773, %v5180
  %v5199 = vld [vmem:[%s644] sm:$0xe]
  %v5200 = vld [vmem:[%s644 + $0xc] sm:$0xe]
  %v5201 = vld [vmem:[%s644 + $0x18] sm:$0xe]
  %v5202 = vld [vmem:[%s644 + $0x24] sm:$0xe]
  %v5203 = vld [vmem:[%s644 + $0x30] sm:$0xe]
  %v5204 = vld [vmem:[%s644 + $0x3c] sm:$0xe]
  %v5205 = vld [vmem:[%s644 + $0x48] sm:$0xe]
  %v5206 = vld [vmem:[%s644 + $0x54] sm:$0xe]
  %v5231 = vrot.slane %v5199, 5
  %v5232 = vrot.slane %v5231, 4
  %v5233 = vrot.slane %v4775, 5
  %v5234 = vsel %vm1349, %v5232, %v5233
  %v5235 = vrot.slane %v5233, 4
  %v5236 = vrot.slane %v4776, 5
  %v5237 = vsel %vm1349, %v5235, %v5236
  %v5238 = vrot.slane %v5200, 5
  %v5239 = vrot.slane %v5238, 4
  %v5240 = vrot.slane %v4778, 5
  %v5241 = vsel %vm1349, %v5239, %v5240
  %v5242 = vrot.slane %v5240, 4
  %v5243 = vrot.slane %v4779, 5
  %v5244 = vsel %vm1349, %v5242, %v5243
  %v5245 = vrot.slane %v5201, 5
  %v5246 = vrot.slane %v5245, 4
  %v5247 = vrot.slane %v4781, 5
  %v5248 = vsel %vm1349, %v5246, %v5247
  %v5249 = vrot.slane %v5247, 4
  %v5250 = vrot.slane %v4782, 5
  %v5251 = vsel %vm1349, %v5249, %v5250
  %v5252 = vrot.slane %v5202, 5
  %v5253 = vrot.slane %v5252, 4
  %v5254 = vrot.slane %v4784, 5
  %v5255 = vsel %vm1349, %v5253, %v5254
  %v5256 = vrot.slane %v5254, 4
  %v5257 = vrot.slane %v4785, 5
  %v5258 = vsel %vm1349, %v5256, %v5257
  %v5259 = vrot.slane %v5203, 5
  %v5260 = vrot.slane %v5259, 4
  %v5261 = vrot.slane %v4787, 5
  %v5262 = vsel %vm1349, %v5260, %v5261
  %v5263 = vrot.slane %v5261, 4
  %v5264 = vrot.slane %v4788, 5
  %v5265 = vsel %vm1349, %v5263, %v5264
  %v5266 = vrot.slane %v5204, 5
  %v5267 = vrot.slane %v5266, 4
  %v5268 = vrot.slane %v4790, 5
  %v5269 = vsel %vm1349, %v5267, %v5268
  %v5270 = vrot.slane %v5268, 4
  %v5271 = vrot.slane %v4791, 5
  %v5272 = vsel %vm1349, %v5270, %v5271
  %v5273 = vrot.slane %v5205, 5
  %v5274 = vrot.slane %v5273, 4
  %v5275 = vrot.slane %v4793, 5
  %v5276 = vsel %vm1349, %v5274, %v5275
  %v5277 = vrot.slane %v5275, 4
  %v5278 = vrot.slane %v4794, 5
  %v5279 = vsel %vm1349, %v5277, %v5278
  %v5280 = vrot.slane %v5206, 5
  %v5281 = vrot.slane %v5280, 4
  %v5282 = vrot.slane %v4796, 5
  %v5283 = vsel %vm1349, %v5281, %v5282
  %v5284 = vrot.slane %v5282, 4
  %v5285 = vrot.slane %v4797, 5
  %v5286 = vsel %vm1349, %v5284, %v5285
  %v5287 = vld [vmem:[%s2372] sm:$0xf]
  %v5288 = vld [vmem:[%s2372 + $0x4] sm:$0xf]
  %v5289 = vld [vmem:[%s2372 + $0x8] sm:$0xf]
  %v5290 = vld [vmem:[%s2372 + $0xc] sm:$0xf]
  %v5291 = vld [vmem:[%s2372 + $0x10] sm:$0xf]
  %v5292 = vld [vmem:[%s2372 + $0x14] sm:$0xf]
  %v5293 = vld [vmem:[%s2372 + $0x18] sm:$0xf]
  %v5294 = vld [vmem:[%s2372 + $0x1c] sm:$0xf]
  %v5295 = vld [vmem:[%s2372 + $0x20] sm:$0xf]
  %v5296 = vld [vmem:[%s2372 + $0x24] sm:$0xf]
  %v5297 = vld [vmem:[%s2372 + $0x28] sm:$0xf]
  %v5298 = vld [vmem:[%s2372 + $0x2c] sm:$0xf]
  %v5299 = vld [vmem:[%s2372 + $0x30] sm:$0xf]
  %v5300 = vld [vmem:[%s2372 + $0x34] sm:$0xf]
  %v5301 = vld [vmem:[%s2372 + $0x38] sm:$0xf]
  %v5302 = vld [vmem:[%s2372 + $0x3c] sm:$0xf]
  %v5303 = vunpack.c.l.b16 %v5234
  %v5304 = vunpack.c.l.b16 %v5237
  %v5305 = vunpack.c.l.b16 %v5241
  %v5306 = vunpack.c.l.b16 %v5244
  %v5307 = vunpack.c.l.b16 %v5248
  %v5308 = vunpack.c.l.b16 %v5251
  %v5309 = vunpack.c.l.b16 %v5255
  %v5310 = vunpack.c.l.b16 %v5258
  %v5311 = vunpack.c.l.b16 %v5262
  %v5312 = vunpack.c.l.b16 %v5265
  %v5313 = vunpack.c.l.b16 %v5269
  %v5314 = vunpack.c.l.b16 %v5272
  %v5315 = vunpack.c.l.b16 %v5276
  %v5316 = vunpack.c.l.b16 %v5279
  %v5317 = vunpack.c.l.b16 %v5283
  %v5318 = vunpack.c.l.b16 %v5286
  %v5319 = vpack.c.b16 %v5304, %v5303
  %v5320 = vpack.c.b16 %v5306, %v5305
  %v5321 = vpack.c.b16 %v5308, %v5307
  %v5322 = vpack.c.b16 %v5310, %v5309
  %v5323 = vpack.c.b16 %v5312, %v5311
  %v5324 = vpack.c.b16 %v5314, %v5313
  %v5325 = vpack.c.b16 %v5316, %v5315
  %v5326 = vpack.c.b16 %v5318, %v5317
  %v5351 = vunpack.c.l.b16 %v5287
  %v5352 = vunpack.c.l.b16 %v5288
  %v5353 = vunpack.c.l.b16 %v5289
  %v5354 = vunpack.c.l.b16 %v5290
  %v5355 = vunpack.c.l.b16 %v5291
  %v5356 = vunpack.c.l.b16 %v5292
  %v5357 = vunpack.c.l.b16 %v5293
  %v5358 = vunpack.c.l.b16 %v5294
  %v5359 = vunpack.c.l.b16 %v5295
  %v5360 = vunpack.c.l.b16 %v5296
  %v5361 = vunpack.c.l.b16 %v5297
  %v5362 = vunpack.c.l.b16 %v5298
  %v5363 = vunpack.c.l.b16 %v5299
  %v5364 = vunpack.c.l.b16 %v5300
  %v5365 = vunpack.c.l.b16 %v5301
  %v5366 = vunpack.c.l.b16 %v5302
  %v5367 = vpack.c.b16 %v5352, %v5351
  %v5368 = vpack.c.b16 %v5354, %v5353
  %v5369 = vpack.c.b16 %v5356, %v5355
  %v5370 = vpack.c.b16 %v5358, %v5357
  %v5371 = vpack.c.b16 %v5360, %v5359
  %v5372 = vpack.c.b16 %v5362, %v5361
  %v5373 = vpack.c.b16 %v5364, %v5363
  %v5374 = vpack.c.b16 %v5366, %v5365
  %5383 = vmatprep.subr.bf16.mxu0 0
  %5384 = vmatpush1.bf16.msra.mxu0 %v5367
  %5385 = vmatprep.subr.bf16.mxu0 0
  %5386 = vmatpush1.bf16.msra.mxu0 %v5368
  %5387 = vmatprep.subr.bf16.mxu0 0
  %5388 = vmatpush1.bf16.msra.mxu0 %v5369
  %5389 = vmatprep.subr.bf16.mxu0 0
  %5390 = vmatpush1.bf16.msra.mxu0 %v5370
  %5391 = vmatprep.subr.bf16.mxu0 0
  %5392 = vmatpush1.bf16.msra.mxu0 %v5371
  %5393 = vmatprep.subr.bf16.mxu0 0
  %5394 = vmatpush1.bf16.msra.mxu0 %v5372
  %5395 = vmatprep.subr.bf16.mxu0 0
  %5396 = vmatpush1.bf16.msra.mxu0 %v5373
  %5397 = vmatprep.subr.bf16.mxu0 0
  %5398 = vmatpush1.bf16.msra.mxu0 %v5374
  %5399 = vmatprep.subr.bf16.mxu0 0
  %5400 = vmatpush1.bf16.msra.mxu0 0
  %5401 = vmatprep.subr.bf16.mxu0 0
  %5402 = vmatpush1.bf16.msra.mxu0 0
  %5403 = vmatprep.subr.bf16.mxu0 0
  %5404 = vmatpush1.bf16.msra.mxu0 0
  %5405 = vmatprep.subr.bf16.mxu0 0
  %5406 = vmatpush1.bf16.msra.mxu0 0
  %5407 = vmatprep.subr.bf16.mxu0 0
  %5408 = vmatpush1.bf16.msra.mxu0 0
  %5409 = vmatprep.subr.bf16.mxu0 0
  %5410 = vmatpush1.bf16.msra.mxu0 0
  %5411 = vmatprep.subr.bf16.mxu0 0
  %5412 = vmatpush1.bf16.msra.mxu0 0
  %5413 = vmatprep.subr.bf16.mxu0 0
  %5414 = vmatpush1.bf16.msra.mxu0 0
  %5415 = vmatprep.mubr.bf16.mxu0 0
  %5416 = vmatmul.mubr.bf16.gmra.mrb[0].mxu0 %v5319
  %v5417 = vpop.f32.mrb[0].mxu0
  %v5418 = vadd.f32 0.0, %v5417
  %v5419 = vpop.f32.mrb[0].mxu0
  %v5420 = vpop.f32.mrb[0].mxu0
  %v5421 = vadd.f32 0.0, %v5420
  %v5422 = vpop.f32.mrb[0].mxu0
  %5423 = vmatprep.mubr.bf16.mxu0 0
  %5424 = vmatmul.mubr.bf16.gmra.mrb[0].mxu0 %v5320
  %v5425 = vpop.f32.mrb[0].mxu0
  %v5426 = vadd.f32 0.0, %v5425
  %v5427 = vpop.f32.mrb[0].mxu0
  %v5428 = vpop.f32.mrb[0].mxu0
  %v5429 = vadd.f32 0.0, %v5428
  %v5430 = vpop.f32.mrb[0].mxu0
  %5431 = vmatprep.mubr.bf16.mxu0 0
  %5432 = vmatmul.mubr.bf16.gmra.mrb[0].mxu0 %v5321
  %v5433 = vpop.f32.mrb[0].mxu0
  %v5434 = vadd.f32 0.0, %v5433
  %v5435 = vpop.f32.mrb[0].mxu0
  %v5436 = vpop.f32.mrb[0].mxu0
  %v5437 = vadd.f32 0.0, %v5436
  %v5438 = vpop.f32.mrb[0].mxu0
  %5439 = vmatprep.mubr.bf16.mxu0 0
  %5440 = vmatmul.mubr.bf16.gmra.mrb[0].mxu0 %v5322
  %v5441 = vpop.f32.mrb[0].mxu0
  %v5442 = vadd.f32 0.0, %v5441
  %v5443 = vpop.f32.mrb[0].mxu0
  %v5444 = vpop.f32.mrb[0].mxu0
  %v5445 = vadd.f32 0.0, %v5444
  %v5446 = vpop.f32.mrb[0].mxu0
  %5447 = vmatprep.mubr.bf16.mxu0 0
  %5448 = vmatmul.mubr.bf16.gmra.mrb[0].mxu0 %v5323
  %v5449 = vpop.f32.mrb[0].mxu0
  %v5450 = vadd.f32 0.0, %v5449
  %v5451 = vpop.f32.mrb[0].mxu0
  %v5452 = vpop.f32.mrb[0].mxu0
  %v5453 = vadd.f32 0.0, %v5452
  %v5454 = vpop.f32.mrb[0].mxu0
  %5455 = vmatprep.mubr.bf16.mxu0 0
  %5456 = vmatmul.mubr.bf16.gmra.mrb[0].mxu0 %v5324
  %v5457 = vpop.f32.mrb[0].mxu0
  %v5458 = vadd.f32 0.0, %v5457
  %v5459 = vpop.f32.mrb[0].mxu0
  %v5460 = vpop.f32.mrb[0].mxu0
  %v5461 = vadd.f32 0.0, %v5460
  %v5462 = vpop.f32.mrb[0].mxu0
  %5463 = vmatprep.mubr.bf16.mxu0 0
  %5464 = vmatmul.mubr.bf16.gmra.mrb[0].mxu0 %v5325
  %v5465 = vpop.f32.mrb[0].mxu0
  %v5466 = vadd.f32 0.0, %v5465
  %v5467 = vpop.f32.mrb[0].mxu0
  %v5468 = vpop.f32.mrb[0].mxu0
  %v5469 = vadd.f32 0.0, %v5468
  %v5470 = vpop.f32.mrb[0].mxu0
  %5471 = vmatprep.mubr.bf16.mxu0 0
  %5472 = vmatmul.mubr.bf16.gmra.mrb[0].mxu0 %v5326
  %v5473 = vpop.f32.mrb[0].mxu0
  %v5474 = vadd.f32 0.0, %v5473
  %v5475 = vpop.f32.mrb[0].mxu0
  %v5476 = vpop.f32.mrb[0].mxu0
  %v5477 = vadd.f32 0.0, %v5476
  %v5478 = vpop.f32.mrb[0].mxu0
  %5479 = vdwg.mxu0
  %v5480 = vadd.f32 %v5183, %v5418
  %v5481 = vadd.f32 %v5184, %v5421
  %v5482 = vadd.f32 %v5185, %v5426
  %v5483 = vadd.f32 %v5186, %v5429
  %v5484 = vadd.f32 %v5187, %v5434
  %v5485 = vadd.f32 %v5188, %v5437
  %v5486 = vadd.f32 %v5189, %v5442
  %v5487 = vadd.f32 %v5190, %v5445
  %v5488 = vadd.f32 %v5191, %v5450
  %v5489 = vadd.f32 %v5192, %v5453
  %v5490 = vadd.f32 %v5193, %v5458
  %v5491 = vadd.f32 %v5194, %v5461
  %v5492 = vadd.f32 %v5195, %v5466
  %v5493 = vadd.f32 %v5196, %v5469
  %v5494 = vadd.f32 %v5197, %v5474
  %v5495 = vadd.f32 %v5198, %v5477
  %s5496 = scalar_lea.vmem [#allocation2], 120
  %v5497 = vld [vmem:[%s5496] sm:$0xf]
  %v5498 = vld [vmem:[%s5496 + $0x4] sm:$0xf]
  %v5499 = vld [vmem:[%s5496 + $0xc] sm:$0xf]
  %v5500 = vld [vmem:[%s5496 + $0x10] sm:$0xf]
  %v5501 = vld [vmem:[%s5496 + $0x18] sm:$0xf]
  %v5502 = vld [vmem:[%s5496 + $0x1c] sm:$0xf]
  %v5503 = vld [vmem:[%s5496 + $0x24] sm:$0xf]
  %v5504 = vld [vmem:[%s5496 + $0x28] sm:$0xf]
  %v5505 = vld [vmem:[%s5496 + $0x30] sm:$0xf]
  %v5506 = vld [vmem:[%s5496 + $0x34] sm:$0xf]
  %v5507 = vld [vmem:[%s5496 + $0x3c] sm:$0xf]
  %v5508 = vld [vmem:[%s5496 + $0x40] sm:$0xf]
  %v5509 = vld [vmem:[%s5496 + $0x48] sm:$0xf]
  %v5510 = vld [vmem:[%s5496 + $0x4c] sm:$0xf]
  %v5511 = vld [vmem:[%s5496 + $0x54] sm:$0xf]
  %v5512 = vld [vmem:[%s5496 + $0x58] sm:$0xf]
  %v5513 = vld [vmem:[%s2599] sm:$0xf]
  %v5514 = vld [vmem:[%s2599 + $0x4] sm:$0xf]
  %v5515 = vld [vmem:[%s2599 + $0x8] sm:$0xf]
  %v5516 = vld [vmem:[%s2599 + $0xc] sm:$0xf]
  %v5517 = vld [vmem:[%s2599 + $0x10] sm:$0xf]
  %v5518 = vld [vmem:[%s2599 + $0x14] sm:$0xf]
  %v5519 = vld [vmem:[%s2599 + $0x18] sm:$0xf]
  %v5520 = vld [vmem:[%s2599 + $0x1c] sm:$0xf]
  %v5521 = vld [vmem:[%s2599 + $0x20] sm:$0xf]
  %v5522 = vld [vmem:[%s2599 + $0x24] sm:$0xf]
  %v5523 = vld [vmem:[%s2599 + $0x28] sm:$0xf]
  %v5524 = vld [vmem:[%s2599 + $0x2c] sm:$0xf]
  %v5525 = vld [vmem:[%s2599 + $0x30] sm:$0xf]
  %v5526 = vld [vmem:[%s2599 + $0x34] sm:$0xf]
  %v5527 = vld [vmem:[%s2599 + $0x38] sm:$0xf]
  %v5528 = vld [vmem:[%s2599 + $0x3c] sm:$0xf]
  %v5545 = vunpack.c.l.b16 %v5497
  %v5546 = vunpack.c.l.b16 %v5498
  %v5547 = vunpack.c.l.b16 %v5499
  %v5548 = vunpack.c.l.b16 %v5500
  %v5549 = vunpack.c.l.b16 %v5501
  %v5550 = vunpack.c.l.b16 %v5502
  %v5551 = vunpack.c.l.b16 %v5503
  %v5552 = vunpack.c.l.b16 %v5504
  %v5553 = vunpack.c.l.b16 %v5505
  %v5554 = vunpack.c.l.b16 %v5506
  %v5555 = vunpack.c.l.b16 %v5507
  %v5556 = vunpack.c.l.b16 %v5508
  %v5557 = vunpack.c.l.b16 %v5509
  %v5558 = vunpack.c.l.b16 %v5510
  %v5559 = vunpack.c.l.b16 %v5511
  %v5560 = vunpack.c.l.b16 %v5512
  %v5561 = vpack.c.b16 %v5546, %v5545
  %v5562 = vpack.c.b16 %v5548, %v5547
  %v5563 = vpack.c.b16 %v5550, %v5549
  %v5564 = vpack.c.b16 %v5552, %v5551
  %v5565 = vpack.c.b16 %v5554, %v5553
  %v5566 = vpack.c.b16 %v5556, %v5555
  %v5567 = vpack.c.b16 %v5558, %v5557
  %v5568 = vpack.c.b16 %v5560, %v5559
  %v5593 = vunpack.c.l.b16 %v5513
  %v5594 = vunpack.c.l.b16 %v5514
  %v5595 = vunpack.c.l.b16 %v5515
  %v5596 = vunpack.c.l.b16 %v5516
  %v5597 = vunpack.c.l.b16 %v5517
  %v5598 = vunpack.c.l.b16 %v5518
  %v5599 = vunpack.c.l.b16 %v5519
  %v5600 = vunpack.c.l.b16 %v5520
  %v5601 = vunpack.c.l.b16 %v5521
  %v5602 = vunpack.c.l.b16 %v5522
  %v5603 = vunpack.c.l.b16 %v5523
  %v5604 = vunpack.c.l.b16 %v5524
  %v5605 = vunpack.c.l.b16 %v5525
  %v5606 = vunpack.c.l.b16 %v5526
  %v5607 = vunpack.c.l.b16 %v5527
  %v5608 = vunpack.c.l.b16 %v5528
  %v5609 = vpack.c.b16 %v5594, %v5593
  %v5610 = vpack.c.b16 %v5596, %v5595
  %v5611 = vpack.c.b16 %v5598, %v5597
  %v5612 = vpack.c.b16 %v5600, %v5599
  %v5613 = vpack.c.b16 %v5602, %v5601
  %v5614 = vpack.c.b16 %v5604, %v5603
  %v5615 = vpack.c.b16 %v5606, %v5605
  %v5616 = vpack.c.b16 %v5608, %v5607
  %5625 = vmatprep.subr.bf16.mxu0 0
  %5626 = vmatpush1.bf16.msra.mxu0 %v5609
  %5627 = vmatprep.subr.bf16.mxu0 0
  %5628 = vmatpush1.bf16.msra.mxu0 %v5610
  %5629 = vmatprep.subr.bf16.mxu0 0
  %5630 = vmatpush1.bf16.msra.mxu0 %v5611
  %5631 = vmatprep.subr.bf16.mxu0 0
  %5632 = vmatpush1.bf16.msra.mxu0 %v5612
  %5633 = vmatprep.subr.bf16.mxu0 0
  %5634 = vmatpush1.bf16.msra.mxu0 %v5613
  %5635 = vmatprep.subr.bf16.mxu0 0
  %5636 = vmatpush1.bf16.msra.mxu0 %v5614
  %5637 = vmatprep.subr.bf16.mxu0 0
  %5638 = vmatpush1.bf16.msra.mxu0 %v5615
  %5639 = vmatprep.subr.bf16.mxu0 0
  %5640 = vmatpush1.bf16.msra.mxu0 %v5616
  %5641 = vmatprep.subr.bf16.mxu0 0
  %5642 = vmatpush1.bf16.msra.mxu0 0
  %5643 = vmatprep.subr.bf16.mxu0 0
  %5644 = vmatpush1.bf16.msra.mxu0 0
  %5645 = vmatprep.subr.bf16.mxu0 0
  %5646 = vmatpush1.bf16.msra.mxu0 0
  %5647 = vmatprep.subr.bf16.mxu0 0
  %5648 = vmatpush1.bf16.msra.mxu0 0
  %5649 = vmatprep.subr.bf16.mxu0 0
  %5650 = vmatpush1.bf16.msra.mxu0 0
  %5651 = vmatprep.subr.bf16.mxu0 0
  %5652 = vmatpush1.bf16.msra.mxu0 0
  %5653 = vmatprep.subr.bf16.mxu0 0
  %5654 = vmatpush1.bf16.msra.mxu0 0
  %5655 = vmatprep.subr.bf16.mxu0 0
  %5656 = vmatpush1.bf16.msra.mxu0 0
  %5657 = vmatprep.mubr.bf16.mxu0 0
  %5658 = vmatmul.mubr.bf16.gmra.mrb[0].mxu0 %v5561
  %v5659 = vpop.f32.mrb[0].mxu0
  %v5660 = vadd.f32 0.0, %v5659
  %v5661 = vpop.f32.mrb[0].mxu0
  %v5662 = vpop.f32.mrb[0].mxu0
  %v5663 = vadd.f32 0.0, %v5662
  %v5664 = vpop.f32.mrb[0].mxu0
  %5665 = vmatprep.mubr.bf16.mxu0 0
  %5666 = vmatmul.mubr.bf16.gmra.mrb[0].mxu0 %v5562
  %v5667 = vpop.f32.mrb[0].mxu0
  %v5668 = vadd.f32 0.0, %v5667
  %v5669 = vpop.f32.mrb[0].mxu0
  %v5670 = vpop.f32.mrb[0].mxu0
  %v5671 = vadd.f32 0.0, %v5670
  %v5672 = vpop.f32.mrb[0].mxu0
  %5673 = vmatprep.mubr.bf16.mxu0 0
  %5674 = vmatmul.mubr.bf16.gmra.mrb[0].mxu0 %v5563
  %v5675 = vpop.f32.mrb[0].mxu0
  %v5676 = vadd.f32 0.0, %v5675
  %v5677 = vpop.f32.mrb[0].mxu0
  %v5678 = vpop.f32.mrb[0].mxu0
  %v5679 = vadd.f32 0.0, %v5678
  %v5680 = vpop.f32.mrb[0].mxu0
  %5681 = vmatprep.mubr.bf16.mxu0 0
  %5682 = vmatmul.mubr.bf16.gmra.mrb[0].mxu0 %v5564
  %v5683 = vpop.f32.mrb[0].mxu0
  %v5684 = vadd.f32 0.0, %v5683
  %v5685 = vpop.f32.mrb[0].mxu0
  %v5686 = vpop.f32.mrb[0].mxu0
  %v5687 = vadd.f32 0.0, %v5686
  %v5688 = vpop.f32.mrb[0].mxu0
  %5689 = vmatprep.mubr.bf16.mxu0 0
  %5690 = vmatmul.mubr.bf16.gmra.mrb[0].mxu0 %v5565
  %v5691 = vpop.f32.mrb[0].mxu0
  %v5692 = vadd.f32 0.0, %v5691
  %v5693 = vpop.f32.mrb[0].mxu0
  %v5694 = vpop.f32.mrb[0].mxu0
  %v5695 = vadd.f32 0.0, %v5694
  %v5696 = vpop.f32.mrb[0].mxu0
  %5697 = vmatprep.mubr.bf16.mxu0 0
  %5698 = vmatmul.mubr.bf16.gmra.mrb[0].mxu0 %v5566
  %v5699 = vpop.f32.mrb[0].mxu0
  %v5700 = vadd.f32 0.0, %v5699
  %v5701 = vpop.f32.mrb[0].mxu0
  %v5702 = vpop.f32.mrb[0].mxu0
  %v5703 = vadd.f32 0.0, %v5702
  %v5704 = vpop.f32.mrb[0].mxu0
  %5705 = vmatprep.mubr.bf16.mxu0 0
  %5706 = vmatmul.mubr.bf16.gmra.mrb[0].mxu0 %v5567
  %v5707 = vpop.f32.mrb[0].mxu0
  %v5708 = vadd.f32 0.0, %v5707
  %v5709 = vpop.f32.mrb[0].mxu0
  %v5710 = vpop.f32.mrb[0].mxu0
  %v5711 = vadd.f32 0.0, %v5710
  %v5712 = vpop.f32.mrb[0].mxu0
  %5713 = vmatprep.mubr.bf16.mxu0 0
  %5714 = vmatmul.mubr.bf16.gmra.mrb[0].mxu0 %v5568
  %v5715 = vpop.f32.mrb[0].mxu0
  %v5716 = vadd.f32 0.0, %v5715
  %v5717 = vpop.f32.mrb[0].mxu0
  %v5718 = vpop.f32.mrb[0].mxu0
  %v5719 = vadd.f32 0.0, %v5718
  %v5720 = vpop.f32.mrb[0].mxu0
  %5721 = vdwg.mxu0
  %v5722 = vadd.f32 %v5480, %v5660
  %v5723 = vadd.f32 %v5481, %v5663
  %v5724 = vadd.f32 %v5482, %v5668
  %v5725 = vadd.f32 %v5483, %v5671
  %v5726 = vadd.f32 %v5484, %v5676
  %v5727 = vadd.f32 %v5485, %v5679
  %v5728 = vadd.f32 %v5486, %v5684
  %v5729 = vadd.f32 %v5487, %v5687
  %v5730 = vadd.f32 %v5488, %v5692
  %v5731 = vadd.f32 %v5489, %v5695
  %v5732 = vadd.f32 %v5490, %v5700
  %v5733 = vadd.f32 %v5491, %v5703
  %v5734 = vadd.f32 %v5492, %v5708
  %v5735 = vadd.f32 %v5493, %v5711
  %v5736 = vadd.f32 %v5494, %v5716
  %v5737 = vadd.f32 %v5495, %v5719
  %v5738 = vld [vmem:[%s5496] sm:$0xf]
  %v5739 = vld [vmem:[%s5496 + $0x4] sm:$0xf]
  %v5740 = vld [vmem:[%s5496 + $0x8] sm:$0x1]
  %v5741 = vld [vmem:[%s5496 + $0xc] sm:$0xf]
  %v5742 = vld [vmem:[%s5496 + $0x10] sm:$0xf]
  %v5743 = vld [vmem:[%s5496 + $0x14] sm:$0x1]
  %v5744 = vld [vmem:[%s5496 + $0x18] sm:$0xf]
  %v5745 = vld [vmem:[%s5496 + $0x1c] sm:$0xf]
  %v5746 = vld [vmem:[%s5496 + $0x20] sm:$0x1]
  %v5747 = vld [vmem:[%s5496 + $0x24] sm:$0xf]
  %v5748 = vld [vmem:[%s5496 + $0x28] sm:$0xf]
  %v5749 = vld [vmem:[%s5496 + $0x2c] sm:$0x1]
  %v5750 = vld [vmem:[%s5496 + $0x30] sm:$0xf]
  %v5751 = vld [vmem:[%s5496 + $0x34] sm:$0xf]
  %v5752 = vld [vmem:[%s5496 + $0x38] sm:$0x1]
  %v5753 = vld [vmem:[%s5496 + $0x3c] sm:$0xf]
  %v5754 = vld [vmem:[%s5496 + $0x40] sm:$0xf]
  %v5755 = vld [vmem:[%s5496 + $0x44] sm:$0x1]
  %v5756 = vld [vmem:[%s5496 + $0x48] sm:$0xf]
  %v5757 = vld [vmem:[%s5496 + $0x4c] sm:$0xf]
  %v5758 = vld [vmem:[%s5496 + $0x50] sm:$0x1]
  %v5759 = vld [vmem:[%s5496 + $0x54] sm:$0xf]
  %v5760 = vld [vmem:[%s5496 + $0x58] sm:$0xf]
  %v5761 = vld [vmem:[%s5496 + $0x5c] sm:$0x1]
  %v5763 = vshrl.u32 %v5738, 16
  %v5765 = vrot.slane %v5763, 4
  %v5766 = vshll.u32 %v5738, 16
  %v5768 = vrot.slane %v5766, 5
  %v5769 = vor.u32 %v5765, %v5768
  %v5770 = vrot.slane %v5769, 4
  %v5772 = vshll.u32 %v5739, 16
  %v5774 = vrot.slane %v5772, 5
  %v5775 = vsel %vm743, %v5770, %v5774
  %v5776 = vshrl.u32 %v5739, 16
  %v5778 = vrot.slane %v5776, 4
  %v5779 = vor.u32 %v5778, %v5774
  %v5780 = vrot.slane %v5779, 4
  %v5782 = vshll.u32 %v5740, 16
  %v5784 = vrot.slane %v5782, 5
  %v5785 = vsel %vm743, %v5780, %v5784
  %v5787 = vshrl.u32 %v5741, 16
  %v5789 = vrot.slane %v5787, 4
  %v5790 = vshll.u32 %v5741, 16
  %v5792 = vrot.slane %v5790, 5
  %v5793 = vor.u32 %v5789, %v5792
  %v5794 = vrot.slane %v5793, 4
  %v5796 = vshll.u32 %v5742, 16
  %v5798 = vrot.slane %v5796, 5
  %v5799 = vsel %vm743, %v5794, %v5798
  %v5800 = vshrl.u32 %v5742, 16
  %v5802 = vrot.slane %v5800, 4
  %v5803 = vor.u32 %v5802, %v5798
  %v5804 = vrot.slane %v5803, 4
  %v5806 = vshll.u32 %v5743, 16
  %v5808 = vrot.slane %v5806, 5
  %v5809 = vsel %vm743, %v5804, %v5808
  %v5811 = vshrl.u32 %v5744, 16
  %v5813 = vrot.slane %v5811, 4
  %v5814 = vshll.u32 %v5744, 16
  %v5816 = vrot.slane %v5814, 5
  %v5817 = vor.u32 %v5813, %v5816
  %v5818 = vrot.slane %v5817, 4
  %v5820 = vshll.u32 %v5745, 16
  %v5822 = vrot.slane %v5820, 5
  %v5823 = vsel %vm743, %v5818, %v5822
  %v5824 = vshrl.u32 %v5745, 16
  %v5826 = vrot.slane %v5824, 4
  %v5827 = vor.u32 %v5826, %v5822
  %v5828 = vrot.slane %v5827, 4
  %v5830 = vshll.u32 %v5746, 16
  %v5832 = vrot.slane %v5830, 5
  %v5833 = vsel %vm743, %v5828, %v5832
  %v5835 = vshrl.u32 %v5747, 16
  %v5837 = vrot.slane %v5835, 4
  %v5838 = vshll.u32 %v5747, 16
  %v5840 = vrot.slane %v5838, 5
  %v5841 = vor.u32 %v5837, %v5840
  %v5842 = vrot.slane %v5841, 4
  %v5844 = vshll.u32 %v5748, 16
  %v5846 = vrot.slane %v5844, 5
  %v5847 = vsel %vm743, %v5842, %v5846
  %v5848 = vshrl.u32 %v5748, 16
  %v5850 = vrot.slane %v5848, 4
  %v5851 = vor.u32 %v5850, %v5846
  %v5852 = vrot.slane %v5851, 4
  %v5854 = vshll.u32 %v5749, 16
  %v5856 = vrot.slane %v5854, 5
  %v5857 = vsel %vm743, %v5852, %v5856
  %v5859 = vshrl.u32 %v5750, 16
  %v5861 = vrot.slane %v5859, 4
  %v5862 = vshll.u32 %v5750, 16
  %v5864 = vrot.slane %v5862, 5
  %v5865 = vor.u32 %v5861, %v5864
  %v5866 = vrot.slane %v5865, 4
  %v5868 = vshll.u32 %v5751, 16
  %v5870 = vrot.slane %v5868, 5
  %v5871 = vsel %vm743, %v5866, %v5870
  %v5872 = vshrl.u32 %v5751, 16
  %v5874 = vrot.slane %v5872, 4
  %v5875 = vor.u32 %v5874, %v5870
  %v5876 = vrot.slane %v5875, 4
  %v5878 = vshll.u32 %v5752, 16
  %v5880 = vrot.slane %v5878, 5
  %v5881 = vsel %vm743, %v5876, %v5880
  %v5883 = vshrl.u32 %v5753, 16
  %v5885 = vrot.slane %v5883, 4
  %v5886 = vshll.u32 %v5753, 16
  %v5888 = vrot.slane %v5886, 5
  %v5889 = vor.u32 %v5885, %v5888
  %v5890 = vrot.slane %v5889, 4
  %v5892 = vshll.u32 %v5754, 16
  %v5894 = vrot.slane %v5892, 5
  %v5895 = vsel %vm743, %v5890, %v5894
  %v5896 = vshrl.u32 %v5754, 16
  %v5898 = vrot.slane %v5896, 4
  %v5899 = vor.u32 %v5898, %v5894
  %v5900 = vrot.slane %v5899, 4
  %v5902 = vshll.u32 %v5755, 16
  %v5904 = vrot.slane %v5902, 5
  %v5905 = vsel %vm743, %v5900, %v5904
  %v5907 = vshrl.u32 %v5756, 16
  %v5909 = vrot.slane %v5907, 4
  %v5910 = vshll.u32 %v5756, 16
  %v5912 = vrot.slane %v5910, 5
  %v5913 = vor.u32 %v5909, %v5912
  %v5914 = vrot.slane %v5913, 4
  %v5916 = vshll.u32 %v5757, 16
  %v5918 = vrot.slane %v5916, 5
  %v5919 = vsel %vm743, %v5914, %v5918
  %v5920 = vshrl.u32 %v5757, 16
  %v5922 = vrot.slane %v5920, 4
  %v5923 = vor.u32 %v5922, %v5918
  %v5924 = vrot.slane %v5923, 4
  %v5926 = vshll.u32 %v5758, 16
  %v5928 = vrot.slane %v5926, 5
  %v5929 = vsel %vm743, %v5924, %v5928
  %v5931 = vshrl.u32 %v5759, 16
  %v5933 = vrot.slane %v5931, 4
  %v5934 = vshll.u32 %v5759, 16
  %v5936 = vrot.slane %v5934, 5
  %v5937 = vor.u32 %v5933, %v5936
  %v5938 = vrot.slane %v5937, 4
  %v5940 = vshll.u32 %v5760, 16
  %v5942 = vrot.slane %v5940, 5
  %v5943 = vsel %vm743, %v5938, %v5942
  %v5944 = vshrl.u32 %v5760, 16
  %v5946 = vrot.slane %v5944, 4
  %v5947 = vor.u32 %v5946, %v5942
  %v5948 = vrot.slane %v5947, 4
  %v5950 = vshll.u32 %v5761, 16
  %v5952 = vrot.slane %v5950, 5
  %v5953 = vsel %vm743, %v5948, %v5952
  %v5954 = vld [vmem:[%s3041] sm:$0xf]
  %v5955 = vld [vmem:[%s3041 + $0x4] sm:$0xf]
  %v5956 = vld [vmem:[%s3041 + $0x8] sm:$0xf]
  %v5957 = vld [vmem:[%s3041 + $0xc] sm:$0xf]
  %v5958 = vld [vmem:[%s3041 + $0x10] sm:$0xf]
  %v5959 = vld [vmem:[%s3041 + $0x14] sm:$0xf]
  %v5960 = vld [vmem:[%s3041 + $0x18] sm:$0xf]
  %v5961 = vld [vmem:[%s3041 + $0x1c] sm:$0xf]
  %v5962 = vld [vmem:[%s3041 + $0x20] sm:$0xf]
  %v5963 = vld [vmem:[%s3041 + $0x24] sm:$0xf]
  %v5964 = vld [vmem:[%s3041 + $0x28] sm:$0xf]
  %v5965 = vld [vmem:[%s3041 + $0x2c] sm:$0xf]
  %v5966 = vld [vmem:[%s3041 + $0x30] sm:$0xf]
  %v5967 = vld [vmem:[%s3041 + $0x34] sm:$0xf]
  %v5968 = vld [vmem:[%s3041 + $0x38] sm:$0xf]
  %v5969 = vld [vmem:[%s3041 + $0x3c] sm:$0xf]
  %v5970 = vunpack.c.l.b16 %v5775
  %v5971 = vunpack.c.l.b16 %v5785
  %v5972 = vunpack.c.l.b16 %v5799
  %v5973 = vunpack.c.l.b16 %v5809
  %v5974 = vunpack.c.l.b16 %v5823
  %v5975 = vunpack.c.l.b16 %v5833
  %v5976 = vunpack.c.l.b16 %v5847
  %v5977 = vunpack.c.l.b16 %v5857
  %v5978 = vunpack.c.l.b16 %v5871
  %v5979 = vunpack.c.l.b16 %v5881
  %v5980 = vunpack.c.l.b16 %v5895
  %v5981 = vunpack.c.l.b16 %v5905
  %v5982 = vunpack.c.l.b16 %v5919
  %v5983 = vunpack.c.l.b16 %v5929
  %v5984 = vunpack.c.l.b16 %v5943
  %v5985 = vunpack.c.l.b16 %v5953
  %v5986 = vpack.c.b16 %v5971, %v5970
  %v5987 = vpack.c.b16 %v5973, %v5972
  %v5988 = vpack.c.b16 %v5975, %v5974
  %v5989 = vpack.c.b16 %v5977, %v5976
  %v5990 = vpack.c.b16 %v5979, %v5978
  %v5991 = vpack.c.b16 %v5981, %v5980
  %v5992 = vpack.c.b16 %v5983, %v5982
  %v5993 = vpack.c.b16 %v5985, %v5984
  %v6018 = vunpack.c.l.b16 %v5954
  %v6019 = vunpack.c.l.b16 %v5955
  %v6020 = vunpack.c.l.b16 %v5956
  %v6021 = vunpack.c.l.b16 %v5957
  %v6022 = vunpack.c.l.b16 %v5958
  %v6023 = vunpack.c.l.b16 %v5959
  %v6024 = vunpack.c.l.b16 %v5960
  %v6025 = vunpack.c.l.b16 %v5961
  %v6026 = vunpack.c.l.b16 %v5962
  %v6027 = vunpack.c.l.b16 %v5963
  %v6028 = vunpack.c.l.b16 %v5964
  %v6029 = vunpack.c.l.b16 %v5965
  %v6030 = vunpack.c.l.b16 %v5966
  %v6031 = vunpack.c.l.b16 %v5967
  %v6032 = vunpack.c.l.b16 %v5968
  %v6033 = vunpack.c.l.b16 %v5969
  %v6034 = vpack.c.b16 %v6019, %v6018
  %v6035 = vpack.c.b16 %v6021, %v6020
  %v6036 = vpack.c.b16 %v6023, %v6022
  %v6037 = vpack.c.b16 %v6025, %v6024
  %v6038 = vpack.c.b16 %v6027, %v6026
  %v6039 = vpack.c.b16 %v6029, %v6028
  %v6040 = vpack.c.b16 %v6031, %v6030
  %v6041 = vpack.c.b16 %v6033, %v6032
  %6050 = vmatprep.subr.bf16.mxu0 0
  %6051 = vmatpush1.bf16.msra.mxu0 %v6034
  %6052 = vmatprep.subr.bf16.mxu0 0
  %6053 = vmatpush1.bf16.msra.mxu0 %v6035
  %6054 = vmatprep.subr.bf16.mxu0 0
  %6055 = vmatpush1.bf16.msra.mxu0 %v6036
  %6056 = vmatprep.subr.bf16.mxu0 0
  %6057 = vmatpush1.bf16.msra.mxu0 %v6037
  %6058 = vmatprep.subr.bf16.mxu0 0
  %6059 = vmatpush1.bf16.msra.mxu0 %v6038
  %6060 = vmatprep.subr.bf16.mxu0 0
  %6061 = vmatpush1.bf16.msra.mxu0 %v6039
  %6062 = vmatprep.subr.bf16.mxu0 0
  %6063 = vmatpush1.bf16.msra.mxu0 %v6040
  %6064 = vmatprep.subr.bf16.mxu0 0
  %6065 = vmatpush1.bf16.msra.mxu0 %v6041
  %6066 = vmatprep.subr.bf16.mxu0 0
  %6067 = vmatpush1.bf16.msra.mxu0 0
  %6068 = vmatprep.subr.bf16.mxu0 0
  %6069 = vmatpush1.bf16.msra.mxu0 0
  %6070 = vmatprep.subr.bf16.mxu0 0
  %6071 = vmatpush1.bf16.msra.mxu0 0
  %6072 = vmatprep.subr.bf16.mxu0 0
  %6073 = vmatpush1.bf16.msra.mxu0 0
  %6074 = vmatprep.subr.bf16.mxu0 0
  %6075 = vmatpush1.bf16.msra.mxu0 0
  %6076 = vmatprep.subr.bf16.mxu0 0
  %6077 = vmatpush1.bf16.msra.mxu0 0
  %6078 = vmatprep.subr.bf16.mxu0 0
  %6079 = vmatpush1.bf16.msra.mxu0 0
  %6080 = vmatprep.subr.bf16.mxu0 0
  %6081 = vmatpush1.bf16.msra.mxu0 0
  %6082 = vmatprep.mubr.bf16.mxu0 0
  %6083 = vmatmul.mubr.bf16.gmra.mrb[0].mxu0 %v5986
  %v6084 = vpop.f32.mrb[0].mxu0
  %v6085 = vadd.f32 0.0, %v6084
  %v6086 = vpop.f32.mrb[0].mxu0
  %v6087 = vpop.f32.mrb[0].mxu0
  %v6088 = vadd.f32 0.0, %v6087
  %v6089 = vpop.f32.mrb[0].mxu0
  %6090 = vmatprep.mubr.bf16.mxu0 0
  %6091 = vmatmul.mubr.bf16.gmra.mrb[0].mxu0 %v5987
  %v6092 = vpop.f32.mrb[0].mxu0
  %v6093 = vadd.f32 0.0, %v6092
  %v6094 = vpop.f32.mrb[0].mxu0
  %v6095 = vpop.f32.mrb[0].mxu0
  %v6096 = vadd.f32 0.0, %v6095
  %v6097 = vpop.f32.mrb[0].mxu0
  %6098 = vmatprep.mubr.bf16.mxu0 0
  %6099 = vmatmul.mubr.bf16.gmra.mrb[0].mxu0 %v5988
  %v6100 = vpop.f32.mrb[0].mxu0
  %v6101 = vadd.f32 0.0, %v6100
  %v6102 = vpop.f32.mrb[0].mxu0
  %v6103 = vpop.f32.mrb[0].mxu0
  %v6104 = vadd.f32 0.0, %v6103
  %v6105 = vpop.f32.mrb[0].mxu0
  %6106 = vmatprep.mubr.bf16.mxu0 0
  %6107 = vmatmul.mubr.bf16.gmra.mrb[0].mxu0 %v5989
  %v6108 = vpop.f32.mrb[0].mxu0
  %v6109 = vadd.f32 0.0, %v6108
  %v6110 = vpop.f32.mrb[0].mxu0
  %v6111 = vpop.f32.mrb[0].mxu0
  %v6112 = vadd.f32 0.0, %v6111
  %v6113 = vpop.f32.mrb[0].mxu0
  %6114 = vmatprep.mubr.bf16.mxu0 0
  %6115 = vmatmul.mubr.bf16.gmra.mrb[0].mxu0 %v5990
  %v6116 = vpop.f32.mrb[0].mxu0
  %v6117 = vadd.f32 0.0, %v6116
  %v6118 = vpop.f32.mrb[0].mxu0
  %v6119 = vpop.f32.mrb[0].mxu0
  %v6120 = vadd.f32 0.0, %v6119
  %v6121 = vpop.f32.mrb[0].mxu0
  %6122 = vmatprep.mubr.bf16.mxu0 0
  %6123 = vmatmul.mubr.bf16.gmra.mrb[0].mxu0 %v5991
  %v6124 = vpop.f32.mrb[0].mxu0
  %v6125 = vadd.f32 0.0, %v6124
  %v6126 = vpop.f32.mrb[0].mxu0
  %v6127 = vpop.f32.mrb[0].mxu0
  %v6128 = vadd.f32 0.0, %v6127
  %v6129 = vpop.f32.mrb[0].mxu0
  %6130 = vmatprep.mubr.bf16.mxu0 0
  %6131 = vmatmul.mubr.bf16.gmra.mrb[0].mxu0 %v5992
  %v6132 = vpop.f32.mrb[0].mxu0
  %v6133 = vadd.f32 0.0, %v6132
  %v6134 = vpop.f32.mrb[0].mxu0
  %v6135 = vpop.f32.mrb[0].mxu0
  %v6136 = vadd.f32 0.0, %v6135
  %v6137 = vpop.f32.mrb[0].mxu0
  %6138 = vmatprep.mubr.bf16.mxu0 0
  %6139 = vmatmul.mubr.bf16.gmra.mrb[0].mxu0 %v5993
  %v6140 = vpop.f32.mrb[0].mxu0
  %v6141 = vadd.f32 0.0, %v6140
  %v6142 = vpop.f32.mrb[0].mxu0
  %v6143 = vpop.f32.mrb[0].mxu0
  %v6144 = vadd.f32 0.0, %v6143
  %v6145 = vpop.f32.mrb[0].mxu0
  %6146 = vdwg.mxu0
  %v6147 = vadd.f32 %v5722, %v6085
  %v6148 = vadd.f32 %v5723, %v6088
  %v6149 = vadd.f32 %v5724, %v6093
  %v6150 = vadd.f32 %v5725, %v6096
  %v6151 = vadd.f32 %v5726, %v6101
  %v6152 = vadd.f32 %v5727, %v6104
  %v6153 = vadd.f32 %v5728, %v6109
  %v6154 = vadd.f32 %v5729, %v6112
  %v6155 = vadd.f32 %v5730, %v6117
  %v6156 = vadd.f32 %v5731, %v6120
  %v6157 = vadd.f32 %v5732, %v6125
  %v6158 = vadd.f32 %v5733, %v6128
  %v6159 = vadd.f32 %v5734, %v6133
  %v6160 = vadd.f32 %v5735, %v6136
  %v6161 = vadd.f32 %v5736, %v6141
  %v6162 = vadd.f32 %v5737, %v6144
  %v6163 = vld [vmem:[%s5496] sm:$0xe]
  %v6164 = vld [vmem:[%s5496 + $0xc] sm:$0xe]
  %v6165 = vld [vmem:[%s5496 + $0x18] sm:$0xe]
  %v6166 = vld [vmem:[%s5496 + $0x24] sm:$0xe]
  %v6167 = vld [vmem:[%s5496 + $0x30] sm:$0xe]
  %v6168 = vld [vmem:[%s5496 + $0x3c] sm:$0xe]
  %v6169 = vld [vmem:[%s5496 + $0x48] sm:$0xe]
  %v6170 = vld [vmem:[%s5496 + $0x54] sm:$0xe]
  %v6195 = vrot.slane %v6163, 5
  %v6196 = vrot.slane %v6195, 4
  %v6197 = vrot.slane %v5739, 5
  %v6198 = vsel %vm1349, %v6196, %v6197
  %v6199 = vrot.slane %v6197, 4
  %v6200 = vrot.slane %v5740, 5
  %v6201 = vsel %vm1349, %v6199, %v6200
  %v6202 = vrot.slane %v6164, 5
  %v6203 = vrot.slane %v6202, 4
  %v6204 = vrot.slane %v5742, 5
  %v6205 = vsel %vm1349, %v6203, %v6204
  %v6206 = vrot.slane %v6204, 4
  %v6207 = vrot.slane %v5743, 5
  %v6208 = vsel %vm1349, %v6206, %v6207
  %v6209 = vrot.slane %v6165, 5
  %v6210 = vrot.slane %v6209, 4
  %v6211 = vrot.slane %v5745, 5
  %v6212 = vsel %vm1349, %v6210, %v6211
  %v6213 = vrot.slane %v6211, 4
  %v6214 = vrot.slane %v5746, 5
  %v6215 = vsel %vm1349, %v6213, %v6214
  %v6216 = vrot.slane %v6166, 5
  %v6217 = vrot.slane %v6216, 4
  %v6218 = vrot.slane %v5748, 5
  %v6219 = vsel %vm1349, %v6217, %v6218
  %v6220 = vrot.slane %v6218, 4
  %v6221 = vrot.slane %v5749, 5
  %v6222 = vsel %vm1349, %v6220, %v6221
  %v6223 = vrot.slane %v6167, 5
  %v6224 = vrot.slane %v6223, 4
  %v6225 = vrot.slane %v5751, 5
  %v6226 = vsel %vm1349, %v6224, %v6225
  %v6227 = vrot.slane %v6225, 4
  %v6228 = vrot.slane %v5752, 5
  %v6229 = vsel %vm1349, %v6227, %v6228
  %v6230 = vrot.slane %v6168, 5
  %v6231 = vrot.slane %v6230, 4
  %v6232 = vrot.slane %v5754, 5
  %v6233 = vsel %vm1349, %v6231, %v6232
  %v6234 = vrot.slane %v6232, 4
  %v6235 = vrot.slane %v5755, 5
  %v6236 = vsel %vm1349, %v6234, %v6235
  %v6237 = vrot.slane %v6169, 5
  %v6238 = vrot.slane %v6237, 4
  %v6239 = vrot.slane %v5757, 5
  %v6240 = vsel %vm1349, %v6238, %v6239
  %v6241 = vrot.slane %v6239, 4
  %v6242 = vrot.slane %v5758, 5
  %v6243 = vsel %vm1349, %v6241, %v6242
  %v6244 = vrot.slane %v6170, 5
  %v6245 = vrot.slane %v6244, 4
  %v6246 = vrot.slane %v5760, 5
  %v6247 = vsel %vm1349, %v6245, %v6246
  %v6248 = vrot.slane %v6246, 4
  %v6249 = vrot.slane %v5761, 5
  %v6250 = vsel %vm1349, %v6248, %v6249
  %v6251 = vld [vmem:[%s3339] sm:$0xf]
  %v6252 = vld [vmem:[%s3339 + $0x4] sm:$0xf]
  %v6253 = vld [vmem:[%s3339 + $0x8] sm:$0xf]
  %v6254 = vld [vmem:[%s3339 + $0xc] sm:$0xf]
  %v6255 = vld [vmem:[%s3339 + $0x10] sm:$0xf]
  %v6256 = vld [vmem:[%s3339 + $0x14] sm:$0xf]
  %v6257 = vld [vmem:[%s3339 + $0x18] sm:$0xf]
  %v6258 = vld [vmem:[%s3339 + $0x1c] sm:$0xf]
  %v6259 = vld [vmem:[%s3339 + $0x20] sm:$0xf]
  %v6260 = vld [vmem:[%s3339 + $0x24] sm:$0xf]
  %v6261 = vld [vmem:[%s3339 + $0x28] sm:$0xf]
  %v6262 = vld [vmem:[%s3339 + $0x2c] sm:$0xf]
  %v6263 = vld [vmem:[%s3339 + $0x30] sm:$0xf]
  %v6264 = vld [vmem:[%s3339 + $0x34] sm:$0xf]
  %v6265 = vld [vmem:[%s3339 + $0x38] sm:$0xf]
  %v6266 = vld [vmem:[%s3339 + $0x3c] sm:$0xf]
  %v6267 = vunpack.c.l.b16 %v6198
  %v6268 = vunpack.c.l.b16 %v6201
  %v6269 = vunpack.c.l.b16 %v6205
  %v6270 = vunpack.c.l.b16 %v6208
  %v6271 = vunpack.c.l.b16 %v6212
  %v6272 = vunpack.c.l.b16 %v6215
  %v6273 = vunpack.c.l.b16 %v6219
  %v6274 = vunpack.c.l.b16 %v6222
  %v6275 = vunpack.c.l.b16 %v6226
  %v6276 = vunpack.c.l.b16 %v6229
  %v6277 = vunpack.c.l.b16 %v6233
  %v6278 = vunpack.c.l.b16 %v6236
  %v6279 = vunpack.c.l.b16 %v6240
  %v6280 = vunpack.c.l.b16 %v6243
  %v6281 = vunpack.c.l.b16 %v6247
  %v6282 = vunpack.c.l.b16 %v6250
  %v6283 = vpack.c.b16 %v6268, %v6267
  %v6284 = vpack.c.b16 %v6270, %v6269
  %v6285 = vpack.c.b16 %v6272, %v6271
  %v6286 = vpack.c.b16 %v6274, %v6273
  %v6287 = vpack.c.b16 %v6276, %v6275
  %v6288 = vpack.c.b16 %v6278, %v6277
  %v6289 = vpack.c.b16 %v6280, %v6279
  %v6290 = vpack.c.b16 %v6282, %v6281
  %v6315 = vunpack.c.l.b16 %v6251
  %v6316 = vunpack.c.l.b16 %v6252
  %v6317 = vunpack.c.l.b16 %v6253
  %v6318 = vunpack.c.l.b16 %v6254
  %v6319 = vunpack.c.l.b16 %v6255
  %v6320 = vunpack.c.l.b16 %v6256
  %v6321 = vunpack.c.l.b16 %v6257
  %v6322 = vunpack.c.l.b16 %v6258
  %v6323 = vunpack.c.l.b16 %v6259
  %v6324 = vunpack.c.l.b16 %v6260
  %v6325 = vunpack.c.l.b16 %v6261
  %v6326 = vunpack.c.l.b16 %v6262
  %v6327 = vunpack.c.l.b16 %v6263
  %v6328 = vunpack.c.l.b16 %v6264
  %v6329 = vunpack.c.l.b16 %v6265
  %v6330 = vunpack.c.l.b16 %v6266
  %v6331 = vpack.c.b16 %v6316, %v6315
  %v6332 = vpack.c.b16 %v6318, %v6317
  %v6333 = vpack.c.b16 %v6320, %v6319
  %v6334 = vpack.c.b16 %v6322, %v6321
  %v6335 = vpack.c.b16 %v6324, %v6323
  %v6336 = vpack.c.b16 %v6326, %v6325
  %v6337 = vpack.c.b16 %v6328, %v6327
  %v6338 = vpack.c.b16 %v6330, %v6329
  %6347 = vmatprep.subr.bf16.mxu0 0
  %6348 = vmatpush1.bf16.msra.mxu0 %v6331
  %6349 = vmatprep.subr.bf16.mxu0 0
  %6350 = vmatpush1.bf16.msra.mxu0 %v6332
  %6351 = vmatprep.subr.bf16.mxu0 0
  %6352 = vmatpush1.bf16.msra.mxu0 %v6333
  %6353 = vmatprep.subr.bf16.mxu0 0
  %6354 = vmatpush1.bf16.msra.mxu0 %v6334
  %6355 = vmatprep.subr.bf16.mxu0 0
  %6356 = vmatpush1.bf16.msra.mxu0 %v6335
  %6357 = vmatprep.subr.bf16.mxu0 0
  %6358 = vmatpush1.bf16.msra.mxu0 %v6336
  %6359 = vmatprep.subr.bf16.mxu0 0
  %6360 = vmatpush1.bf16.msra.mxu0 %v6337
  %6361 = vmatprep.subr.bf16.mxu0 0
  %6362 = vmatpush1.bf16.msra.mxu0 %v6338
  %6363 = vmatprep.subr.bf16.mxu0 0
  %6364 = vmatpush1.bf16.msra.mxu0 0
  %6365 = vmatprep.subr.bf16.mxu0 0
  %6366 = vmatpush1.bf16.msra.mxu0 0
  %6367 = vmatprep.subr.bf16.mxu0 0
  %6368 = vmatpush1.bf16.msra.mxu0 0
  %6369 = vmatprep.subr.bf16.mxu0 0
  %6370 = vmatpush1.bf16.msra.mxu0 0
  %6371 = vmatprep.subr.bf16.mxu0 0
  %6372 = vmatpush1.bf16.msra.mxu0 0
  %6373 = vmatprep.subr.bf16.mxu0 0
  %6374 = vmatpush1.bf16.msra.mxu0 0
  %6375 = vmatprep.subr.bf16.mxu0 0
  %6376 = vmatpush1.bf16.msra.mxu0 0
  %6377 = vmatprep.subr.bf16.mxu0 0
  %6378 = vmatpush1.bf16.msra.mxu0 0
  %6379 = vmatprep.mubr.bf16.mxu0 0
  %6380 = vmatmul.mubr.bf16.gmra.mrb[0].mxu0 %v6283
  %v6381 = vpop.f32.mrb[0].mxu0
  %v6382 = vadd.f32 0.0, %v6381
  %v6383 = vpop.f32.mrb[0].mxu0
  %v6384 = vpop.f32.mrb[0].mxu0
  %v6385 = vadd.f32 0.0, %v6384
  %v6386 = vpop.f32.mrb[0].mxu0
  %6387 = vmatprep.mubr.bf16.mxu0 0
  %6388 = vmatmul.mubr.bf16.gmra.mrb[0].mxu0 %v6284
  %v6389 = vpop.f32.mrb[0].mxu0
  %v6390 = vadd.f32 0.0, %v6389
  %v6391 = vpop.f32.mrb[0].mxu0
  %v6392 = vpop.f32.mrb[0].mxu0
  %v6393 = vadd.f32 0.0, %v6392
  %v6394 = vpop.f32.mrb[0].mxu0
  %6395 = vmatprep.mubr.bf16.mxu0 0
  %6396 = vmatmul.mubr.bf16.gmra.mrb[0].mxu0 %v6285
  %v6397 = vpop.f32.mrb[0].mxu0
  %v6398 = vadd.f32 0.0, %v6397
  %v6399 = vpop.f32.mrb[0].mxu0
  %v6400 = vpop.f32.mrb[0].mxu0
  %v6401 = vadd.f32 0.0, %v6400
  %v6402 = vpop.f32.mrb[0].mxu0
  %6403 = vmatprep.mubr.bf16.mxu0 0
  %6404 = vmatmul.mubr.bf16.gmra.mrb[0].mxu0 %v6286
  %v6405 = vpop.f32.mrb[0].mxu0
  %v6406 = vadd.f32 0.0, %v6405
  %v6407 = vpop.f32.mrb[0].mxu0
  %v6408 = vpop.f32.mrb[0].mxu0
  %v6409 = vadd.f32 0.0, %v6408
  %v6410 = vpop.f32.mrb[0].mxu0
  %6411 = vmatprep.mubr.bf16.mxu0 0
  %6412 = vmatmul.mubr.bf16.gmra.mrb[0].mxu0 %v6287
  %v6413 = vpop.f32.mrb[0].mxu0
  %v6414 = vadd.f32 0.0, %v6413
  %v6415 = vpop.f32.mrb[0].mxu0
  %v6416 = vpop.f32.mrb[0].mxu0
  %v6417 = vadd.f32 0.0, %v6416
  %v6418 = vpop.f32.mrb[0].mxu0
  %6419 = vmatprep.mubr.bf16.mxu0 0
  %6420 = vmatmul.mubr.bf16.gmra.mrb[0].mxu0 %v6288
  %v6421 = vpop.f32.mrb[0].mxu0
  %v6422 = vadd.f32 0.0, %v6421
  %v6423 = vpop.f32.mrb[0].mxu0
  %v6424 = vpop.f32.mrb[0].mxu0
  %v6425 = vadd.f32 0.0, %v6424
  %v6426 = vpop.f32.mrb[0].mxu0
  %6427 = vmatprep.mubr.bf16.mxu0 0
  %6428 = vmatmul.mubr.bf16.gmra.mrb[0].mxu0 %v6289
  %v6429 = vpop.f32.mrb[0].mxu0
  %v6430 = vadd.f32 0.0, %v6429
  %v6431 = vpop.f32.mrb[0].mxu0
  %v6432 = vpop.f32.mrb[0].mxu0
  %v6433 = vadd.f32 0.0, %v6432
  %v6434 = vpop.f32.mrb[0].mxu0
  %6435 = vmatprep.mubr.bf16.mxu0 0
  %6436 = vmatmul.mubr.bf16.gmra.mrb[0].mxu0 %v6290
  %v6437 = vpop.f32.mrb[0].mxu0
  %v6438 = vadd.f32 0.0, %v6437
  %v6439 = vpop.f32.mrb[0].mxu0
  %v6440 = vpop.f32.mrb[0].mxu0
  %v6441 = vadd.f32 0.0, %v6440
  %v6442 = vpop.f32.mrb[0].mxu0
  %6443 = vdwg.mxu0
  %v6444 = vadd.f32 %v6147, %v6382
  %v6445 = vadd.f32 %v6148, %v6385
  %v6446 = vadd.f32 %v6149, %v6390
  %v6447 = vadd.f32 %v6150, %v6393
  %v6448 = vadd.f32 %v6151, %v6398
  %v6449 = vadd.f32 %v6152, %v6401
  %v6450 = vadd.f32 %v6153, %v6406
  %v6451 = vadd.f32 %v6154, %v6409
  %v6452 = vadd.f32 %v6155, %v6414
  %v6453 = vadd.f32 %v6156, %v6417
  %v6454 = vadd.f32 %v6157, %v6422
  %v6455 = vadd.f32 %v6158, %v6425
  %v6456 = vadd.f32 %v6159, %v6430
  %v6457 = vadd.f32 %v6160, %v6433
  %v6458 = vadd.f32 %v6161, %v6438
  %v6459 = vadd.f32 %v6162, %v6441
  %6460 = vst [vmem:[#allocation3 + $0x80] sm:$0xff] %v6444
  %6461 = vst [vmem:[#allocation3 + $0x88] sm:$0xff] %v6445
  %6462 = vst [vmem:[#allocation3 + $0x90] sm:$0xff] %v6446
  %6463 = vst [vmem:[#allocation3 + $0x98] sm:$0xff] %v6447
  %6464 = vst [vmem:[#allocation3 + $0xa0] sm:$0xff] %v6448
  %6465 = vst [vmem:[#allocation3 + $0xa8] sm:$0xff] %v6449
  %6466 = vst [vmem:[#allocation3 + $0xb0] sm:$0xff] %v6450
  %6467 = vst [vmem:[#allocation3 + $0xb8] sm:$0xff] %v6451
  %6468 = vst [vmem:[#allocation3 + $0xc0] sm:$0xff] %v6452
  %6469 = vst [vmem:[#allocation3 + $0xc8] sm:$0xff] %v6453
  %6470 = vst [vmem:[#allocation3 + $0xd0] sm:$0xff] %v6454
  %6471 = vst [vmem:[#allocation3 + $0xd8] sm:$0xff] %v6455
  %6472 = vst [vmem:[#allocation3 + $0xe0] sm:$0xff] %v6456
  %6473 = vst [vmem:[#allocation3 + $0xe8] sm:$0xff] %v6457
  %6474 = vst [vmem:[#allocation3 + $0xf0] sm:$0xff] %v6458
  %6475 = vst [vmem:[#allocation3 + $0xf8] sm:$0xff] %v6459
  %v6476 = vadd.f32 %v6444, %v6445
  %v6477 = vadd.f32 %v6476, %v6446
  %v6478 = vadd.f32 %v6477, %v6447
  %v6479 = vadd.f32 %v6478, %v6448
  %v6480 = vadd.f32 %v6479, %v6449
  %v6481 = vadd.f32 %v6480, %v6450
  %v6482 = vadd.f32 %v6481, %v6451
  %v6483 = vadd.f32 %v6482, %v6452
  %v6484 = vadd.f32 %v6483, %v6453
  %v6485 = vadd.f32 %v6484, %v6454
  %v6486 = vadd.f32 %v6485, %v6455
  %v6487 = vadd.f32 %v6486, %v6456
  %v6488 = vadd.f32 %v6487, %v6457
  %v6489 = vadd.f32 %v6488, %v6458
  %v6490 = vadd.f32 %v6489, %v6459
  %v6491 = vrot.slane %v6490, 4
  %v6492 = vadd.f32 %v6490, %v6491
  %v6493 = vrot.slane %v6492, 2
  %v6494 = vadd.f32 %v6492, %v6493
  %v6495 = vrot.slane %v6494, 1
  %v6496 = vadd.f32 %v6494, %v6495
  %v6497 = vadd.f32 %v3586, %v6496
  %v6498 = vmul.f32 %v6444, %v6444
  %v6499 = vmul.f32 %v6445, %v6445
  %v6500 = vmul.f32 %v6446, %v6446
  %v6501 = vmul.f32 %v6447, %v6447
  %v6502 = vmul.f32 %v6448, %v6448
  %v6503 = vmul.f32 %v6449, %v6449
  %v6504 = vmul.f32 %v6450, %v6450
  %v6505 = vmul.f32 %v6451, %v6451
  %v6506 = vmul.f32 %v6452, %v6452
  %v6507 = vmul.f32 %v6453, %v6453
  %v6508 = vmul.f32 %v6454, %v6454
  %v6509 = vmul.f32 %v6455, %v6455
  %v6510 = vmul.f32 %v6456, %v6456
  %v6511 = vmul.f32 %v6457, %v6457
  %v6512 = vmul.f32 %v6458, %v6458
  %v6513 = vmul.f32 %v6459, %v6459
  %v6514 = vadd.f32 %v6498, %v6499
  %v6515 = vadd.f32 %v6514, %v6500
  %v6516 = vadd.f32 %v6515, %v6501
  %v6517 = vadd.f32 %v6516, %v6502
  %v6518 = vadd.f32 %v6517, %v6503
  %v6519 = vadd.f32 %v6518, %v6504
  %v6520 = vadd.f32 %v6519, %v6505
  %v6521 = vadd.f32 %v6520, %v6506
  %v6522 = vadd.f32 %v6521, %v6507
  %v6523 = vadd.f32 %v6522, %v6508
  %v6524 = vadd.f32 %v6523, %v6509
  %v6525 = vadd.f32 %v6524, %v6510
  %v6526 = vadd.f32 %v6525, %v6511
  %v6527 = vadd.f32 %v6526, %v6512
  %v6528 = vadd.f32 %v6527, %v6513
  %v6529 = vrot.slane %v6528, 4
  %v6530 = vadd.f32 %v6528, %v6529
  %v6531 = vrot.slane %v6530, 2
  %v6532 = vadd.f32 %v6530, %v6531
  %v6533 = vrot.slane %v6532, 1
  %v6534 = vadd.f32 %v6532, %v6533
  %v6535 = vadd.f32 %v3624, %v6534
  %6536 = vrot.lane.b32.xlu0 %v6497, 64
  %v6537 = vpop.permute.xlu0 %6536
  %v6538 = vadd.f32 %v6497, %v6537
  %6539 = vrot.lane.b32.xlu0 %v6535, 64
  %v6540 = vpop.permute.xlu0 %6539
  %v6541 = vadd.f32 %v6535, %v6540
  %v6542 = vmul.f32 %v6538, 0.001953125
  %v6543 = vmul.f32 %v6541, 0.001953125
  %v6544 = vmul.f32 %v6542, %v6542
  %v6545 = vsub.f32 %v6543, %v6544
  %v6546 = vld [vmem:[%s2] sm:$0x1]
  %v6547 = vadd.f32 %v6545, 1e-05
  %v6548 = vrsqrt.pop %v6547
  %v6549 = vmul.f32 %v6546, %v6548
  %v6550 = vld [vmem:[%s2 + $0x1] sm:$0x1]
  %v6551 = vmul.f32 %v6542, %v6549
  %v6552 = vsub.f32 %v6550, %v6551
  %v6553 = vld [vmem:[#allocation3] sm:$0xff]
  %v6554 = vld [vmem:[#allocation3 + $0x8] sm:$0xff]
  %v6555 = vld [vmem:[#allocation3 + $0x10] sm:$0xff]
  %v6556 = vld [vmem:[#allocation3 + $0x18] sm:$0xff]
  %v6557 = vld [vmem:[#allocation3 + $0x20] sm:$0xff]
  %v6558 = vld [vmem:[#allocation3 + $0x28] sm:$0xff]
  %v6559 = vld [vmem:[#allocation3 + $0x30] sm:$0xff]
  %v6560 = vld [vmem:[#allocation3 + $0x38] sm:$0xff]
  %v6561 = vld [vmem:[#allocation3 + $0x40] sm:$0xff]
  %v6562 = vld [vmem:[#allocation3 + $0x48] sm:$0xff]
  %v6563 = vld [vmem:[#allocation3 + $0x50] sm:$0xff]
  %v6564 = vld [vmem:[#allocation3 + $0x58] sm:$0xff]
  %v6565 = vld [vmem:[#allocation3 + $0x60] sm:$0xff]
  %v6566 = vld [vmem:[#allocation3 + $0x68] sm:$0xff]
  %v6567 = vld [vmem:[#allocation3 + $0x70] sm:$0xff]
  %v6568 = vld [vmem:[#allocation3 + $0x78] sm:$0xff]
  %v6569 = vlaneseq
  %v6570 = vshrl.u32 %v6569, 7
  %v6571 = vsub.s32 0, %v6570
  %v6572 = vrot.slane %v6549, %v6571
  %v6573 = vmul.f32 %v6553, %v6572
  %v6574 = vmul.f32 %v6554, %v6572
  %v6575 = vmul.f32 %v6555, %v6572
  %v6576 = vmul.f32 %v6556, %v6572
  %v6577 = vmul.f32 %v6557, %v6572
  %v6578 = vmul.f32 %v6558, %v6572
  %v6579 = vmul.f32 %v6559, %v6572
  %v6580 = vmul.f32 %v6560, %v6572
  %v6581 = vmul.f32 %v6561, %v6572
  %v6582 = vmul.f32 %v6562, %v6572
  %v6583 = vmul.f32 %v6563, %v6572
  %v6584 = vmul.f32 %v6564, %v6572
  %v6585 = vmul.f32 %v6565, %v6572
  %v6586 = vmul.f32 %v6566, %v6572
  %v6587 = vmul.f32 %v6567, %v6572
  %v6588 = vmul.f32 %v6568, %v6572
  %v6589 = vlaneseq
  %v6590 = vshrl.u32 %v6589, 7
  %v6591 = vsub.s32 0, %v6590
  %v6592 = vrot.slane %v6552, %v6591
  %v6593 = vadd.f32 %v6573, %v6592
  %v6594 = vadd.f32 %v6574, %v6592
  %v6595 = vadd.f32 %v6575, %v6592
  %v6596 = vadd.f32 %v6576, %v6592
  %v6597 = vadd.f32 %v6577, %v6592
  %v6598 = vadd.f32 %v6578, %v6592
  %v6599 = vadd.f32 %v6579, %v6592
  %v6600 = vadd.f32 %v6580, %v6592
  %v6601 = vadd.f32 %v6581, %v6592
  %v6602 = vadd.f32 %v6582, %v6592
  %v6603 = vadd.f32 %v6583, %v6592
  %v6604 = vadd.f32 %v6584, %v6592
  %v6605 = vadd.f32 %v6585, %v6592
  %v6606 = vadd.f32 %v6586, %v6592
  %v6607 = vadd.f32 %v6587, %v6592
  %v6608 = vadd.f32 %v6588, %v6592
  %v6609 = vmax.f32 %v6593, 0.0
  %v6610 = vmax.f32 %v6594, 0.0
  %v6611 = vmax.f32 %v6595, 0.0
  %v6612 = vmax.f32 %v6596, 0.0
  %v6613 = vmax.f32 %v6597, 0.0
  %v6614 = vmax.f32 %v6598, 0.0
  %v6615 = vmax.f32 %v6599, 0.0
  %v6616 = vmax.f32 %v6600, 0.0
  %v6617 = vmax.f32 %v6601, 0.0
  %v6618 = vmax.f32 %v6602, 0.0
  %v6619 = vmax.f32 %v6603, 0.0
  %v6620 = vmax.f32 %v6604, 0.0
  %v6621 = vmax.f32 %v6605, 0.0
  %v6622 = vmax.f32 %v6606, 0.0
  %v6623 = vmax.f32 %v6607, 0.0
  %v6624 = vmax.f32 %v6608, 0.0
  %v6625 = vpack.c.bf16 %v6610, %v6609
  %v6626 = vpack.c.bf16 %v6612, %v6611
  %v6627 = vpack.c.bf16 %v6614, %v6613
  %v6628 = vpack.c.bf16 %v6616, %v6615
  %v6629 = vpack.c.bf16 %v6618, %v6617
  %v6630 = vpack.c.bf16 %v6620, %v6619
  %v6631 = vpack.c.bf16 %v6622, %v6621
  %v6632 = vpack.c.bf16 %v6624, %v6623
  %v6641 = vunpack.c.l.b16 %v6625
  %v6642 = vunpack.c.h.b16 %v6625
  %v6643 = vunpack.c.l.b16 %v6626
  %v6644 = vunpack.c.h.b16 %v6626
  %v6645 = vunpack.c.l.b16 %v6627
  %v6646 = vunpack.c.h.b16 %v6627
  %v6647 = vunpack.c.l.b16 %v6628
  %v6648 = vunpack.c.h.b16 %v6628
  %v6649 = vunpack.c.l.b16 %v6629
  %v6650 = vunpack.c.h.b16 %v6629
  %v6651 = vunpack.c.l.b16 %v6630
  %v6652 = vunpack.c.h.b16 %v6630
  %v6653 = vunpack.c.l.b16 %v6631
  %v6654 = vunpack.c.h.b16 %v6631
  %v6655 = vunpack.c.l.b16 %v6632
  %v6656 = vunpack.c.h.b16 %v6632
  %v6657 = vpack.c.b16 %v6641, %v6641
  %v6658 = vpack.c.b16 %v6642, %v6642
  %v6659 = vpack.c.b16 %v6643, %v6643
  %v6660 = vpack.c.b16 %v6644, %v6644
  %v6661 = vpack.c.b16 %v6645, %v6645
  %v6662 = vpack.c.b16 %v6646, %v6646
  %v6663 = vpack.c.b16 %v6647, %v6647
  %v6664 = vpack.c.b16 %v6648, %v6648
  %v6665 = vpack.c.b16 %v6649, %v6649
  %v6666 = vpack.c.b16 %v6650, %v6650
  %v6667 = vpack.c.b16 %v6651, %v6651
  %v6668 = vpack.c.b16 %v6652, %v6652
  %v6669 = vpack.c.b16 %v6653, %v6653
  %v6670 = vpack.c.b16 %v6654, %v6654
  %v6671 = vpack.c.b16 %v6655, %v6655
  %v6672 = vpack.c.b16 %v6656, %v6656
  %v6674 = vshrl.u32 %v6657, 16
  %v6676 = vrot.slane %v6674, 7
  %v6677 = vshll.u32 %v6657, 16
  %v6679 = vor.u32 %v6676, %v6677
  %v6680 = vrot.slane %v6676, 4
  %v6682 = vshrl.u32 %v6658, 16
  %v6684 = vrot.slane %v6682, 7
  %v6685 = vshll.u32 %v6658, 16
  %v6687 = vor.u32 %v6684, %v6685
  %v6688 = vsel %vm200, %v6680, %v6687
  %v6689 = vrot.slane %v6684, 4
  %v6691 = vshrl.u32 %v6659, 16
  %v6693 = vrot.slane %v6691, 7
  %v6694 = vshll.u32 %v6659, 16
  %v6696 = vor.u32 %v6693, %v6694
  %v6697 = vrot.slane %v6693, 4
  %v6699 = vshrl.u32 %v6660, 16
  %v6701 = vrot.slane %v6699, 7
  %v6702 = vshll.u32 %v6660, 16
  %v6704 = vor.u32 %v6701, %v6702
  %v6705 = vsel %vm200, %v6697, %v6704
  %v6706 = vrot.slane %v6701, 4
  %v6708 = vshrl.u32 %v6661, 16
  %v6710 = vrot.slane %v6708, 7
  %v6711 = vshll.u32 %v6661, 16
  %v6713 = vor.u32 %v6710, %v6711
  %v6714 = vrot.slane %v6710, 4
  %v6716 = vshrl.u32 %v6662, 16
  %v6718 = vrot.slane %v6716, 7
  %v6719 = vshll.u32 %v6662, 16
  %v6721 = vor.u32 %v6718, %v6719
  %v6722 = vsel %vm200, %v6714, %v6721
  %v6723 = vrot.slane %v6718, 4
  %v6725 = vshrl.u32 %v6663, 16
  %v6727 = vrot.slane %v6725, 7
  %v6728 = vshll.u32 %v6663, 16
  %v6730 = vor.u32 %v6727, %v6728
  %v6731 = vrot.slane %v6727, 4
  %v6733 = vshrl.u32 %v6664, 16
  %v6735 = vrot.slane %v6733, 7
  %v6736 = vshll.u32 %v6664, 16
  %v6738 = vor.u32 %v6735, %v6736
  %v6739 = vsel %vm200, %v6731, %v6738
  %v6740 = vrot.slane %v6735, 4
  %v6742 = vshrl.u32 %v6665, 16
  %v6744 = vrot.slane %v6742, 7
  %v6745 = vshll.u32 %v6665, 16
  %v6747 = vor.u32 %v6744, %v6745
  %v6748 = vrot.slane %v6744, 4
  %v6750 = vshrl.u32 %v6666, 16
  %v6752 = vrot.slane %v6750, 7
  %v6753 = vshll.u32 %v6666, 16
  %v6755 = vor.u32 %v6752, %v6753
  %v6756 = vsel %vm200, %v6748, %v6755
  %v6757 = vrot.slane %v6752, 4
  %v6759 = vshrl.u32 %v6667, 16
  %v6761 = vrot.slane %v6759, 7
  %v6762 = vshll.u32 %v6667, 16
  %v6764 = vor.u32 %v6761, %v6762
  %v6765 = vrot.slane %v6761, 4
  %v6767 = vshrl.u32 %v6668, 16
  %v6769 = vrot.slane %v6767, 7
  %v6770 = vshll.u32 %v6668, 16
  %v6772 = vor.u32 %v6769, %v6770
  %v6773 = vsel %vm200, %v6765, %v6772
  %v6774 = vrot.slane %v6769, 4
  %v6776 = vshrl.u32 %v6669, 16
  %v6778 = vrot.slane %v6776, 7
  %v6779 = vshll.u32 %v6669, 16
  %v6781 = vor.u32 %v6778, %v6779
  %v6782 = vrot.slane %v6778, 4
  %v6784 = vshrl.u32 %v6670, 16
  %v6786 = vrot.slane %v6784, 7
  %v6787 = vshll.u32 %v6670, 16
  %v6789 = vor.u32 %v6786, %v6787
  %v6790 = vsel %vm200, %v6782, %v6789
  %v6791 = vrot.slane %v6786, 4
  %v6793 = vshrl.u32 %v6671, 16
  %v6795 = vrot.slane %v6793, 7
  %v6796 = vshll.u32 %v6671, 16
  %v6798 = vor.u32 %v6795, %v6796
  %v6799 = vrot.slane %v6795, 4
  %v6801 = vshrl.u32 %v6672, 16
  %v6803 = vrot.slane %v6801, 7
  %v6804 = vshll.u32 %v6672, 16
  %v6806 = vor.u32 %v6803, %v6804
  %v6807 = vsel %vm200, %v6799, %v6806
  %v6808 = vrot.slane %v6803, 4
  %v6833 = vld [vmem:[%s361] sm:$0xf]
  %v6834 = vsel %vm363, %v6679, %v6833
  %6835 = vst [vmem:[%s361] sm:$0xf] %v6834
  %6836 = vst [vmem:[%s361 + $0x4] sm:$0xf] %v6688
  %v6837 = vld [vmem:[%s361 + $0x8] sm:$0x1]
  %v6838 = vsel %vm24, %v6689, %v6837
  %6839 = vst [vmem:[%s361 + $0x8] sm:$0x1] %v6838
  %v6840 = vld [vmem:[%s361 + $0xc] sm:$0xf]
  %v6841 = vsel %vm363, %v6696, %v6840
  %6842 = vst [vmem:[%s361 + $0xc] sm:$0xf] %v6841
  %6843 = vst [vmem:[%s361 + $0x10] sm:$0xf] %v6705
  %v6844 = vld [vmem:[%s361 + $0x14] sm:$0x1]
  %v6845 = vsel %vm24, %v6706, %v6844
  %6846 = vst [vmem:[%s361 + $0x14] sm:$0x1] %v6845
  %v6847 = vld [vmem:[%s361 + $0x18] sm:$0xf]
  %v6848 = vsel %vm363, %v6713, %v6847
  %6849 = vst [vmem:[%s361 + $0x18] sm:$0xf] %v6848
  %6850 = vst [vmem:[%s361 + $0x1c] sm:$0xf] %v6722
  %v6851 = vld [vmem:[%s361 + $0x20] sm:$0x1]
  %v6852 = vsel %vm24, %v6723, %v6851
  %6853 = vst [vmem:[%s361 + $0x20] sm:$0x1] %v6852
  %v6854 = vld [vmem:[%s361 + $0x24] sm:$0xf]
  %v6855 = vsel %vm363, %v6730, %v6854
  %6856 = vst [vmem:[%s361 + $0x24] sm:$0xf] %v6855
  %6857 = vst [vmem:[%s361 + $0x28] sm:$0xf] %v6739
  %v6858 = vld [vmem:[%s361 + $0x2c] sm:$0x1]
  %v6859 = vsel %vm24, %v6740, %v6858
  %6860 = vst [vmem:[%s361 + $0x2c] sm:$0x1] %v6859
  %v6861 = vld [vmem:[%s361 + $0x30] sm:$0xf]
  %v6862 = vsel %vm363, %v6747, %v6861
  %6863 = vst [vmem:[%s361 + $0x30] sm:$0xf] %v6862
  %6864 = vst [vmem:[%s361 + $0x34] sm:$0xf] %v6756
  %v6865 = vld [vmem:[%s361 + $0x38] sm:$0x1]
  %v6866 = vsel %vm24, %v6757, %v6865
  %6867 = vst [vmem:[%s361 + $0x38] sm:$0x1] %v6866
  %v6868 = vld [vmem:[%s361 + $0x3c] sm:$0xf]
  %v6869 = vsel %vm363, %v6764, %v6868
  %6870 = vst [vmem:[%s361 + $0x3c] sm:$0xf] %v6869
  %6871 = vst [vmem:[%s361 + $0x40] sm:$0xf] %v6773
  %v6872 = vld [vmem:[%s361 + $0x44] sm:$0x1]
  %v6873 = vsel %vm24, %v6774, %v6872
  %6874 = vst [vmem:[%s361 + $0x44] sm:$0x1] %v6873
  %v6875 = vld [vmem:[%s361 + $0x48] sm:$0xf]
  %v6876 = vsel %vm363, %v6781, %v6875
  %6877 = vst [vmem:[%s361 + $0x48] sm:$0xf] %v6876
  %6878 = vst [vmem:[%s361 + $0x4c] sm:$0xf] %v6790
  %v6879 = vld [vmem:[%s361 + $0x50] sm:$0x1]
  %v6880 = vsel %vm24, %v6791, %v6879
  %6881 = vst [vmem:[%s361 + $0x50] sm:$0x1] %v6880
  %v6882 = vld [vmem:[%s361 + $0x54] sm:$0xf]
  %v6883 = vsel %vm363, %v6798, %v6882
  %6884 = vst [vmem:[%s361 + $0x54] sm:$0xf] %v6883
  %6885 = vst [vmem:[%s361 + $0x58] sm:$0xf] %v6807
  %v6886 = vld [vmem:[%s361 + $0x5c] sm:$0x1]
  %v6887 = vsel %vm24, %v6808, %v6886
  %6888 = vst [vmem:[%s361 + $0x5c] sm:$0x1] %v6887
  %v6889 = vld [vmem:[#allocation3 + $0x80] sm:$0xff]
  %v6890 = vld [vmem:[#allocation3 + $0x88] sm:$0xff]
  %v6891 = vld [vmem:[#allocation3 + $0x90] sm:$0xff]
  %v6892 = vld [vmem:[#allocation3 + $0x98] sm:$0xff]
  %v6893 = vld [vmem:[#allocation3 + $0xa0] sm:$0xff]
  %v6894 = vld [vmem:[#allocation3 + $0xa8] sm:$0xff]
  %v6895 = vld [vmem:[#allocation3 + $0xb0] sm:$0xff]
  %v6896 = vld [vmem:[#allocation3 + $0xb8] sm:$0xff]
  %v6897 = vld [vmem:[#allocation3 + $0xc0] sm:$0xff]
  %v6898 = vld [vmem:[#allocation3 + $0xc8] sm:$0xff]
  %v6899 = vld [vmem:[#allocation3 + $0xd0] sm:$0xff]
  %v6900 = vld [vmem:[#allocation3 + $0xd8] sm:$0xff]
  %v6901 = vld [vmem:[#allocation3 + $0xe0] sm:$0xff]
  %v6902 = vld [vmem:[#allocation3 + $0xe8] sm:$0xff]
  %v6903 = vld [vmem:[#allocation3 + $0xf0] sm:$0xff]
  %v6904 = vld [vmem:[#allocation3 + $0xf8] sm:$0xff]
  %v6905 = vmul.f32 %v6889, %v6572
  %v6906 = vmul.f32 %v6890, %v6572
  %v6907 = vmul.f32 %v6891, %v6572
  %v6908 = vmul.f32 %v6892, %v6572
  %v6909 = vmul.f32 %v6893, %v6572
  %v6910 = vmul.f32 %v6894, %v6572
  %v6911 = vmul.f32 %v6895, %v6572
  %v6912 = vmul.f32 %v6896, %v6572
  %v6913 = vmul.f32 %v6897, %v6572
  %v6914 = vmul.f32 %v6898, %v6572
  %v6915 = vmul.f32 %v6899, %v6572
  %v6916 = vmul.f32 %v6900, %v6572
  %v6917 = vmul.f32 %v6901, %v6572
  %v6918 = vmul.f32 %v6902, %v6572
  %v6919 = vmul.f32 %v6903, %v6572
  %v6920 = vmul.f32 %v6904, %v6572
  %v6921 = vadd.f32 %v6905, %v6592
  %v6922 = vadd.f32 %v6906, %v6592
  %v6923 = vadd.f32 %v6907, %v6592
  %v6924 = vadd.f32 %v6908, %v6592
  %v6925 = vadd.f32 %v6909, %v6592
  %v6926 = vadd.f32 %v6910, %v6592
  %v6927 = vadd.f32 %v6911, %v6592
  %v6928 = vadd.f32 %v6912, %v6592
  %v6929 = vadd.f32 %v6913, %v6592
  %v6930 = vadd.f32 %v6914, %v6592
  %v6931 = vadd.f32 %v6915, %v6592
  %v6932 = vadd.f32 %v6916, %v6592
  %v6933 = vadd.f32 %v6917, %v6592
  %v6934 = vadd.f32 %v6918, %v6592
  %v6935 = vadd.f32 %v6919, %v6592
  %v6936 = vadd.f32 %v6920, %v6592
  %v6937 = vmax.f32 %v6921, 0.0
  %v6938 = vmax.f32 %v6922, 0.0
  %v6939 = vmax.f32 %v6923, 0.0
  %v6940 = vmax.f32 %v6924, 0.0
  %v6941 = vmax.f32 %v6925, 0.0
  %v6942 = vmax.f32 %v6926, 0.0
  %v6943 = vmax.f32 %v6927, 0.0
  %v6944 = vmax.f32 %v6928, 0.0
  %v6945 = vmax.f32 %v6929, 0.0
  %v6946 = vmax.f32 %v6930, 0.0
  %v6947 = vmax.f32 %v6931, 0.0
  %v6948 = vmax.f32 %v6932, 0.0
  %v6949 = vmax.f32 %v6933, 0.0
  %v6950 = vmax.f32 %v6934, 0.0
  %v6951 = vmax.f32 %v6935, 0.0
  %v6952 = vmax.f32 %v6936, 0.0
  %v6953 = vpack.c.bf16 %v6938, %v6937
  %v6954 = vpack.c.bf16 %v6940, %v6939
  %v6955 = vpack.c.bf16 %v6942, %v6941
  %v6956 = vpack.c.bf16 %v6944, %v6943
  %v6957 = vpack.c.bf16 %v6946, %v6945
  %v6958 = vpack.c.bf16 %v6948, %v6947
  %v6959 = vpack.c.bf16 %v6950, %v6949
  %v6960 = vpack.c.bf16 %v6952, %v6951
  %v6969 = vunpack.c.l.b16 %v6953
  %v6970 = vunpack.c.h.b16 %v6953
  %v6971 = vunpack.c.l.b16 %v6954
  %v6972 = vunpack.c.h.b16 %v6954
  %v6973 = vunpack.c.l.b16 %v6955
  %v6974 = vunpack.c.h.b16 %v6955
  %v6975 = vunpack.c.l.b16 %v6956
  %v6976 = vunpack.c.h.b16 %v6956
  %v6977 = vunpack.c.l.b16 %v6957
  %v6978 = vunpack.c.h.b16 %v6957
  %v6979 = vunpack.c.l.b16 %v6958
  %v6980 = vunpack.c.h.b16 %v6958
  %v6981 = vunpack.c.l.b16 %v6959
  %v6982 = vunpack.c.h.b16 %v6959
  %v6983 = vunpack.c.l.b16 %v6960
  %v6984 = vunpack.c.h.b16 %v6960
  %v6985 = vpack.c.b16 %v6969, %v6969
  %v6986 = vpack.c.b16 %v6970, %v6970
  %v6987 = vpack.c.b16 %v6971, %v6971
  %v6988 = vpack.c.b16 %v6972, %v6972
  %v6989 = vpack.c.b16 %v6973, %v6973
  %v6990 = vpack.c.b16 %v6974, %v6974
  %v6991 = vpack.c.b16 %v6975, %v6975
  %v6992 = vpack.c.b16 %v6976, %v6976
  %v6993 = vpack.c.b16 %v6977, %v6977
  %v6994 = vpack.c.b16 %v6978, %v6978
  %v6995 = vpack.c.b16 %v6979, %v6979
  %v6996 = vpack.c.b16 %v6980, %v6980
  %v6997 = vpack.c.b16 %v6981, %v6981
  %v6998 = vpack.c.b16 %v6982, %v6982
  %v6999 = vpack.c.b16 %v6983, %v6983
  %v7000 = vpack.c.b16 %v6984, %v6984
  %v7002 = vshrl.u32 %v6985, 16
  %v7004 = vrot.slane %v7002, 7
  %v7005 = vshll.u32 %v6985, 16
  %v7007 = vor.u32 %v7004, %v7005
  %v7008 = vrot.slane %v7004, 4
  %v7010 = vshrl.u32 %v6986, 16
  %v7012 = vrot.slane %v7010, 7
  %v7013 = vshll.u32 %v6986, 16
  %v7015 = vor.u32 %v7012, %v7013
  %v7016 = vsel %vm200, %v7008, %v7015
  %v7017 = vrot.slane %v7012, 4
  %v7019 = vshrl.u32 %v6987, 16
  %v7021 = vrot.slane %v7019, 7
  %v7022 = vshll.u32 %v6987, 16
  %v7024 = vor.u32 %v7021, %v7022
  %v7025 = vrot.slane %v7021, 4
  %v7027 = vshrl.u32 %v6988, 16
  %v7029 = vrot.slane %v7027, 7
  %v7030 = vshll.u32 %v6988, 16
  %v7032 = vor.u32 %v7029, %v7030
  %v7033 = vsel %vm200, %v7025, %v7032
  %v7034 = vrot.slane %v7029, 4
  %v7036 = vshrl.u32 %v6989, 16
  %v7038 = vrot.slane %v7036, 7
  %v7039 = vshll.u32 %v6989, 16
  %v7041 = vor.u32 %v7038, %v7039
  %v7042 = vrot.slane %v7038, 4
  %v7044 = vshrl.u32 %v6990, 16
  %v7046 = vrot.slane %v7044, 7
  %v7047 = vshll.u32 %v6990, 16
  %v7049 = vor.u32 %v7046, %v7047
  %v7050 = vsel %vm200, %v7042, %v7049
  %v7051 = vrot.slane %v7046, 4
  %v7053 = vshrl.u32 %v6991, 16
  %v7055 = vrot.slane %v7053, 7
  %v7056 = vshll.u32 %v6991, 16
  %v7058 = vor.u32 %v7055, %v7056
  %v7059 = vrot.slane %v7055, 4
  %v7061 = vshrl.u32 %v6992, 16
  %v7063 = vrot.slane %v7061, 7
  %v7064 = vshll.u32 %v6992, 16
  %v7066 = vor.u32 %v7063, %v7064
  %v7067 = vsel %vm200, %v7059, %v7066
  %v7068 = vrot.slane %v7063, 4
  %v7070 = vshrl.u32 %v6993, 16
  %v7072 = vrot.slane %v7070, 7
  %v7073 = vshll.u32 %v6993, 16
  %v7075 = vor.u32 %v7072, %v7073
  %v7076 = vrot.slane %v7072, 4
  %v7078 = vshrl.u32 %v6994, 16
  %v7080 = vrot.slane %v7078, 7
  %v7081 = vshll.u32 %v6994, 16
  %v7083 = vor.u32 %v7080, %v7081
  %v7084 = vsel %vm200, %v7076, %v7083
  %v7085 = vrot.slane %v7080, 4
  %v7087 = vshrl.u32 %v6995, 16
  %v7089 = vrot.slane %v7087, 7
  %v7090 = vshll.u32 %v6995, 16
  %v7092 = vor.u32 %v7089, %v7090
  %v7093 = vrot.slane %v7089, 4
  %v7095 = vshrl.u32 %v6996, 16
  %v7097 = vrot.slane %v7095, 7
  %v7098 = vshll.u32 %v6996, 16
  %v7100 = vor.u32 %v7097, %v7098
  %v7101 = vsel %vm200, %v7093, %v7100
  %v7102 = vrot.slane %v7097, 4
  %v7104 = vshrl.u32 %v6997, 16
  %v7106 = vrot.slane %v7104, 7
  %v7107 = vshll.u32 %v6997, 16
  %v7109 = vor.u32 %v7106, %v7107
  %v7110 = vrot.slane %v7106, 4
  %v7112 = vshrl.u32 %v6998, 16
  %v7114 = vrot.slane %v7112, 7
  %v7115 = vshll.u32 %v6998, 16
  %v7117 = vor.u32 %v7114, %v7115
  %v7118 = vsel %vm200, %v7110, %v7117
  %v7119 = vrot.slane %v7114, 4
  %v7121 = vshrl.u32 %v6999, 16
  %v7123 = vrot.slane %v7121, 7
  %v7124 = vshll.u32 %v6999, 16
  %v7126 = vor.u32 %v7123, %v7124
  %v7127 = vrot.slane %v7123, 4
  %v7129 = vshrl.u32 %v7000, 16
  %v7131 = vrot.slane %v7129, 7
  %v7132 = vshll.u32 %v7000, 16
  %v7134 = vor.u32 %v7131, %v7132
  %v7135 = vsel %vm200, %v7127, %v7134
  %v7136 = vrot.slane %v7131, 4
  %v7161 = vld [vmem:[%s644] sm:$0xf]
  %v7162 = vsel %vm363, %v7007, %v7161
  %7163 = vst [vmem:[%s644] sm:$0xf] %v7162
  %7164 = vst [vmem:[%s644 + $0x4] sm:$0xf] %v7016
  %v7165 = vld [vmem:[%s644 + $0x8] sm:$0x1]
  %v7166 = vsel %vm24, %v7017, %v7165
  %7167 = vst [vmem:[%s644 + $0x8] sm:$0x1] %v7166
  %v7168 = vld [vmem:[%s644 + $0xc] sm:$0xf]
  %v7169 = vsel %vm363, %v7024, %v7168
  %7170 = vst [vmem:[%s644 + $0xc] sm:$0xf] %v7169
  %7171 = vst [vmem:[%s644 + $0x10] sm:$0xf] %v7033
  %v7172 = vld [vmem:[%s644 + $0x14] sm:$0x1]
  %v7173 = vsel %vm24, %v7034, %v7172
  %7174 = vst [vmem:[%s644 + $0x14] sm:$0x1] %v7173
  %v7175 = vld [vmem:[%s644 + $0x18] sm:$0xf]
  %v7176 = vsel %vm363, %v7041, %v7175
  %7177 = vst [vmem:[%s644 + $0x18] sm:$0xf] %v7176
  %7178 = vst [vmem:[%s644 + $0x1c] sm:$0xf] %v7050
  %v7179 = vld [vmem:[%s644 + $0x20] sm:$0x1]
  %v7180 = vsel %vm24, %v7051, %v7179
  %7181 = vst [vmem:[%s644 + $0x20] sm:$0x1] %v7180
  %v7182 = vld [vmem:[%s644 + $0x24] sm:$0xf]
  %v7183 = vsel %vm363, %v7058, %v7182
  %7184 = vst [vmem:[%s644 + $0x24] sm:$0xf] %v7183
  %7185 = vst [vmem:[%s644 + $0x28] sm:$0xf] %v7067
  %v7186 = vld [vmem:[%s644 + $0x2c] sm:$0x1]
  %v7187 = vsel %vm24, %v7068, %v7186
  %7188 = vst [vmem:[%s644 + $0x2c] sm:$0x1] %v7187
  %v7189 = vld [vmem:[%s644 + $0x30] sm:$0xf]
  %v7190 = vsel %vm363, %v7075, %v7189
  %7191 = vst [vmem:[%s644 + $0x30] sm:$0xf] %v7190
  %7192 = vst [vmem:[%s644 + $0x34] sm:$0xf] %v7084
  %v7193 = vld [vmem:[%s644 + $0x38] sm:$0x1]
  %v7194 = vsel %vm24, %v7085, %v7193
  %7195 = vst [vmem:[%s644 + $0x38] sm:$0x1] %v7194
  %v7196 = vld [vmem:[%s644 + $0x3c] sm:$0xf]
  %v7197 = vsel %vm363, %v7092, %v7196
  %7198 = vst [vmem:[%s644 + $0x3c] sm:$0xf] %v7197
  %7199 = vst [vmem:[%s644 + $0x40] sm:$0xf] %v7101
  %v7200 = vld [vmem:[%s644 + $0x44] sm:$0x1]
  %v7201 = vsel %vm24, %v7102, %v7200
  %7202 = vst [vmem:[%s644 + $0x44] sm:$0x1] %v7201
  %v7203 = vld [vmem:[%s644 + $0x48] sm:$0xf]
  %v7204 = vsel %vm363, %v7109, %v7203
  %7205 = vst [vmem:[%s644 + $0x48] sm:$0xf] %v7204
  %7206 = vst [vmem:[%s644 + $0x4c] sm:$0xf] %v7118
  %v7207 = vld [vmem:[%s644 + $0x50] sm:$0x1]
  %v7208 = vsel %vm24, %v7119, %v7207
  %7209 = vst [vmem:[%s644 + $0x50] sm:$0x1] %v7208
  %v7210 = vld [vmem:[%s644 + $0x54] sm:$0xf]
  %v7211 = vsel %vm363, %v7126, %v7210
  %7212 = vst [vmem:[%s644 + $0x54] sm:$0xf] %v7211
  %7213 = vst [vmem:[%s644 + $0x58] sm:$0xf] %v7135
  %v7214 = vld [vmem:[%s644 + $0x5c] sm:$0x1]
  %v7215 = vsel %vm24, %v7136, %v7214
  %7216 = vst [vmem:[%s644 + $0x5c] sm:$0x1] %v7215
  %v7217 = vld [vmem:[#allocation2] sm:$0xf]
  %v7218 = vld [vmem:[#allocation2 + $0x4] sm:$0xf]
  %v7219 = vld [vmem:[#allocation2 + $0xc] sm:$0xf]
  %v7220 = vld [vmem:[#allocation2 + $0x10] sm:$0xf]
  %v7221 = vld [vmem:[#allocation2 + $0x18] sm:$0xf]
  %v7222 = vld [vmem:[#allocation2 + $0x1c] sm:$0xf]
  %v7223 = vld [vmem:[#allocation2 + $0x24] sm:$0xf]
  %v7224 = vld [vmem:[#allocation2 + $0x28] sm:$0xf]
  %v7225 = vld [vmem:[#allocation2 + $0x30] sm:$0xf]
  %v7226 = vld [vmem:[#allocation2 + $0x34] sm:$0xf]
  %v7227 = vld [vmem:[#allocation2 + $0x3c] sm:$0xf]
  %v7228 = vld [vmem:[#allocation2 + $0x40] sm:$0xf]
  %v7229 = vld [vmem:[#allocation2 + $0x48] sm:$0xf]
  %v7230 = vld [vmem:[#allocation2 + $0x4c] sm:$0xf]
  %v7231 = vld [vmem:[#allocation2 + $0x54] sm:$0xf]
  %v7232 = vld [vmem:[#allocation2 + $0x58] sm:$0xf]
  %v7233 = vld [vmem:[%s1] sm:$0xf]
  %v7234 = vld [vmem:[%s1 + $0x4] sm:$0xf]
  %v7235 = vld [vmem:[%s1 + $0x8] sm:$0xf]
  %v7236 = vld [vmem:[%s1 + $0xc] sm:$0xf]
  %v7237 = vld [vmem:[%s1 + $0x10] sm:$0xf]
  %v7238 = vld [vmem:[%s1 + $0x14] sm:$0xf]
  %v7239 = vld [vmem:[%s1 + $0x18] sm:$0xf]
  %v7240 = vld [vmem:[%s1 + $0x1c] sm:$0xf]
  %v7241 = vld [vmem:[%s1 + $0x20] sm:$0xf]
  %v7242 = vld [vmem:[%s1 + $0x24] sm:$0xf]
  %v7243 = vld [vmem:[%s1 + $0x28] sm:$0xf]
  %v7244 = vld [vmem:[%s1 + $0x2c] sm:$0xf]
  %v7245 = vld [vmem:[%s1 + $0x30] sm:$0xf]
  %v7246 = vld [vmem:[%s1 + $0x34] sm:$0xf]
  %v7247 = vld [vmem:[%s1 + $0x38] sm:$0xf]
  %v7248 = vld [vmem:[%s1 + $0x3c] sm:$0xf]
  %v7249 = vld [vmem:[#allocation2 + $0x8] sm:$0x1]
  %v7250 = vld [vmem:[#allocation2 + $0x14] sm:$0x1]
  %v7251 = vld [vmem:[#allocation2 + $0x20] sm:$0x1]
  %v7252 = vld [vmem:[#allocation2 + $0x2c] sm:$0x1]
  %v7253 = vld [vmem:[#allocation2 + $0x38] sm:$0x1]
  %v7254 = vld [vmem:[#allocation2 + $0x44] sm:$0x1]
  %v7255 = vld [vmem:[#allocation2 + $0x50] sm:$0x1]
  %v7256 = vld [vmem:[#allocation2 + $0x5c] sm:$0x1]
  %v7258 = vshrl.u32 %v7217, 16
  %v7260 = vrot.slane %v7258, 4
  %v7261 = vshll.u32 %v7217, 16
  %v7263 = vrot.slane %v7261, 5
  %v7264 = vor.u32 %v7260, %v7263
  %v7265 = vrot.slane %v7264, 4
  %v7267 = vshll.u32 %v7218, 16
  %v7269 = vrot.slane %v7267, 5
  %v7270 = vsel %vm743, %v7265, %v7269
  %v7271 = vshrl.u32 %v7218, 16
  %v7273 = vrot.slane %v7271, 4
  %v7274 = vor.u32 %v7273, %v7269
  %v7275 = vrot.slane %v7274, 4
  %v7277 = vshll.u32 %v7249, 16
  %v7279 = vrot.slane %v7277, 5
  %v7280 = vsel %vm743, %v7275, %v7279
  %v7282 = vshrl.u32 %v7219, 16
  %v7284 = vrot.slane %v7282, 4
  %v7285 = vshll.u32 %v7219, 16
  %v7287 = vrot.slane %v7285, 5
  %v7288 = vor.u32 %v7284, %v7287
  %v7289 = vrot.slane %v7288, 4
  %v7291 = vshll.u32 %v7220, 16
  %v7293 = vrot.slane %v7291, 5
  %v7294 = vsel %vm743, %v7289, %v7293
  %v7295 = vshrl.u32 %v7220, 16
  %v7297 = vrot.slane %v7295, 4
  %v7298 = vor.u32 %v7297, %v7293
  %v7299 = vrot.slane %v7298, 4
  %v7301 = vshll.u32 %v7250, 16
  %v7303 = vrot.slane %v7301, 5
  %v7304 = vsel %vm743, %v7299, %v7303
  %v7306 = vshrl.u32 %v7221, 16
  %v7308 = vrot.slane %v7306, 4
  %v7309 = vshll.u32 %v7221, 16
  %v7311 = vrot.slane %v7309, 5
  %v7312 = vor.u32 %v7308, %v7311
  %v7313 = vrot.slane %v7312, 4
  %v7315 = vshll.u32 %v7222, 16
  %v7317 = vrot.slane %v7315, 5
  %v7318 = vsel %vm743, %v7313, %v7317
  %v7319 = vshrl.u32 %v7222, 16
  %v7321 = vrot.slane %v7319, 4
  %v7322 = vor.u32 %v7321, %v7317
  %v7323 = vrot.slane %v7322, 4
  %v7325 = vshll.u32 %v7251, 16
  %v7327 = vrot.slane %v7325, 5
  %v7328 = vsel %vm743, %v7323, %v7327
  %v7330 = vshrl.u32 %v7223, 16
  %v7332 = vrot.slane %v7330, 4
  %v7333 = vshll.u32 %v7223, 16
  %v7335 = vrot.slane %v7333, 5
  %v7336 = vor.u32 %v7332, %v7335
  %v7337 = vrot.slane %v7336, 4
  %v7339 = vshll.u32 %v7224, 16
  %v7341 = vrot.slane %v7339, 5
  %v7342 = vsel %vm743, %v7337, %v7341
  %v7343 = vshrl.u32 %v7224, 16
  %v7345 = vrot.slane %v7343, 4
  %v7346 = vor.u32 %v7345, %v7341
  %v7347 = vrot.slane %v7346, 4
  %v7349 = vshll.u32 %v7252, 16
  %v7351 = vrot.slane %v7349, 5
  %v7352 = vsel %vm743, %v7347, %v7351
  %v7354 = vshrl.u32 %v7225, 16
  %v7356 = vrot.slane %v7354, 4
  %v7357 = vshll.u32 %v7225, 16
  %v7359 = vrot.slane %v7357, 5
  %v7360 = vor.u32 %v7356, %v7359
  %v7361 = vrot.slane %v7360, 4
  %v7363 = vshll.u32 %v7226, 16
  %v7365 = vrot.slane %v7363, 5
  %v7366 = vsel %vm743, %v7361, %v7365
  %v7367 = vshrl.u32 %v7226, 16
  %v7369 = vrot.slane %v7367, 4
  %v7370 = vor.u32 %v7369, %v7365
  %v7371 = vrot.slane %v7370, 4
  %v7373 = vshll.u32 %v7253, 16
  %v7375 = vrot.slane %v7373, 5
  %v7376 = vsel %vm743, %v7371, %v7375
  %v7378 = vshrl.u32 %v7227, 16
  %v7380 = vrot.slane %v7378, 4
  %v7381 = vshll.u32 %v7227, 16
  %v7383 = vrot.slane %v7381, 5
  %v7384 = vor.u32 %v7380, %v7383
  %v7385 = vrot.slane %v7384, 4
  %v7387 = vshll.u32 %v7228, 16
  %v7389 = vrot.slane %v7387, 5
  %v7390 = vsel %vm743, %v7385, %v7389
  %v7391 = vshrl.u32 %v7228, 16
  %v7393 = vrot.slane %v7391, 4
  %v7394 = vor.u32 %v7393, %v7389
  %v7395 = vrot.slane %v7394, 4
  %v7397 = vshll.u32 %v7254, 16
  %v7399 = vrot.slane %v7397, 5
  %v7400 = vsel %vm743, %v7395, %v7399
  %v7402 = vshrl.u32 %v7229, 16
  %v7404 = vrot.slane %v7402, 4
  %v7405 = vshll.u32 %v7229, 16
  %v7407 = vrot.slane %v7405, 5
  %v7408 = vor.u32 %v7404, %v7407
  %v7409 = vrot.slane %v7408, 4
  %v7411 = vshll.u32 %v7230, 16
  %v7413 = vrot.slane %v7411, 5
  %v7414 = vsel %vm743, %v7409, %v7413
  %v7415 = vshrl.u32 %v7230, 16
  %v7417 = vrot.slane %v7415, 4
  %v7418 = vor.u32 %v7417, %v7413
  %v7419 = vrot.slane %v7418, 4
  %v7421 = vshll.u32 %v7255, 16
  %v7423 = vrot.slane %v7421, 5
  %v7424 = vsel %vm743, %v7419, %v7423
  %v7426 = vshrl.u32 %v7231, 16
  %v7428 = vrot.slane %v7426, 4
  %v7429 = vshll.u32 %v7231, 16
  %v7431 = vrot.slane %v7429, 5
  %v7432 = vor.u32 %v7428, %v7431
  %v7433 = vrot.slane %v7432, 4
  %v7435 = vshll.u32 %v7232, 16
  %v7437 = vrot.slane %v7435, 5
  %v7438 = vsel %vm743, %v7433, %v7437
  %v7439 = vshrl.u32 %v7232, 16
  %v7441 = vrot.slane %v7439, 4
  %v7442 = vor.u32 %v7441, %v7437
  %v7443 = vrot.slane %v7442, 4
  %v7445 = vshll.u32 %v7256, 16
  %v7447 = vrot.slane %v7445, 5
  %v7448 = vsel %vm743, %v7443, %v7447
  %v7449 = vld [vmem:[%s936] sm:$0xf]
  %v7450 = vld [vmem:[%s936 + $0x4] sm:$0xf]
  %v7451 = vld [vmem:[%s936 + $0x8] sm:$0xf]
  %v7452 = vld [vmem:[%s936 + $0xc] sm:$0xf]
  %v7453 = vld [vmem:[%s936 + $0x10] sm:$0xf]
  %v7454 = vld [vmem:[%s936 + $0x14] sm:$0xf]
  %v7455 = vld [vmem:[%s936 + $0x18] sm:$0xf]
  %v7456 = vld [vmem:[%s936 + $0x1c] sm:$0xf]
  %v7457 = vld [vmem:[%s936 + $0x20] sm:$0xf]
  %v7458 = vld [vmem:[%s936 + $0x24] sm:$0xf]
  %v7459 = vld [vmem:[%s936 + $0x28] sm:$0xf]
  %v7460 = vld [vmem:[%s936 + $0x2c] sm:$0xf]
  %v7461 = vld [vmem:[%s936 + $0x30] sm:$0xf]
  %v7462 = vld [vmem:[%s936 + $0x34] sm:$0xf]
  %v7463 = vld [vmem:[%s936 + $0x38] sm:$0xf]
  %v7464 = vld [vmem:[%s936 + $0x3c] sm:$0xf]
  %v7465 = vunpack.c.l.b16 %v7270
  %v7466 = vunpack.c.l.b16 %v7280
  %v7467 = vunpack.c.l.b16 %v7294
  %v7468 = vunpack.c.l.b16 %v7304
  %v7469 = vunpack.c.l.b16 %v7318
  %v7470 = vunpack.c.l.b16 %v7328
  %v7471 = vunpack.c.l.b16 %v7342
  %v7472 = vunpack.c.l.b16 %v7352
  %v7473 = vunpack.c.l.b16 %v7366
  %v7474 = vunpack.c.l.b16 %v7376
  %v7475 = vunpack.c.l.b16 %v7390
  %v7476 = vunpack.c.l.b16 %v7400
  %v7477 = vunpack.c.l.b16 %v7414
  %v7478 = vunpack.c.l.b16 %v7424
  %v7479 = vunpack.c.l.b16 %v7438
  %v7480 = vunpack.c.l.b16 %v7448
  %v7481 = vpack.c.b16 %v7466, %v7465
  %v7482 = vpack.c.b16 %v7468, %v7467
  %v7483 = vpack.c.b16 %v7470, %v7469
  %v7484 = vpack.c.b16 %v7472, %v7471
  %v7485 = vpack.c.b16 %v7474, %v7473
  %v7486 = vpack.c.b16 %v7476, %v7475
  %v7487 = vpack.c.b16 %v7478, %v7477
  %v7488 = vpack.c.b16 %v7480, %v7479
  %v7513 = vunpack.c.l.b16 %v7449
  %v7514 = vunpack.c.l.b16 %v7450
  %v7515 = vunpack.c.l.b16 %v7451
  %v7516 = vunpack.c.l.b16 %v7452
  %v7517 = vunpack.c.l.b16 %v7453
  %v7518 = vunpack.c.l.b16 %v7454
  %v7519 = vunpack.c.l.b16 %v7455
  %v7520 = vunpack.c.l.b16 %v7456
  %v7521 = vunpack.c.l.b16 %v7457
  %v7522 = vunpack.c.l.b16 %v7458
  %v7523 = vunpack.c.l.b16 %v7459
  %v7524 = vunpack.c.l.b16 %v7460
  %v7525 = vunpack.c.l.b16 %v7461
  %v7526 = vunpack.c.l.b16 %v7462
  %v7527 = vunpack.c.l.b16 %v7463
  %v7528 = vunpack.c.l.b16 %v7464
  %v7529 = vpack.c.b16 %v7514, %v7513
  %v7530 = vpack.c.b16 %v7516, %v7515
  %v7531 = vpack.c.b16 %v7518, %v7517
  %v7532 = vpack.c.b16 %v7520, %v7519
  %v7533 = vpack.c.b16 %v7522, %v7521
  %v7534 = vpack.c.b16 %v7524, %v7523
  %v7535 = vpack.c.b16 %v7526, %v7525
  %v7536 = vpack.c.b16 %v7528, %v7527
  %7545 = vmatprep.subr.bf16.mxu0 0
  %7546 = vmatpush1.bf16.msra.mxu0 %v7529
  %7547 = vmatprep.subr.bf16.mxu0 0
  %7548 = vmatpush1.bf16.msra.mxu0 %v7530
  %7549 = vmatprep.subr.bf16.mxu0 0
  %7550 = vmatpush1.bf16.msra.mxu0 %v7531
  %7551 = vmatprep.subr.bf16.mxu0 0
  %7552 = vmatpush1.bf16.msra.mxu0 %v7532
  %7553 = vmatprep.subr.bf16.mxu0 0
  %7554 = vmatpush1.bf16.msra.mxu0 %v7533
  %7555 = vmatprep.subr.bf16.mxu0 0
  %7556 = vmatpush1.bf16.msra.mxu0 %v7534
  %7557 = vmatprep.subr.bf16.mxu0 0
  %7558 = vmatpush1.bf16.msra.mxu0 %v7535
  %7559 = vmatprep.subr.bf16.mxu0 0
  %7560 = vmatpush1.bf16.msra.mxu0 %v7536
  %7561 = vmatprep.subr.bf16.mxu0 0
  %7562 = vmatpush1.bf16.msra.mxu0 0
  %7563 = vmatprep.subr.bf16.mxu0 0
  %7564 = vmatpush1.bf16.msra.mxu0 0
  %7565 = vmatprep.subr.bf16.mxu0 0
  %7566 = vmatpush1.bf16.msra.mxu0 0
  %7567 = vmatprep.subr.bf16.mxu0 0
  %7568 = vmatpush1.bf16.msra.mxu0 0
  %7569 = vmatprep.subr.bf16.mxu0 0
  %7570 = vmatpush1.bf16.msra.mxu0 0
  %7571 = vmatprep.subr.bf16.mxu0 0
  %7572 = vmatpush1.bf16.msra.mxu0 0
  %7573 = vmatprep.subr.bf16.mxu0 0
  %7574 = vmatpush1.bf16.msra.mxu0 0
  %7575 = vmatprep.subr.bf16.mxu0 0
  %7576 = vmatpush1.bf16.msra.mxu0 0
  %7577 = vmatprep.mubr.bf16.mxu0 0
  %7578 = vmatmul.mubr.bf16.gmra.mrb[0].mxu0 %v7481
  %v7579 = vpop.f32.mrb[0].mxu0
  %v7580 = vadd.f32 0.0, %v7579
  %v7581 = vpop.f32.mrb[0].mxu0
  %v7582 = vpop.f32.mrb[0].mxu0
  %v7583 = vadd.f32 0.0, %v7582
  %v7584 = vpop.f32.mrb[0].mxu0
  %7585 = vmatprep.mubr.bf16.mxu0 0
  %7586 = vmatmul.mubr.bf16.gmra.mrb[0].mxu0 %v7482
  %v7587 = vpop.f32.mrb[0].mxu0
  %v7588 = vadd.f32 0.0, %v7587
  %v7589 = vpop.f32.mrb[0].mxu0
  %v7590 = vpop.f32.mrb[0].mxu0
  %v7591 = vadd.f32 0.0, %v7590
  %v7592 = vpop.f32.mrb[0].mxu0
  %7593 = vmatprep.mubr.bf16.mxu0 0
  %7594 = vmatmul.mubr.bf16.gmra.mrb[0].mxu0 %v7483
  %v7595 = vpop.f32.mrb[0].mxu0
  %v7596 = vadd.f32 0.0, %v7595
  %v7597 = vpop.f32.mrb[0].mxu0
  %v7598 = vpop.f32.mrb[0].mxu0
  %v7599 = vadd.f32 0.0, %v7598
  %v7600 = vpop.f32.mrb[0].mxu0
  %7601 = vmatprep.mubr.bf16.mxu0 0
  %7602 = vmatmul.mubr.bf16.gmra.mrb[0].mxu0 %v7484
  %v7603 = vpop.f32.mrb[0].mxu0
  %v7604 = vadd.f32 0.0, %v7603
  %v7605 = vpop.f32.mrb[0].mxu0
  %v7606 = vpop.f32.mrb[0].mxu0
  %v7607 = vadd.f32 0.0, %v7606
  %v7608 = vpop.f32.mrb[0].mxu0
  %7609 = vmatprep.mubr.bf16.mxu0 0
  %7610 = vmatmul.mubr.bf16.gmra.mrb[0].mxu0 %v7485
  %v7611 = vpop.f32.mrb[0].mxu0
  %v7612 = vadd.f32 0.0, %v7611
  %v7613 = vpop.f32.mrb[0].mxu0
  %v7614 = vpop.f32.mrb[0].mxu0
  %v7615 = vadd.f32 0.0, %v7614
  %v7616 = vpop.f32.mrb[0].mxu0
  %7617 = vmatprep.mubr.bf16.mxu0 0
  %7618 = vmatmul.mubr.bf16.gmra.mrb[0].mxu0 %v7486
  %v7619 = vpop.f32.mrb[0].mxu0
  %v7620 = vadd.f32 0.0, %v7619
  %v7621 = vpop.f32.mrb[0].mxu0
  %v7622 = vpop.f32.mrb[0].mxu0
  %v7623 = vadd.f32 0.0, %v7622
  %v7624 = vpop.f32.mrb[0].mxu0
  %7625 = vmatprep.mubr.bf16.mxu0 0
  %7626 = vmatmul.mubr.bf16.gmra.mrb[0].mxu0 %v7487
  %v7627 = vpop.f32.mrb[0].mxu0
  %v7628 = vadd.f32 0.0, %v7627
  %v7629 = vpop.f32.mrb[0].mxu0
  %v7630 = vpop.f32.mrb[0].mxu0
  %v7631 = vadd.f32 0.0, %v7630
  %v7632 = vpop.f32.mrb[0].mxu0
  %7633 = vmatprep.mubr.bf16.mxu0 0
  %7634 = vmatmul.mubr.bf16.gmra.mrb[0].mxu0 %v7488
  %v7635 = vpop.f32.mrb[0].mxu0
  %v7636 = vadd.f32 0.0, %v7635
  %v7637 = vpop.f32.mrb[0].mxu0
  %v7638 = vpop.f32.mrb[0].mxu0
  %v7639 = vadd.f32 0.0, %v7638
  %v7640 = vpop.f32.mrb[0].mxu0
  %7641 = vdwg.mxu0
  %v7658 = vunpack.c.l.b16 %v7217
  %v7659 = vunpack.c.l.b16 %v7218
  %v7660 = vunpack.c.l.b16 %v7219
  %v7661 = vunpack.c.l.b16 %v7220
  %v7662 = vunpack.c.l.b16 %v7221
  %v7663 = vunpack.c.l.b16 %v7222
  %v7664 = vunpack.c.l.b16 %v7223
  %v7665 = vunpack.c.l.b16 %v7224
  %v7666 = vunpack.c.l.b16 %v7225
  %v7667 = vunpack.c.l.b16 %v7226
  %v7668 = vunpack.c.l.b16 %v7227
  %v7669 = vunpack.c.l.b16 %v7228
  %v7670 = vunpack.c.l.b16 %v7229
  %v7671 = vunpack.c.l.b16 %v7230
  %v7672 = vunpack.c.l.b16 %v7231
  %v7673 = vunpack.c.l.b16 %v7232
  %v7674 = vpack.c.b16 %v7659, %v7658
  %v7675 = vpack.c.b16 %v7661, %v7660
  %v7676 = vpack.c.b16 %v7663, %v7662
  %v7677 = vpack.c.b16 %v7665, %v7664
  %v7678 = vpack.c.b16 %v7667, %v7666
  %v7679 = vpack.c.b16 %v7669, %v7668
  %v7680 = vpack.c.b16 %v7671, %v7670
  %v7681 = vpack.c.b16 %v7673, %v7672
  %v7706 = vunpack.c.l.b16 %v7233
  %v7707 = vunpack.c.l.b16 %v7234
  %v7708 = vunpack.c.l.b16 %v7235
  %v7709 = vunpack.c.l.b16 %v7236
  %v7710 = vunpack.c.l.b16 %v7237
  %v7711 = vunpack.c.l.b16 %v7238
  %v7712 = vunpack.c.l.b16 %v7239
  %v7713 = vunpack.c.l.b16 %v7240
  %v7714 = vunpack.c.l.b16 %v7241
  %v7715 = vunpack.c.l.b16 %v7242
  %v7716 = vunpack.c.l.b16 %v7243
  %v7717 = vunpack.c.l.b16 %v7244
  %v7718 = vunpack.c.l.b16 %v7245
  %v7719 = vunpack.c.l.b16 %v7246
  %v7720 = vunpack.c.l.b16 %v7247
  %v7721 = vunpack.c.l.b16 %v7248
  %v7722 = vpack.c.b16 %v7707, %v7706
  %v7723 = vpack.c.b16 %v7709, %v7708
  %v7724 = vpack.c.b16 %v7711, %v7710
  %v7725 = vpack.c.b16 %v7713, %v7712
  %v7726 = vpack.c.b16 %v7715, %v7714
  %v7727 = vpack.c.b16 %v7717, %v7716
  %v7728 = vpack.c.b16 %v7719, %v7718
  %v7729 = vpack.c.b16 %v7721, %v7720
  %7738 = vmatprep.subr.bf16.mxu0 0
  %7739 = vmatpush1.bf16.msra.mxu0 %v7722
  %7740 = vmatprep.subr.bf16.mxu0 0
  %7741 = vmatpush1.bf16.msra.mxu0 %v7723
  %7742 = vmatprep.subr.bf16.mxu0 0
  %7743 = vmatpush1.bf16.msra.mxu0 %v7724
  %7744 = vmatprep.subr.bf16.mxu0 0
  %7745 = vmatpush1.bf16.msra.mxu0 %v7725
  %7746 = vmatprep.subr.bf16.mxu0 0
  %7747 = vmatpush1.bf16.msra.mxu0 %v7726
  %7748 = vmatprep.subr.bf16.mxu0 0
  %7749 = vmatpush1.bf16.msra.mxu0 %v7727
  %7750 = vmatprep.subr.bf16.mxu0 0
  %7751 = vmatpush1.bf16.msra.mxu0 %v7728
  %7752 = vmatprep.subr.bf16.mxu0 0
  %7753 = vmatpush1.bf16.msra.mxu0 %v7729
  %7754 = vmatprep.subr.bf16.mxu0 0
  %7755 = vmatpush1.bf16.msra.mxu0 0
  %7756 = vmatprep.subr.bf16.mxu0 0
  %7757 = vmatpush1.bf16.msra.mxu0 0
  %7758 = vmatprep.subr.bf16.mxu0 0
  %7759 = vmatpush1.bf16.msra.mxu0 0
  %7760 = vmatprep.subr.bf16.mxu0 0
  %7761 = vmatpush1.bf16.msra.mxu0 0
  %7762 = vmatprep.subr.bf16.mxu0 0
  %7763 = vmatpush1.bf16.msra.mxu0 0
  %7764 = vmatprep.subr.bf16.mxu0 0
  %7765 = vmatpush1.bf16.msra.mxu0 0
  %7766 = vmatprep.subr.bf16.mxu0 0
  %7767 = vmatpush1.bf16.msra.mxu0 0
  %7768 = vmatprep.subr.bf16.mxu0 0
  %7769 = vmatpush1.bf16.msra.mxu0 0
  %7770 = vmatprep.mubr.bf16.mxu0 0
  %7771 = vmatmul.mubr.bf16.gmra.mrb[0].mxu0 %v7674
  %v7772 = vpop.f32.mrb[0].mxu0
  %v7773 = vadd.f32 %v7580, %v7772
  %v7774 = vpop.f32.mrb[0].mxu0
  %v7775 = vpop.f32.mrb[0].mxu0
  %v7776 = vadd.f32 %v7583, %v7775
  %v7777 = vpop.f32.mrb[0].mxu0
  %7778 = vmatprep.mubr.bf16.mxu0 0
  %7779 = vmatmul.mubr.bf16.gmra.mrb[0].mxu0 %v7675
  %v7780 = vpop.f32.mrb[0].mxu0
  %v7781 = vadd.f32 %v7588, %v7780
  %v7782 = vpop.f32.mrb[0].mxu0
  %v7783 = vpop.f32.mrb[0].mxu0
  %v7784 = vadd.f32 %v7591, %v7783
  %v7785 = vpop.f32.mrb[0].mxu0
  %7786 = vmatprep.mubr.bf16.mxu0 0
  %7787 = vmatmul.mubr.bf16.gmra.mrb[0].mxu0 %v7676
  %v7788 = vpop.f32.mrb[0].mxu0
  %v7789 = vadd.f32 %v7596, %v7788
  %v7790 = vpop.f32.mrb[0].mxu0
  %v7791 = vpop.f32.mrb[0].mxu0
  %v7792 = vadd.f32 %v7599, %v7791
  %v7793 = vpop.f32.mrb[0].mxu0
  %7794 = vmatprep.mubr.bf16.mxu0 0
  %7795 = vmatmul.mubr.bf16.gmra.mrb[0].mxu0 %v7677
  %v7796 = vpop.f32.mrb[0].mxu0
  %v7797 = vadd.f32 %v7604, %v7796
  %v7798 = vpop.f32.mrb[0].mxu0
  %v7799 = vpop.f32.mrb[0].mxu0
  %v7800 = vadd.f32 %v7607, %v7799
  %v7801 = vpop.f32.mrb[0].mxu0
  %7802 = vmatprep.mubr.bf16.mxu0 0
  %7803 = vmatmul.mubr.bf16.gmra.mrb[0].mxu0 %v7678
  %v7804 = vpop.f32.mrb[0].mxu0
  %v7805 = vadd.f32 %v7612, %v7804
  %v7806 = vpop.f32.mrb[0].mxu0
  %v7807 = vpop.f32.mrb[0].mxu0
  %v7808 = vadd.f32 %v7615, %v7807
  %v7809 = vpop.f32.mrb[0].mxu0
  %7810 = vmatprep.mubr.bf16.mxu0 0
  %7811 = vmatmul.mubr.bf16.gmra.mrb[0].mxu0 %v7679
  %v7812 = vpop.f32.mrb[0].mxu0
  %v7813 = vadd.f32 %v7620, %v7812
  %v7814 = vpop.f32.mrb[0].mxu0
  %v7815 = vpop.f32.mrb[0].mxu0
  %v7816 = vadd.f32 %v7623, %v7815
  %v7817 = vpop.f32.mrb[0].mxu0
  %7818 = vmatprep.mubr.bf16.mxu0 0
  %7819 = vmatmul.mubr.bf16.gmra.mrb[0].mxu0 %v7680
  %v7820 = vpop.f32.mrb[0].mxu0
  %v7821 = vadd.f32 %v7628, %v7820
  %v7822 = vpop.f32.mrb[0].mxu0
  %v7823 = vpop.f32.mrb[0].mxu0
  %v7824 = vadd.f32 %v7631, %v7823
  %v7825 = vpop.f32.mrb[0].mxu0
  %7826 = vmatprep.mubr.bf16.mxu0 0
  %7827 = vmatmul.mubr.bf16.gmra.mrb[0].mxu0 %v7681
  %v7828 = vpop.f32.mrb[0].mxu0
  %v7829 = vadd.f32 %v7636, %v7828
  %v7830 = vpop.f32.mrb[0].mxu0
  %v7831 = vpop.f32.mrb[0].mxu0
  %v7832 = vadd.f32 %v7639, %v7831
  %v7833 = vpop.f32.mrb[0].mxu0
  %7834 = vdwg.mxu0
  %v7835 = vld [vmem:[#allocation2] sm:$0xe]
  %v7836 = vld [vmem:[#allocation2 + $0xc] sm:$0xe]
  %v7837 = vld [vmem:[#allocation2 + $0x18] sm:$0xe]
  %v7838 = vld [vmem:[#allocation2 + $0x24] sm:$0xe]
  %v7839 = vld [vmem:[#allocation2 + $0x30] sm:$0xe]
  %v7840 = vld [vmem:[#allocation2 + $0x3c] sm:$0xe]
  %v7841 = vld [vmem:[#allocation2 + $0x48] sm:$0xe]
  %v7842 = vld [vmem:[#allocation2 + $0x54] sm:$0xe]
  %v7859 = vrot.slane %v7835, 5
  %v7860 = vrot.slane %v7859, 4
  %v7861 = vrot.slane %v7218, 5
  %v7862 = vsel %vm1349, %v7860, %v7861
  %v7863 = vrot.slane %v7861, 4
  %v7864 = vrot.slane %v7249, 5
  %v7865 = vsel %vm1349, %v7863, %v7864
  %v7866 = vrot.slane %v7836, 5
  %v7867 = vrot.slane %v7866, 4
  %v7868 = vrot.slane %v7220, 5
  %v7869 = vsel %vm1349, %v7867, %v7868
  %v7870 = vrot.slane %v7868, 4
  %v7871 = vrot.slane %v7250, 5
  %v7872 = vsel %vm1349, %v7870, %v7871
  %v7873 = vrot.slane %v7837, 5
  %v7874 = vrot.slane %v7873, 4
  %v7875 = vrot.slane %v7222, 5
  %v7876 = vsel %vm1349, %v7874, %v7875
  %v7877 = vrot.slane %v7875, 4
  %v7878 = vrot.slane %v7251, 5
  %v7879 = vsel %vm1349, %v7877, %v7878
  %v7880 = vrot.slane %v7838, 5
  %v7881 = vrot.slane %v7880, 4
  %v7882 = vrot.slane %v7224, 5
  %v7883 = vsel %vm1349, %v7881, %v7882
  %v7884 = vrot.slane %v7882, 4
  %v7885 = vrot.slane %v7252, 5
  %v7886 = vsel %vm1349, %v7884, %v7885
  %v7887 = vrot.slane %v7839, 5
  %v7888 = vrot.slane %v7887, 4
  %v7889 = vrot.slane %v7226, 5
  %v7890 = vsel %vm1349, %v7888, %v7889
  %v7891 = vrot.slane %v7889, 4
  %v7892 = vrot.slane %v7253, 5
  %v7893 = vsel %vm1349, %v7891, %v7892
  %v7894 = vrot.slane %v7840, 5
  %v7895 = vrot.slane %v7894, 4
  %v7896 = vrot.slane %v7228, 5
  %v7897 = vsel %vm1349, %v7895, %v7896
  %v7898 = vrot.slane %v7896, 4
  %v7899 = vrot.slane %v7254, 5
  %v7900 = vsel %vm1349, %v7898, %v7899
  %v7901 = vrot.slane %v7841, 5
  %v7902 = vrot.slane %v7901, 4
  %v7903 = vrot.slane %v7230, 5
  %v7904 = vsel %vm1349, %v7902, %v7903
  %v7905 = vrot.slane %v7903, 4
  %v7906 = vrot.slane %v7255, 5
  %v7907 = vsel %vm1349, %v7905, %v7906
  %v7908 = vrot.slane %v7842, 5
  %v7909 = vrot.slane %v7908, 4
  %v7910 = vrot.slane %v7232, 5
  %v7911 = vsel %vm1349, %v7909, %v7910
  %v7912 = vrot.slane %v7910, 4
  %v7913 = vrot.slane %v7256, 5
  %v7914 = vsel %vm1349, %v7912, %v7913
  %v7915 = vld [vmem:[%s1406] sm:$0xf]
  %v7916 = vld [vmem:[%s1406 + $0x4] sm:$0xf]
  %v7917 = vld [vmem:[%s1406 + $0x8] sm:$0xf]
  %v7918 = vld [vmem:[%s1406 + $0xc] sm:$0xf]
  %v7919 = vld [vmem:[%s1406 + $0x10] sm:$0xf]
  %v7920 = vld [vmem:[%s1406 + $0x14] sm:$0xf]
  %v7921 = vld [vmem:[%s1406 + $0x18] sm:$0xf]
  %v7922 = vld [vmem:[%s1406 + $0x1c] sm:$0xf]
  %v7923 = vld [vmem:[%s1406 + $0x20] sm:$0xf]
  %v7924 = vld [vmem:[%s1406 + $0x24] sm:$0xf]
  %v7925 = vld [vmem:[%s1406 + $0x28] sm:$0xf]
  %v7926 = vld [vmem:[%s1406 + $0x2c] sm:$0xf]
  %v7927 = vld [vmem:[%s1406 + $0x30] sm:$0xf]
  %v7928 = vld [vmem:[%s1406 + $0x34] sm:$0xf]
  %v7929 = vld [vmem:[%s1406 + $0x38] sm:$0xf]
  %v7930 = vld [vmem:[%s1406 + $0x3c] sm:$0xf]
  %v7931 = vunpack.c.l.b16 %v7862
  %v7932 = vunpack.c.l.b16 %v7865
  %v7933 = vunpack.c.l.b16 %v7869
  %v7934 = vunpack.c.l.b16 %v7872
  %v7935 = vunpack.c.l.b16 %v7876
  %v7936 = vunpack.c.l.b16 %v7879
  %v7937 = vunpack.c.l.b16 %v7883
  %v7938 = vunpack.c.l.b16 %v7886
  %v7939 = vunpack.c.l.b16 %v7890
  %v7940 = vunpack.c.l.b16 %v7893
  %v7941 = vunpack.c.l.b16 %v7897
  %v7942 = vunpack.c.l.b16 %v7900
  %v7943 = vunpack.c.l.b16 %v7904
  %v7944 = vunpack.c.l.b16 %v7907
  %v7945 = vunpack.c.l.b16 %v7911
  %v7946 = vunpack.c.l.b16 %v7914
  %v7947 = vpack.c.b16 %v7932, %v7931
  %v7948 = vpack.c.b16 %v7934, %v7933
  %v7949 = vpack.c.b16 %v7936, %v7935
  %v7950 = vpack.c.b16 %v7938, %v7937
  %v7951 = vpack.c.b16 %v7940, %v7939
  %v7952 = vpack.c.b16 %v7942, %v7941
  %v7953 = vpack.c.b16 %v7944, %v7943
  %v7954 = vpack.c.b16 %v7946, %v7945
  %v7979 = vunpack.c.l.b16 %v7915
  %v7980 = vunpack.c.l.b16 %v7916
  %v7981 = vunpack.c.l.b16 %v7917
  %v7982 = vunpack.c.l.b16 %v7918
  %v7983 = vunpack.c.l.b16 %v7919
  %v7984 = vunpack.c.l.b16 %v7920
  %v7985 = vunpack.c.l.b16 %v7921
  %v7986 = vunpack.c.l.b16 %v7922
  %v7987 = vunpack.c.l.b16 %v7923
  %v7988 = vunpack.c.l.b16 %v7924
  %v7989 = vunpack.c.l.b16 %v7925
  %v7990 = vunpack.c.l.b16 %v7926
  %v7991 = vunpack.c.l.b16 %v7927
  %v7992 = vunpack.c.l.b16 %v7928
  %v7993 = vunpack.c.l.b16 %v7929
  %v7994 = vunpack.c.l.b16 %v7930
  %v7995 = vpack.c.b16 %v7980, %v7979
  %v7996 = vpack.c.b16 %v7982, %v7981
  %v7997 = vpack.c.b16 %v7984, %v7983
  %v7998 = vpack.c.b16 %v7986, %v7985
  %v7999 = vpack.c.b16 %v7988, %v7987
  %v8000 = vpack.c.b16 %v7990, %v7989
  %v8001 = vpack.c.b16 %v7992, %v7991
  %v8002 = vpack.c.b16 %v7994, %v7993
  %8011 = vmatprep.subr.bf16.mxu0 0
  %8012 = vmatpush1.bf16.msra.mxu0 %v7995
  %8013 = vmatprep.subr.bf16.mxu0 0
  %8014 = vmatpush1.bf16.msra.mxu0 %v7996
  %8015 = vmatprep.subr.bf16.mxu0 0
  %8016 = vmatpush1.bf16.msra.mxu0 %v7997
  %8017 = vmatprep.subr.bf16.mxu0 0
  %8018 = vmatpush1.bf16.msra.mxu0 %v7998
  %8019 = vmatprep.subr.bf16.mxu0 0
  %8020 = vmatpush1.bf16.msra.mxu0 %v7999
  %8021 = vmatprep.subr.bf16.mxu0 0
  %8022 = vmatpush1.bf16.msra.mxu0 %v8000
  %8023 = vmatprep.subr.bf16.mxu0 0
  %8024 = vmatpush1.bf16.msra.mxu0 %v8001
  %8025 = vmatprep.subr.bf16.mxu0 0
  %8026 = vmatpush1.bf16.msra.mxu0 %v8002
  %8027 = vmatprep.subr.bf16.mxu0 0
  %8028 = vmatpush1.bf16.msra.mxu0 0
  %8029 = vmatprep.subr.bf16.mxu0 0
  %8030 = vmatpush1.bf16.msra.mxu0 0
  %8031 = vmatprep.subr.bf16.mxu0 0
  %8032 = vmatpush1.bf16.msra.mxu0 0
  %8033 = vmatprep.subr.bf16.mxu0 0
  %8034 = vmatpush1.bf16.msra.mxu0 0
  %8035 = vmatprep.subr.bf16.mxu0 0
  %8036 = vmatpush1.bf16.msra.mxu0 0
  %8037 = vmatprep.subr.bf16.mxu0 0
  %8038 = vmatpush1.bf16.msra.mxu0 0
  %8039 = vmatprep.subr.bf16.mxu0 0
  %8040 = vmatpush1.bf16.msra.mxu0 0
  %8041 = vmatprep.subr.bf16.mxu0 0
  %8042 = vmatpush1.bf16.msra.mxu0 0
  %8043 = vmatprep.mubr.bf16.mxu0 0
  %8044 = vmatmul.mubr.bf16.gmra.mrb[0].mxu0 %v7947
  %v8045 = vpop.f32.mrb[0].mxu0
  %v8046 = vadd.f32 0.0, %v8045
  %v8047 = vpop.f32.mrb[0].mxu0
  %v8048 = vpop.f32.mrb[0].mxu0
  %v8049 = vadd.f32 0.0, %v8048
  %v8050 = vpop.f32.mrb[0].mxu0
  %8051 = vmatprep.mubr.bf16.mxu0 0
  %8052 = vmatmul.mubr.bf16.gmra.mrb[0].mxu0 %v7948
  %v8053 = vpop.f32.mrb[0].mxu0
  %v8054 = vadd.f32 0.0, %v8053
  %v8055 = vpop.f32.mrb[0].mxu0
  %v8056 = vpop.f32.mrb[0].mxu0
  %v8057 = vadd.f32 0.0, %v8056
  %v8058 = vpop.f32.mrb[0].mxu0
  %8059 = vmatprep.mubr.bf16.mxu0 0
  %8060 = vmatmul.mubr.bf16.gmra.mrb[0].mxu0 %v7949
  %v8061 = vpop.f32.mrb[0].mxu0
  %v8062 = vadd.f32 0.0, %v8061
  %v8063 = vpop.f32.mrb[0].mxu0
  %v8064 = vpop.f32.mrb[0].mxu0
  %v8065 = vadd.f32 0.0, %v8064
  %v8066 = vpop.f32.mrb[0].mxu0
  %8067 = vmatprep.mubr.bf16.mxu0 0
  %8068 = vmatmul.mubr.bf16.gmra.mrb[0].mxu0 %v7950
  %v8069 = vpop.f32.mrb[0].mxu0
  %v8070 = vadd.f32 0.0, %v8069
  %v8071 = vpop.f32.mrb[0].mxu0
  %v8072 = vpop.f32.mrb[0].mxu0
  %v8073 = vadd.f32 0.0, %v8072
  %v8074 = vpop.f32.mrb[0].mxu0
  %8075 = vmatprep.mubr.bf16.mxu0 0
  %8076 = vmatmul.mubr.bf16.gmra.mrb[0].mxu0 %v7951
  %v8077 = vpop.f32.mrb[0].mxu0
  %v8078 = vadd.f32 0.0, %v8077
  %v8079 = vpop.f32.mrb[0].mxu0
  %v8080 = vpop.f32.mrb[0].mxu0
  %v8081 = vadd.f32 0.0, %v8080
  %v8082 = vpop.f32.mrb[0].mxu0
  %8083 = vmatprep.mubr.bf16.mxu0 0
  %8084 = vmatmul.mubr.bf16.gmra.mrb[0].mxu0 %v7952
  %v8085 = vpop.f32.mrb[0].mxu0
  %v8086 = vadd.f32 0.0, %v8085
  %v8087 = vpop.f32.mrb[0].mxu0
  %v8088 = vpop.f32.mrb[0].mxu0
  %v8089 = vadd.f32 0.0, %v8088
  %v8090 = vpop.f32.mrb[0].mxu0
  %8091 = vmatprep.mubr.bf16.mxu0 0
  %8092 = vmatmul.mubr.bf16.gmra.mrb[0].mxu0 %v7953
  %v8093 = vpop.f32.mrb[0].mxu0
  %v8094 = vadd.f32 0.0, %v8093
  %v8095 = vpop.f32.mrb[0].mxu0
  %v8096 = vpop.f32.mrb[0].mxu0
  %v8097 = vadd.f32 0.0, %v8096
  %v8098 = vpop.f32.mrb[0].mxu0
  %8099 = vmatprep.mubr.bf16.mxu0 0
  %8100 = vmatmul.mubr.bf16.gmra.mrb[0].mxu0 %v7954
  %v8101 = vpop.f32.mrb[0].mxu0
  %v8102 = vadd.f32 0.0, %v8101
  %v8103 = vpop.f32.mrb[0].mxu0
  %v8104 = vpop.f32.mrb[0].mxu0
  %v8105 = vadd.f32 0.0, %v8104
  %v8106 = vpop.f32.mrb[0].mxu0
  %8107 = vdwg.mxu0
  %v8108 = vadd.f32 %v7773, %v8046
  %v8109 = vadd.f32 %v7776, %v8049
  %v8110 = vadd.f32 %v7781, %v8054
  %v8111 = vadd.f32 %v7784, %v8057
  %v8112 = vadd.f32 %v7789, %v8062
  %v8113 = vadd.f32 %v7792, %v8065
  %v8114 = vadd.f32 %v7797, %v8070
  %v8115 = vadd.f32 %v7800, %v8073
  %v8116 = vadd.f32 %v7805, %v8078
  %v8117 = vadd.f32 %v7808, %v8081
  %v8118 = vadd.f32 %v7813, %v8086
  %v8119 = vadd.f32 %v7816, %v8089
  %v8120 = vadd.f32 %v7821, %v8094
  %v8121 = vadd.f32 %v7824, %v8097
  %v8122 = vadd.f32 %v7829, %v8102
  %v8123 = vadd.f32 %v7832, %v8105
  %v8124 = vld [vmem:[%s361] sm:$0xf]
  %v8125 = vld [vmem:[%s361 + $0x4] sm:$0xf]
  %v8126 = vld [vmem:[%s361 + $0xc] sm:$0xf]
  %v8127 = vld [vmem:[%s361 + $0x10] sm:$0xf]
  %v8128 = vld [vmem:[%s361 + $0x18] sm:$0xf]
  %v8129 = vld [vmem:[%s361 + $0x1c] sm:$0xf]
  %v8130 = vld [vmem:[%s361 + $0x24] sm:$0xf]
  %v8131 = vld [vmem:[%s361 + $0x28] sm:$0xf]
  %v8132 = vld [vmem:[%s361 + $0x30] sm:$0xf]
  %v8133 = vld [vmem:[%s361 + $0x34] sm:$0xf]
  %v8134 = vld [vmem:[%s361 + $0x3c] sm:$0xf]
  %v8135 = vld [vmem:[%s361 + $0x40] sm:$0xf]
  %v8136 = vld [vmem:[%s361 + $0x48] sm:$0xf]
  %v8137 = vld [vmem:[%s361 + $0x4c] sm:$0xf]
  %v8138 = vld [vmem:[%s361 + $0x54] sm:$0xf]
  %v8139 = vld [vmem:[%s361 + $0x58] sm:$0xf]
  %v8140 = vld [vmem:[%s1632] sm:$0xf]
  %v8141 = vld [vmem:[%s1632 + $0x4] sm:$0xf]
  %v8142 = vld [vmem:[%s1632 + $0x8] sm:$0xf]
  %v8143 = vld [vmem:[%s1632 + $0xc] sm:$0xf]
  %v8144 = vld [vmem:[%s1632 + $0x10] sm:$0xf]
  %v8145 = vld [vmem:[%s1632 + $0x14] sm:$0xf]
  %v8146 = vld [vmem:[%s1632 + $0x18] sm:$0xf]
  %v8147 = vld [vmem:[%s1632 + $0x1c] sm:$0xf]
  %v8148 = vld [vmem:[%s1632 + $0x20] sm:$0xf]
  %v8149 = vld [vmem:[%s1632 + $0x24] sm:$0xf]
  %v8150 = vld [vmem:[%s1632 + $0x28] sm:$0xf]
  %v8151 = vld [vmem:[%s1632 + $0x2c] sm:$0xf]
  %v8152 = vld [vmem:[%s1632 + $0x30] sm:$0xf]
  %v8153 = vld [vmem:[%s1632 + $0x34] sm:$0xf]
  %v8154 = vld [vmem:[%s1632 + $0x38] sm:$0xf]
  %v8155 = vld [vmem:[%s1632 + $0x3c] sm:$0xf]
  %v8172 = vunpack.c.l.b16 %v8124
  %v8173 = vunpack.c.l.b16 %v8125
  %v8174 = vunpack.c.l.b16 %v8126
  %v8175 = vunpack.c.l.b16 %v8127
  %v8176 = vunpack.c.l.b16 %v8128
  %v8177 = vunpack.c.l.b16 %v8129
  %v8178 = vunpack.c.l.b16 %v8130
  %v8179 = vunpack.c.l.b16 %v8131
  %v8180 = vunpack.c.l.b16 %v8132
  %v8181 = vunpack.c.l.b16 %v8133
  %v8182 = vunpack.c.l.b16 %v8134
  %v8183 = vunpack.c.l.b16 %v8135
  %v8184 = vunpack.c.l.b16 %v8136
  %v8185 = vunpack.c.l.b16 %v8137
  %v8186 = vunpack.c.l.b16 %v8138
  %v8187 = vunpack.c.l.b16 %v8139
  %v8188 = vpack.c.b16 %v8173, %v8172
  %v8189 = vpack.c.b16 %v8175, %v8174
  %v8190 = vpack.c.b16 %v8177, %v8176
  %v8191 = vpack.c.b16 %v8179, %v8178
  %v8192 = vpack.c.b16 %v8181, %v8180
  %v8193 = vpack.c.b16 %v8183, %v8182
  %v8194 = vpack.c.b16 %v8185, %v8184
  %v8195 = vpack.c.b16 %v8187, %v8186
  %v8220 = vunpack.c.l.b16 %v8140
  %v8221 = vunpack.c.l.b16 %v8141
  %v8222 = vunpack.c.l.b16 %v8142
  %v8223 = vunpack.c.l.b16 %v8143
  %v8224 = vunpack.c.l.b16 %v8144
  %v8225 = vunpack.c.l.b16 %v8145
  %v8226 = vunpack.c.l.b16 %v8146
  %v8227 = vunpack.c.l.b16 %v8147
  %v8228 = vunpack.c.l.b16 %v8148
  %v8229 = vunpack.c.l.b16 %v8149
  %v8230 = vunpack.c.l.b16 %v8150
  %v8231 = vunpack.c.l.b16 %v8151
  %v8232 = vunpack.c.l.b16 %v8152
  %v8233 = vunpack.c.l.b16 %v8153
  %v8234 = vunpack.c.l.b16 %v8154
  %v8235 = vunpack.c.l.b16 %v8155
  %v8236 = vpack.c.b16 %v8221, %v8220
  %v8237 = vpack.c.b16 %v8223, %v8222
  %v8238 = vpack.c.b16 %v8225, %v8224
  %v8239 = vpack.c.b16 %v8227, %v8226
  %v8240 = vpack.c.b16 %v8229, %v8228
  %v8241 = vpack.c.b16 %v8231, %v8230
  %v8242 = vpack.c.b16 %v8233, %v8232
  %v8243 = vpack.c.b16 %v8235, %v8234
  %8252 = vmatprep.subr.bf16.mxu0 0
  %8253 = vmatpush1.bf16.msra.mxu0 %v8236
  %8254 = vmatprep.subr.bf16.mxu0 0
  %8255 = vmatpush1.bf16.msra.mxu0 %v8237
  %8256 = vmatprep.subr.bf16.mxu0 0
  %8257 = vmatpush1.bf16.msra.mxu0 %v8238
  %8258 = vmatprep.subr.bf16.mxu0 0
  %8259 = vmatpush1.bf16.msra.mxu0 %v8239
  %8260 = vmatprep.subr.bf16.mxu0 0
  %8261 = vmatpush1.bf16.msra.mxu0 %v8240
  %8262 = vmatprep.subr.bf16.mxu0 0
  %8263 = vmatpush1.bf16.msra.mxu0 %v8241
  %8264 = vmatprep.subr.bf16.mxu0 0
  %8265 = vmatpush1.bf16.msra.mxu0 %v8242
  %8266 = vmatprep.subr.bf16.mxu0 0
  %8267 = vmatpush1.bf16.msra.mxu0 %v8243
  %8268 = vmatprep.subr.bf16.mxu0 0
  %8269 = vmatpush1.bf16.msra.mxu0 0
  %8270 = vmatprep.subr.bf16.mxu0 0
  %8271 = vmatpush1.bf16.msra.mxu0 0
  %8272 = vmatprep.subr.bf16.mxu0 0
  %8273 = vmatpush1.bf16.msra.mxu0 0
  %8274 = vmatprep.subr.bf16.mxu0 0
  %8275 = vmatpush1.bf16.msra.mxu0 0
  %8276 = vmatprep.subr.bf16.mxu0 0
  %8277 = vmatpush1.bf16.msra.mxu0 0
  %8278 = vmatprep.subr.bf16.mxu0 0
  %8279 = vmatpush1.bf16.msra.mxu0 0
  %8280 = vmatprep.subr.bf16.mxu0 0
  %8281 = vmatpush1.bf16.msra.mxu0 0
  %8282 = vmatprep.subr.bf16.mxu0 0
  %8283 = vmatpush1.bf16.msra.mxu0 0
  %8284 = vmatprep.mubr.bf16.mxu0 0
  %8285 = vmatmul.mubr.bf16.gmra.mrb[0].mxu0 %v8188
  %v8286 = vpop.f32.mrb[0].mxu0
  %v8287 = vadd.f32 0.0, %v8286
  %v8288 = vpop.f32.mrb[0].mxu0
  %v8289 = vpop.f32.mrb[0].mxu0
  %v8290 = vadd.f32 0.0, %v8289
  %v8291 = vpop.f32.mrb[0].mxu0
  %8292 = vmatprep.mubr.bf16.mxu0 0
  %8293 = vmatmul.mubr.bf16.gmra.mrb[0].mxu0 %v8189
  %v8294 = vpop.f32.mrb[0].mxu0
  %v8295 = vadd.f32 0.0, %v8294
  %v8296 = vpop.f32.mrb[0].mxu0
  %v8297 = vpop.f32.mrb[0].mxu0
  %v8298 = vadd.f32 0.0, %v8297
  %v8299 = vpop.f32.mrb[0].mxu0
  %8300 = vmatprep.mubr.bf16.mxu0 0
  %8301 = vmatmul.mubr.bf16.gmra.mrb[0].mxu0 %v8190
  %v8302 = vpop.f32.mrb[0].mxu0
  %v8303 = vadd.f32 0.0, %v8302
  %v8304 = vpop.f32.mrb[0].mxu0
  %v8305 = vpop.f32.mrb[0].mxu0
  %v8306 = vadd.f32 0.0, %v8305
  %v8307 = vpop.f32.mrb[0].mxu0
  %8308 = vmatprep.mubr.bf16.mxu0 0
  %8309 = vmatmul.mubr.bf16.gmra.mrb[0].mxu0 %v8191
  %v8310 = vpop.f32.mrb[0].mxu0
  %v8311 = vadd.f32 0.0, %v8310
  %v8312 = vpop.f32.mrb[0].mxu0
  %v8313 = vpop.f32.mrb[0].mxu0
  %v8314 = vadd.f32 0.0, %v8313
  %v8315 = vpop.f32.mrb[0].mxu0
  %8316 = vmatprep.mubr.bf16.mxu0 0
  %8317 = vmatmul.mubr.bf16.gmra.mrb[0].mxu0 %v8192
  %v8318 = vpop.f32.mrb[0].mxu0
  %v8319 = vadd.f32 0.0, %v8318
  %v8320 = vpop.f32.mrb[0].mxu0
  %v8321 = vpop.f32.mrb[0].mxu0
  %v8322 = vadd.f32 0.0, %v8321
  %v8323 = vpop.f32.mrb[0].mxu0
  %8324 = vmatprep.mubr.bf16.mxu0 0
  %8325 = vmatmul.mubr.bf16.gmra.mrb[0].mxu0 %v8193
  %v8326 = vpop.f32.mrb[0].mxu0
  %v8327 = vadd.f32 0.0, %v8326
  %v8328 = vpop.f32.mrb[0].mxu0
  %v8329 = vpop.f32.mrb[0].mxu0
  %v8330 = vadd.f32 0.0, %v8329
  %v8331 = vpop.f32.mrb[0].mxu0
  %8332 = vmatprep.mubr.bf16.mxu0 0
  %8333 = vmatmul.mubr.bf16.gmra.mrb[0].mxu0 %v8194
  %v8334 = vpop.f32.mrb[0].mxu0
  %v8335 = vadd.f32 0.0, %v8334
  %v8336 = vpop.f32.mrb[0].mxu0
  %v8337 = vpop.f32.mrb[0].mxu0
  %v8338 = vadd.f32 0.0, %v8337
  %v8339 = vpop.f32.mrb[0].mxu0
  %8340 = vmatprep.mubr.bf16.mxu0 0
  %8341 = vmatmul.mubr.bf16.gmra.mrb[0].mxu0 %v8195
  %v8342 = vpop.f32.mrb[0].mxu0
  %v8343 = vadd.f32 0.0, %v8342
  %v8344 = vpop.f32.mrb[0].mxu0
  %v8345 = vpop.f32.mrb[0].mxu0
  %v8346 = vadd.f32 0.0, %v8345
  %v8347 = vpop.f32.mrb[0].mxu0
  %8348 = vdwg.mxu0
  %v8349 = vadd.f32 %v8108, %v8287
  %v8350 = vadd.f32 %v8109, %v8290
  %v8351 = vadd.f32 %v8110, %v8295
  %v8352 = vadd.f32 %v8111, %v8298
  %v8353 = vadd.f32 %v8112, %v8303
  %v8354 = vadd.f32 %v8113, %v8306
  %v8355 = vadd.f32 %v8114, %v8311
  %v8356 = vadd.f32 %v8115, %v8314
  %v8357 = vadd.f32 %v8116, %v8319
  %v8358 = vadd.f32 %v8117, %v8322
  %v8359 = vadd.f32 %v8118, %v8327
  %v8360 = vadd.f32 %v8119, %v8330
  %v8361 = vadd.f32 %v8120, %v8335
  %v8362 = vadd.f32 %v8121, %v8338
  %v8363 = vadd.f32 %v8122, %v8343
  %v8364 = vadd.f32 %v8123, %v8346
  %v8365 = vld [vmem:[%s361] sm:$0xf]
  %v8366 = vld [vmem:[%s361 + $0x4] sm:$0xf]
  %v8367 = vld [vmem:[%s361 + $0x8] sm:$0x1]
  %v8368 = vld [vmem:[%s361 + $0xc] sm:$0xf]
  %v8369 = vld [vmem:[%s361 + $0x10] sm:$0xf]
  %v8370 = vld [vmem:[%s361 + $0x14] sm:$0x1]
  %v8371 = vld [vmem:[%s361 + $0x18] sm:$0xf]
  %v8372 = vld [vmem:[%s361 + $0x1c] sm:$0xf]
  %v8373 = vld [vmem:[%s361 + $0x20] sm:$0x1]
  %v8374 = vld [vmem:[%s361 + $0x24] sm:$0xf]
  %v8375 = vld [vmem:[%s361 + $0x28] sm:$0xf]
  %v8376 = vld [vmem:[%s361 + $0x2c] sm:$0x1]
  %v8377 = vld [vmem:[%s361 + $0x30] sm:$0xf]
  %v8378 = vld [vmem:[%s361 + $0x34] sm:$0xf]
  %v8379 = vld [vmem:[%s361 + $0x38] sm:$0x1]
  %v8380 = vld [vmem:[%s361 + $0x3c] sm:$0xf]
  %v8381 = vld [vmem:[%s361 + $0x40] sm:$0xf]
  %v8382 = vld [vmem:[%s361 + $0x44] sm:$0x1]
  %v8383 = vld [vmem:[%s361 + $0x48] sm:$0xf]
  %v8384 = vld [vmem:[%s361 + $0x4c] sm:$0xf]
  %v8385 = vld [vmem:[%s361 + $0x50] sm:$0x1]
  %v8386 = vld [vmem:[%s361 + $0x54] sm:$0xf]
  %v8387 = vld [vmem:[%s361 + $0x58] sm:$0xf]
  %v8388 = vld [vmem:[%s361 + $0x5c] sm:$0x1]
  %v8390 = vshrl.u32 %v8365, 16
  %v8392 = vrot.slane %v8390, 4
  %v8393 = vshll.u32 %v8365, 16
  %v8395 = vrot.slane %v8393, 5
  %v8396 = vor.u32 %v8392, %v8395
  %v8397 = vrot.slane %v8396, 4
  %v8399 = vshll.u32 %v8366, 16
  %v8401 = vrot.slane %v8399, 5
  %v8402 = vsel %vm743, %v8397, %v8401
  %v8403 = vshrl.u32 %v8366, 16
  %v8405 = vrot.slane %v8403, 4
  %v8406 = vor.u32 %v8405, %v8401
  %v8407 = vrot.slane %v8406, 4
  %v8409 = vshll.u32 %v8367, 16
  %v8411 = vrot.slane %v8409, 5
  %v8412 = vsel %vm743, %v8407, %v8411
  %v8414 = vshrl.u32 %v8368, 16
  %v8416 = vrot.slane %v8414, 4
  %v8417 = vshll.u32 %v8368, 16
  %v8419 = vrot.slane %v8417, 5
  %v8420 = vor.u32 %v8416, %v8419
  %v8421 = vrot.slane %v8420, 4
  %v8423 = vshll.u32 %v8369, 16
  %v8425 = vrot.slane %v8423, 5
  %v8426 = vsel %vm743, %v8421, %v8425
  %v8427 = vshrl.u32 %v8369, 16
  %v8429 = vrot.slane %v8427, 4
  %v8430 = vor.u32 %v8429, %v8425
  %v8431 = vrot.slane %v8430, 4
  %v8433 = vshll.u32 %v8370, 16
  %v8435 = vrot.slane %v8433, 5
  %v8436 = vsel %vm743, %v8431, %v8435
  %v8438 = vshrl.u32 %v8371, 16
  %v8440 = vrot.slane %v8438, 4
  %v8441 = vshll.u32 %v8371, 16
  %v8443 = vrot.slane %v8441, 5
  %v8444 = vor.u32 %v8440, %v8443
  %v8445 = vrot.slane %v8444, 4
  %v8447 = vshll.u32 %v8372, 16
  %v8449 = vrot.slane %v8447, 5
  %v8450 = vsel %vm743, %v8445, %v8449
  %v8451 = vshrl.u32 %v8372, 16
  %v8453 = vrot.slane %v8451, 4
  %v8454 = vor.u32 %v8453, %v8449
  %v8455 = vrot.slane %v8454, 4
  %v8457 = vshll.u32 %v8373, 16
  %v8459 = vrot.slane %v8457, 5
  %v8460 = vsel %vm743, %v8455, %v8459
  %v8462 = vshrl.u32 %v8374, 16
  %v8464 = vrot.slane %v8462, 4
  %v8465 = vshll.u32 %v8374, 16
  %v8467 = vrot.slane %v8465, 5
  %v8468 = vor.u32 %v8464, %v8467
  %v8469 = vrot.slane %v8468, 4
  %v8471 = vshll.u32 %v8375, 16
  %v8473 = vrot.slane %v8471, 5
  %v8474 = vsel %vm743, %v8469, %v8473
  %v8475 = vshrl.u32 %v8375, 16
  %v8477 = vrot.slane %v8475, 4
  %v8478 = vor.u32 %v8477, %v8473
  %v8479 = vrot.slane %v8478, 4
  %v8481 = vshll.u32 %v8376, 16
  %v8483 = vrot.slane %v8481, 5
  %v8484 = vsel %vm743, %v8479, %v8483
  %v8486 = vshrl.u32 %v8377, 16
  %v8488 = vrot.slane %v8486, 4
  %v8489 = vshll.u32 %v8377, 16
  %v8491 = vrot.slane %v8489, 5
  %v8492 = vor.u32 %v8488, %v8491
  %v8493 = vrot.slane %v8492, 4
  %v8495 = vshll.u32 %v8378, 16
  %v8497 = vrot.slane %v8495, 5
  %v8498 = vsel %vm743, %v8493, %v8497
  %v8499 = vshrl.u32 %v8378, 16
  %v8501 = vrot.slane %v8499, 4
  %v8502 = vor.u32 %v8501, %v8497
  %v8503 = vrot.slane %v8502, 4
  %v8505 = vshll.u32 %v8379, 16
  %v8507 = vrot.slane %v8505, 5
  %v8508 = vsel %vm743, %v8503, %v8507
  %v8510 = vshrl.u32 %v8380, 16
  %v8512 = vrot.slane %v8510, 4
  %v8513 = vshll.u32 %v8380, 16
  %v8515 = vrot.slane %v8513, 5
  %v8516 = vor.u32 %v8512, %v8515
  %v8517 = vrot.slane %v8516, 4
  %v8519 = vshll.u32 %v8381, 16
  %v8521 = vrot.slane %v8519, 5
  %v8522 = vsel %vm743, %v8517, %v8521
  %v8523 = vshrl.u32 %v8381, 16
  %v8525 = vrot.slane %v8523, 4
  %v8526 = vor.u32 %v8525, %v8521
  %v8527 = vrot.slane %v8526, 4
  %v8529 = vshll.u32 %v8382, 16
  %v8531 = vrot.slane %v8529, 5
  %v8532 = vsel %vm743, %v8527, %v8531
  %v8534 = vshrl.u32 %v8383, 16
  %v8536 = vrot.slane %v8534, 4
  %v8537 = vshll.u32 %v8383, 16
  %v8539 = vrot.slane %v8537, 5
  %v8540 = vor.u32 %v8536, %v8539
  %v8541 = vrot.slane %v8540, 4
  %v8543 = vshll.u32 %v8384, 16
  %v8545 = vrot.slane %v8543, 5
  %v8546 = vsel %vm743, %v8541, %v8545
  %v8547 = vshrl.u32 %v8384, 16
  %v8549 = vrot.slane %v8547, 4
  %v8550 = vor.u32 %v8549, %v8545
  %v8551 = vrot.slane %v8550, 4
  %v8553 = vshll.u32 %v8385, 16
  %v8555 = vrot.slane %v8553, 5
  %v8556 = vsel %vm743, %v8551, %v8555
  %v8558 = vshrl.u32 %v8386, 16
  %v8560 = vrot.slane %v8558, 4
  %v8561 = vshll.u32 %v8386, 16
  %v8563 = vrot.slane %v8561, 5
  %v8564 = vor.u32 %v8560, %v8563
  %v8565 = vrot.slane %v8564, 4
  %v8567 = vshll.u32 %v8387, 16
  %v8569 = vrot.slane %v8567, 5
  %v8570 = vsel %vm743, %v8565, %v8569
  %v8571 = vshrl.u32 %v8387, 16
  %v8573 = vrot.slane %v8571, 4
  %v8574 = vor.u32 %v8573, %v8569
  %v8575 = vrot.slane %v8574, 4
  %v8577 = vshll.u32 %v8388, 16
  %v8579 = vrot.slane %v8577, 5
  %v8580 = vsel %vm743, %v8575, %v8579
  %v8581 = vld [vmem:[%s2074] sm:$0xf]
  %v8582 = vld [vmem:[%s2074 + $0x4] sm:$0xf]
  %v8583 = vld [vmem:[%s2074 + $0x8] sm:$0xf]
  %v8584 = vld [vmem:[%s2074 + $0xc] sm:$0xf]
  %v8585 = vld [vmem:[%s2074 + $0x10] sm:$0xf]
  %v8586 = vld [vmem:[%s2074 + $0x14] sm:$0xf]
  %v8587 = vld [vmem:[%s2074 + $0x18] sm:$0xf]
  %v8588 = vld [vmem:[%s2074 + $0x1c] sm:$0xf]
  %v8589 = vld [vmem:[%s2074 + $0x20] sm:$0xf]
  %v8590 = vld [vmem:[%s2074 + $0x24] sm:$0xf]
  %v8591 = vld [vmem:[%s2074 + $0x28] sm:$0xf]
  %v8592 = vld [vmem:[%s2074 + $0x2c] sm:$0xf]
  %v8593 = vld [vmem:[%s2074 + $0x30] sm:$0xf]
  %v8594 = vld [vmem:[%s2074 + $0x34] sm:$0xf]
  %v8595 = vld [vmem:[%s2074 + $0x38] sm:$0xf]
  %v8596 = vld [vmem:[%s2074 + $0x3c] sm:$0xf]
  %v8597 = vunpack.c.l.b16 %v8402
  %v8598 = vunpack.c.l.b16 %v8412
  %v8599 = vunpack.c.l.b16 %v8426
  %v8600 = vunpack.c.l.b16 %v8436
  %v8601 = vunpack.c.l.b16 %v8450
  %v8602 = vunpack.c.l.b16 %v8460
  %v8603 = vunpack.c.l.b16 %v8474
  %v8604 = vunpack.c.l.b16 %v8484
  %v8605 = vunpack.c.l.b16 %v8498
  %v8606 = vunpack.c.l.b16 %v8508
  %v8607 = vunpack.c.l.b16 %v8522
  %v8608 = vunpack.c.l.b16 %v8532
  %v8609 = vunpack.c.l.b16 %v8546
  %v8610 = vunpack.c.l.b16 %v8556
  %v8611 = vunpack.c.l.b16 %v8570
  %v8612 = vunpack.c.l.b16 %v8580
  %v8613 = vpack.c.b16 %v8598, %v8597
  %v8614 = vpack.c.b16 %v8600, %v8599
  %v8615 = vpack.c.b16 %v8602, %v8601
  %v8616 = vpack.c.b16 %v8604, %v8603
  %v8617 = vpack.c.b16 %v8606, %v8605
  %v8618 = vpack.c.b16 %v8608, %v8607
  %v8619 = vpack.c.b16 %v8610, %v8609
  %v8620 = vpack.c.b16 %v8612, %v8611
  %v8645 = vunpack.c.l.b16 %v8581
  %v8646 = vunpack.c.l.b16 %v8582
  %v8647 = vunpack.c.l.b16 %v8583
  %v8648 = vunpack.c.l.b16 %v8584
  %v8649 = vunpack.c.l.b16 %v8585
  %v8650 = vunpack.c.l.b16 %v8586
  %v8651 = vunpack.c.l.b16 %v8587
  %v8652 = vunpack.c.l.b16 %v8588
  %v8653 = vunpack.c.l.b16 %v8589
  %v8654 = vunpack.c.l.b16 %v8590
  %v8655 = vunpack.c.l.b16 %v8591
  %v8656 = vunpack.c.l.b16 %v8592
  %v8657 = vunpack.c.l.b16 %v8593
  %v8658 = vunpack.c.l.b16 %v8594
  %v8659 = vunpack.c.l.b16 %v8595
  %v8660 = vunpack.c.l.b16 %v8596
  %v8661 = vpack.c.b16 %v8646, %v8645
  %v8662 = vpack.c.b16 %v8648, %v8647
  %v8663 = vpack.c.b16 %v8650, %v8649
  %v8664 = vpack.c.b16 %v8652, %v8651
  %v8665 = vpack.c.b16 %v8654, %v8653
  %v8666 = vpack.c.b16 %v8656, %v8655
  %v8667 = vpack.c.b16 %v8658, %v8657
  %v8668 = vpack.c.b16 %v8660, %v8659
  %8677 = vmatprep.subr.bf16.mxu0 0
  %8678 = vmatpush1.bf16.msra.mxu0 %v8661
  %8679 = vmatprep.subr.bf16.mxu0 0
  %8680 = vmatpush1.bf16.msra.mxu0 %v8662
  %8681 = vmatprep.subr.bf16.mxu0 0
  %8682 = vmatpush1.bf16.msra.mxu0 %v8663
  %8683 = vmatprep.subr.bf16.mxu0 0
  %8684 = vmatpush1.bf16.msra.mxu0 %v8664
  %8685 = vmatprep.subr.bf16.mxu0 0
  %8686 = vmatpush1.bf16.msra.mxu0 %v8665
  %8687 = vmatprep.subr.bf16.mxu0 0
  %8688 = vmatpush1.bf16.msra.mxu0 %v8666
  %8689 = vmatprep.subr.bf16.mxu0 0
  %8690 = vmatpush1.bf16.msra.mxu0 %v8667
  %8691 = vmatprep.subr.bf16.mxu0 0
  %8692 = vmatpush1.bf16.msra.mxu0 %v8668
  %8693 = vmatprep.subr.bf16.mxu0 0
  %8694 = vmatpush1.bf16.msra.mxu0 0
  %8695 = vmatprep.subr.bf16.mxu0 0
  %8696 = vmatpush1.bf16.msra.mxu0 0
  %8697 = vmatprep.subr.bf16.mxu0 0
  %8698 = vmatpush1.bf16.msra.mxu0 0
  %8699 = vmatprep.subr.bf16.mxu0 0
  %8700 = vmatpush1.bf16.msra.mxu0 0
  %8701 = vmatprep.subr.bf16.mxu0 0
  %8702 = vmatpush1.bf16.msra.mxu0 0
  %8703 = vmatprep.subr.bf16.mxu0 0
  %8704 = vmatpush1.bf16.msra.mxu0 0
  %8705 = vmatprep.subr.bf16.mxu0 0
  %8706 = vmatpush1.bf16.msra.mxu0 0
  %8707 = vmatprep.subr.bf16.mxu0 0
  %8708 = vmatpush1.bf16.msra.mxu0 0
  %8709 = vmatprep.mubr.bf16.mxu0 0
  %8710 = vmatmul.mubr.bf16.gmra.mrb[0].mxu0 %v8613
  %v8711 = vpop.f32.mrb[0].mxu0
  %v8712 = vadd.f32 0.0, %v8711
  %v8713 = vpop.f32.mrb[0].mxu0
  %v8714 = vpop.f32.mrb[0].mxu0
  %v8715 = vadd.f32 0.0, %v8714
  %v8716 = vpop.f32.mrb[0].mxu0
  %8717 = vmatprep.mubr.bf16.mxu0 0
  %8718 = vmatmul.mubr.bf16.gmra.mrb[0].mxu0 %v8614
  %v8719 = vpop.f32.mrb[0].mxu0
  %v8720 = vadd.f32 0.0, %v8719
  %v8721 = vpop.f32.mrb[0].mxu0
  %v8722 = vpop.f32.mrb[0].mxu0
  %v8723 = vadd.f32 0.0, %v8722
  %v8724 = vpop.f32.mrb[0].mxu0
  %8725 = vmatprep.mubr.bf16.mxu0 0
  %8726 = vmatmul.mubr.bf16.gmra.mrb[0].mxu0 %v8615
  %v8727 = vpop.f32.mrb[0].mxu0
  %v8728 = vadd.f32 0.0, %v8727
  %v8729 = vpop.f32.mrb[0].mxu0
  %v8730 = vpop.f32.mrb[0].mxu0
  %v8731 = vadd.f32 0.0, %v8730
  %v8732 = vpop.f32.mrb[0].mxu0
  %8733 = vmatprep.mubr.bf16.mxu0 0
  %8734 = vmatmul.mubr.bf16.gmra.mrb[0].mxu0 %v8616
  %v8735 = vpop.f32.mrb[0].mxu0
  %v8736 = vadd.f32 0.0, %v8735
  %v8737 = vpop.f32.mrb[0].mxu0
  %v8738 = vpop.f32.mrb[0].mxu0
  %v8739 = vadd.f32 0.0, %v8738
  %v8740 = vpop.f32.mrb[0].mxu0
  %8741 = vmatprep.mubr.bf16.mxu0 0
  %8742 = vmatmul.mubr.bf16.gmra.mrb[0].mxu0 %v8617
  %v8743 = vpop.f32.mrb[0].mxu0
  %v8744 = vadd.f32 0.0, %v8743
  %v8745 = vpop.f32.mrb[0].mxu0
  %v8746 = vpop.f32.mrb[0].mxu0
  %v8747 = vadd.f32 0.0, %v8746
  %v8748 = vpop.f32.mrb[0].mxu0
  %8749 = vmatprep.mubr.bf16.mxu0 0
  %8750 = vmatmul.mubr.bf16.gmra.mrb[0].mxu0 %v8618
  %v8751 = vpop.f32.mrb[0].mxu0
  %v8752 = vadd.f32 0.0, %v8751
  %v8753 = vpop.f32.mrb[0].mxu0
  %v8754 = vpop.f32.mrb[0].mxu0
  %v8755 = vadd.f32 0.0, %v8754
  %v8756 = vpop.f32.mrb[0].mxu0
  %8757 = vmatprep.mubr.bf16.mxu0 0
  %8758 = vmatmul.mubr.bf16.gmra.mrb[0].mxu0 %v8619
  %v8759 = vpop.f32.mrb[0].mxu0
  %v8760 = vadd.f32 0.0, %v8759
  %v8761 = vpop.f32.mrb[0].mxu0
  %v8762 = vpop.f32.mrb[0].mxu0
  %v8763 = vadd.f32 0.0, %v8762
  %v8764 = vpop.f32.mrb[0].mxu0
  %8765 = vmatprep.mubr.bf16.mxu0 0
  %8766 = vmatmul.mubr.bf16.gmra.mrb[0].mxu0 %v8620
  %v8767 = vpop.f32.mrb[0].mxu0
  %v8768 = vadd.f32 0.0, %v8767
  %v8769 = vpop.f32.mrb[0].mxu0
  %v8770 = vpop.f32.mrb[0].mxu0
  %v8771 = vadd.f32 0.0, %v8770
  %v8772 = vpop.f32.mrb[0].mxu0
  %8773 = vdwg.mxu0
  %v8774 = vadd.f32 %v8349, %v8712
  %v8775 = vadd.f32 %v8350, %v8715
  %v8776 = vadd.f32 %v8351, %v8720
  %v8777 = vadd.f32 %v8352, %v8723
  %v8778 = vadd.f32 %v8353, %v8728
  %v8779 = vadd.f32 %v8354, %v8731
  %v8780 = vadd.f32 %v8355, %v8736
  %v8781 = vadd.f32 %v8356, %v8739
  %v8782 = vadd.f32 %v8357, %v8744
  %v8783 = vadd.f32 %v8358, %v8747
  %v8784 = vadd.f32 %v8359, %v8752
  %v8785 = vadd.f32 %v8360, %v8755
  %v8786 = vadd.f32 %v8361, %v8760
  %v8787 = vadd.f32 %v8362, %v8763
  %v8788 = vadd.f32 %v8363, %v8768
  %v8789 = vadd.f32 %v8364, %v8771
  %v8790 = vld [vmem:[%s361] sm:$0xe]
  %v8791 = vld [vmem:[%s361 + $0xc] sm:$0xe]
  %v8792 = vld [vmem:[%s361 + $0x18] sm:$0xe]
  %v8793 = vld [vmem:[%s361 + $0x24] sm:$0xe]
  %v8794 = vld [vmem:[%s361 + $0x30] sm:$0xe]
  %v8795 = vld [vmem:[%s361 + $0x3c] sm:$0xe]
  %v8796 = vld [vmem:[%s361 + $0x48] sm:$0xe]
  %v8797 = vld [vmem:[%s361 + $0x54] sm:$0xe]
  %v8822 = vrot.slane %v8790, 5
  %v8823 = vrot.slane %v8822, 4
  %v8824 = vrot.slane %v8366, 5
  %v8825 = vsel %vm1349, %v8823, %v8824
  %v8826 = vrot.slane %v8824, 4
  %v8827 = vrot.slane %v8367, 5
  %v8828 = vsel %vm1349, %v8826, %v8827
  %v8829 = vrot.slane %v8791, 5
  %v8830 = vrot.slane %v8829, 4
  %v8831 = vrot.slane %v8369, 5
  %v8832 = vsel %vm1349, %v8830, %v8831
  %v8833 = vrot.slane %v8831, 4
  %v8834 = vrot.slane %v8370, 5
  %v8835 = vsel %vm1349, %v8833, %v8834
  %v8836 = vrot.slane %v8792, 5
  %v8837 = vrot.slane %v8836, 4
  %v8838 = vrot.slane %v8372, 5
  %v8839 = vsel %vm1349, %v8837, %v8838
  %v8840 = vrot.slane %v8838, 4
  %v8841 = vrot.slane %v8373, 5
  %v8842 = vsel %vm1349, %v8840, %v8841
  %v8843 = vrot.slane %v8793, 5
  %v8844 = vrot.slane %v8843, 4
  %v8845 = vrot.slane %v8375, 5
  %v8846 = vsel %vm1349, %v8844, %v8845
  %v8847 = vrot.slane %v8845, 4
  %v8848 = vrot.slane %v8376, 5
  %v8849 = vsel %vm1349, %v8847, %v8848
  %v8850 = vrot.slane %v8794, 5
  %v8851 = vrot.slane %v8850, 4
  %v8852 = vrot.slane %v8378, 5
  %v8853 = vsel %vm1349, %v8851, %v8852
  %v8854 = vrot.slane %v8852, 4
  %v8855 = vrot.slane %v8379, 5
  %v8856 = vsel %vm1349, %v8854, %v8855
  %v8857 = vrot.slane %v8795, 5
  %v8858 = vrot.slane %v8857, 4
  %v8859 = vrot.slane %v8381, 5
  %v8860 = vsel %vm1349, %v8858, %v8859
  %v8861 = vrot.slane %v8859, 4
  %v8862 = vrot.slane %v8382, 5
  %v8863 = vsel %vm1349, %v8861, %v8862
  %v8864 = vrot.slane %v8796, 5
  %v8865 = vrot.slane %v8864, 4
  %v8866 = vrot.slane %v8384, 5
  %v8867 = vsel %vm1349, %v8865, %v8866
  %v8868 = vrot.slane %v8866, 4
  %v8869 = vrot.slane %v8385, 5
  %v8870 = vsel %vm1349, %v8868, %v8869
  %v8871 = vrot.slane %v8797, 5
  %v8872 = vrot.slane %v8871, 4
  %v8873 = vrot.slane %v8387, 5
  %v8874 = vsel %vm1349, %v8872, %v8873
  %v8875 = vrot.slane %v8873, 4
  %v8876 = vrot.slane %v8388, 5
  %v8877 = vsel %vm1349, %v8875, %v8876
  %v8878 = vld [vmem:[%s2372] sm:$0xf]
  %v8879 = vld [vmem:[%s2372 + $0x4] sm:$0xf]
  %v8880 = vld [vmem:[%s2372 + $0x8] sm:$0xf]
  %v8881 = vld [vmem:[%s2372 + $0xc] sm:$0xf]
  %v8882 = vld [vmem:[%s2372 + $0x10] sm:$0xf]
  %v8883 = vld [vmem:[%s2372 + $0x14] sm:$0xf]
  %v8884 = vld [vmem:[%s2372 + $0x18] sm:$0xf]
  %v8885 = vld [vmem:[%s2372 + $0x1c] sm:$0xf]
  %v8886 = vld [vmem:[%s2372 + $0x20] sm:$0xf]
  %v8887 = vld [vmem:[%s2372 + $0x24] sm:$0xf]
  %v8888 = vld [vmem:[%s2372 + $0x28] sm:$0xf]
  %v8889 = vld [vmem:[%s2372 + $0x2c] sm:$0xf]
  %v8890 = vld [vmem:[%s2372 + $0x30] sm:$0xf]
  %v8891 = vld [vmem:[%s2372 + $0x34] sm:$0xf]
  %v8892 = vld [vmem:[%s2372 + $0x38] sm:$0xf]
  %v8893 = vld [vmem:[%s2372 + $0x3c] sm:$0xf]
  %v8894 = vunpack.c.l.b16 %v8825
  %v8895 = vunpack.c.l.b16 %v8828
  %v8896 = vunpack.c.l.b16 %v8832
  %v8897 = vunpack.c.l.b16 %v8835
  %v8898 = vunpack.c.l.b16 %v8839
  %v8899 = vunpack.c.l.b16 %v8842
  %v8900 = vunpack.c.l.b16 %v8846
  %v8901 = vunpack.c.l.b16 %v8849
  %v8902 = vunpack.c.l.b16 %v8853
  %v8903 = vunpack.c.l.b16 %v8856
  %v8904 = vunpack.c.l.b16 %v8860
  %v8905 = vunpack.c.l.b16 %v8863
  %v8906 = vunpack.c.l.b16 %v8867
  %v8907 = vunpack.c.l.b16 %v8870
  %v8908 = vunpack.c.l.b16 %v8874
  %v8909 = vunpack.c.l.b16 %v8877
  %v8910 = vpack.c.b16 %v8895, %v8894
  %v8911 = vpack.c.b16 %v8897, %v8896
  %v8912 = vpack.c.b16 %v8899, %v8898
  %v8913 = vpack.c.b16 %v8901, %v8900
  %v8914 = vpack.c.b16 %v8903, %v8902
  %v8915 = vpack.c.b16 %v8905, %v8904
  %v8916 = vpack.c.b16 %v8907, %v8906
  %v8917 = vpack.c.b16 %v8909, %v8908
  %v8942 = vunpack.c.l.b16 %v8878
  %v8943 = vunpack.c.l.b16 %v8879
  %v8944 = vunpack.c.l.b16 %v8880
  %v8945 = vunpack.c.l.b16 %v8881
  %v8946 = vunpack.c.l.b16 %v8882
  %v8947 = vunpack.c.l.b16 %v8883
  %v8948 = vunpack.c.l.b16 %v8884
  %v8949 = vunpack.c.l.b16 %v8885
  %v8950 = vunpack.c.l.b16 %v8886
  %v8951 = vunpack.c.l.b16 %v8887
  %v8952 = vunpack.c.l.b16 %v8888
  %v8953 = vunpack.c.l.b16 %v8889
  %v8954 = vunpack.c.l.b16 %v8890
  %v8955 = vunpack.c.l.b16 %v8891
  %v8956 = vunpack.c.l.b16 %v8892
  %v8957 = vunpack.c.l.b16 %v8893
  %v8958 = vpack.c.b16 %v8943, %v8942
  %v8959 = vpack.c.b16 %v8945, %v8944
  %v8960 = vpack.c.b16 %v8947, %v8946
  %v8961 = vpack.c.b16 %v8949, %v8948
  %v8962 = vpack.c.b16 %v8951, %v8950
  %v8963 = vpack.c.b16 %v8953, %v8952
  %v8964 = vpack.c.b16 %v8955, %v8954
  %v8965 = vpack.c.b16 %v8957, %v8956
  %8974 = vmatprep.subr.bf16.mxu0 0
  %8975 = vmatpush1.bf16.msra.mxu0 %v8958
  %8976 = vmatprep.subr.bf16.mxu0 0
  %8977 = vmatpush1.bf16.msra.mxu0 %v8959
  %8978 = vmatprep.subr.bf16.mxu0 0
  %8979 = vmatpush1.bf16.msra.mxu0 %v8960
  %8980 = vmatprep.subr.bf16.mxu0 0
  %8981 = vmatpush1.bf16.msra.mxu0 %v8961
  %8982 = vmatprep.subr.bf16.mxu0 0
  %8983 = vmatpush1.bf16.msra.mxu0 %v8962
  %8984 = vmatprep.subr.bf16.mxu0 0
  %8985 = vmatpush1.bf16.msra.mxu0 %v8963
  %8986 = vmatprep.subr.bf16.mxu0 0
  %8987 = vmatpush1.bf16.msra.mxu0 %v8964
  %8988 = vmatprep.subr.bf16.mxu0 0
  %8989 = vmatpush1.bf16.msra.mxu0 %v8965
  %8990 = vmatprep.subr.bf16.mxu0 0
  %8991 = vmatpush1.bf16.msra.mxu0 0
  %8992 = vmatprep.subr.bf16.mxu0 0
  %8993 = vmatpush1.bf16.msra.mxu0 0
  %8994 = vmatprep.subr.bf16.mxu0 0
  %8995 = vmatpush1.bf16.msra.mxu0 0
  %8996 = vmatprep.subr.bf16.mxu0 0
  %8997 = vmatpush1.bf16.msra.mxu0 0
  %8998 = vmatprep.subr.bf16.mxu0 0
  %8999 = vmatpush1.bf16.msra.mxu0 0
  %9000 = vmatprep.subr.bf16.mxu0 0
  %9001 = vmatpush1.bf16.msra.mxu0 0
  %9002 = vmatprep.subr.bf16.mxu0 0
  %9003 = vmatpush1.bf16.msra.mxu0 0
  %9004 = vmatprep.subr.bf16.mxu0 0
  %9005 = vmatpush1.bf16.msra.mxu0 0
  %9006 = vmatprep.mubr.bf16.mxu0 0
  %9007 = vmatmul.mubr.bf16.gmra.mrb[0].mxu0 %v8910
  %v9008 = vpop.f32.mrb[0].mxu0
  %v9009 = vadd.f32 0.0, %v9008
  %v9010 = vpop.f32.mrb[0].mxu0
  %v9011 = vpop.f32.mrb[0].mxu0
  %v9012 = vadd.f32 0.0, %v9011
  %v9013 = vpop.f32.mrb[0].mxu0
  %9014 = vmatprep.mubr.bf16.mxu0 0
  %9015 = vmatmul.mubr.bf16.gmra.mrb[0].mxu0 %v8911
  %v9016 = vpop.f32.mrb[0].mxu0
  %v9017 = vadd.f32 0.0, %v9016
  %v9018 = vpop.f32.mrb[0].mxu0
  %v9019 = vpop.f32.mrb[0].mxu0
  %v9020 = vadd.f32 0.0, %v9019
  %v9021 = vpop.f32.mrb[0].mxu0
  %9022 = vmatprep.mubr.bf16.mxu0 0
  %9023 = vmatmul.mubr.bf16.gmra.mrb[0].mxu0 %v8912
  %v9024 = vpop.f32.mrb[0].mxu0
  %v9025 = vadd.f32 0.0, %v9024
  %v9026 = vpop.f32.mrb[0].mxu0
  %v9027 = vpop.f32.mrb[0].mxu0
  %v9028 = vadd.f32 0.0, %v9027
  %v9029 = vpop.f32.mrb[0].mxu0
  %9030 = vmatprep.mubr.bf16.mxu0 0
  %9031 = vmatmul.mubr.bf16.gmra.mrb[0].mxu0 %v8913
  %v9032 = vpop.f32.mrb[0].mxu0
  %v9033 = vadd.f32 0.0, %v9032
  %v9034 = vpop.f32.mrb[0].mxu0
  %v9035 = vpop.f32.mrb[0].mxu0
  %v9036 = vadd.f32 0.0, %v9035
  %v9037 = vpop.f32.mrb[0].mxu0
  %9038 = vmatprep.mubr.bf16.mxu0 0
  %9039 = vmatmul.mubr.bf16.gmra.mrb[0].mxu0 %v8914
  %v9040 = vpop.f32.mrb[0].mxu0
  %v9041 = vadd.f32 0.0, %v9040
  %v9042 = vpop.f32.mrb[0].mxu0
  %v9043 = vpop.f32.mrb[0].mxu0
  %v9044 = vadd.f32 0.0, %v9043
  %v9045 = vpop.f32.mrb[0].mxu0
  %9046 = vmatprep.mubr.bf16.mxu0 0
  %9047 = vmatmul.mubr.bf16.gmra.mrb[0].mxu0 %v8915
  %v9048 = vpop.f32.mrb[0].mxu0
  %v9049 = vadd.f32 0.0, %v9048
  %v9050 = vpop.f32.mrb[0].mxu0
  %v9051 = vpop.f32.mrb[0].mxu0
  %v9052 = vadd.f32 0.0, %v9051
  %v9053 = vpop.f32.mrb[0].mxu0
  %9054 = vmatprep.mubr.bf16.mxu0 0
  %9055 = vmatmul.mubr.bf16.gmra.mrb[0].mxu0 %v8916
  %v9056 = vpop.f32.mrb[0].mxu0
  %v9057 = vadd.f32 0.0, %v9056
  %v9058 = vpop.f32.mrb[0].mxu0
  %v9059 = vpop.f32.mrb[0].mxu0
  %v9060 = vadd.f32 0.0, %v9059
  %v9061 = vpop.f32.mrb[0].mxu0
  %9062 = vmatprep.mubr.bf16.mxu0 0
  %9063 = vmatmul.mubr.bf16.gmra.mrb[0].mxu0 %v8917
  %v9064 = vpop.f32.mrb[0].mxu0
  %v9065 = vadd.f32 0.0, %v9064
  %v9066 = vpop.f32.mrb[0].mxu0
  %v9067 = vpop.f32.mrb[0].mxu0
  %v9068 = vadd.f32 0.0, %v9067
  %v9069 = vpop.f32.mrb[0].mxu0
  %9070 = vdwg.mxu0
  %v9071 = vadd.f32 %v8774, %v9009
  %v9072 = vadd.f32 %v8775, %v9012
  %v9073 = vadd.f32 %v8776, %v9017
  %v9074 = vadd.f32 %v8777, %v9020
  %v9075 = vadd.f32 %v8778, %v9025
  %v9076 = vadd.f32 %v8779, %v9028
  %v9077 = vadd.f32 %v8780, %v9033
  %v9078 = vadd.f32 %v8781, %v9036
  %v9079 = vadd.f32 %v8782, %v9041
  %v9080 = vadd.f32 %v8783, %v9044
  %v9081 = vadd.f32 %v8784, %v9049
  %v9082 = vadd.f32 %v8785, %v9052
  %v9083 = vadd.f32 %v8786, %v9057
  %v9084 = vadd.f32 %v8787, %v9060
  %v9085 = vadd.f32 %v8788, %v9065
  %v9086 = vadd.f32 %v8789, %v9068
  %v9087 = vld [vmem:[%s2582] sm:$0xf]
  %v9088 = vld [vmem:[%s2582 + $0x4] sm:$0xf]
  %v9089 = vld [vmem:[%s2582 + $0xc] sm:$0xf]
  %v9090 = vld [vmem:[%s2582 + $0x10] sm:$0xf]
  %v9091 = vld [vmem:[%s2582 + $0x18] sm:$0xf]
  %v9092 = vld [vmem:[%s2582 + $0x1c] sm:$0xf]
  %v9093 = vld [vmem:[%s2582 + $0x24] sm:$0xf]
  %v9094 = vld [vmem:[%s2582 + $0x28] sm:$0xf]
  %v9095 = vld [vmem:[%s2582 + $0x30] sm:$0xf]
  %v9096 = vld [vmem:[%s2582 + $0x34] sm:$0xf]
  %v9097 = vld [vmem:[%s2582 + $0x3c] sm:$0xf]
  %v9098 = vld [vmem:[%s2582 + $0x40] sm:$0xf]
  %v9099 = vld [vmem:[%s2582 + $0x48] sm:$0xf]
  %v9100 = vld [vmem:[%s2582 + $0x4c] sm:$0xf]
  %v9101 = vld [vmem:[%s2582 + $0x54] sm:$0xf]
  %v9102 = vld [vmem:[%s2582 + $0x58] sm:$0xf]
  %v9103 = vld [vmem:[%s2599] sm:$0xf]
  %v9104 = vld [vmem:[%s2599 + $0x4] sm:$0xf]
  %v9105 = vld [vmem:[%s2599 + $0x8] sm:$0xf]
  %v9106 = vld [vmem:[%s2599 + $0xc] sm:$0xf]
  %v9107 = vld [vmem:[%s2599 + $0x10] sm:$0xf]
  %v9108 = vld [vmem:[%s2599 + $0x14] sm:$0xf]
  %v9109 = vld [vmem:[%s2599 + $0x18] sm:$0xf]
  %v9110 = vld [vmem:[%s2599 + $0x1c] sm:$0xf]
  %v9111 = vld [vmem:[%s2599 + $0x20] sm:$0xf]
  %v9112 = vld [vmem:[%s2599 + $0x24] sm:$0xf]
  %v9113 = vld [vmem:[%s2599 + $0x28] sm:$0xf]
  %v9114 = vld [vmem:[%s2599 + $0x2c] sm:$0xf]
  %v9115 = vld [vmem:[%s2599 + $0x30] sm:$0xf]
  %v9116 = vld [vmem:[%s2599 + $0x34] sm:$0xf]
  %v9117 = vld [vmem:[%s2599 + $0x38] sm:$0xf]
  %v9118 = vld [vmem:[%s2599 + $0x3c] sm:$0xf]
  %v9135 = vunpack.c.l.b16 %v9087
  %v9136 = vunpack.c.l.b16 %v9088
  %v9137 = vunpack.c.l.b16 %v9089
  %v9138 = vunpack.c.l.b16 %v9090
  %v9139 = vunpack.c.l.b16 %v9091
  %v9140 = vunpack.c.l.b16 %v9092
  %v9141 = vunpack.c.l.b16 %v9093
  %v9142 = vunpack.c.l.b16 %v9094
  %v9143 = vunpack.c.l.b16 %v9095
  %v9144 = vunpack.c.l.b16 %v9096
  %v9145 = vunpack.c.l.b16 %v9097
  %v9146 = vunpack.c.l.b16 %v9098
  %v9147 = vunpack.c.l.b16 %v9099
  %v9148 = vunpack.c.l.b16 %v9100
  %v9149 = vunpack.c.l.b16 %v9101
  %v9150 = vunpack.c.l.b16 %v9102
  %v9151 = vpack.c.b16 %v9136, %v9135
  %v9152 = vpack.c.b16 %v9138, %v9137
  %v9153 = vpack.c.b16 %v9140, %v9139
  %v9154 = vpack.c.b16 %v9142, %v9141
  %v9155 = vpack.c.b16 %v9144, %v9143
  %v9156 = vpack.c.b16 %v9146, %v9145
  %v9157 = vpack.c.b16 %v9148, %v9147
  %v9158 = vpack.c.b16 %v9150, %v9149
  %v9183 = vunpack.c.l.b16 %v9103
  %v9184 = vunpack.c.l.b16 %v9104
  %v9185 = vunpack.c.l.b16 %v9105
  %v9186 = vunpack.c.l.b16 %v9106
  %v9187 = vunpack.c.l.b16 %v9107
  %v9188 = vunpack.c.l.b16 %v9108
  %v9189 = vunpack.c.l.b16 %v9109
  %v9190 = vunpack.c.l.b16 %v9110
  %v9191 = vunpack.c.l.b16 %v9111
  %v9192 = vunpack.c.l.b16 %v9112
  %v9193 = vunpack.c.l.b16 %v9113
  %v9194 = vunpack.c.l.b16 %v9114
  %v9195 = vunpack.c.l.b16 %v9115
  %v9196 = vunpack.c.l.b16 %v9116
  %v9197 = vunpack.c.l.b16 %v9117
  %v9198 = vunpack.c.l.b16 %v9118
  %v9199 = vpack.c.b16 %v9184, %v9183
  %v9200 = vpack.c.b16 %v9186, %v9185
  %v9201 = vpack.c.b16 %v9188, %v9187
  %v9202 = vpack.c.b16 %v9190, %v9189
  %v9203 = vpack.c.b16 %v9192, %v9191
  %v9204 = vpack.c.b16 %v9194, %v9193
  %v9205 = vpack.c.b16 %v9196, %v9195
  %v9206 = vpack.c.b16 %v9198, %v9197
  %9215 = vmatprep.subr.bf16.mxu0 0
  %9216 = vmatpush1.bf16.msra.mxu0 %v9199
  %9217 = vmatprep.subr.bf16.mxu0 0
  %9218 = vmatpush1.bf16.msra.mxu0 %v9200
  %9219 = vmatprep.subr.bf16.mxu0 0
  %9220 = vmatpush1.bf16.msra.mxu0 %v9201
  %9221 = vmatprep.subr.bf16.mxu0 0
  %9222 = vmatpush1.bf16.msra.mxu0 %v9202
  %9223 = vmatprep.subr.bf16.mxu0 0
  %9224 = vmatpush1.bf16.msra.mxu0 %v9203
  %9225 = vmatprep.subr.bf16.mxu0 0
  %9226 = vmatpush1.bf16.msra.mxu0 %v9204
  %9227 = vmatprep.subr.bf16.mxu0 0
  %9228 = vmatpush1.bf16.msra.mxu0 %v9205
  %9229 = vmatprep.subr.bf16.mxu0 0
  %9230 = vmatpush1.bf16.msra.mxu0 %v9206
  %9231 = vmatprep.subr.bf16.mxu0 0
  %9232 = vmatpush1.bf16.msra.mxu0 0
  %9233 = vmatprep.subr.bf16.mxu0 0
  %9234 = vmatpush1.bf16.msra.mxu0 0
  %9235 = vmatprep.subr.bf16.mxu0 0
  %9236 = vmatpush1.bf16.msra.mxu0 0
  %9237 = vmatprep.subr.bf16.mxu0 0
  %9238 = vmatpush1.bf16.msra.mxu0 0
  %9239 = vmatprep.subr.bf16.mxu0 0
  %9240 = vmatpush1.bf16.msra.mxu0 0
  %9241 = vmatprep.subr.bf16.mxu0 0
  %9242 = vmatpush1.bf16.msra.mxu0 0
  %9243 = vmatprep.subr.bf16.mxu0 0
  %9244 = vmatpush1.bf16.msra.mxu0 0
  %9245 = vmatprep.subr.bf16.mxu0 0
  %9246 = vmatpush1.bf16.msra.mxu0 0
  %9247 = vmatprep.mubr.bf16.mxu0 0
  %9248 = vmatmul.mubr.bf16.gmra.mrb[0].mxu0 %v9151
  %v9249 = vpop.f32.mrb[0].mxu0
  %v9250 = vadd.f32 0.0, %v9249
  %v9251 = vpop.f32.mrb[0].mxu0
  %v9252 = vpop.f32.mrb[0].mxu0
  %v9253 = vadd.f32 0.0, %v9252
  %v9254 = vpop.f32.mrb[0].mxu0
  %9255 = vmatprep.mubr.bf16.mxu0 0
  %9256 = vmatmul.mubr.bf16.gmra.mrb[0].mxu0 %v9152
  %v9257 = vpop.f32.mrb[0].mxu0
  %v9258 = vadd.f32 0.0, %v9257
  %v9259 = vpop.f32.mrb[0].mxu0
  %v9260 = vpop.f32.mrb[0].mxu0
  %v9261 = vadd.f32 0.0, %v9260
  %v9262 = vpop.f32.mrb[0].mxu0
  %9263 = vmatprep.mubr.bf16.mxu0 0
  %9264 = vmatmul.mubr.bf16.gmra.mrb[0].mxu0 %v9153
  %v9265 = vpop.f32.mrb[0].mxu0
  %v9266 = vadd.f32 0.0, %v9265
  %v9267 = vpop.f32.mrb[0].mxu0
  %v9268 = vpop.f32.mrb[0].mxu0
  %v9269 = vadd.f32 0.0, %v9268
  %v9270 = vpop.f32.mrb[0].mxu0
  %9271 = vmatprep.mubr.bf16.mxu0 0
  %9272 = vmatmul.mubr.bf16.gmra.mrb[0].mxu0 %v9154
  %v9273 = vpop.f32.mrb[0].mxu0
  %v9274 = vadd.f32 0.0, %v9273
  %v9275 = vpop.f32.mrb[0].mxu0
  %v9276 = vpop.f32.mrb[0].mxu0
  %v9277 = vadd.f32 0.0, %v9276
  %v9278 = vpop.f32.mrb[0].mxu0
  %9279 = vmatprep.mubr.bf16.mxu0 0
  %9280 = vmatmul.mubr.bf16.gmra.mrb[0].mxu0 %v9155
  %v9281 = vpop.f32.mrb[0].mxu0
  %v9282 = vadd.f32 0.0, %v9281
  %v9283 = vpop.f32.mrb[0].mxu0
  %v9284 = vpop.f32.mrb[0].mxu0
  %v9285 = vadd.f32 0.0, %v9284
  %v9286 = vpop.f32.mrb[0].mxu0
  %9287 = vmatprep.mubr.bf16.mxu0 0
  %9288 = vmatmul.mubr.bf16.gmra.mrb[0].mxu0 %v9156
  %v9289 = vpop.f32.mrb[0].mxu0
  %v9290 = vadd.f32 0.0, %v9289
  %v9291 = vpop.f32.mrb[0].mxu0
  %v9292 = vpop.f32.mrb[0].mxu0
  %v9293 = vadd.f32 0.0, %v9292
  %v9294 = vpop.f32.mrb[0].mxu0
  %9295 = vmatprep.mubr.bf16.mxu0 0
  %9296 = vmatmul.mubr.bf16.gmra.mrb[0].mxu0 %v9157
  %v9297 = vpop.f32.mrb[0].mxu0
  %v9298 = vadd.f32 0.0, %v9297
  %v9299 = vpop.f32.mrb[0].mxu0
  %v9300 = vpop.f32.mrb[0].mxu0
  %v9301 = vadd.f32 0.0, %v9300
  %v9302 = vpop.f32.mrb[0].mxu0
  %9303 = vmatprep.mubr.bf16.mxu0 0
  %9304 = vmatmul.mubr.bf16.gmra.mrb[0].mxu0 %v9158
  %v9305 = vpop.f32.mrb[0].mxu0
  %v9306 = vadd.f32 0.0, %v9305
  %v9307 = vpop.f32.mrb[0].mxu0
  %v9308 = vpop.f32.mrb[0].mxu0
  %v9309 = vadd.f32 0.0, %v9308
  %v9310 = vpop.f32.mrb[0].mxu0
  %9311 = vdwg.mxu0
  %v9312 = vadd.f32 %v9071, %v9250
  %v9313 = vadd.f32 %v9072, %v9253
  %v9314 = vadd.f32 %v9073, %v9258
  %v9315 = vadd.f32 %v9074, %v9261
  %v9316 = vadd.f32 %v9075, %v9266
  %v9317 = vadd.f32 %v9076, %v9269
  %v9318 = vadd.f32 %v9077, %v9274
  %v9319 = vadd.f32 %v9078, %v9277
  %v9320 = vadd.f32 %v9079, %v9282
  %v9321 = vadd.f32 %v9080, %v9285
  %v9322 = vadd.f32 %v9081, %v9290
  %v9323 = vadd.f32 %v9082, %v9293
  %v9324 = vadd.f32 %v9083, %v9298
  %v9325 = vadd.f32 %v9084, %v9301
  %v9326 = vadd.f32 %v9085, %v9306
  %v9327 = vadd.f32 %v9086, %v9309
  %v9328 = vld [vmem:[%s2582] sm:$0xf]
  %v9329 = vld [vmem:[%s2582 + $0x4] sm:$0xf]
  %v9330 = vld [vmem:[%s2582 + $0x8] sm:$0x1]
  %v9331 = vld [vmem:[%s2582 + $0xc] sm:$0xf]
  %v9332 = vld [vmem:[%s2582 + $0x10] sm:$0xf]
  %v9333 = vld [vmem:[%s2582 + $0x14] sm:$0x1]
  %v9334 = vld [vmem:[%s2582 + $0x18] sm:$0xf]
  %v9335 = vld [vmem:[%s2582 + $0x1c] sm:$0xf]
  %v9336 = vld [vmem:[%s2582 + $0x20] sm:$0x1]
  %v9337 = vld [vmem:[%s2582 + $0x24] sm:$0xf]
  %v9338 = vld [vmem:[%s2582 + $0x28] sm:$0xf]
  %v9339 = vld [vmem:[%s2582 + $0x2c] sm:$0x1]
  %v9340 = vld [vmem:[%s2582 + $0x30] sm:$0xf]
  %v9341 = vld [vmem:[%s2582 + $0x34] sm:$0xf]
  %v9342 = vld [vmem:[%s2582 + $0x38] sm:$0x1]
  %v9343 = vld [vmem:[%s2582 + $0x3c] sm:$0xf]
  %v9344 = vld [vmem:[%s2582 + $0x40] sm:$0xf]
  %v9345 = vld [vmem:[%s2582 + $0x44] sm:$0x1]
  %v9346 = vld [vmem:[%s2582 + $0x48] sm:$0xf]
  %v9347 = vld [vmem:[%s2582 + $0x4c] sm:$0xf]
  %v9348 = vld [vmem:[%s2582 + $0x50] sm:$0x1]
  %v9349 = vld [vmem:[%s2582 + $0x54] sm:$0xf]
  %v9350 = vld [vmem:[%s2582 + $0x58] sm:$0xf]
  %v9351 = vld [vmem:[%s2582 + $0x5c] sm:$0x1]
  %v9353 = vshrl.u32 %v9328, 16
  %v9355 = vrot.slane %v9353, 4
  %v9356 = vshll.u32 %v9328, 16
  %v9358 = vrot.slane %v9356, 5
  %v9359 = vor.u32 %v9355, %v9358
  %v9360 = vrot.slane %v9359, 4
  %v9362 = vshll.u32 %v9329, 16
  %v9364 = vrot.slane %v9362, 5
  %v9365 = vsel %vm743, %v9360, %v9364
  %v9366 = vshrl.u32 %v9329, 16
  %v9368 = vrot.slane %v9366, 4
  %v9369 = vor.u32 %v9368, %v9364
  %v9370 = vrot.slane %v9369, 4
  %v9372 = vshll.u32 %v9330, 16
  %v9374 = vrot.slane %v9372, 5
  %v9375 = vsel %vm743, %v9370, %v9374
  %v9377 = vshrl.u32 %v9331, 16
  %v9379 = vrot.slane %v9377, 4
  %v9380 = vshll.u32 %v9331, 16
  %v9382 = vrot.slane %v9380, 5
  %v9383 = vor.u32 %v9379, %v9382
  %v9384 = vrot.slane %v9383, 4
  %v9386 = vshll.u32 %v9332, 16
  %v9388 = vrot.slane %v9386, 5
  %v9389 = vsel %vm743, %v9384, %v9388
  %v9390 = vshrl.u32 %v9332, 16
  %v9392 = vrot.slane %v9390, 4
  %v9393 = vor.u32 %v9392, %v9388
  %v9394 = vrot.slane %v9393, 4
  %v9396 = vshll.u32 %v9333, 16
  %v9398 = vrot.slane %v9396, 5
  %v9399 = vsel %vm743, %v9394, %v9398
  %v9401 = vshrl.u32 %v9334, 16
  %v9403 = vrot.slane %v9401, 4
  %v9404 = vshll.u32 %v9334, 16
  %v9406 = vrot.slane %v9404, 5
  %v9407 = vor.u32 %v9403, %v9406
  %v9408 = vrot.slane %v9407, 4
  %v9410 = vshll.u32 %v9335, 16
  %v9412 = vrot.slane %v9410, 5
  %v9413 = vsel %vm743, %v9408, %v9412
  %v9414 = vshrl.u32 %v9335, 16
  %v9416 = vrot.slane %v9414, 4
  %v9417 = vor.u32 %v9416, %v9412
  %v9418 = vrot.slane %v9417, 4
  %v9420 = vshll.u32 %v9336, 16
  %v9422 = vrot.slane %v9420, 5
  %v9423 = vsel %vm743, %v9418, %v9422
  %v9425 = vshrl.u32 %v9337, 16
  %v9427 = vrot.slane %v9425, 4
  %v9428 = vshll.u32 %v9337, 16
  %v9430 = vrot.slane %v9428, 5
  %v9431 = vor.u32 %v9427, %v9430
  %v9432 = vrot.slane %v9431, 4
  %v9434 = vshll.u32 %v9338, 16
  %v9436 = vrot.slane %v9434, 5
  %v9437 = vsel %vm743, %v9432, %v9436
  %v9438 = vshrl.u32 %v9338, 16
  %v9440 = vrot.slane %v9438, 4
  %v9441 = vor.u32 %v9440, %v9436
  %v9442 = vrot.slane %v9441, 4
  %v9444 = vshll.u32 %v9339, 16
  %v9446 = vrot.slane %v9444, 5
  %v9447 = vsel %vm743, %v9442, %v9446
  %v9449 = vshrl.u32 %v9340, 16
  %v9451 = vrot.slane %v9449, 4
  %v9452 = vshll.u32 %v9340, 16
  %v9454 = vrot.slane %v9452, 5
  %v9455 = vor.u32 %v9451, %v9454
  %v9456 = vrot.slane %v9455, 4
  %v9458 = vshll.u32 %v9341, 16
  %v9460 = vrot.slane %v9458, 5
  %v9461 = vsel %vm743, %v9456, %v9460
  %v9462 = vshrl.u32 %v9341, 16
  %v9464 = vrot.slane %v9462, 4
  %v9465 = vor.u32 %v9464, %v9460
  %v9466 = vrot.slane %v9465, 4
  %v9468 = vshll.u32 %v9342, 16
  %v9470 = vrot.slane %v9468, 5
  %v9471 = vsel %vm743, %v9466, %v9470
  %v9473 = vshrl.u32 %v9343, 16
  %v9475 = vrot.slane %v9473, 4
  %v9476 = vshll.u32 %v9343, 16
  %v9478 = vrot.slane %v9476, 5
  %v9479 = vor.u32 %v9475, %v9478
  %v9480 = vrot.slane %v9479, 4
  %v9482 = vshll.u32 %v9344, 16
  %v9484 = vrot.slane %v9482, 5
  %v9485 = vsel %vm743, %v9480, %v9484
  %v9486 = vshrl.u32 %v9344, 16
  %v9488 = vrot.slane %v9486, 4
  %v9489 = vor.u32 %v9488, %v9484
  %v9490 = vrot.slane %v9489, 4
  %v9492 = vshll.u32 %v9345, 16
  %v9494 = vrot.slane %v9492, 5
  %v9495 = vsel %vm743, %v9490, %v9494
  %v9497 = vshrl.u32 %v9346, 16
  %v9499 = vrot.slane %v9497, 4
  %v9500 = vshll.u32 %v9346, 16
  %v9502 = vrot.slane %v9500, 5
  %v9503 = vor.u32 %v9499, %v9502
  %v9504 = vrot.slane %v9503, 4
  %v9506 = vshll.u32 %v9347, 16
  %v9508 = vrot.slane %v9506, 5
  %v9509 = vsel %vm743, %v9504, %v9508
  %v9510 = vshrl.u32 %v9347, 16
  %v9512 = vrot.slane %v9510, 4
  %v9513 = vor.u32 %v9512, %v9508
  %v9514 = vrot.slane %v9513, 4
  %v9516 = vshll.u32 %v9348, 16
  %v9518 = vrot.slane %v9516, 5
  %v9519 = vsel %vm743, %v9514, %v9518
  %v9521 = vshrl.u32 %v9349, 16
  %v9523 = vrot.slane %v9521, 4
  %v9524 = vshll.u32 %v9349, 16
  %v9526 = vrot.slane %v9524, 5
  %v9527 = vor.u32 %v9523, %v9526
  %v9528 = vrot.slane %v9527, 4
  %v9530 = vshll.u32 %v9350, 16
  %v9532 = vrot.slane %v9530, 5
  %v9533 = vsel %vm743, %v9528, %v9532
  %v9534 = vshrl.u32 %v9350, 16
  %v9536 = vrot.slane %v9534, 4
  %v9537 = vor.u32 %v9536, %v9532
  %v9538 = vrot.slane %v9537, 4
  %v9540 = vshll.u32 %v9351, 16
  %v9542 = vrot.slane %v9540, 5
  %v9543 = vsel %vm743, %v9538, %v9542
  %v9544 = vld [vmem:[%s3041] sm:$0xf]
  %v9545 = vld [vmem:[%s3041 + $0x4] sm:$0xf]
  %v9546 = vld [vmem:[%s3041 + $0x8] sm:$0xf]
  %v9547 = vld [vmem:[%s3041 + $0xc] sm:$0xf]
  %v9548 = vld [vmem:[%s3041 + $0x10] sm:$0xf]
  %v9549 = vld [vmem:[%s3041 + $0x14] sm:$0xf]
  %v9550 = vld [vmem:[%s3041 + $0x18] sm:$0xf]
  %v9551 = vld [vmem:[%s3041 + $0x1c] sm:$0xf]
  %v9552 = vld [vmem:[%s3041 + $0x20] sm:$0xf]
  %v9553 = vld [vmem:[%s3041 + $0x24] sm:$0xf]
  %v9554 = vld [vmem:[%s3041 + $0x28] sm:$0xf]
  %v9555 = vld [vmem:[%s3041 + $0x2c] sm:$0xf]
  %v9556 = vld [vmem:[%s3041 + $0x30] sm:$0xf]
  %v9557 = vld [vmem:[%s3041 + $0x34] sm:$0xf]
  %v9558 = vld [vmem:[%s3041 + $0x38] sm:$0xf]
  %v9559 = vld [vmem:[%s3041 + $0x3c] sm:$0xf]
  %v9560 = vunpack.c.l.b16 %v9365
  %v9561 = vunpack.c.l.b16 %v9375
  %v9562 = vunpack.c.l.b16 %v9389
  %v9563 = vunpack.c.l.b16 %v9399
  %v9564 = vunpack.c.l.b16 %v9413
  %v9565 = vunpack.c.l.b16 %v9423
  %v9566 = vunpack.c.l.b16 %v9437
  %v9567 = vunpack.c.l.b16 %v9447
  %v9568 = vunpack.c.l.b16 %v9461
  %v9569 = vunpack.c.l.b16 %v9471
  %v9570 = vunpack.c.l.b16 %v9485
  %v9571 = vunpack.c.l.b16 %v9495
  %v9572 = vunpack.c.l.b16 %v9509
  %v9573 = vunpack.c.l.b16 %v9519
  %v9574 = vunpack.c.l.b16 %v9533
  %v9575 = vunpack.c.l.b16 %v9543
  %v9576 = vpack.c.b16 %v9561, %v9560
  %v9577 = vpack.c.b16 %v9563, %v9562
  %v9578 = vpack.c.b16 %v9565, %v9564
  %v9579 = vpack.c.b16 %v9567, %v9566
  %v9580 = vpack.c.b16 %v9569, %v9568
  %v9581 = vpack.c.b16 %v9571, %v9570
  %v9582 = vpack.c.b16 %v9573, %v9572
  %v9583 = vpack.c.b16 %v9575, %v9574
  %v9608 = vunpack.c.l.b16 %v9544
  %v9609 = vunpack.c.l.b16 %v9545
  %v9610 = vunpack.c.l.b16 %v9546
  %v9611 = vunpack.c.l.b16 %v9547
  %v9612 = vunpack.c.l.b16 %v9548
  %v9613 = vunpack.c.l.b16 %v9549
  %v9614 = vunpack.c.l.b16 %v9550
  %v9615 = vunpack.c.l.b16 %v9551
  %v9616 = vunpack.c.l.b16 %v9552
  %v9617 = vunpack.c.l.b16 %v9553
  %v9618 = vunpack.c.l.b16 %v9554
  %v9619 = vunpack.c.l.b16 %v9555
  %v9620 = vunpack.c.l.b16 %v9556
  %v9621 = vunpack.c.l.b16 %v9557
  %v9622 = vunpack.c.l.b16 %v9558
  %v9623 = vunpack.c.l.b16 %v9559
  %v9624 = vpack.c.b16 %v9609, %v9608
  %v9625 = vpack.c.b16 %v9611, %v9610
  %v9626 = vpack.c.b16 %v9613, %v9612
  %v9627 = vpack.c.b16 %v9615, %v9614
  %v9628 = vpack.c.b16 %v9617, %v9616
  %v9629 = vpack.c.b16 %v9619, %v9618
  %v9630 = vpack.c.b16 %v9621, %v9620
  %v9631 = vpack.c.b16 %v9623, %v9622
  %9640 = vmatprep.subr.bf16.mxu0 0
  %9641 = vmatpush1.bf16.msra.mxu0 %v9624
  %9642 = vmatprep.subr.bf16.mxu0 0
  %9643 = vmatpush1.bf16.msra.mxu0 %v9625
  %9644 = vmatprep.subr.bf16.mxu0 0
  %9645 = vmatpush1.bf16.msra.mxu0 %v9626
  %9646 = vmatprep.subr.bf16.mxu0 0
  %9647 = vmatpush1.bf16.msra.mxu0 %v9627
  %9648 = vmatprep.subr.bf16.mxu0 0
  %9649 = vmatpush1.bf16.msra.mxu0 %v9628
  %9650 = vmatprep.subr.bf16.mxu0 0
  %9651 = vmatpush1.bf16.msra.mxu0 %v9629
  %9652 = vmatprep.subr.bf16.mxu0 0
  %9653 = vmatpush1.bf16.msra.mxu0 %v9630
  %9654 = vmatprep.subr.bf16.mxu0 0
  %9655 = vmatpush1.bf16.msra.mxu0 %v9631
  %9656 = vmatprep.subr.bf16.mxu0 0
  %9657 = vmatpush1.bf16.msra.mxu0 0
  %9658 = vmatprep.subr.bf16.mxu0 0
  %9659 = vmatpush1.bf16.msra.mxu0 0
  %9660 = vmatprep.subr.bf16.mxu0 0
  %9661 = vmatpush1.bf16.msra.mxu0 0
  %9662 = vmatprep.subr.bf16.mxu0 0
  %9663 = vmatpush1.bf16.msra.mxu0 0
  %9664 = vmatprep.subr.bf16.mxu0 0
  %9665 = vmatpush1.bf16.msra.mxu0 0
  %9666 = vmatprep.subr.bf16.mxu0 0
  %9667 = vmatpush1.bf16.msra.mxu0 0
  %9668 = vmatprep.subr.bf16.mxu0 0
  %9669 = vmatpush1.bf16.msra.mxu0 0
  %9670 = vmatprep.subr.bf16.mxu0 0
  %9671 = vmatpush1.bf16.msra.mxu0 0
  %9672 = vmatprep.mubr.bf16.mxu0 0
  %9673 = vmatmul.mubr.bf16.gmra.mrb[0].mxu0 %v9576
  %v9674 = vpop.f32.mrb[0].mxu0
  %v9675 = vadd.f32 0.0, %v9674
  %v9676 = vpop.f32.mrb[0].mxu0
  %v9677 = vpop.f32.mrb[0].mxu0
  %v9678 = vadd.f32 0.0, %v9677
  %v9679 = vpop.f32.mrb[0].mxu0
  %9680 = vmatprep.mubr.bf16.mxu0 0
  %9681 = vmatmul.mubr.bf16.gmra.mrb[0].mxu0 %v9577
  %v9682 = vpop.f32.mrb[0].mxu0
  %v9683 = vadd.f32 0.0, %v9682
  %v9684 = vpop.f32.mrb[0].mxu0
  %v9685 = vpop.f32.mrb[0].mxu0
  %v9686 = vadd.f32 0.0, %v9685
  %v9687 = vpop.f32.mrb[0].mxu0
  %9688 = vmatprep.mubr.bf16.mxu0 0
  %9689 = vmatmul.mubr.bf16.gmra.mrb[0].mxu0 %v9578
  %v9690 = vpop.f32.mrb[0].mxu0
  %v9691 = vadd.f32 0.0, %v9690
  %v9692 = vpop.f32.mrb[0].mxu0
  %v9693 = vpop.f32.mrb[0].mxu0
  %v9694 = vadd.f32 0.0, %v9693
  %v9695 = vpop.f32.mrb[0].mxu0
  %9696 = vmatprep.mubr.bf16.mxu0 0
  %9697 = vmatmul.mubr.bf16.gmra.mrb[0].mxu0 %v9579
  %v9698 = vpop.f32.mrb[0].mxu0
  %v9699 = vadd.f32 0.0, %v9698
  %v9700 = vpop.f32.mrb[0].mxu0
  %v9701 = vpop.f32.mrb[0].mxu0
  %v9702 = vadd.f32 0.0, %v9701
  %v9703 = vpop.f32.mrb[0].mxu0
  %9704 = vmatprep.mubr.bf16.mxu0 0
  %9705 = vmatmul.mubr.bf16.gmra.mrb[0].mxu0 %v9580
  %v9706 = vpop.f32.mrb[0].mxu0
  %v9707 = vadd.f32 0.0, %v9706
  %v9708 = vpop.f32.mrb[0].mxu0
  %v9709 = vpop.f32.mrb[0].mxu0
  %v9710 = vadd.f32 0.0, %v9709
  %v9711 = vpop.f32.mrb[0].mxu0
  %9712 = vmatprep.mubr.bf16.mxu0 0
  %9713 = vmatmul.mubr.bf16.gmra.mrb[0].mxu0 %v9581
  %v9714 = vpop.f32.mrb[0].mxu0
  %v9715 = vadd.f32 0.0, %v9714
  %v9716 = vpop.f32.mrb[0].mxu0
  %v9717 = vpop.f32.mrb[0].mxu0
  %v9718 = vadd.f32 0.0, %v9717
  %v9719 = vpop.f32.mrb[0].mxu0
  %9720 = vmatprep.mubr.bf16.mxu0 0
  %9721 = vmatmul.mubr.bf16.gmra.mrb[0].mxu0 %v9582
  %v9722 = vpop.f32.mrb[0].mxu0
  %v9723 = vadd.f32 0.0, %v9722
  %v9724 = vpop.f32.mrb[0].mxu0
  %v9725 = vpop.f32.mrb[0].mxu0
  %v9726 = vadd.f32 0.0, %v9725
  %v9727 = vpop.f32.mrb[0].mxu0
  %9728 = vmatprep.mubr.bf16.mxu0 0
  %9729 = vmatmul.mubr.bf16.gmra.mrb[0].mxu0 %v9583
  %v9730 = vpop.f32.mrb[0].mxu0
  %v9731 = vadd.f32 0.0, %v9730
  %v9732 = vpop.f32.mrb[0].mxu0
  %v9733 = vpop.f32.mrb[0].mxu0
  %v9734 = vadd.f32 0.0, %v9733
  %v9735 = vpop.f32.mrb[0].mxu0
  %9736 = vdwg.mxu0
  %v9737 = vadd.f32 %v9312, %v9675
  %v9738 = vadd.f32 %v9313, %v9678
  %v9739 = vadd.f32 %v9314, %v9683
  %v9740 = vadd.f32 %v9315, %v9686
  %v9741 = vadd.f32 %v9316, %v9691
  %v9742 = vadd.f32 %v9317, %v9694
  %v9743 = vadd.f32 %v9318, %v9699
  %v9744 = vadd.f32 %v9319, %v9702
  %v9745 = vadd.f32 %v9320, %v9707
  %v9746 = vadd.f32 %v9321, %v9710
  %v9747 = vadd.f32 %v9322, %v9715
  %v9748 = vadd.f32 %v9323, %v9718
  %v9749 = vadd.f32 %v9324, %v9723
  %v9750 = vadd.f32 %v9325, %v9726
  %v9751 = vadd.f32 %v9326, %v9731
  %v9752 = vadd.f32 %v9327, %v9734
  %v9753 = vld [vmem:[%s2582] sm:$0xe]
  %v9754 = vld [vmem:[%s2582 + $0xc] sm:$0xe]
  %v9755 = vld [vmem:[%s2582 + $0x18] sm:$0xe]
  %v9756 = vld [vmem:[%s2582 + $0x24] sm:$0xe]
  %v9757 = vld [vmem:[%s2582 + $0x30] sm:$0xe]
  %v9758 = vld [vmem:[%s2582 + $0x3c] sm:$0xe]
  %v9759 = vld [vmem:[%s2582 + $0x48] sm:$0xe]
  %v9760 = vld [vmem:[%s2582 + $0x54] sm:$0xe]
  %v9785 = vrot.slane %v9753, 5
  %v9786 = vrot.slane %v9785, 4
  %v9787 = vrot.slane %v9329, 5
  %v9788 = vsel %vm1349, %v9786, %v9787
  %v9789 = vrot.slane %v9787, 4
  %v9790 = vrot.slane %v9330, 5
  %v9791 = vsel %vm1349, %v9789, %v9790
  %v9792 = vrot.slane %v9754, 5
  %v9793 = vrot.slane %v9792, 4
  %v9794 = vrot.slane %v9332, 5
  %v9795 = vsel %vm1349, %v9793, %v9794
  %v9796 = vrot.slane %v9794, 4
  %v9797 = vrot.slane %v9333, 5
  %v9798 = vsel %vm1349, %v9796, %v9797
  %v9799 = vrot.slane %v9755, 5
  %v9800 = vrot.slane %v9799, 4
  %v9801 = vrot.slane %v9335, 5
  %v9802 = vsel %vm1349, %v9800, %v9801
  %v9803 = vrot.slane %v9801, 4
  %v9804 = vrot.slane %v9336, 5
  %v9805 = vsel %vm1349, %v9803, %v9804
  %v9806 = vrot.slane %v9756, 5
  %v9807 = vrot.slane %v9806, 4
  %v9808 = vrot.slane %v9338, 5
  %v9809 = vsel %vm1349, %v9807, %v9808
  %v9810 = vrot.slane %v9808, 4
  %v9811 = vrot.slane %v9339, 5
  %v9812 = vsel %vm1349, %v9810, %v9811
  %v9813 = vrot.slane %v9757, 5
  %v9814 = vrot.slane %v9813, 4
  %v9815 = vrot.slane %v9341, 5
  %v9816 = vsel %vm1349, %v9814, %v9815
  %v9817 = vrot.slane %v9815, 4
  %v9818 = vrot.slane %v9342, 5
  %v9819 = vsel %vm1349, %v9817, %v9818
  %v9820 = vrot.slane %v9758, 5
  %v9821 = vrot.slane %v9820, 4
  %v9822 = vrot.slane %v9344, 5
  %v9823 = vsel %vm1349, %v9821, %v9822
  %v9824 = vrot.slane %v9822, 4
  %v9825 = vrot.slane %v9345, 5
  %v9826 = vsel %vm1349, %v9824, %v9825
  %v9827 = vrot.slane %v9759, 5
  %v9828 = vrot.slane %v9827, 4
  %v9829 = vrot.slane %v9347, 5
  %v9830 = vsel %vm1349, %v9828, %v9829
  %v9831 = vrot.slane %v9829, 4
  %v9832 = vrot.slane %v9348, 5
  %v9833 = vsel %vm1349, %v9831, %v9832
  %v9834 = vrot.slane %v9760, 5
  %v9835 = vrot.slane %v9834, 4
  %v9836 = vrot.slane %v9350, 5
  %v9837 = vsel %vm1349, %v9835, %v9836
  %v9838 = vrot.slane %v9836, 4
  %v9839 = vrot.slane %v9351, 5
  %v9840 = vsel %vm1349, %v9838, %v9839
  %v9841 = vld [vmem:[%s3339] sm:$0xf]
  %v9842 = vld [vmem:[%s3339 + $0x4] sm:$0xf]
  %v9843 = vld [vmem:[%s3339 + $0x8] sm:$0xf]
  %v9844 = vld [vmem:[%s3339 + $0xc] sm:$0xf]
  %v9845 = vld [vmem:[%s3339 + $0x10] sm:$0xf]
  %v9846 = vld [vmem:[%s3339 + $0x14] sm:$0xf]
  %v9847 = vld [vmem:[%s3339 + $0x18] sm:$0xf]
  %v9848 = vld [vmem:[%s3339 + $0x1c] sm:$0xf]
  %v9849 = vld [vmem:[%s3339 + $0x20] sm:$0xf]
  %v9850 = vld [vmem:[%s3339 + $0x24] sm:$0xf]
  %v9851 = vld [vmem:[%s3339 + $0x28] sm:$0xf]
  %v9852 = vld [vmem:[%s3339 + $0x2c] sm:$0xf]
  %v9853 = vld [vmem:[%s3339 + $0x30] sm:$0xf]
  %v9854 = vld [vmem:[%s3339 + $0x34] sm:$0xf]
  %v9855 = vld [vmem:[%s3339 + $0x38] sm:$0xf]
  %v9856 = vld [vmem:[%s3339 + $0x3c] sm:$0xf]
  %v9857 = vunpack.c.l.b16 %v9788
  %v9858 = vunpack.c.l.b16 %v9791
  %v9859 = vunpack.c.l.b16 %v9795
  %v9860 = vunpack.c.l.b16 %v9798
  %v9861 = vunpack.c.l.b16 %v9802
  %v9862 = vunpack.c.l.b16 %v9805
  %v9863 = vunpack.c.l.b16 %v9809
  %v9864 = vunpack.c.l.b16 %v9812
  %v9865 = vunpack.c.l.b16 %v9816
  %v9866 = vunpack.c.l.b16 %v9819
  %v9867 = vunpack.c.l.b16 %v9823
  %v9868 = vunpack.c.l.b16 %v9826
  %v9869 = vunpack.c.l.b16 %v9830
  %v9870 = vunpack.c.l.b16 %v9833
  %v9871 = vunpack.c.l.b16 %v9837
  %v9872 = vunpack.c.l.b16 %v9840
  %v9873 = vpack.c.b16 %v9858, %v9857
  %v9874 = vpack.c.b16 %v9860, %v9859
  %v9875 = vpack.c.b16 %v9862, %v9861
  %v9876 = vpack.c.b16 %v9864, %v9863
  %v9877 = vpack.c.b16 %v9866, %v9865
  %v9878 = vpack.c.b16 %v9868, %v9867
  %v9879 = vpack.c.b16 %v9870, %v9869
  %v9880 = vpack.c.b16 %v9872, %v9871
  %v9905 = vunpack.c.l.b16 %v9841
  %v9906 = vunpack.c.l.b16 %v9842
  %v9907 = vunpack.c.l.b16 %v9843
  %v9908 = vunpack.c.l.b16 %v9844
  %v9909 = vunpack.c.l.b16 %v9845
  %v9910 = vunpack.c.l.b16 %v9846
  %v9911 = vunpack.c.l.b16 %v9847
  %v9912 = vunpack.c.l.b16 %v9848
  %v9913 = vunpack.c.l.b16 %v9849
  %v9914 = vunpack.c.l.b16 %v9850
  %v9915 = vunpack.c.l.b16 %v9851
  %v9916 = vunpack.c.l.b16 %v9852
  %v9917 = vunpack.c.l.b16 %v9853
  %v9918 = vunpack.c.l.b16 %v9854
  %v9919 = vunpack.c.l.b16 %v9855
  %v9920 = vunpack.c.l.b16 %v9856
  %v9921 = vpack.c.b16 %v9906, %v9905
  %v9922 = vpack.c.b16 %v9908, %v9907
  %v9923 = vpack.c.b16 %v9910, %v9909
  %v9924 = vpack.c.b16 %v9912, %v9911
  %v9925 = vpack.c.b16 %v9914, %v9913
  %v9926 = vpack.c.b16 %v9916, %v9915
  %v9927 = vpack.c.b16 %v9918, %v9917
  %v9928 = vpack.c.b16 %v9920, %v9919
  %9937 = vmatprep.subr.bf16.mxu0 0
  %9938 = vmatpush1.bf16.msra.mxu0 %v9921
  %9939 = vmatprep.subr.bf16.mxu0 0
  %9940 = vmatpush1.bf16.msra.mxu0 %v9922
  %9941 = vmatprep.subr.bf16.mxu0 0
  %9942 = vmatpush1.bf16.msra.mxu0 %v9923
  %9943 = vmatprep.subr.bf16.mxu0 0
  %9944 = vmatpush1.bf16.msra.mxu0 %v9924
  %9945 = vmatprep.subr.bf16.mxu0 0
  %9946 = vmatpush1.bf16.msra.mxu0 %v9925
  %9947 = vmatprep.subr.bf16.mxu0 0
  %9948 = vmatpush1.bf16.msra.mxu0 %v9926
  %9949 = vmatprep.subr.bf16.mxu0 0
  %9950 = vmatpush1.bf16.msra.mxu0 %v9927
  %9951 = vmatprep.subr.bf16.mxu0 0
  %9952 = vmatpush1.bf16.msra.mxu0 %v9928
  %9953 = vmatprep.subr.bf16.mxu0 0
  %9954 = vmatpush1.bf16.msra.mxu0 0
  %9955 = vmatprep.subr.bf16.mxu0 0
  %9956 = vmatpush1.bf16.msra.mxu0 0
  %9957 = vmatprep.subr.bf16.mxu0 0
  %9958 = vmatpush1.bf16.msra.mxu0 0
  %9959 = vmatprep.subr.bf16.mxu0 0
  %9960 = vmatpush1.bf16.msra.mxu0 0
  %9961 = vmatprep.subr.bf16.mxu0 0
  %9962 = vmatpush1.bf16.msra.mxu0 0
  %9963 = vmatprep.subr.bf16.mxu0 0
  %9964 = vmatpush1.bf16.msra.mxu0 0
  %9965 = vmatprep.subr.bf16.mxu0 0
  %9966 = vmatpush1.bf16.msra.mxu0 0
  %9967 = vmatprep.subr.bf16.mxu0 0
  %9968 = vmatpush1.bf16.msra.mxu0 0
  %9969 = vmatprep.mubr.bf16.mxu0 0
  %9970 = vmatmul.mubr.bf16.gmra.mrb[0].mxu0 %v9873
  %v9971 = vpop.f32.mrb[0].mxu0
  %v9972 = vadd.f32 0.0, %v9971
  %v9973 = vpop.f32.mrb[0].mxu0
  %v9974 = vpop.f32.mrb[0].mxu0
  %v9975 = vadd.f32 0.0, %v9974
  %v9976 = vpop.f32.mrb[0].mxu0
  %9977 = vmatprep.mubr.bf16.mxu0 0
  %9978 = vmatmul.mubr.bf16.gmra.mrb[0].mxu0 %v9874
  %v9979 = vpop.f32.mrb[0].mxu0
  %v9980 = vadd.f32 0.0, %v9979
  %v9981 = vpop.f32.mrb[0].mxu0
  %v9982 = vpop.f32.mrb[0].mxu0
  %v9983 = vadd.f32 0.0, %v9982
  %v9984 = vpop.f32.mrb[0].mxu0
  %9985 = vmatprep.mubr.bf16.mxu0 0
  %9986 = vmatmul.mubr.bf16.gmra.mrb[0].mxu0 %v9875
  %v9987 = vpop.f32.mrb[0].mxu0
  %v9988 = vadd.f32 0.0, %v9987
  %v9989 = vpop.f32.mrb[0].mxu0
  %v9990 = vpop.f32.mrb[0].mxu0
  %v9991 = vadd.f32 0.0, %v9990
  %v9992 = vpop.f32.mrb[0].mxu0
  %9993 = vmatprep.mubr.bf16.mxu0 0
  %9994 = vmatmul.mubr.bf16.gmra.mrb[0].mxu0 %v9876
  %v9995 = vpop.f32.mrb[0].mxu0
  %v9996 = vadd.f32 0.0, %v9995
  %v9997 = vpop.f32.mrb[0].mxu0
  %v9998 = vpop.f32.mrb[0].mxu0
  %v9999 = vadd.f32 0.0, %v9998
  %v10000 = vpop.f32.mrb[0].mxu0
  %10001 = vmatprep.mubr.bf16.mxu0 0
  %10002 = vmatmul.mubr.bf16.gmra.mrb[0].mxu0 %v9877
  %v10003 = vpop.f32.mrb[0].mxu0
  %v10004 = vadd.f32 0.0, %v10003
  %v10005 = vpop.f32.mrb[0].mxu0
  %v10006 = vpop.f32.mrb[0].mxu0
  %v10007 = vadd.f32 0.0, %v10006
  %v10008 = vpop.f32.mrb[0].mxu0
  %10009 = vmatprep.mubr.bf16.mxu0 0
  %10010 = vmatmul.mubr.bf16.gmra.mrb[0].mxu0 %v9878
  %v10011 = vpop.f32.mrb[0].mxu0
  %v10012 = vadd.f32 0.0, %v10011
  %v10013 = vpop.f32.mrb[0].mxu0
  %v10014 = vpop.f32.mrb[0].mxu0
  %v10015 = vadd.f32 0.0, %v10014
  %v10016 = vpop.f32.mrb[0].mxu0
  %10017 = vmatprep.mubr.bf16.mxu0 0
  %10018 = vmatmul.mubr.bf16.gmra.mrb[0].mxu0 %v9879
  %v10019 = vpop.f32.mrb[0].mxu0
  %v10020 = vadd.f32 0.0, %v10019
  %v10021 = vpop.f32.mrb[0].mxu0
  %v10022 = vpop.f32.mrb[0].mxu0
  %v10023 = vadd.f32 0.0, %v10022
  %v10024 = vpop.f32.mrb[0].mxu0
  %10025 = vmatprep.mubr.bf16.mxu0 0
  %10026 = vmatmul.mubr.bf16.gmra.mrb[0].mxu0 %v9880
  %v10027 = vpop.f32.mrb[0].mxu0
  %v10028 = vadd.f32 0.0, %v10027
  %v10029 = vpop.f32.mrb[0].mxu0
  %v10030 = vpop.f32.mrb[0].mxu0
  %v10031 = vadd.f32 0.0, %v10030
  %v10032 = vpop.f32.mrb[0].mxu0
  %10033 = vdwg.mxu0
  %v10034 = vadd.f32 %v9737, %v9972
  %v10035 = vadd.f32 %v9738, %v9975
  %v10036 = vadd.f32 %v9739, %v9980
  %v10037 = vadd.f32 %v9740, %v9983
  %v10038 = vadd.f32 %v9741, %v9988
  %v10039 = vadd.f32 %v9742, %v9991
  %v10040 = vadd.f32 %v9743, %v9996
  %v10041 = vadd.f32 %v9744, %v9999
  %v10042 = vadd.f32 %v9745, %v10004
  %v10043 = vadd.f32 %v9746, %v10007
  %v10044 = vadd.f32 %v9747, %v10012
  %v10045 = vadd.f32 %v9748, %v10015
  %v10046 = vadd.f32 %v9749, %v10020
  %v10047 = vadd.f32 %v9750, %v10023
  %v10048 = vadd.f32 %v9751, %v10028
  %v10049 = vadd.f32 %v9752, %v10031
  %10050 = vst [vmem:[#allocation3] sm:$0xff] %v10034
  %10051 = vst [vmem:[#allocation3 + $0x8] sm:$0xff] %v10035
  %10052 = vst [vmem:[#allocation3 + $0x10] sm:$0xff] %v10036
  %10053 = vst [vmem:[#allocation3 + $0x18] sm:$0xff] %v10037
  %10054 = vst [vmem:[#allocation3 + $0x20] sm:$0xff] %v10038
  %10055 = vst [vmem:[#allocation3 + $0x28] sm:$0xff] %v10039
  %10056 = vst [vmem:[#allocation3 + $0x30] sm:$0xff] %v10040
  %10057 = vst [vmem:[#allocation3 + $0x38] sm:$0xff] %v10041
  %10058 = vst [vmem:[#allocation3 + $0x40] sm:$0xff] %v10042
  %10059 = vst [vmem:[#allocation3 + $0x48] sm:$0xff] %v10043
  %10060 = vst [vmem:[#allocation3 + $0x50] sm:$0xff] %v10044
  %10061 = vst [vmem:[#allocation3 + $0x58] sm:$0xff] %v10045
  %10062 = vst [vmem:[#allocation3 + $0x60] sm:$0xff] %v10046
  %10063 = vst [vmem:[#allocation3 + $0x68] sm:$0xff] %v10047
  %10064 = vst [vmem:[#allocation3 + $0x70] sm:$0xff] %v10048
  %10065 = vst [vmem:[#allocation3 + $0x78] sm:$0xff] %v10049
  %v10066 = vadd.f32 %v10034, %v10035
  %v10067 = vadd.f32 %v10066, %v10036
  %v10068 = vadd.f32 %v10067, %v10037
  %v10069 = vadd.f32 %v10068, %v10038
  %v10070 = vadd.f32 %v10069, %v10039
  %v10071 = vadd.f32 %v10070, %v10040
  %v10072 = vadd.f32 %v10071, %v10041
  %v10073 = vadd.f32 %v10072, %v10042
  %v10074 = vadd.f32 %v10073, %v10043
  %v10075 = vadd.f32 %v10074, %v10044
  %v10076 = vadd.f32 %v10075, %v10045
  %v10077 = vadd.f32 %v10076, %v10046
  %v10078 = vadd.f32 %v10077, %v10047
  %v10079 = vadd.f32 %v10078, %v10048
  %v10080 = vadd.f32 %v10079, %v10049
  %v10081 = vrot.slane %v10080, 4
  %v10082 = vadd.f32 %v10080, %v10081
  %v10083 = vrot.slane %v10082, 2
  %v10084 = vadd.f32 %v10082, %v10083
  %v10085 = vrot.slane %v10084, 1
  %v10086 = vadd.f32 %v10084, %v10085
  %v10087 = vadd.f32 %v10086, 0.0
  %v10088 = vmul.f32 %v10034, %v10034
  %v10089 = vmul.f32 %v10035, %v10035
  %v10090 = vmul.f32 %v10036, %v10036
  %v10091 = vmul.f32 %v10037, %v10037
  %v10092 = vmul.f32 %v10038, %v10038
  %v10093 = vmul.f32 %v10039, %v10039
  %v10094 = vmul.f32 %v10040, %v10040
  %v10095 = vmul.f32 %v10041, %v10041
  %v10096 = vmul.f32 %v10042, %v10042
  %v10097 = vmul.f32 %v10043, %v10043
  %v10098 = vmul.f32 %v10044, %v10044
  %v10099 = vmul.f32 %v10045, %v10045
  %v10100 = vmul.f32 %v10046, %v10046
  %v10101 = vmul.f32 %v10047, %v10047
  %v10102 = vmul.f32 %v10048, %v10048
  %v10103 = vmul.f32 %v10049, %v10049
  %v10104 = vadd.f32 %v10088, %v10089
  %v10105 = vadd.f32 %v10104, %v10090
  %v10106 = vadd.f32 %v10105, %v10091
  %v10107 = vadd.f32 %v10106, %v10092
  %v10108 = vadd.f32 %v10107, %v10093
  %v10109 = vadd.f32 %v10108, %v10094
  %v10110 = vadd.f32 %v10109, %v10095
  %v10111 = vadd.f32 %v10110, %v10096
  %v10112 = vadd.f32 %v10111, %v10097
  %v10113 = vadd.f32 %v10112, %v10098
  %v10114 = vadd.f32 %v10113, %v10099
  %v10115 = vadd.f32 %v10114, %v10100
  %v10116 = vadd.f32 %v10115, %v10101
  %v10117 = vadd.f32 %v10116, %v10102
  %v10118 = vadd.f32 %v10117, %v10103
  %v10119 = vrot.slane %v10118, 4
  %v10120 = vadd.f32 %v10118, %v10119
  %v10121 = vrot.slane %v10120, 2
  %v10122 = vadd.f32 %v10120, %v10121
  %v10123 = vrot.slane %v10122, 1
  %v10124 = vadd.f32 %v10122, %v10123
  %v10125 = vadd.f32 %v10124, 0.0
  %v10126 = vld [vmem:[%s3625] sm:$0xf]
  %v10127 = vld [vmem:[%s3625 + $0x4] sm:$0xf]
  %v10128 = vld [vmem:[%s3625 + $0xc] sm:$0xf]
  %v10129 = vld [vmem:[%s3625 + $0x10] sm:$0xf]
  %v10130 = vld [vmem:[%s3625 + $0x18] sm:$0xf]
  %v10131 = vld [vmem:[%s3625 + $0x1c] sm:$0xf]
  %v10132 = vld [vmem:[%s3625 + $0x24] sm:$0xf]
  %v10133 = vld [vmem:[%s3625 + $0x28] sm:$0xf]
  %v10134 = vld [vmem:[%s3625 + $0x30] sm:$0xf]
  %v10135 = vld [vmem:[%s3625 + $0x34] sm:$0xf]
  %v10136 = vld [vmem:[%s3625 + $0x3c] sm:$0xf]
  %v10137 = vld [vmem:[%s3625 + $0x40] sm:$0xf]
  %v10138 = vld [vmem:[%s3625 + $0x48] sm:$0xf]
  %v10139 = vld [vmem:[%s3625 + $0x4c] sm:$0xf]
  %v10140 = vld [vmem:[%s3625 + $0x54] sm:$0xf]
  %v10141 = vld [vmem:[%s3625 + $0x58] sm:$0xf]
  %v10142 = vld [vmem:[%s1] sm:$0xf]
  %v10143 = vld [vmem:[%s1 + $0x4] sm:$0xf]
  %v10144 = vld [vmem:[%s1 + $0x8] sm:$0xf]
  %v10145 = vld [vmem:[%s1 + $0xc] sm:$0xf]
  %v10146 = vld [vmem:[%s1 + $0x10] sm:$0xf]
  %v10147 = vld [vmem:[%s1 + $0x14] sm:$0xf]
  %v10148 = vld [vmem:[%s1 + $0x18] sm:$0xf]
  %v10149 = vld [vmem:[%s1 + $0x1c] sm:$0xf]
  %v10150 = vld [vmem:[%s1 + $0x20] sm:$0xf]
  %v10151 = vld [vmem:[%s1 + $0x24] sm:$0xf]
  %v10152 = vld [vmem:[%s1 + $0x28] sm:$0xf]
  %v10153 = vld [vmem:[%s1 + $0x2c] sm:$0xf]
  %v10154 = vld [vmem:[%s1 + $0x30] sm:$0xf]
  %v10155 = vld [vmem:[%s1 + $0x34] sm:$0xf]
  %v10156 = vld [vmem:[%s1 + $0x38] sm:$0xf]
  %v10157 = vld [vmem:[%s1 + $0x3c] sm:$0xf]
  %v10158 = vld [vmem:[%s3625 + $0x8] sm:$0x1]
  %v10159 = vld [vmem:[%s3625 + $0x14] sm:$0x1]
  %v10160 = vld [vmem:[%s3625 + $0x20] sm:$0x1]
  %v10161 = vld [vmem:[%s3625 + $0x2c] sm:$0x1]
  %v10162 = vld [vmem:[%s3625 + $0x38] sm:$0x1]
  %v10163 = vld [vmem:[%s3625 + $0x44] sm:$0x1]
  %v10164 = vld [vmem:[%s3625 + $0x50] sm:$0x1]
  %v10165 = vld [vmem:[%s3625 + $0x5c] sm:$0x1]
  %v10167 = vshrl.u32 %v10126, 16
  %v10169 = vrot.slane %v10167, 4
  %v10170 = vshll.u32 %v10126, 16
  %v10172 = vrot.slane %v10170, 5
  %v10173 = vor.u32 %v10169, %v10172
  %v10174 = vrot.slane %v10173, 4
  %v10176 = vshll.u32 %v10127, 16
  %v10178 = vrot.slane %v10176, 5
  %v10179 = vsel %vm743, %v10174, %v10178
  %v10180 = vshrl.u32 %v10127, 16
  %v10182 = vrot.slane %v10180, 4
  %v10183 = vor.u32 %v10182, %v10178
  %v10184 = vrot.slane %v10183, 4
  %v10186 = vshll.u32 %v10158, 16
  %v10188 = vrot.slane %v10186, 5
  %v10189 = vsel %vm743, %v10184, %v10188
  %v10191 = vshrl.u32 %v10128, 16
  %v10193 = vrot.slane %v10191, 4
  %v10194 = vshll.u32 %v10128, 16
  %v10196 = vrot.slane %v10194, 5
  %v10197 = vor.u32 %v10193, %v10196
  %v10198 = vrot.slane %v10197, 4
  %v10200 = vshll.u32 %v10129, 16
  %v10202 = vrot.slane %v10200, 5
  %v10203 = vsel %vm743, %v10198, %v10202
  %v10204 = vshrl.u32 %v10129, 16
  %v10206 = vrot.slane %v10204, 4
  %v10207 = vor.u32 %v10206, %v10202
  %v10208 = vrot.slane %v10207, 4
  %v10210 = vshll.u32 %v10159, 16
  %v10212 = vrot.slane %v10210, 5
  %v10213 = vsel %vm743, %v10208, %v10212
  %v10215 = vshrl.u32 %v10130, 16
  %v10217 = vrot.slane %v10215, 4
  %v10218 = vshll.u32 %v10130, 16
  %v10220 = vrot.slane %v10218, 5
  %v10221 = vor.u32 %v10217, %v10220
  %v10222 = vrot.slane %v10221, 4
  %v10224 = vshll.u32 %v10131, 16
  %v10226 = vrot.slane %v10224, 5
  %v10227 = vsel %vm743, %v10222, %v10226
  %v10228 = vshrl.u32 %v10131, 16
  %v10230 = vrot.slane %v10228, 4
  %v10231 = vor.u32 %v10230, %v10226
  %v10232 = vrot.slane %v10231, 4
  %v10234 = vshll.u32 %v10160, 16
  %v10236 = vrot.slane %v10234, 5
  %v10237 = vsel %vm743, %v10232, %v10236
  %v10239 = vshrl.u32 %v10132, 16
  %v10241 = vrot.slane %v10239, 4
  %v10242 = vshll.u32 %v10132, 16
  %v10244 = vrot.slane %v10242, 5
  %v10245 = vor.u32 %v10241, %v10244
  %v10246 = vrot.slane %v10245, 4
  %v10248 = vshll.u32 %v10133, 16
  %v10250 = vrot.slane %v10248, 5
  %v10251 = vsel %vm743, %v10246, %v10250
  %v10252 = vshrl.u32 %v10133, 16
  %v10254 = vrot.slane %v10252, 4
  %v10255 = vor.u32 %v10254, %v10250
  %v10256 = vrot.slane %v10255, 4
  %v10258 = vshll.u32 %v10161, 16
  %v10260 = vrot.slane %v10258, 5
  %v10261 = vsel %vm743, %v10256, %v10260
  %v10263 = vshrl.u32 %v10134, 16
  %v10265 = vrot.slane %v10263, 4
  %v10266 = vshll.u32 %v10134, 16
  %v10268 = vrot.slane %v10266, 5
  %v10269 = vor.u32 %v10265, %v10268
  %v10270 = vrot.slane %v10269, 4
  %v10272 = vshll.u32 %v10135, 16
  %v10274 = vrot.slane %v10272, 5
  %v10275 = vsel %vm743, %v10270, %v10274
  %v10276 = vshrl.u32 %v10135, 16
  %v10278 = vrot.slane %v10276, 4
  %v10279 = vor.u32 %v10278, %v10274
  %v10280 = vrot.slane %v10279, 4
  %v10282 = vshll.u32 %v10162, 16
  %v10284 = vrot.slane %v10282, 5
  %v10285 = vsel %vm743, %v10280, %v10284
  %v10287 = vshrl.u32 %v10136, 16
  %v10289 = vrot.slane %v10287, 4
  %v10290 = vshll.u32 %v10136, 16
  %v10292 = vrot.slane %v10290, 5
  %v10293 = vor.u32 %v10289, %v10292
  %v10294 = vrot.slane %v10293, 4
  %v10296 = vshll.u32 %v10137, 16
  %v10298 = vrot.slane %v10296, 5
  %v10299 = vsel %vm743, %v10294, %v10298
  %v10300 = vshrl.u32 %v10137, 16
  %v10302 = vrot.slane %v10300, 4
  %v10303 = vor.u32 %v10302, %v10298
  %v10304 = vrot.slane %v10303, 4
  %v10306 = vshll.u32 %v10163, 16
  %v10308 = vrot.slane %v10306, 5
  %v10309 = vsel %vm743, %v10304, %v10308
  %v10311 = vshrl.u32 %v10138, 16
  %v10313 = vrot.slane %v10311, 4
  %v10314 = vshll.u32 %v10138, 16
  %v10316 = vrot.slane %v10314, 5
  %v10317 = vor.u32 %v10313, %v10316
  %v10318 = vrot.slane %v10317, 4
  %v10320 = vshll.u32 %v10139, 16
  %v10322 = vrot.slane %v10320, 5
  %v10323 = vsel %vm743, %v10318, %v10322
  %v10324 = vshrl.u32 %v10139, 16
  %v10326 = vrot.slane %v10324, 4
  %v10327 = vor.u32 %v10326, %v10322
  %v10328 = vrot.slane %v10327, 4
  %v10330 = vshll.u32 %v10164, 16
  %v10332 = vrot.slane %v10330, 5
  %v10333 = vsel %vm743, %v10328, %v10332
  %v10335 = vshrl.u32 %v10140, 16
  %v10337 = vrot.slane %v10335, 4
  %v10338 = vshll.u32 %v10140, 16
  %v10340 = vrot.slane %v10338, 5
  %v10341 = vor.u32 %v10337, %v10340
  %v10342 = vrot.slane %v10341, 4
  %v10344 = vshll.u32 %v10141, 16
  %v10346 = vrot.slane %v10344, 5
  %v10347 = vsel %vm743, %v10342, %v10346
  %v10348 = vshrl.u32 %v10141, 16
  %v10350 = vrot.slane %v10348, 4
  %v10351 = vor.u32 %v10350, %v10346
  %v10352 = vrot.slane %v10351, 4
  %v10354 = vshll.u32 %v10165, 16
  %v10356 = vrot.slane %v10354, 5
  %v10357 = vsel %vm743, %v10352, %v10356
  %v10358 = vld [vmem:[%s936] sm:$0xf]
  %v10359 = vld [vmem:[%s936 + $0x4] sm:$0xf]
  %v10360 = vld [vmem:[%s936 + $0x8] sm:$0xf]
  %v10361 = vld [vmem:[%s936 + $0xc] sm:$0xf]
  %v10362 = vld [vmem:[%s936 + $0x10] sm:$0xf]
  %v10363 = vld [vmem:[%s936 + $0x14] sm:$0xf]
  %v10364 = vld [vmem:[%s936 + $0x18] sm:$0xf]
  %v10365 = vld [vmem:[%s936 + $0x1c] sm:$0xf]
  %v10366 = vld [vmem:[%s936 + $0x20] sm:$0xf]
  %v10367 = vld [vmem:[%s936 + $0x24] sm:$0xf]
  %v10368 = vld [vmem:[%s936 + $0x28] sm:$0xf]
  %v10369 = vld [vmem:[%s936 + $0x2c] sm:$0xf]
  %v10370 = vld [vmem:[%s936 + $0x30] sm:$0xf]
  %v10371 = vld [vmem:[%s936 + $0x34] sm:$0xf]
  %v10372 = vld [vmem:[%s936 + $0x38] sm:$0xf]
  %v10373 = vld [vmem:[%s936 + $0x3c] sm:$0xf]
  %v10374 = vunpack.c.l.b16 %v10179
  %v10375 = vunpack.c.l.b16 %v10189
  %v10376 = vunpack.c.l.b16 %v10203
  %v10377 = vunpack.c.l.b16 %v10213
  %v10378 = vunpack.c.l.b16 %v10227
  %v10379 = vunpack.c.l.b16 %v10237
  %v10380 = vunpack.c.l.b16 %v10251
  %v10381 = vunpack.c.l.b16 %v10261
  %v10382 = vunpack.c.l.b16 %v10275
  %v10383 = vunpack.c.l.b16 %v10285
  %v10384 = vunpack.c.l.b16 %v10299
  %v10385 = vunpack.c.l.b16 %v10309
  %v10386 = vunpack.c.l.b16 %v10323
  %v10387 = vunpack.c.l.b16 %v10333
  %v10388 = vunpack.c.l.b16 %v10347
  %v10389 = vunpack.c.l.b16 %v10357
  %v10390 = vpack.c.b16 %v10375, %v10374
  %v10391 = vpack.c.b16 %v10377, %v10376
  %v10392 = vpack.c.b16 %v10379, %v10378
  %v10393 = vpack.c.b16 %v10381, %v10380
  %v10394 = vpack.c.b16 %v10383, %v10382
  %v10395 = vpack.c.b16 %v10385, %v10384
  %v10396 = vpack.c.b16 %v10387, %v10386
  %v10397 = vpack.c.b16 %v10389, %v10388
  %v10422 = vunpack.c.l.b16 %v10358
  %v10423 = vunpack.c.l.b16 %v10359
  %v10424 = vunpack.c.l.b16 %v10360
  %v10425 = vunpack.c.l.b16 %v10361
  %v10426 = vunpack.c.l.b16 %v10362
  %v10427 = vunpack.c.l.b16 %v10363
  %v10428 = vunpack.c.l.b16 %v10364
  %v10429 = vunpack.c.l.b16 %v10365
  %v10430 = vunpack.c.l.b16 %v10366
  %v10431 = vunpack.c.l.b16 %v10367
  %v10432 = vunpack.c.l.b16 %v10368
  %v10433 = vunpack.c.l.b16 %v10369
  %v10434 = vunpack.c.l.b16 %v10370
  %v10435 = vunpack.c.l.b16 %v10371
  %v10436 = vunpack.c.l.b16 %v10372
  %v10437 = vunpack.c.l.b16 %v10373
  %v10438 = vpack.c.b16 %v10423, %v10422
  %v10439 = vpack.c.b16 %v10425, %v10424
  %v10440 = vpack.c.b16 %v10427, %v10426
  %v10441 = vpack.c.b16 %v10429, %v10428
  %v10442 = vpack.c.b16 %v10431, %v10430
  %v10443 = vpack.c.b16 %v10433, %v10432
  %v10444 = vpack.c.b16 %v10435, %v10434
  %v10445 = vpack.c.b16 %v10437, %v10436
  %10454 = vmatprep.subr.bf16.mxu0 0
  %10455 = vmatpush1.bf16.msra.mxu0 %v10438
  %10456 = vmatprep.subr.bf16.mxu0 0
  %10457 = vmatpush1.bf16.msra.mxu0 %v10439
  %10458 = vmatprep.subr.bf16.mxu0 0
  %10459 = vmatpush1.bf16.msra.mxu0 %v10440
  %10460 = vmatprep.subr.bf16.mxu0 0
  %10461 = vmatpush1.bf16.msra.mxu0 %v10441
  %10462 = vmatprep.subr.bf16.mxu0 0
  %10463 = vmatpush1.bf16.msra.mxu0 %v10442
  %10464 = vmatprep.subr.bf16.mxu0 0
  %10465 = vmatpush1.bf16.msra.mxu0 %v10443
  %10466 = vmatprep.subr.bf16.mxu0 0
  %10467 = vmatpush1.bf16.msra.mxu0 %v10444
  %10468 = vmatprep.subr.bf16.mxu0 0
  %10469 = vmatpush1.bf16.msra.mxu0 %v10445
  %10470 = vmatprep.subr.bf16.mxu0 0
  %10471 = vmatpush1.bf16.msra.mxu0 0
  %10472 = vmatprep.subr.bf16.mxu0 0
  %10473 = vmatpush1.bf16.msra.mxu0 0
  %10474 = vmatprep.subr.bf16.mxu0 0
  %10475 = vmatpush1.bf16.msra.mxu0 0
  %10476 = vmatprep.subr.bf16.mxu0 0
  %10477 = vmatpush1.bf16.msra.mxu0 0
  %10478 = vmatprep.subr.bf16.mxu0 0
  %10479 = vmatpush1.bf16.msra.mxu0 0
  %10480 = vmatprep.subr.bf16.mxu0 0
  %10481 = vmatpush1.bf16.msra.mxu0 0
  %10482 = vmatprep.subr.bf16.mxu0 0
  %10483 = vmatpush1.bf16.msra.mxu0 0
  %10484 = vmatprep.subr.bf16.mxu0 0
  %10485 = vmatpush1.bf16.msra.mxu0 0
  %10486 = vmatprep.mubr.bf16.mxu0 0
  %10487 = vmatmul.mubr.bf16.gmra.mrb[0].mxu0 %v10390
  %v10488 = vpop.f32.mrb[0].mxu0
  %v10489 = vadd.f32 0.0, %v10488
  %v10490 = vpop.f32.mrb[0].mxu0
  %v10491 = vpop.f32.mrb[0].mxu0
  %v10492 = vadd.f32 0.0, %v10491
  %v10493 = vpop.f32.mrb[0].mxu0
  %10494 = vmatprep.mubr.bf16.mxu0 0
  %10495 = vmatmul.mubr.bf16.gmra.mrb[0].mxu0 %v10391
  %v10496 = vpop.f32.mrb[0].mxu0
  %v10497 = vadd.f32 0.0, %v10496
  %v10498 = vpop.f32.mrb[0].mxu0
  %v10499 = vpop.f32.mrb[0].mxu0
  %v10500 = vadd.f32 0.0, %v10499
  %v10501 = vpop.f32.mrb[0].mxu0
  %10502 = vmatprep.mubr.bf16.mxu0 0
  %10503 = vmatmul.mubr.bf16.gmra.mrb[0].mxu0 %v10392
  %v10504 = vpop.f32.mrb[0].mxu0
  %v10505 = vadd.f32 0.0, %v10504
  %v10506 = vpop.f32.mrb[0].mxu0
  %v10507 = vpop.f32.mrb[0].mxu0
  %v10508 = vadd.f32 0.0, %v10507
  %v10509 = vpop.f32.mrb[0].mxu0
  %10510 = vmatprep.mubr.bf16.mxu0 0
  %10511 = vmatmul.mubr.bf16.gmra.mrb[0].mxu0 %v10393
  %v10512 = vpop.f32.mrb[0].mxu0
  %v10513 = vadd.f32 0.0, %v10512
  %v10514 = vpop.f32.mrb[0].mxu0
  %v10515 = vpop.f32.mrb[0].mxu0
  %v10516 = vadd.f32 0.0, %v10515
  %v10517 = vpop.f32.mrb[0].mxu0
  %10518 = vmatprep.mubr.bf16.mxu0 0
  %10519 = vmatmul.mubr.bf16.gmra.mrb[0].mxu0 %v10394
  %v10520 = vpop.f32.mrb[0].mxu0
  %v10521 = vadd.f32 0.0, %v10520
  %v10522 = vpop.f32.mrb[0].mxu0
  %v10523 = vpop.f32.mrb[0].mxu0
  %v10524 = vadd.f32 0.0, %v10523
  %v10525 = vpop.f32.mrb[0].mxu0
  %10526 = vmatprep.mubr.bf16.mxu0 0
  %10527 = vmatmul.mubr.bf16.gmra.mrb[0].mxu0 %v10395
  %v10528 = vpop.f32.mrb[0].mxu0
  %v10529 = vadd.f32 0.0, %v10528
  %v10530 = vpop.f32.mrb[0].mxu0
  %v10531 = vpop.f32.mrb[0].mxu0
  %v10532 = vadd.f32 0.0, %v10531
  %v10533 = vpop.f32.mrb[0].mxu0
  %10534 = vmatprep.mubr.bf16.mxu0 0
  %10535 = vmatmul.mubr.bf16.gmra.mrb[0].mxu0 %v10396
  %v10536 = vpop.f32.mrb[0].mxu0
  %v10537 = vadd.f32 0.0, %v10536
  %v10538 = vpop.f32.mrb[0].mxu0
  %v10539 = vpop.f32.mrb[0].mxu0
  %v10540 = vadd.f32 0.0, %v10539
  %v10541 = vpop.f32.mrb[0].mxu0
  %10542 = vmatprep.mubr.bf16.mxu0 0
  %10543 = vmatmul.mubr.bf16.gmra.mrb[0].mxu0 %v10397
  %v10544 = vpop.f32.mrb[0].mxu0
  %v10545 = vadd.f32 0.0, %v10544
  %v10546 = vpop.f32.mrb[0].mxu0
  %v10547 = vpop.f32.mrb[0].mxu0
  %v10548 = vadd.f32 0.0, %v10547
  %v10549 = vpop.f32.mrb[0].mxu0
  %10550 = vdwg.mxu0
  %v10567 = vunpack.c.l.b16 %v10126
  %v10568 = vunpack.c.l.b16 %v10127
  %v10569 = vunpack.c.l.b16 %v10128
  %v10570 = vunpack.c.l.b16 %v10129
  %v10571 = vunpack.c.l.b16 %v10130
  %v10572 = vunpack.c.l.b16 %v10131
  %v10573 = vunpack.c.l.b16 %v10132
  %v10574 = vunpack.c.l.b16 %v10133
  %v10575 = vunpack.c.l.b16 %v10134
  %v10576 = vunpack.c.l.b16 %v10135
  %v10577 = vunpack.c.l.b16 %v10136
  %v10578 = vunpack.c.l.b16 %v10137
  %v10579 = vunpack.c.l.b16 %v10138
  %v10580 = vunpack.c.l.b16 %v10139
  %v10581 = vunpack.c.l.b16 %v10140
  %v10582 = vunpack.c.l.b16 %v10141
  %v10583 = vpack.c.b16 %v10568, %v10567
  %v10584 = vpack.c.b16 %v10570, %v10569
  %v10585 = vpack.c.b16 %v10572, %v10571
  %v10586 = vpack.c.b16 %v10574, %v10573
  %v10587 = vpack.c.b16 %v10576, %v10575
  %v10588 = vpack.c.b16 %v10578, %v10577
  %v10589 = vpack.c.b16 %v10580, %v10579
  %v10590 = vpack.c.b16 %v10582, %v10581
  %v10615 = vunpack.c.l.b16 %v10142
  %v10616 = vunpack.c.l.b16 %v10143
  %v10617 = vunpack.c.l.b16 %v10144
  %v10618 = vunpack.c.l.b16 %v10145
  %v10619 = vunpack.c.l.b16 %v10146
  %v10620 = vunpack.c.l.b16 %v10147
  %v10621 = vunpack.c.l.b16 %v10148
  %v10622 = vunpack.c.l.b16 %v10149
  %v10623 = vunpack.c.l.b16 %v10150
  %v10624 = vunpack.c.l.b16 %v10151
  %v10625 = vunpack.c.l.b16 %v10152
  %v10626 = vunpack.c.l.b16 %v10153
  %v10627 = vunpack.c.l.b16 %v10154
  %v10628 = vunpack.c.l.b16 %v10155
  %v10629 = vunpack.c.l.b16 %v10156
  %v10630 = vunpack.c.l.b16 %v10157
  %v10631 = vpack.c.b16 %v10616, %v10615
  %v10632 = vpack.c.b16 %v10618, %v10617
  %v10633 = vpack.c.b16 %v10620, %v10619
  %v10634 = vpack.c.b16 %v10622, %v10621
  %v10635 = vpack.c.b16 %v10624, %v10623
  %v10636 = vpack.c.b16 %v10626, %v10625
  %v10637 = vpack.c.b16 %v10628, %v10627
  %v10638 = vpack.c.b16 %v10630, %v10629
  %10647 = vmatprep.subr.bf16.mxu0 0
  %10648 = vmatpush1.bf16.msra.mxu0 %v10631
  %10649 = vmatprep.subr.bf16.mxu0 0
  %10650 = vmatpush1.bf16.msra.mxu0 %v10632
  %10651 = vmatprep.subr.bf16.mxu0 0
  %10652 = vmatpush1.bf16.msra.mxu0 %v10633
  %10653 = vmatprep.subr.bf16.mxu0 0
  %10654 = vmatpush1.bf16.msra.mxu0 %v10634
  %10655 = vmatprep.subr.bf16.mxu0 0
  %10656 = vmatpush1.bf16.msra.mxu0 %v10635
  %10657 = vmatprep.subr.bf16.mxu0 0
  %10658 = vmatpush1.bf16.msra.mxu0 %v10636
  %10659 = vmatprep.subr.bf16.mxu0 0
  %10660 = vmatpush1.bf16.msra.mxu0 %v10637
  %10661 = vmatprep.subr.bf16.mxu0 0
  %10662 = vmatpush1.bf16.msra.mxu0 %v10638
  %10663 = vmatprep.subr.bf16.mxu0 0
  %10664 = vmatpush1.bf16.msra.mxu0 0
  %10665 = vmatprep.subr.bf16.mxu0 0
  %10666 = vmatpush1.bf16.msra.mxu0 0
  %10667 = vmatprep.subr.bf16.mxu0 0
  %10668 = vmatpush1.bf16.msra.mxu0 0
  %10669 = vmatprep.subr.bf16.mxu0 0
  %10670 = vmatpush1.bf16.msra.mxu0 0
  %10671 = vmatprep.subr.bf16.mxu0 0
  %10672 = vmatpush1.bf16.msra.mxu0 0
  %10673 = vmatprep.subr.bf16.mxu0 0
  %10674 = vmatpush1.bf16.msra.mxu0 0
  %10675 = vmatprep.subr.bf16.mxu0 0
  %10676 = vmatpush1.bf16.msra.mxu0 0
  %10677 = vmatprep.subr.bf16.mxu0 0
  %10678 = vmatpush1.bf16.msra.mxu0 0
  %10679 = vmatprep.mubr.bf16.mxu0 0
  %10680 = vmatmul.mubr.bf16.gmra.mrb[0].mxu0 %v10583
  %v10681 = vpop.f32.mrb[0].mxu0
  %v10682 = vadd.f32 %v10489, %v10681
  %v10683 = vpop.f32.mrb[0].mxu0
  %v10684 = vpop.f32.mrb[0].mxu0
  %v10685 = vadd.f32 %v10492, %v10684
  %v10686 = vpop.f32.mrb[0].mxu0
  %10687 = vmatprep.mubr.bf16.mxu0 0
  %10688 = vmatmul.mubr.bf16.gmra.mrb[0].mxu0 %v10584
  %v10689 = vpop.f32.mrb[0].mxu0
  %v10690 = vadd.f32 %v10497, %v10689
  %v10691 = vpop.f32.mrb[0].mxu0
  %v10692 = vpop.f32.mrb[0].mxu0
  %v10693 = vadd.f32 %v10500, %v10692
  %v10694 = vpop.f32.mrb[0].mxu0
  %10695 = vmatprep.mubr.bf16.mxu0 0
  %10696 = vmatmul.mubr.bf16.gmra.mrb[0].mxu0 %v10585
  %v10697 = vpop.f32.mrb[0].mxu0
  %v10698 = vadd.f32 %v10505, %v10697
  %v10699 = vpop.f32.mrb[0].mxu0
  %v10700 = vpop.f32.mrb[0].mxu0
  %v10701 = vadd.f32 %v10508, %v10700
  %v10702 = vpop.f32.mrb[0].mxu0
  %10703 = vmatprep.mubr.bf16.mxu0 0
  %10704 = vmatmul.mubr.bf16.gmra.mrb[0].mxu0 %v10586
  %v10705 = vpop.f32.mrb[0].mxu0
  %v10706 = vadd.f32 %v10513, %v10705
  %v10707 = vpop.f32.mrb[0].mxu0
  %v10708 = vpop.f32.mrb[0].mxu0
  %v10709 = vadd.f32 %v10516, %v10708
  %v10710 = vpop.f32.mrb[0].mxu0
  %10711 = vmatprep.mubr.bf16.mxu0 0
  %10712 = vmatmul.mubr.bf16.gmra.mrb[0].mxu0 %v10587
  %v10713 = vpop.f32.mrb[0].mxu0
  %v10714 = vadd.f32 %v10521, %v10713
  %v10715 = vpop.f32.mrb[0].mxu0
  %v10716 = vpop.f32.mrb[0].mxu0
  %v10717 = vadd.f32 %v10524, %v10716
  %v10718 = vpop.f32.mrb[0].mxu0
  %10719 = vmatprep.mubr.bf16.mxu0 0
  %10720 = vmatmul.mubr.bf16.gmra.mrb[0].mxu0 %v10588
  %v10721 = vpop.f32.mrb[0].mxu0
  %v10722 = vadd.f32 %v10529, %v10721
  %v10723 = vpop.f32.mrb[0].mxu0
  %v10724 = vpop.f32.mrb[0].mxu0
  %v10725 = vadd.f32 %v10532, %v10724
  %v10726 = vpop.f32.mrb[0].mxu0
  %10727 = vmatprep.mubr.bf16.mxu0 0
  %10728 = vmatmul.mubr.bf16.gmra.mrb[0].mxu0 %v10589
  %v10729 = vpop.f32.mrb[0].mxu0
  %v10730 = vadd.f32 %v10537, %v10729
  %v10731 = vpop.f32.mrb[0].mxu0
  %v10732 = vpop.f32.mrb[0].mxu0
  %v10733 = vadd.f32 %v10540, %v10732
  %v10734 = vpop.f32.mrb[0].mxu0
  %10735 = vmatprep.mubr.bf16.mxu0 0
  %10736 = vmatmul.mubr.bf16.gmra.mrb[0].mxu0 %v10590
  %v10737 = vpop.f32.mrb[0].mxu0
  %v10738 = vadd.f32 %v10545, %v10737
  %v10739 = vpop.f32.mrb[0].mxu0
  %v10740 = vpop.f32.mrb[0].mxu0
  %v10741 = vadd.f32 %v10548, %v10740
  %v10742 = vpop.f32.mrb[0].mxu0
  %10743 = vdwg.mxu0
  %v10744 = vld [vmem:[%s3625] sm:$0xe]
  %v10745 = vld [vmem:[%s3625 + $0xc] sm:$0xe]
  %v10746 = vld [vmem:[%s3625 + $0x18] sm:$0xe]
  %v10747 = vld [vmem:[%s3625 + $0x24] sm:$0xe]
  %v10748 = vld [vmem:[%s3625 + $0x30] sm:$0xe]
  %v10749 = vld [vmem:[%s3625 + $0x3c] sm:$0xe]
  %v10750 = vld [vmem:[%s3625 + $0x48] sm:$0xe]
  %v10751 = vld [vmem:[%s3625 + $0x54] sm:$0xe]
  %v10768 = vrot.slane %v10744, 5
  %v10769 = vrot.slane %v10768, 4
  %v10770 = vrot.slane %v10127, 5
  %v10771 = vsel %vm1349, %v10769, %v10770
  %v10772 = vrot.slane %v10770, 4
  %v10773 = vrot.slane %v10158, 5
  %v10774 = vsel %vm1349, %v10772, %v10773
  %v10775 = vrot.slane %v10745, 5
  %v10776 = vrot.slane %v10775, 4
  %v10777 = vrot.slane %v10129, 5
  %v10778 = vsel %vm1349, %v10776, %v10777
  %v10779 = vrot.slane %v10777, 4
  %v10780 = vrot.slane %v10159, 5
  %v10781 = vsel %vm1349, %v10779, %v10780
  %v10782 = vrot.slane %v10746, 5
  %v10783 = vrot.slane %v10782, 4
  %v10784 = vrot.slane %v10131, 5
  %v10785 = vsel %vm1349, %v10783, %v10784
  %v10786 = vrot.slane %v10784, 4
  %v10787 = vrot.slane %v10160, 5
  %v10788 = vsel %vm1349, %v10786, %v10787
  %v10789 = vrot.slane %v10747, 5
  %v10790 = vrot.slane %v10789, 4
  %v10791 = vrot.slane %v10133, 5
  %v10792 = vsel %vm1349, %v10790, %v10791
  %v10793 = vrot.slane %v10791, 4
  %v10794 = vrot.slane %v10161, 5
  %v10795 = vsel %vm1349, %v10793, %v10794
  %v10796 = vrot.slane %v10748, 5
  %v10797 = vrot.slane %v10796, 4
  %v10798 = vrot.slane %v10135, 5
  %v10799 = vsel %vm1349, %v10797, %v10798
  %v10800 = vrot.slane %v10798, 4
  %v10801 = vrot.slane %v10162, 5
  %v10802 = vsel %vm1349, %v10800, %v10801
  %v10803 = vrot.slane %v10749, 5
  %v10804 = vrot.slane %v10803, 4
  %v10805 = vrot.slane %v10137, 5
  %v10806 = vsel %vm1349, %v10804, %v10805
  %v10807 = vrot.slane %v10805, 4
  %v10808 = vrot.slane %v10163, 5
  %v10809 = vsel %vm1349, %v10807, %v10808
  %v10810 = vrot.slane %v10750, 5
  %v10811 = vrot.slane %v10810, 4
  %v10812 = vrot.slane %v10139, 5
  %v10813 = vsel %vm1349, %v10811, %v10812
  %v10814 = vrot.slane %v10812, 4
  %v10815 = vrot.slane %v10164, 5
  %v10816 = vsel %vm1349, %v10814, %v10815
  %v10817 = vrot.slane %v10751, 5
  %v10818 = vrot.slane %v10817, 4
  %v10819 = vrot.slane %v10141, 5
  %v10820 = vsel %vm1349, %v10818, %v10819
  %v10821 = vrot.slane %v10819, 4
  %v10822 = vrot.slane %v10165, 5
  %v10823 = vsel %vm1349, %v10821, %v10822
  %v10824 = vld [vmem:[%s1406] sm:$0xf]
  %v10825 = vld [vmem:[%s1406 + $0x4] sm:$0xf]
  %v10826 = vld [vmem:[%s1406 + $0x8] sm:$0xf]
  %v10827 = vld [vmem:[%s1406 + $0xc] sm:$0xf]
  %v10828 = vld [vmem:[%s1406 + $0x10] sm:$0xf]
  %v10829 = vld [vmem:[%s1406 + $0x14] sm:$0xf]
  %v10830 = vld [vmem:[%s1406 + $0x18] sm:$0xf]
  %v10831 = vld [vmem:[%s1406 + $0x1c] sm:$0xf]
  %v10832 = vld [vmem:[%s1406 + $0x20] sm:$0xf]
  %v10833 = vld [vmem:[%s1406 + $0x24] sm:$0xf]
  %v10834 = vld [vmem:[%s1406 + $0x28] sm:$0xf]
  %v10835 = vld [vmem:[%s1406 + $0x2c] sm:$0xf]
  %v10836 = vld [vmem:[%s1406 + $0x30] sm:$0xf]
  %v10837 = vld [vmem:[%s1406 + $0x34] sm:$0xf]
  %v10838 = vld [vmem:[%s1406 + $0x38] sm:$0xf]
  %v10839 = vld [vmem:[%s1406 + $0x3c] sm:$0xf]
  %v10840 = vunpack.c.l.b16 %v10771
  %v10841 = vunpack.c.l.b16 %v10774
  %v10842 = vunpack.c.l.b16 %v10778
  %v10843 = vunpack.c.l.b16 %v10781
  %v10844 = vunpack.c.l.b16 %v10785
  %v10845 = vunpack.c.l.b16 %v10788
  %v10846 = vunpack.c.l.b16 %v10792
  %v10847 = vunpack.c.l.b16 %v10795
  %v10848 = vunpack.c.l.b16 %v10799
  %v10849 = vunpack.c.l.b16 %v10802
  %v10850 = vunpack.c.l.b16 %v10806
  %v10851 = vunpack.c.l.b16 %v10809
  %v10852 = vunpack.c.l.b16 %v10813
  %v10853 = vunpack.c.l.b16 %v10816
  %v10854 = vunpack.c.l.b16 %v10820
  %v10855 = vunpack.c.l.b16 %v10823
  %v10856 = vpack.c.b16 %v10841, %v10840
  %v10857 = vpack.c.b16 %v10843, %v10842
  %v10858 = vpack.c.b16 %v10845, %v10844
  %v10859 = vpack.c.b16 %v10847, %v10846
  %v10860 = vpack.c.b16 %v10849, %v10848
  %v10861 = vpack.c.b16 %v10851, %v10850
  %v10862 = vpack.c.b16 %v10853, %v10852
  %v10863 = vpack.c.b16 %v10855, %v10854
  %v10888 = vunpack.c.l.b16 %v10824
  %v10889 = vunpack.c.l.b16 %v10825
  %v10890 = vunpack.c.l.b16 %v10826
  %v10891 = vunpack.c.l.b16 %v10827
  %v10892 = vunpack.c.l.b16 %v10828
  %v10893 = vunpack.c.l.b16 %v10829
  %v10894 = vunpack.c.l.b16 %v10830
  %v10895 = vunpack.c.l.b16 %v10831
  %v10896 = vunpack.c.l.b16 %v10832
  %v10897 = vunpack.c.l.b16 %v10833
  %v10898 = vunpack.c.l.b16 %v10834
  %v10899 = vunpack.c.l.b16 %v10835
  %v10900 = vunpack.c.l.b16 %v10836
  %v10901 = vunpack.c.l.b16 %v10837
  %v10902 = vunpack.c.l.b16 %v10838
  %v10903 = vunpack.c.l.b16 %v10839
  %v10904 = vpack.c.b16 %v10889, %v10888
  %v10905 = vpack.c.b16 %v10891, %v10890
  %v10906 = vpack.c.b16 %v10893, %v10892
  %v10907 = vpack.c.b16 %v10895, %v10894
  %v10908 = vpack.c.b16 %v10897, %v10896
  %v10909 = vpack.c.b16 %v10899, %v10898
  %v10910 = vpack.c.b16 %v10901, %v10900
  %v10911 = vpack.c.b16 %v10903, %v10902
  %10920 = vmatprep.subr.bf16.mxu0 0
  %10921 = vmatpush1.bf16.msra.mxu0 %v10904
  %10922 = vmatprep.subr.bf16.mxu0 0
  %10923 = vmatpush1.bf16.msra.mxu0 %v10905
  %10924 = vmatprep.subr.bf16.mxu0 0
  %10925 = vmatpush1.bf16.msra.mxu0 %v10906
  %10926 = vmatprep.subr.bf16.mxu0 0
  %10927 = vmatpush1.bf16.msra.mxu0 %v10907
  %10928 = vmatprep.subr.bf16.mxu0 0
  %10929 = vmatpush1.bf16.msra.mxu0 %v10908
  %10930 = vmatprep.subr.bf16.mxu0 0
  %10931 = vmatpush1.bf16.msra.mxu0 %v10909
  %10932 = vmatprep.subr.bf16.mxu0 0
  %10933 = vmatpush1.bf16.msra.mxu0 %v10910
  %10934 = vmatprep.subr.bf16.mxu0 0
  %10935 = vmatpush1.bf16.msra.mxu0 %v10911
  %10936 = vmatprep.subr.bf16.mxu0 0
  %10937 = vmatpush1.bf16.msra.mxu0 0
  %10938 = vmatprep.subr.bf16.mxu0 0
  %10939 = vmatpush1.bf16.msra.mxu0 0
  %10940 = vmatprep.subr.bf16.mxu0 0
  %10941 = vmatpush1.bf16.msra.mxu0 0
  %10942 = vmatprep.subr.bf16.mxu0 0
  %10943 = vmatpush1.bf16.msra.mxu0 0
  %10944 = vmatprep.subr.bf16.mxu0 0
  %10945 = vmatpush1.bf16.msra.mxu0 0
  %10946 = vmatprep.subr.bf16.mxu0 0
  %10947 = vmatpush1.bf16.msra.mxu0 0
  %10948 = vmatprep.subr.bf16.mxu0 0
  %10949 = vmatpush1.bf16.msra.mxu0 0
  %10950 = vmatprep.subr.bf16.mxu0 0
  %10951 = vmatpush1.bf16.msra.mxu0 0
  %10952 = vmatprep.mubr.bf16.mxu0 0
  %10953 = vmatmul.mubr.bf16.gmra.mrb[0].mxu0 %v10856
  %v10954 = vpop.f32.mrb[0].mxu0
  %v10955 = vadd.f32 0.0, %v10954
  %v10956 = vpop.f32.mrb[0].mxu0
  %v10957 = vpop.f32.mrb[0].mxu0
  %v10958 = vadd.f32 0.0, %v10957
  %v10959 = vpop.f32.mrb[0].mxu0
  %10960 = vmatprep.mubr.bf16.mxu0 0
  %10961 = vmatmul.mubr.bf16.gmra.mrb[0].mxu0 %v10857
  %v10962 = vpop.f32.mrb[0].mxu0
  %v10963 = vadd.f32 0.0, %v10962
  %v10964 = vpop.f32.mrb[0].mxu0
  %v10965 = vpop.f32.mrb[0].mxu0
  %v10966 = vadd.f32 0.0, %v10965
  %v10967 = vpop.f32.mrb[0].mxu0
  %10968 = vmatprep.mubr.bf16.mxu0 0
  %10969 = vmatmul.mubr.bf16.gmra.mrb[0].mxu0 %v10858
  %v10970 = vpop.f32.mrb[0].mxu0
  %v10971 = vadd.f32 0.0, %v10970
  %v10972 = vpop.f32.mrb[0].mxu0
  %v10973 = vpop.f32.mrb[0].mxu0
  %v10974 = vadd.f32 0.0, %v10973
  %v10975 = vpop.f32.mrb[0].mxu0
  %10976 = vmatprep.mubr.bf16.mxu0 0
  %10977 = vmatmul.mubr.bf16.gmra.mrb[0].mxu0 %v10859
  %v10978 = vpop.f32.mrb[0].mxu0
  %v10979 = vadd.f32 0.0, %v10978
  %v10980 = vpop.f32.mrb[0].mxu0
  %v10981 = vpop.f32.mrb[0].mxu0
  %v10982 = vadd.f32 0.0, %v10981
  %v10983 = vpop.f32.mrb[0].mxu0
  %10984 = vmatprep.mubr.bf16.mxu0 0
  %10985 = vmatmul.mubr.bf16.gmra.mrb[0].mxu0 %v10860
  %v10986 = vpop.f32.mrb[0].mxu0
  %v10987 = vadd.f32 0.0, %v10986
  %v10988 = vpop.f32.mrb[0].mxu0
  %v10989 = vpop.f32.mrb[0].mxu0
  %v10990 = vadd.f32 0.0, %v10989
  %v10991 = vpop.f32.mrb[0].mxu0
  %10992 = vmatprep.mubr.bf16.mxu0 0
  %10993 = vmatmul.mubr.bf16.gmra.mrb[0].mxu0 %v10861
  %v10994 = vpop.f32.mrb[0].mxu0
  %v10995 = vadd.f32 0.0, %v10994
  %v10996 = vpop.f32.mrb[0].mxu0
  %v10997 = vpop.f32.mrb[0].mxu0
  %v10998 = vadd.f32 0.0, %v10997
  %v10999 = vpop.f32.mrb[0].mxu0
  %11000 = vmatprep.mubr.bf16.mxu0 0
  %11001 = vmatmul.mubr.bf16.gmra.mrb[0].mxu0 %v10862
  %v11002 = vpop.f32.mrb[0].mxu0
  %v11003 = vadd.f32 0.0, %v11002
  %v11004 = vpop.f32.mrb[0].mxu0
  %v11005 = vpop.f32.mrb[0].mxu0
  %v11006 = vadd.f32 0.0, %v11005
  %v11007 = vpop.f32.mrb[0].mxu0
  %11008 = vmatprep.mubr.bf16.mxu0 0
  %11009 = vmatmul.mubr.bf16.gmra.mrb[0].mxu0 %v10863
  %v11010 = vpop.f32.mrb[0].mxu0
  %v11011 = vadd.f32 0.0, %v11010
  %v11012 = vpop.f32.mrb[0].mxu0
  %v11013 = vpop.f32.mrb[0].mxu0
  %v11014 = vadd.f32 0.0, %v11013
  %v11015 = vpop.f32.mrb[0].mxu0
  %11016 = vdwg.mxu0
  %v11017 = vadd.f32 %v10682, %v10955
  %v11018 = vadd.f32 %v10685, %v10958
  %v11019 = vadd.f32 %v10690, %v10963
  %v11020 = vadd.f32 %v10693, %v10966
  %v11021 = vadd.f32 %v10698, %v10971
  %v11022 = vadd.f32 %v10701, %v10974
  %v11023 = vadd.f32 %v10706, %v10979
  %v11024 = vadd.f32 %v10709, %v10982
  %v11025 = vadd.f32 %v10714, %v10987
  %v11026 = vadd.f32 %v10717, %v10990
  %v11027 = vadd.f32 %v10722, %v10995
  %v11028 = vadd.f32 %v10725, %v10998
  %v11029 = vadd.f32 %v10730, %v11003
  %v11030 = vadd.f32 %v10733, %v11006
  %v11031 = vadd.f32 %v10738, %v11011
  %v11032 = vadd.f32 %v10741, %v11014
  %v11033 = vld [vmem:[%s644] sm:$0xf]
  %v11034 = vld [vmem:[%s644 + $0x4] sm:$0xf]
  %v11035 = vld [vmem:[%s644 + $0xc] sm:$0xf]
  %v11036 = vld [vmem:[%s644 + $0x10] sm:$0xf]
  %v11037 = vld [vmem:[%s644 + $0x18] sm:$0xf]
  %v11038 = vld [vmem:[%s644 + $0x1c] sm:$0xf]
  %v11039 = vld [vmem:[%s644 + $0x24] sm:$0xf]
  %v11040 = vld [vmem:[%s644 + $0x28] sm:$0xf]
  %v11041 = vld [vmem:[%s644 + $0x30] sm:$0xf]
  %v11042 = vld [vmem:[%s644 + $0x34] sm:$0xf]
  %v11043 = vld [vmem:[%s644 + $0x3c] sm:$0xf]
  %v11044 = vld [vmem:[%s644 + $0x40] sm:$0xf]
  %v11045 = vld [vmem:[%s644 + $0x48] sm:$0xf]
  %v11046 = vld [vmem:[%s644 + $0x4c] sm:$0xf]
  %v11047 = vld [vmem:[%s644 + $0x54] sm:$0xf]
  %v11048 = vld [vmem:[%s644 + $0x58] sm:$0xf]
  %v11049 = vld [vmem:[%s1632] sm:$0xf]
  %v11050 = vld [vmem:[%s1632 + $0x4] sm:$0xf]
  %v11051 = vld [vmem:[%s1632 + $0x8] sm:$0xf]
  %v11052 = vld [vmem:[%s1632 + $0xc] sm:$0xf]
  %v11053 = vld [vmem:[%s1632 + $0x10] sm:$0xf]
  %v11054 = vld [vmem:[%s1632 + $0x14] sm:$0xf]
  %v11055 = vld [vmem:[%s1632 + $0x18] sm:$0xf]
  %v11056 = vld [vmem:[%s1632 + $0x1c] sm:$0xf]
  %v11057 = vld [vmem:[%s1632 + $0x20] sm:$0xf]
  %v11058 = vld [vmem:[%s1632 + $0x24] sm:$0xf]
  %v11059 = vld [vmem:[%s1632 + $0x28] sm:$0xf]
  %v11060 = vld [vmem:[%s1632 + $0x2c] sm:$0xf]
  %v11061 = vld [vmem:[%s1632 + $0x30] sm:$0xf]
  %v11062 = vld [vmem:[%s1632 + $0x34] sm:$0xf]
  %v11063 = vld [vmem:[%s1632 + $0x38] sm:$0xf]
  %v11064 = vld [vmem:[%s1632 + $0x3c] sm:$0xf]
  %v11081 = vunpack.c.l.b16 %v11033
  %v11082 = vunpack.c.l.b16 %v11034
  %v11083 = vunpack.c.l.b16 %v11035
  %v11084 = vunpack.c.l.b16 %v11036
  %v11085 = vunpack.c.l.b16 %v11037
  %v11086 = vunpack.c.l.b16 %v11038
  %v11087 = vunpack.c.l.b16 %v11039
  %v11088 = vunpack.c.l.b16 %v11040
  %v11089 = vunpack.c.l.b16 %v11041
  %v11090 = vunpack.c.l.b16 %v11042
  %v11091 = vunpack.c.l.b16 %v11043
  %v11092 = vunpack.c.l.b16 %v11044
  %v11093 = vunpack.c.l.b16 %v11045
  %v11094 = vunpack.c.l.b16 %v11046
  %v11095 = vunpack.c.l.b16 %v11047
  %v11096 = vunpack.c.l.b16 %v11048
  %v11097 = vpack.c.b16 %v11082, %v11081
  %v11098 = vpack.c.b16 %v11084, %v11083
  %v11099 = vpack.c.b16 %v11086, %v11085
  %v11100 = vpack.c.b16 %v11088, %v11087
  %v11101 = vpack.c.b16 %v11090, %v11089
  %v11102 = vpack.c.b16 %v11092, %v11091
  %v11103 = vpack.c.b16 %v11094, %v11093
  %v11104 = vpack.c.b16 %v11096, %v11095
  %v11129 = vunpack.c.l.b16 %v11049
  %v11130 = vunpack.c.l.b16 %v11050
  %v11131 = vunpack.c.l.b16 %v11051
  %v11132 = vunpack.c.l.b16 %v11052
  %v11133 = vunpack.c.l.b16 %v11053
  %v11134 = vunpack.c.l.b16 %v11054
  %v11135 = vunpack.c.l.b16 %v11055
  %v11136 = vunpack.c.l.b16 %v11056
  %v11137 = vunpack.c.l.b16 %v11057
  %v11138 = vunpack.c.l.b16 %v11058
  %v11139 = vunpack.c.l.b16 %v11059
  %v11140 = vunpack.c.l.b16 %v11060
  %v11141 = vunpack.c.l.b16 %v11061
  %v11142 = vunpack.c.l.b16 %v11062
  %v11143 = vunpack.c.l.b16 %v11063
  %v11144 = vunpack.c.l.b16 %v11064
  %v11145 = vpack.c.b16 %v11130, %v11129
  %v11146 = vpack.c.b16 %v11132, %v11131
  %v11147 = vpack.c.b16 %v11134, %v11133
  %v11148 = vpack.c.b16 %v11136, %v11135
  %v11149 = vpack.c.b16 %v11138, %v11137
  %v11150 = vpack.c.b16 %v11140, %v11139
  %v11151 = vpack.c.b16 %v11142, %v11141
  %v11152 = vpack.c.b16 %v11144, %v11143
  %11161 = vmatprep.subr.bf16.mxu0 0
  %11162 = vmatpush1.bf16.msra.mxu0 %v11145
  %11163 = vmatprep.subr.bf16.mxu0 0
  %11164 = vmatpush1.bf16.msra.mxu0 %v11146
  %11165 = vmatprep.subr.bf16.mxu0 0
  %11166 = vmatpush1.bf16.msra.mxu0 %v11147
  %11167 = vmatprep.subr.bf16.mxu0 0
  %11168 = vmatpush1.bf16.msra.mxu0 %v11148
  %11169 = vmatprep.subr.bf16.mxu0 0
  %11170 = vmatpush1.bf16.msra.mxu0 %v11149
  %11171 = vmatprep.subr.bf16.mxu0 0
  %11172 = vmatpush1.bf16.msra.mxu0 %v11150
  %11173 = vmatprep.subr.bf16.mxu0 0
  %11174 = vmatpush1.bf16.msra.mxu0 %v11151
  %11175 = vmatprep.subr.bf16.mxu0 0
  %11176 = vmatpush1.bf16.msra.mxu0 %v11152
  %11177 = vmatprep.subr.bf16.mxu0 0
  %11178 = vmatpush1.bf16.msra.mxu0 0
  %11179 = vmatprep.subr.bf16.mxu0 0
  %11180 = vmatpush1.bf16.msra.mxu0 0
  %11181 = vmatprep.subr.bf16.mxu0 0
  %11182 = vmatpush1.bf16.msra.mxu0 0
  %11183 = vmatprep.subr.bf16.mxu0 0
  %11184 = vmatpush1.bf16.msra.mxu0 0
  %11185 = vmatprep.subr.bf16.mxu0 0
  %11186 = vmatpush1.bf16.msra.mxu0 0
  %11187 = vmatprep.subr.bf16.mxu0 0
  %11188 = vmatpush1.bf16.msra.mxu0 0
  %11189 = vmatprep.subr.bf16.mxu0 0
  %11190 = vmatpush1.bf16.msra.mxu0 0
  %11191 = vmatprep.subr.bf16.mxu0 0
  %11192 = vmatpush1.bf16.msra.mxu0 0
  %11193 = vmatprep.mubr.bf16.mxu0 0
  %11194 = vmatmul.mubr.bf16.gmra.mrb[0].mxu0 %v11097
  %v11195 = vpop.f32.mrb[0].mxu0
  %v11196 = vadd.f32 0.0, %v11195
  %v11197 = vpop.f32.mrb[0].mxu0
  %v11198 = vpop.f32.mrb[0].mxu0
  %v11199 = vadd.f32 0.0, %v11198
  %v11200 = vpop.f32.mrb[0].mxu0
  %11201 = vmatprep.mubr.bf16.mxu0 0
  %11202 = vmatmul.mubr.bf16.gmra.mrb[0].mxu0 %v11098
  %v11203 = vpop.f32.mrb[0].mxu0
  %v11204 = vadd.f32 0.0, %v11203
  %v11205 = vpop.f32.mrb[0].mxu0
  %v11206 = vpop.f32.mrb[0].mxu0
  %v11207 = vadd.f32 0.0, %v11206
  %v11208 = vpop.f32.mrb[0].mxu0
  %11209 = vmatprep.mubr.bf16.mxu0 0
  %11210 = vmatmul.mubr.bf16.gmra.mrb[0].mxu0 %v11099
  %v11211 = vpop.f32.mrb[0].mxu0
  %v11212 = vadd.f32 0.0, %v11211
  %v11213 = vpop.f32.mrb[0].mxu0
  %v11214 = vpop.f32.mrb[0].mxu0
  %v11215 = vadd.f32 0.0, %v11214
  %v11216 = vpop.f32.mrb[0].mxu0
  %11217 = vmatprep.mubr.bf16.mxu0 0
  %11218 = vmatmul.mubr.bf16.gmra.mrb[0].mxu0 %v11100
  %v11219 = vpop.f32.mrb[0].mxu0
  %v11220 = vadd.f32 0.0, %v11219
  %v11221 = vpop.f32.mrb[0].mxu0
  %v11222 = vpop.f32.mrb[0].mxu0
  %v11223 = vadd.f32 0.0, %v11222
  %v11224 = vpop.f32.mrb[0].mxu0
  %11225 = vmatprep.mubr.bf16.mxu0 0
  %11226 = vmatmul.mubr.bf16.gmra.mrb[0].mxu0 %v11101
  %v11227 = vpop.f32.mrb[0].mxu0
  %v11228 = vadd.f32 0.0, %v11227
  %v11229 = vpop.f32.mrb[0].mxu0
  %v11230 = vpop.f32.mrb[0].mxu0
  %v11231 = vadd.f32 0.0, %v11230
  %v11232 = vpop.f32.mrb[0].mxu0
  %11233 = vmatprep.mubr.bf16.mxu0 0
  %11234 = vmatmul.mubr.bf16.gmra.mrb[0].mxu0 %v11102
  %v11235 = vpop.f32.mrb[0].mxu0
  %v11236 = vadd.f32 0.0, %v11235
  %v11237 = vpop.f32.mrb[0].mxu0
  %v11238 = vpop.f32.mrb[0].mxu0
  %v11239 = vadd.f32 0.0, %v11238
  %v11240 = vpop.f32.mrb[0].mxu0
  %11241 = vmatprep.mubr.bf16.mxu0 0
  %11242 = vmatmul.mubr.bf16.gmra.mrb[0].mxu0 %v11103
  %v11243 = vpop.f32.mrb[0].mxu0
  %v11244 = vadd.f32 0.0, %v11243
  %v11245 = vpop.f32.mrb[0].mxu0
  %v11246 = vpop.f32.mrb[0].mxu0
  %v11247 = vadd.f32 0.0, %v11246
  %v11248 = vpop.f32.mrb[0].mxu0
  %11249 = vmatprep.mubr.bf16.mxu0 0
  %11250 = vmatmul.mubr.bf16.gmra.mrb[0].mxu0 %v11104
  %v11251 = vpop.f32.mrb[0].mxu0
  %v11252 = vadd.f32 0.0, %v11251
  %v11253 = vpop.f32.mrb[0].mxu0
  %v11254 = vpop.f32.mrb[0].mxu0
  %v11255 = vadd.f32 0.0, %v11254
  %v11256 = vpop.f32.mrb[0].mxu0
  %11257 = vdwg.mxu0
  %v11258 = vadd.f32 %v11017, %v11196
  %v11259 = vadd.f32 %v11018, %v11199
  %v11260 = vadd.f32 %v11019, %v11204
  %v11261 = vadd.f32 %v11020, %v11207
  %v11262 = vadd.f32 %v11021, %v11212
  %v11263 = vadd.f32 %v11022, %v11215
  %v11264 = vadd.f32 %v11023, %v11220
  %v11265 = vadd.f32 %v11024, %v11223
  %v11266 = vadd.f32 %v11025, %v11228
  %v11267 = vadd.f32 %v11026, %v11231
  %v11268 = vadd.f32 %v11027, %v11236
  %v11269 = vadd.f32 %v11028, %v11239
  %v11270 = vadd.f32 %v11029, %v11244
  %v11271 = vadd.f32 %v11030, %v11247
  %v11272 = vadd.f32 %v11031, %v11252
  %v11273 = vadd.f32 %v11032, %v11255
  %v11274 = vld [vmem:[%s644] sm:$0xf]
  %v11275 = vld [vmem:[%s644 + $0x4] sm:$0xf]
  %v11276 = vld [vmem:[%s644 + $0x8] sm:$0x1]
  %v11277 = vld [vmem:[%s644 + $0xc] sm:$0xf]
  %v11278 = vld [vmem:[%s644 + $0x10] sm:$0xf]
  %v11279 = vld [vmem:[%s644 + $0x14] sm:$0x1]
  %v11280 = vld [vmem:[%s644 + $0x18] sm:$0xf]
  %v11281 = vld [vmem:[%s644 + $0x1c] sm:$0xf]
  %v11282 = vld [vmem:[%s644 + $0x20] sm:$0x1]
  %v11283 = vld [vmem:[%s644 + $0x24] sm:$0xf]
  %v11284 = vld [vmem:[%s644 + $0x28] sm:$0xf]
  %v11285 = vld [vmem:[%s644 + $0x2c] sm:$0x1]
  %v11286 = vld [vmem:[%s644 + $0x30] sm:$0xf]
  %v11287 = vld [vmem:[%s644 + $0x34] sm:$0xf]
  %v11288 = vld [vmem:[%s644 + $0x38] sm:$0x1]
  %v11289 = vld [vmem:[%s644 + $0x3c] sm:$0xf]
  %v11290 = vld [vmem:[%s644 + $0x40] sm:$0xf]
  %v11291 = vld [vmem:[%s644 + $0x44] sm:$0x1]
  %v11292 = vld [vmem:[%s644 + $0x48] sm:$0xf]
  %v11293 = vld [vmem:[%s644 + $0x4c] sm:$0xf]
  %v11294 = vld [vmem:[%s644 + $0x50] sm:$0x1]
  %v11295 = vld [vmem:[%s644 + $0x54] sm:$0xf]
  %v11296 = vld [vmem:[%s644 + $0x58] sm:$0xf]
  %v11297 = vld [vmem:[%s644 + $0x5c] sm:$0x1]
  %v11299 = vshrl.u32 %v11274, 16
  %v11301 = vrot.slane %v11299, 4
  %v11302 = vshll.u32 %v11274, 16
  %v11304 = vrot.slane %v11302, 5
  %v11305 = vor.u32 %v11301, %v11304
  %v11306 = vrot.slane %v11305, 4
  %v11308 = vshll.u32 %v11275, 16
  %v11310 = vrot.slane %v11308, 5
  %v11311 = vsel %vm743, %v11306, %v11310
  %v11312 = vshrl.u32 %v11275, 16
  %v11314 = vrot.slane %v11312, 4
  %v11315 = vor.u32 %v11314, %v11310
  %v11316 = vrot.slane %v11315, 4
  %v11318 = vshll.u32 %v11276, 16
  %v11320 = vrot.slane %v11318, 5
  %v11321 = vsel %vm743, %v11316, %v11320
  %v11323 = vshrl.u32 %v11277, 16
  %v11325 = vrot.slane %v11323, 4
  %v11326 = vshll.u32 %v11277, 16
  %v11328 = vrot.slane %v11326, 5
  %v11329 = vor.u32 %v11325, %v11328
  %v11330 = vrot.slane %v11329, 4
  %v11332 = vshll.u32 %v11278, 16
  %v11334 = vrot.slane %v11332, 5
  %v11335 = vsel %vm743, %v11330, %v11334
  %v11336 = vshrl.u32 %v11278, 16
  %v11338 = vrot.slane %v11336, 4
  %v11339 = vor.u32 %v11338, %v11334
  %v11340 = vrot.slane %v11339, 4
  %v11342 = vshll.u32 %v11279, 16
  %v11344 = vrot.slane %v11342, 5
  %v11345 = vsel %vm743, %v11340, %v11344
  %v11347 = vshrl.u32 %v11280, 16
  %v11349 = vrot.slane %v11347, 4
  %v11350 = vshll.u32 %v11280, 16
  %v11352 = vrot.slane %v11350, 5
  %v11353 = vor.u32 %v11349, %v11352
  %v11354 = vrot.slane %v11353, 4
  %v11356 = vshll.u32 %v11281, 16
  %v11358 = vrot.slane %v11356, 5
  %v11359 = vsel %vm743, %v11354, %v11358
  %v11360 = vshrl.u32 %v11281, 16
  %v11362 = vrot.slane %v11360, 4
  %v11363 = vor.u32 %v11362, %v11358
  %v11364 = vrot.slane %v11363, 4
  %v11366 = vshll.u32 %v11282, 16
  %v11368 = vrot.slane %v11366, 5
  %v11369 = vsel %vm743, %v11364, %v11368
  %v11371 = vshrl.u32 %v11283, 16
  %v11373 = vrot.slane %v11371, 4
  %v11374 = vshll.u32 %v11283, 16
  %v11376 = vrot.slane %v11374, 5
  %v11377 = vor.u32 %v11373, %v11376
  %v11378 = vrot.slane %v11377, 4
  %v11380 = vshll.u32 %v11284, 16
  %v11382 = vrot.slane %v11380, 5
  %v11383 = vsel %vm743, %v11378, %v11382
  %v11384 = vshrl.u32 %v11284, 16
  %v11386 = vrot.slane %v11384, 4
  %v11387 = vor.u32 %v11386, %v11382
  %v11388 = vrot.slane %v11387, 4
  %v11390 = vshll.u32 %v11285, 16
  %v11392 = vrot.slane %v11390, 5
  %v11393 = vsel %vm743, %v11388, %v11392
  %v11395 = vshrl.u32 %v11286, 16
  %v11397 = vrot.slane %v11395, 4
  %v11398 = vshll.u32 %v11286, 16
  %v11400 = vrot.slane %v11398, 5
  %v11401 = vor.u32 %v11397, %v11400
  %v11402 = vrot.slane %v11401, 4
  %v11404 = vshll.u32 %v11287, 16
  %v11406 = vrot.slane %v11404, 5
  %v11407 = vsel %vm743, %v11402, %v11406
  %v11408 = vshrl.u32 %v11287, 16
  %v11410 = vrot.slane %v11408, 4
  %v11411 = vor.u32 %v11410, %v11406
  %v11412 = vrot.slane %v11411, 4
  %v11414 = vshll.u32 %v11288, 16
  %v11416 = vrot.slane %v11414, 5
  %v11417 = vsel %vm743, %v11412, %v11416
  %v11419 = vshrl.u32 %v11289, 16
  %v11421 = vrot.slane %v11419, 4
  %v11422 = vshll.u32 %v11289, 16
  %v11424 = vrot.slane %v11422, 5
  %v11425 = vor.u32 %v11421, %v11424
  %v11426 = vrot.slane %v11425, 4
  %v11428 = vshll.u32 %v11290, 16
  %v11430 = vrot.slane %v11428, 5
  %v11431 = vsel %vm743, %v11426, %v11430
  %v11432 = vshrl.u32 %v11290, 16
  %v11434 = vrot.slane %v11432, 4
  %v11435 = vor.u32 %v11434, %v11430
  %v11436 = vrot.slane %v11435, 4
  %v11438 = vshll.u32 %v11291, 16
  %v11440 = vrot.slane %v11438, 5
  %v11441 = vsel %vm743, %v11436, %v11440
  %v11443 = vshrl.u32 %v11292, 16
  %v11445 = vrot.slane %v11443, 4
  %v11446 = vshll.u32 %v11292, 16
  %v11448 = vrot.slane %v11446, 5
  %v11449 = vor.u32 %v11445, %v11448
  %v11450 = vrot.slane %v11449, 4
  %v11452 = vshll.u32 %v11293, 16
  %v11454 = vrot.slane %v11452, 5
  %v11455 = vsel %vm743, %v11450, %v11454
  %v11456 = vshrl.u32 %v11293, 16
  %v11458 = vrot.slane %v11456, 4
  %v11459 = vor.u32 %v11458, %v11454
  %v11460 = vrot.slane %v11459, 4
  %v11462 = vshll.u32 %v11294, 16
  %v11464 = vrot.slane %v11462, 5
  %v11465 = vsel %vm743, %v11460, %v11464
  %v11467 = vshrl.u32 %v11295, 16
  %v11469 = vrot.slane %v11467, 4
  %v11470 = vshll.u32 %v11295, 16
  %v11472 = vrot.slane %v11470, 5
  %v11473 = vor.u32 %v11469, %v11472
  %v11474 = vrot.slane %v11473, 4
  %v11476 = vshll.u32 %v11296, 16
  %v11478 = vrot.slane %v11476, 5
  %v11479 = vsel %vm743, %v11474, %v11478
  %v11480 = vshrl.u32 %v11296, 16
  %v11482 = vrot.slane %v11480, 4
  %v11483 = vor.u32 %v11482, %v11478
  %v11484 = vrot.slane %v11483, 4
  %v11486 = vshll.u32 %v11297, 16
  %v11488 = vrot.slane %v11486, 5
  %v11489 = vsel %vm743, %v11484, %v11488
  %v11490 = vld [vmem:[%s2074] sm:$0xf]
  %v11491 = vld [vmem:[%s2074 + $0x4] sm:$0xf]
  %v11492 = vld [vmem:[%s2074 + $0x8] sm:$0xf]
  %v11493 = vld [vmem:[%s2074 + $0xc] sm:$0xf]
  %v11494 = vld [vmem:[%s2074 + $0x10] sm:$0xf]
  %v11495 = vld [vmem:[%s2074 + $0x14] sm:$0xf]
  %v11496 = vld [vmem:[%s2074 + $0x18] sm:$0xf]
  %v11497 = vld [vmem:[%s2074 + $0x1c] sm:$0xf]
  %v11498 = vld [vmem:[%s2074 + $0x20] sm:$0xf]
  %v11499 = vld [vmem:[%s2074 + $0x24] sm:$0xf]
  %v11500 = vld [vmem:[%s2074 + $0x28] sm:$0xf]
  %v11501 = vld [vmem:[%s2074 + $0x2c] sm:$0xf]
  %v11502 = vld [vmem:[%s2074 + $0x30] sm:$0xf]
  %v11503 = vld [vmem:[%s2074 + $0x34] sm:$0xf]
  %v11504 = vld [vmem:[%s2074 + $0x38] sm:$0xf]
  %v11505 = vld [vmem:[%s2074 + $0x3c] sm:$0xf]
  %v11506 = vunpack.c.l.b16 %v11311
  %v11507 = vunpack.c.l.b16 %v11321
  %v11508 = vunpack.c.l.b16 %v11335
  %v11509 = vunpack.c.l.b16 %v11345
  %v11510 = vunpack.c.l.b16 %v11359
  %v11511 = vunpack.c.l.b16 %v11369
  %v11512 = vunpack.c.l.b16 %v11383
  %v11513 = vunpack.c.l.b16 %v11393
  %v11514 = vunpack.c.l.b16 %v11407
  %v11515 = vunpack.c.l.b16 %v11417
  %v11516 = vunpack.c.l.b16 %v11431
  %v11517 = vunpack.c.l.b16 %v11441
  %v11518 = vunpack.c.l.b16 %v11455
  %v11519 = vunpack.c.l.b16 %v11465
  %v11520 = vunpack.c.l.b16 %v11479
  %v11521 = vunpack.c.l.b16 %v11489
  %v11522 = vpack.c.b16 %v11507, %v11506
  %v11523 = vpack.c.b16 %v11509, %v11508
  %v11524 = vpack.c.b16 %v11511, %v11510
  %v11525 = vpack.c.b16 %v11513, %v11512
  %v11526 = vpack.c.b16 %v11515, %v11514
  %v11527 = vpack.c.b16 %v11517, %v11516
  %v11528 = vpack.c.b16 %v11519, %v11518
  %v11529 = vpack.c.b16 %v11521, %v11520
  %v11554 = vunpack.c.l.b16 %v11490
  %v11555 = vunpack.c.l.b16 %v11491
  %v11556 = vunpack.c.l.b16 %v11492
  %v11557 = vunpack.c.l.b16 %v11493
  %v11558 = vunpack.c.l.b16 %v11494
  %v11559 = vunpack.c.l.b16 %v11495
  %v11560 = vunpack.c.l.b16 %v11496
  %v11561 = vunpack.c.l.b16 %v11497
  %v11562 = vunpack.c.l.b16 %v11498
  %v11563 = vunpack.c.l.b16 %v11499
  %v11564 = vunpack.c.l.b16 %v11500
  %v11565 = vunpack.c.l.b16 %v11501
  %v11566 = vunpack.c.l.b16 %v11502
  %v11567 = vunpack.c.l.b16 %v11503
  %v11568 = vunpack.c.l.b16 %v11504
  %v11569 = vunpack.c.l.b16 %v11505
  %v11570 = vpack.c.b16 %v11555, %v11554
  %v11571 = vpack.c.b16 %v11557, %v11556
  %v11572 = vpack.c.b16 %v11559, %v11558
  %v11573 = vpack.c.b16 %v11561, %v11560
  %v11574 = vpack.c.b16 %v11563, %v11562
  %v11575 = vpack.c.b16 %v11565, %v11564
  %v11576 = vpack.c.b16 %v11567, %v11566
  %v11577 = vpack.c.b16 %v11569, %v11568
  %11586 = vmatprep.subr.bf16.mxu0 0
  %11587 = vmatpush1.bf16.msra.mxu0 %v11570
  %11588 = vmatprep.subr.bf16.mxu0 0
  %11589 = vmatpush1.bf16.msra.mxu0 %v11571
  %11590 = vmatprep.subr.bf16.mxu0 0
  %11591 = vmatpush1.bf16.msra.mxu0 %v11572
  %11592 = vmatprep.subr.bf16.mxu0 0
  %11593 = vmatpush1.bf16.msra.mxu0 %v11573
  %11594 = vmatprep.subr.bf16.mxu0 0
  %11595 = vmatpush1.bf16.msra.mxu0 %v11574
  %11596 = vmatprep.subr.bf16.mxu0 0
  %11597 = vmatpush1.bf16.msra.mxu0 %v11575
  %11598 = vmatprep.subr.bf16.mxu0 0
  %11599 = vmatpush1.bf16.msra.mxu0 %v11576
  %11600 = vmatprep.subr.bf16.mxu0 0
  %11601 = vmatpush1.bf16.msra.mxu0 %v11577
  %11602 = vmatprep.subr.bf16.mxu0 0
  %11603 = vmatpush1.bf16.msra.mxu0 0
  %11604 = vmatprep.subr.bf16.mxu0 0
  %11605 = vmatpush1.bf16.msra.mxu0 0
  %11606 = vmatprep.subr.bf16.mxu0 0
  %11607 = vmatpush1.bf16.msra.mxu0 0
  %11608 = vmatprep.subr.bf16.mxu0 0
  %11609 = vmatpush1.bf16.msra.mxu0 0
  %11610 = vmatprep.subr.bf16.mxu0 0
  %11611 = vmatpush1.bf16.msra.mxu0 0
  %11612 = vmatprep.subr.bf16.mxu0 0
  %11613 = vmatpush1.bf16.msra.mxu0 0
  %11614 = vmatprep.subr.bf16.mxu0 0
  %11615 = vmatpush1.bf16.msra.mxu0 0
  %11616 = vmatprep.subr.bf16.mxu0 0
  %11617 = vmatpush1.bf16.msra.mxu0 0
  %11618 = vmatprep.mubr.bf16.mxu0 0
  %11619 = vmatmul.mubr.bf16.gmra.mrb[0].mxu0 %v11522
  %v11620 = vpop.f32.mrb[0].mxu0
  %v11621 = vadd.f32 0.0, %v11620
  %v11622 = vpop.f32.mrb[0].mxu0
  %v11623 = vpop.f32.mrb[0].mxu0
  %v11624 = vadd.f32 0.0, %v11623
  %v11625 = vpop.f32.mrb[0].mxu0
  %11626 = vmatprep.mubr.bf16.mxu0 0
  %11627 = vmatmul.mubr.bf16.gmra.mrb[0].mxu0 %v11523
  %v11628 = vpop.f32.mrb[0].mxu0
  %v11629 = vadd.f32 0.0, %v11628
  %v11630 = vpop.f32.mrb[0].mxu0
  %v11631 = vpop.f32.mrb[0].mxu0
  %v11632 = vadd.f32 0.0, %v11631
  %v11633 = vpop.f32.mrb[0].mxu0
  %11634 = vmatprep.mubr.bf16.mxu0 0
  %11635 = vmatmul.mubr.bf16.gmra.mrb[0].mxu0 %v11524
  %v11636 = vpop.f32.mrb[0].mxu0
  %v11637 = vadd.f32 0.0, %v11636
  %v11638 = vpop.f32.mrb[0].mxu0
  %v11639 = vpop.f32.mrb[0].mxu0
  %v11640 = vadd.f32 0.0, %v11639
  %v11641 = vpop.f32.mrb[0].mxu0
  %11642 = vmatprep.mubr.bf16.mxu0 0
  %11643 = vmatmul.mubr.bf16.gmra.mrb[0].mxu0 %v11525
  %v11644 = vpop.f32.mrb[0].mxu0
  %v11645 = vadd.f32 0.0, %v11644
  %v11646 = vpop.f32.mrb[0].mxu0
  %v11647 = vpop.f32.mrb[0].mxu0
  %v11648 = vadd.f32 0.0, %v11647
  %v11649 = vpop.f32.mrb[0].mxu0
  %11650 = vmatprep.mubr.bf16.mxu0 0
  %11651 = vmatmul.mubr.bf16.gmra.mrb[0].mxu0 %v11526
  %v11652 = vpop.f32.mrb[0].mxu0
  %v11653 = vadd.f32 0.0, %v11652
  %v11654 = vpop.f32.mrb[0].mxu0
  %v11655 = vpop.f32.mrb[0].mxu0
  %v11656 = vadd.f32 0.0, %v11655
  %v11657 = vpop.f32.mrb[0].mxu0
  %11658 = vmatprep.mubr.bf16.mxu0 0
  %11659 = vmatmul.mubr.bf16.gmra.mrb[0].mxu0 %v11527
  %v11660 = vpop.f32.mrb[0].mxu0
  %v11661 = vadd.f32 0.0, %v11660
  %v11662 = vpop.f32.mrb[0].mxu0
  %v11663 = vpop.f32.mrb[0].mxu0
  %v11664 = vadd.f32 0.0, %v11663
  %v11665 = vpop.f32.mrb[0].mxu0
  %11666 = vmatprep.mubr.bf16.mxu0 0
  %11667 = vmatmul.mubr.bf16.gmra.mrb[0].mxu0 %v11528
  %v11668 = vpop.f32.mrb[0].mxu0
  %v11669 = vadd.f32 0.0, %v11668
  %v11670 = vpop.f32.mrb[0].mxu0
  %v11671 = vpop.f32.mrb[0].mxu0
  %v11672 = vadd.f32 0.0, %v11671
  %v11673 = vpop.f32.mrb[0].mxu0
  %11674 = vmatprep.mubr.bf16.mxu0 0
  %11675 = vmatmul.mubr.bf16.gmra.mrb[0].mxu0 %v11529
  %v11676 = vpop.f32.mrb[0].mxu0
  %v11677 = vadd.f32 0.0, %v11676
  %v11678 = vpop.f32.mrb[0].mxu0
  %v11679 = vpop.f32.mrb[0].mxu0
  %v11680 = vadd.f32 0.0, %v11679
  %v11681 = vpop.f32.mrb[0].mxu0
  %11682 = vdwg.mxu0
  %v11683 = vadd.f32 %v11258, %v11621
  %v11684 = vadd.f32 %v11259, %v11624
  %v11685 = vadd.f32 %v11260, %v11629
  %v11686 = vadd.f32 %v11261, %v11632
  %v11687 = vadd.f32 %v11262, %v11637
  %v11688 = vadd.f32 %v11263, %v11640
  %v11689 = vadd.f32 %v11264, %v11645
  %v11690 = vadd.f32 %v11265, %v11648
  %v11691 = vadd.f32 %v11266, %v11653
  %v11692 = vadd.f32 %v11267, %v11656
  %v11693 = vadd.f32 %v11268, %v11661
  %v11694 = vadd.f32 %v11269, %v11664
  %v11695 = vadd.f32 %v11270, %v11669
  %v11696 = vadd.f32 %v11271, %v11672
  %v11697 = vadd.f32 %v11272, %v11677
  %v11698 = vadd.f32 %v11273, %v11680
  %v11699 = vld [vmem:[%s644] sm:$0xe]
  %v11700 = vld [vmem:[%s644 + $0xc] sm:$0xe]
  %v11701 = vld [vmem:[%s644 + $0x18] sm:$0xe]
  %v11702 = vld [vmem:[%s644 + $0x24] sm:$0xe]
  %v11703 = vld [vmem:[%s644 + $0x30] sm:$0xe]
  %v11704 = vld [vmem:[%s644 + $0x3c] sm:$0xe]
  %v11705 = vld [vmem:[%s644 + $0x48] sm:$0xe]
  %v11706 = vld [vmem:[%s644 + $0x54] sm:$0xe]
  %v11731 = vrot.slane %v11699, 5
  %v11732 = vrot.slane %v11731, 4
  %v11733 = vrot.slane %v11275, 5
  %v11734 = vsel %vm1349, %v11732, %v11733
  %v11735 = vrot.slane %v11733, 4
  %v11736 = vrot.slane %v11276, 5
  %v11737 = vsel %vm1349, %v11735, %v11736
  %v11738 = vrot.slane %v11700, 5
  %v11739 = vrot.slane %v11738, 4
  %v11740 = vrot.slane %v11278, 5
  %v11741 = vsel %vm1349, %v11739, %v11740
  %v11742 = vrot.slane %v11740, 4
  %v11743 = vrot.slane %v11279, 5
  %v11744 = vsel %vm1349, %v11742, %v11743
  %v11745 = vrot.slane %v11701, 5
  %v11746 = vrot.slane %v11745, 4
  %v11747 = vrot.slane %v11281, 5
  %v11748 = vsel %vm1349, %v11746, %v11747
  %v11749 = vrot.slane %v11747, 4
  %v11750 = vrot.slane %v11282, 5
  %v11751 = vsel %vm1349, %v11749, %v11750
  %v11752 = vrot.slane %v11702, 5
  %v11753 = vrot.slane %v11752, 4
  %v11754 = vrot.slane %v11284, 5
  %v11755 = vsel %vm1349, %v11753, %v11754
  %v11756 = vrot.slane %v11754, 4
  %v11757 = vrot.slane %v11285, 5
  %v11758 = vsel %vm1349, %v11756, %v11757
  %v11759 = vrot.slane %v11703, 5
  %v11760 = vrot.slane %v11759, 4
  %v11761 = vrot.slane %v11287, 5
  %v11762 = vsel %vm1349, %v11760, %v11761
  %v11763 = vrot.slane %v11761, 4
  %v11764 = vrot.slane %v11288, 5
  %v11765 = vsel %vm1349, %v11763, %v11764
  %v11766 = vrot.slane %v11704, 5
  %v11767 = vrot.slane %v11766, 4
  %v11768 = vrot.slane %v11290, 5
  %v11769 = vsel %vm1349, %v11767, %v11768
  %v11770 = vrot.slane %v11768, 4
  %v11771 = vrot.slane %v11291, 5
  %v11772 = vsel %vm1349, %v11770, %v11771
  %v11773 = vrot.slane %v11705, 5
  %v11774 = vrot.slane %v11773, 4
  %v11775 = vrot.slane %v11293, 5
  %v11776 = vsel %vm1349, %v11774, %v11775
  %v11777 = vrot.slane %v11775, 4
  %v11778 = vrot.slane %v11294, 5
  %v11779 = vsel %vm1349, %v11777, %v11778
  %v11780 = vrot.slane %v11706, 5
  %v11781 = vrot.slane %v11780, 4
  %v11782 = vrot.slane %v11296, 5
  %v11783 = vsel %vm1349, %v11781, %v11782
  %v11784 = vrot.slane %v11782, 4
  %v11785 = vrot.slane %v11297, 5
  %v11786 = vsel %vm1349, %v11784, %v11785
  %v11787 = vld [vmem:[%s2372] sm:$0xf]
  %v11788 = vld [vmem:[%s2372 + $0x4] sm:$0xf]
  %v11789 = vld [vmem:[%s2372 + $0x8] sm:$0xf]
  %v11790 = vld [vmem:[%s2372 + $0xc] sm:$0xf]
  %v11791 = vld [vmem:[%s2372 + $0x10] sm:$0xf]
  %v11792 = vld [vmem:[%s2372 + $0x14] sm:$0xf]
  %v11793 = vld [vmem:[%s2372 + $0x18] sm:$0xf]
  %v11794 = vld [vmem:[%s2372 + $0x1c] sm:$0xf]
  %v11795 = vld [vmem:[%s2372 + $0x20] sm:$0xf]
  %v11796 = vld [vmem:[%s2372 + $0x24] sm:$0xf]
  %v11797 = vld [vmem:[%s2372 + $0x28] sm:$0xf]
  %v11798 = vld [vmem:[%s2372 + $0x2c] sm:$0xf]
  %v11799 = vld [vmem:[%s2372 + $0x30] sm:$0xf]
  %v11800 = vld [vmem:[%s2372 + $0x34] sm:$0xf]
  %v11801 = vld [vmem:[%s2372 + $0x38] sm:$0xf]
  %v11802 = vld [vmem:[%s2372 + $0x3c] sm:$0xf]
  %v11803 = vunpack.c.l.b16 %v11734
  %v11804 = vunpack.c.l.b16 %v11737
  %v11805 = vunpack.c.l.b16 %v11741
  %v11806 = vunpack.c.l.b16 %v11744
  %v11807 = vunpack.c.l.b16 %v11748
  %v11808 = vunpack.c.l.b16 %v11751
  %v11809 = vunpack.c.l.b16 %v11755
  %v11810 = vunpack.c.l.b16 %v11758
  %v11811 = vunpack.c.l.b16 %v11762
  %v11812 = vunpack.c.l.b16 %v11765
  %v11813 = vunpack.c.l.b16 %v11769
  %v11814 = vunpack.c.l.b16 %v11772
  %v11815 = vunpack.c.l.b16 %v11776
  %v11816 = vunpack.c.l.b16 %v11779
  %v11817 = vunpack.c.l.b16 %v11783
  %v11818 = vunpack.c.l.b16 %v11786
  %v11819 = vpack.c.b16 %v11804, %v11803
  %v11820 = vpack.c.b16 %v11806, %v11805
  %v11821 = vpack.c.b16 %v11808, %v11807
  %v11822 = vpack.c.b16 %v11810, %v11809
  %v11823 = vpack.c.b16 %v11812, %v11811
  %v11824 = vpack.c.b16 %v11814, %v11813
  %v11825 = vpack.c.b16 %v11816, %v11815
  %v11826 = vpack.c.b16 %v11818, %v11817
  %v11851 = vunpack.c.l.b16 %v11787
  %v11852 = vunpack.c.l.b16 %v11788
  %v11853 = vunpack.c.l.b16 %v11789
  %v11854 = vunpack.c.l.b16 %v11790
  %v11855 = vunpack.c.l.b16 %v11791
  %v11856 = vunpack.c.l.b16 %v11792
  %v11857 = vunpack.c.l.b16 %v11793
  %v11858 = vunpack.c.l.b16 %v11794
  %v11859 = vunpack.c.l.b16 %v11795
  %v11860 = vunpack.c.l.b16 %v11796
  %v11861 = vunpack.c.l.b16 %v11797
  %v11862 = vunpack.c.l.b16 %v11798
  %v11863 = vunpack.c.l.b16 %v11799
  %v11864 = vunpack.c.l.b16 %v11800
  %v11865 = vunpack.c.l.b16 %v11801
  %v11866 = vunpack.c.l.b16 %v11802
  %v11867 = vpack.c.b16 %v11852, %v11851
  %v11868 = vpack.c.b16 %v11854, %v11853
  %v11869 = vpack.c.b16 %v11856, %v11855
  %v11870 = vpack.c.b16 %v11858, %v11857
  %v11871 = vpack.c.b16 %v11860, %v11859
  %v11872 = vpack.c.b16 %v11862, %v11861
  %v11873 = vpack.c.b16 %v11864, %v11863
  %v11874 = vpack.c.b16 %v11866, %v11865
  %11883 = vmatprep.subr.bf16.mxu0 0
  %11884 = vmatpush1.bf16.msra.mxu0 %v11867
  %11885 = vmatprep.subr.bf16.mxu0 0
  %11886 = vmatpush1.bf16.msra.mxu0 %v11868
  %11887 = vmatprep.subr.bf16.mxu0 0
  %11888 = vmatpush1.bf16.msra.mxu0 %v11869
  %11889 = vmatprep.subr.bf16.mxu0 0
  %11890 = vmatpush1.bf16.msra.mxu0 %v11870
  %11891 = vmatprep.subr.bf16.mxu0 0
  %11892 = vmatpush1.bf16.msra.mxu0 %v11871
  %11893 = vmatprep.subr.bf16.mxu0 0
  %11894 = vmatpush1.bf16.msra.mxu0 %v11872
  %11895 = vmatprep.subr.bf16.mxu0 0
  %11896 = vmatpush1.bf16.msra.mxu0 %v11873
  %11897 = vmatprep.subr.bf16.mxu0 0
  %11898 = vmatpush1.bf16.msra.mxu0 %v11874
  %11899 = vmatprep.subr.bf16.mxu0 0
  %11900 = vmatpush1.bf16.msra.mxu0 0
  %11901 = vmatprep.subr.bf16.mxu0 0
  %11902 = vmatpush1.bf16.msra.mxu0 0
  %11903 = vmatprep.subr.bf16.mxu0 0
  %11904 = vmatpush1.bf16.msra.mxu0 0
  %11905 = vmatprep.subr.bf16.mxu0 0
  %11906 = vmatpush1.bf16.msra.mxu0 0
  %11907 = vmatprep.subr.bf16.mxu0 0
  %11908 = vmatpush1.bf16.msra.mxu0 0
  %11909 = vmatprep.subr.bf16.mxu0 0
  %11910 = vmatpush1.bf16.msra.mxu0 0
  %11911 = vmatprep.subr.bf16.mxu0 0
  %11912 = vmatpush1.bf16.msra.mxu0 0
  %11913 = vmatprep.subr.bf16.mxu0 0
  %11914 = vmatpush1.bf16.msra.mxu0 0
  %11915 = vmatprep.mubr.bf16.mxu0 0
  %11916 = vmatmul.mubr.bf16.gmra.mrb[0].mxu0 %v11819
  %v11917 = vpop.f32.mrb[0].mxu0
  %v11918 = vadd.f32 0.0, %v11917
  %v11919 = vpop.f32.mrb[0].mxu0
  %v11920 = vpop.f32.mrb[0].mxu0
  %v11921 = vadd.f32 0.0, %v11920
  %v11922 = vpop.f32.mrb[0].mxu0
  %11923 = vmatprep.mubr.bf16.mxu0 0
  %11924 = vmatmul.mubr.bf16.gmra.mrb[0].mxu0 %v11820
  %v11925 = vpop.f32.mrb[0].mxu0
  %v11926 = vadd.f32 0.0, %v11925
  %v11927 = vpop.f32.mrb[0].mxu0
  %v11928 = vpop.f32.mrb[0].mxu0
  %v11929 = vadd.f32 0.0, %v11928
  %v11930 = vpop.f32.mrb[0].mxu0
  %11931 = vmatprep.mubr.bf16.mxu0 0
  %11932 = vmatmul.mubr.bf16.gmra.mrb[0].mxu0 %v11821
  %v11933 = vpop.f32.mrb[0].mxu0
  %v11934 = vadd.f32 0.0, %v11933
  %v11935 = vpop.f32.mrb[0].mxu0
  %v11936 = vpop.f32.mrb[0].mxu0
  %v11937 = vadd.f32 0.0, %v11936
  %v11938 = vpop.f32.mrb[0].mxu0
  %11939 = vmatprep.mubr.bf16.mxu0 0
  %11940 = vmatmul.mubr.bf16.gmra.mrb[0].mxu0 %v11822
  %v11941 = vpop.f32.mrb[0].mxu0
  %v11942 = vadd.f32 0.0, %v11941
  %v11943 = vpop.f32.mrb[0].mxu0
  %v11944 = vpop.f32.mrb[0].mxu0
  %v11945 = vadd.f32 0.0, %v11944
  %v11946 = vpop.f32.mrb[0].mxu0
  %11947 = vmatprep.mubr.bf16.mxu0 0
  %11948 = vmatmul.mubr.bf16.gmra.mrb[0].mxu0 %v11823
  %v11949 = vpop.f32.mrb[0].mxu0
  %v11950 = vadd.f32 0.0, %v11949
  %v11951 = vpop.f32.mrb[0].mxu0
  %v11952 = vpop.f32.mrb[0].mxu0
  %v11953 = vadd.f32 0.0, %v11952
  %v11954 = vpop.f32.mrb[0].mxu0
  %11955 = vmatprep.mubr.bf16.mxu0 0
  %11956 = vmatmul.mubr.bf16.gmra.mrb[0].mxu0 %v11824
  %v11957 = vpop.f32.mrb[0].mxu0
  %v11958 = vadd.f32 0.0, %v11957
  %v11959 = vpop.f32.mrb[0].mxu0
  %v11960 = vpop.f32.mrb[0].mxu0
  %v11961 = vadd.f32 0.0, %v11960
  %v11962 = vpop.f32.mrb[0].mxu0
  %11963 = vmatprep.mubr.bf16.mxu0 0
  %11964 = vmatmul.mubr.bf16.gmra.mrb[0].mxu0 %v11825
  %v11965 = vpop.f32.mrb[0].mxu0
  %v11966 = vadd.f32 0.0, %v11965
  %v11967 = vpop.f32.mrb[0].mxu0
  %v11968 = vpop.f32.mrb[0].mxu0
  %v11969 = vadd.f32 0.0, %v11968
  %v11970 = vpop.f32.mrb[0].mxu0
  %11971 = vmatprep.mubr.bf16.mxu0 0
  %11972 = vmatmul.mubr.bf16.gmra.mrb[0].mxu0 %v11826
  %v11973 = vpop.f32.mrb[0].mxu0
  %v11974 = vadd.f32 0.0, %v11973
  %v11975 = vpop.f32.mrb[0].mxu0
  %v11976 = vpop.f32.mrb[0].mxu0
  %v11977 = vadd.f32 0.0, %v11976
  %v11978 = vpop.f32.mrb[0].mxu0
  %11979 = vdwg.mxu0
  %v11980 = vadd.f32 %v11683, %v11918
  %v11981 = vadd.f32 %v11684, %v11921
  %v11982 = vadd.f32 %v11685, %v11926
  %v11983 = vadd.f32 %v11686, %v11929
  %v11984 = vadd.f32 %v11687, %v11934
  %v11985 = vadd.f32 %v11688, %v11937
  %v11986 = vadd.f32 %v11689, %v11942
  %v11987 = vadd.f32 %v11690, %v11945
  %v11988 = vadd.f32 %v11691, %v11950
  %v11989 = vadd.f32 %v11692, %v11953
  %v11990 = vadd.f32 %v11693, %v11958
  %v11991 = vadd.f32 %v11694, %v11961
  %v11992 = vadd.f32 %v11695, %v11966
  %v11993 = vadd.f32 %v11696, %v11969
  %v11994 = vadd.f32 %v11697, %v11974
  %v11995 = vadd.f32 %v11698, %v11977
  %v11996 = vld [vmem:[%s5496] sm:$0xf]
  %v11997 = vld [vmem:[%s5496 + $0x4] sm:$0xf]
  %v11998 = vld [vmem:[%s5496 + $0xc] sm:$0xf]
  %v11999 = vld [vmem:[%s5496 + $0x10] sm:$0xf]
  %v12000 = vld [vmem:[%s5496 + $0x18] sm:$0xf]
  %v12001 = vld [vmem:[%s5496 + $0x1c] sm:$0xf]
  %v12002 = vld [vmem:[%s5496 + $0x24] sm:$0xf]
  %v12003 = vld [vmem:[%s5496 + $0x28] sm:$0xf]
  %v12004 = vld [vmem:[%s5496 + $0x30] sm:$0xf]
  %v12005 = vld [vmem:[%s5496 + $0x34] sm:$0xf]
  %v12006 = vld [vmem:[%s5496 + $0x3c] sm:$0xf]
  %v12007 = vld [vmem:[%s5496 + $0x40] sm:$0xf]
  %v12008 = vld [vmem:[%s5496 + $0x48] sm:$0xf]
  %v12009 = vld [vmem:[%s5496 + $0x4c] sm:$0xf]
  %v12010 = vld [vmem:[%s5496 + $0x54] sm:$0xf]
  %v12011 = vld [vmem:[%s5496 + $0x58] sm:$0xf]
  %v12012 = vld [vmem:[%s2599] sm:$0xf]
  %v12013 = vld [vmem:[%s2599 + $0x4] sm:$0xf]
  %v12014 = vld [vmem:[%s2599 + $0x8] sm:$0xf]
  %v12015 = vld [vmem:[%s2599 + $0xc] sm:$0xf]
  %v12016 = vld [vmem:[%s2599 + $0x10] sm:$0xf]
  %v12017 = vld [vmem:[%s2599 + $0x14] sm:$0xf]
  %v12018 = vld [vmem:[%s2599 + $0x18] sm:$0xf]
  %v12019 = vld [vmem:[%s2599 + $0x1c] sm:$0xf]
  %v12020 = vld [vmem:[%s2599 + $0x20] sm:$0xf]
  %v12021 = vld [vmem:[%s2599 + $0x24] sm:$0xf]
  %v12022 = vld [vmem:[%s2599 + $0x28] sm:$0xf]
  %v12023 = vld [vmem:[%s2599 + $0x2c] sm:$0xf]
  %v12024 = vld [vmem:[%s2599 + $0x30] sm:$0xf]
  %v12025 = vld [vmem:[%s2599 + $0x34] sm:$0xf]
  %v12026 = vld [vmem:[%s2599 + $0x38] sm:$0xf]
  %v12027 = vld [vmem:[%s2599 + $0x3c] sm:$0xf]
  %v12044 = vunpack.c.l.b16 %v11996
  %v12045 = vunpack.c.l.b16 %v11997
  %v12046 = vunpack.c.l.b16 %v11998
  %v12047 = vunpack.c.l.b16 %v11999
  %v12048 = vunpack.c.l.b16 %v12000
  %v12049 = vunpack.c.l.b16 %v12001
  %v12050 = vunpack.c.l.b16 %v12002
  %v12051 = vunpack.c.l.b16 %v12003
  %v12052 = vunpack.c.l.b16 %v12004
  %v12053 = vunpack.c.l.b16 %v12005
  %v12054 = vunpack.c.l.b16 %v12006
  %v12055 = vunpack.c.l.b16 %v12007
  %v12056 = vunpack.c.l.b16 %v12008
  %v12057 = vunpack.c.l.b16 %v12009
  %v12058 = vunpack.c.l.b16 %v12010
  %v12059 = vunpack.c.l.b16 %v12011
  %v12060 = vpack.c.b16 %v12045, %v12044
  %v12061 = vpack.c.b16 %v12047, %v12046
  %v12062 = vpack.c.b16 %v12049, %v12048
  %v12063 = vpack.c.b16 %v12051, %v12050
  %v12064 = vpack.c.b16 %v12053, %v12052
  %v12065 = vpack.c.b16 %v12055, %v12054
  %v12066 = vpack.c.b16 %v12057, %v12056
  %v12067 = vpack.c.b16 %v12059, %v12058
  %v12092 = vunpack.c.l.b16 %v12012
  %v12093 = vunpack.c.l.b16 %v12013
  %v12094 = vunpack.c.l.b16 %v12014
  %v12095 = vunpack.c.l.b16 %v12015
  %v12096 = vunpack.c.l.b16 %v12016
  %v12097 = vunpack.c.l.b16 %v12017
  %v12098 = vunpack.c.l.b16 %v12018
  %v12099 = vunpack.c.l.b16 %v12019
  %v12100 = vunpack.c.l.b16 %v12020
  %v12101 = vunpack.c.l.b16 %v12021
  %v12102 = vunpack.c.l.b16 %v12022
  %v12103 = vunpack.c.l.b16 %v12023
  %v12104 = vunpack.c.l.b16 %v12024
  %v12105 = vunpack.c.l.b16 %v12025
  %v12106 = vunpack.c.l.b16 %v12026
  %v12107 = vunpack.c.l.b16 %v12027
  %v12108 = vpack.c.b16 %v12093, %v12092
  %v12109 = vpack.c.b16 %v12095, %v12094
  %v12110 = vpack.c.b16 %v12097, %v12096
  %v12111 = vpack.c.b16 %v12099, %v12098
  %v12112 = vpack.c.b16 %v12101, %v12100
  %v12113 = vpack.c.b16 %v12103, %v12102
  %v12114 = vpack.c.b16 %v12105, %v12104
  %v12115 = vpack.c.b16 %v12107, %v12106
  %12124 = vmatprep.subr.bf16.mxu0 0
  %12125 = vmatpush1.bf16.msra.mxu0 %v12108
  %12126 = vmatprep.subr.bf16.mxu0 0
  %12127 = vmatpush1.bf16.msra.mxu0 %v12109
  %12128 = vmatprep.subr.bf16.mxu0 0
  %12129 = vmatpush1.bf16.msra.mxu0 %v12110
  %12130 = vmatprep.subr.bf16.mxu0 0
  %12131 = vmatpush1.bf16.msra.mxu0 %v12111
  %12132 = vmatprep.subr.bf16.mxu0 0
  %12133 = vmatpush1.bf16.msra.mxu0 %v12112
  %12134 = vmatprep.subr.bf16.mxu0 0
  %12135 = vmatpush1.bf16.msra.mxu0 %v12113
  %12136 = vmatprep.subr.bf16.mxu0 0
  %12137 = vmatpush1.bf16.msra.mxu0 %v12114
  %12138 = vmatprep.subr.bf16.mxu0 0
  %12139 = vmatpush1.bf16.msra.mxu0 %v12115
  %12140 = vmatprep.subr.bf16.mxu0 0
  %12141 = vmatpush1.bf16.msra.mxu0 0
  %12142 = vmatprep.subr.bf16.mxu0 0
  %12143 = vmatpush1.bf16.msra.mxu0 0
  %12144 = vmatprep.subr.bf16.mxu0 0
  %12145 = vmatpush1.bf16.msra.mxu0 0
  %12146 = vmatprep.subr.bf16.mxu0 0
  %12147 = vmatpush1.bf16.msra.mxu0 0
  %12148 = vmatprep.subr.bf16.mxu0 0
  %12149 = vmatpush1.bf16.msra.mxu0 0
  %12150 = vmatprep.subr.bf16.mxu0 0
  %12151 = vmatpush1.bf16.msra.mxu0 0
  %12152 = vmatprep.subr.bf16.mxu0 0
  %12153 = vmatpush1.bf16.msra.mxu0 0
  %12154 = vmatprep.subr.bf16.mxu0 0
  %12155 = vmatpush1.bf16.msra.mxu0 0
  %12156 = vmatprep.mubr.bf16.mxu0 0
  %12157 = vmatmul.mubr.bf16.gmra.mrb[0].mxu0 %v12060
  %v12158 = vpop.f32.mrb[0].mxu0
  %v12159 = vadd.f32 0.0, %v12158
  %v12160 = vpop.f32.mrb[0].mxu0
  %v12161 = vpop.f32.mrb[0].mxu0
  %v12162 = vadd.f32 0.0, %v12161
  %v12163 = vpop.f32.mrb[0].mxu0
  %12164 = vmatprep.mubr.bf16.mxu0 0
  %12165 = vmatmul.mubr.bf16.gmra.mrb[0].mxu0 %v12061
  %v12166 = vpop.f32.mrb[0].mxu0
  %v12167 = vadd.f32 0.0, %v12166
  %v12168 = vpop.f32.mrb[0].mxu0
  %v12169 = vpop.f32.mrb[0].mxu0
  %v12170 = vadd.f32 0.0, %v12169
  %v12171 = vpop.f32.mrb[0].mxu0
  %12172 = vmatprep.mubr.bf16.mxu0 0
  %12173 = vmatmul.mubr.bf16.gmra.mrb[0].mxu0 %v12062
  %v12174 = vpop.f32.mrb[0].mxu0
  %v12175 = vadd.f32 0.0, %v12174
  %v12176 = vpop.f32.mrb[0].mxu0
  %v12177 = vpop.f32.mrb[0].mxu0
  %v12178 = vadd.f32 0.0, %v12177
  %v12179 = vpop.f32.mrb[0].mxu0
  %12180 = vmatprep.mubr.bf16.mxu0 0
  %12181 = vmatmul.mubr.bf16.gmra.mrb[0].mxu0 %v12063
  %v12182 = vpop.f32.mrb[0].mxu0
  %v12183 = vadd.f32 0.0, %v12182
  %v12184 = vpop.f32.mrb[0].mxu0
  %v12185 = vpop.f32.mrb[0].mxu0
  %v12186 = vadd.f32 0.0, %v12185
  %v12187 = vpop.f32.mrb[0].mxu0
  %12188 = vmatprep.mubr.bf16.mxu0 0
  %12189 = vmatmul.mubr.bf16.gmra.mrb[0].mxu0 %v12064
  %v12190 = vpop.f32.mrb[0].mxu0
  %v12191 = vadd.f32 0.0, %v12190
  %v12192 = vpop.f32.mrb[0].mxu0
  %v12193 = vpop.f32.mrb[0].mxu0
  %v12194 = vadd.f32 0.0, %v12193
  %v12195 = vpop.f32.mrb[0].mxu0
  %12196 = vmatprep.mubr.bf16.mxu0 0
  %12197 = vmatmul.mubr.bf16.gmra.mrb[0].mxu0 %v12065
  %v12198 = vpop.f32.mrb[0].mxu0
  %v12199 = vadd.f32 0.0, %v12198
  %v12200 = vpop.f32.mrb[0].mxu0
  %v12201 = vpop.f32.mrb[0].mxu0
  %v12202 = vadd.f32 0.0, %v12201
  %v12203 = vpop.f32.mrb[0].mxu0
  %12204 = vmatprep.mubr.bf16.mxu0 0
  %12205 = vmatmul.mubr.bf16.gmra.mrb[0].mxu0 %v12066
  %v12206 = vpop.f32.mrb[0].mxu0
  %v12207 = vadd.f32 0.0, %v12206
  %v12208 = vpop.f32.mrb[0].mxu0
  %v12209 = vpop.f32.mrb[0].mxu0
  %v12210 = vadd.f32 0.0, %v12209
  %v12211 = vpop.f32.mrb[0].mxu0
  %12212 = vmatprep.mubr.bf16.mxu0 0
  %12213 = vmatmul.mubr.bf16.gmra.mrb[0].mxu0 %v12067
  %v12214 = vpop.f32.mrb[0].mxu0
  %v12215 = vadd.f32 0.0, %v12214
  %v12216 = vpop.f32.mrb[0].mxu0
  %v12217 = vpop.f32.mrb[0].mxu0
  %v12218 = vadd.f32 0.0, %v12217
  %v12219 = vpop.f32.mrb[0].mxu0
  %12220 = vdwg.mxu0
  %v12221 = vadd.f32 %v11980, %v12159
  %v12222 = vadd.f32 %v11981, %v12162
  %v12223 = vadd.f32 %v11982, %v12167
  %v12224 = vadd.f32 %v11983, %v12170
  %v12225 = vadd.f32 %v11984, %v12175
  %v12226 = vadd.f32 %v11985, %v12178
  %v12227 = vadd.f32 %v11986, %v12183
  %v12228 = vadd.f32 %v11987, %v12186
  %v12229 = vadd.f32 %v11988, %v12191
  %v12230 = vadd.f32 %v11989, %v12194
  %v12231 = vadd.f32 %v11990, %v12199
  %v12232 = vadd.f32 %v11991, %v12202
  %v12233 = vadd.f32 %v11992, %v12207
  %v12234 = vadd.f32 %v11993, %v12210
  %v12235 = vadd.f32 %v11994, %v12215
  %v12236 = vadd.f32 %v11995, %v12218
  %v12237 = vld [vmem:[%s5496] sm:$0xf]
  %v12238 = vld [vmem:[%s5496 + $0x4] sm:$0xf]
  %v12239 = vld [vmem:[%s5496 + $0x8] sm:$0x1]
  %v12240 = vld [vmem:[%s5496 + $0xc] sm:$0xf]
  %v12241 = vld [vmem:[%s5496 + $0x10] sm:$0xf]
  %v12242 = vld [vmem:[%s5496 + $0x14] sm:$0x1]
  %v12243 = vld [vmem:[%s5496 + $0x18] sm:$0xf]
  %v12244 = vld [vmem:[%s5496 + $0x1c] sm:$0xf]
  %v12245 = vld [vmem:[%s5496 + $0x20] sm:$0x1]
  %v12246 = vld [vmem:[%s5496 + $0x24] sm:$0xf]
  %v12247 = vld [vmem:[%s5496 + $0x28] sm:$0xf]
  %v12248 = vld [vmem:[%s5496 + $0x2c] sm:$0x1]
  %v12249 = vld [vmem:[%s5496 + $0x30] sm:$0xf]
  %v12250 = vld [vmem:[%s5496 + $0x34] sm:$0xf]
  %v12251 = vld [vmem:[%s5496 + $0x38] sm:$0x1]
  %v12252 = vld [vmem:[%s5496 + $0x3c] sm:$0xf]
  %v12253 = vld [vmem:[%s5496 + $0x40] sm:$0xf]
  %v12254 = vld [vmem:[%s5496 + $0x44] sm:$0x1]
  %v12255 = vld [vmem:[%s5496 + $0x48] sm:$0xf]
  %v12256 = vld [vmem:[%s5496 + $0x4c] sm:$0xf]
  %v12257 = vld [vmem:[%s5496 + $0x50] sm:$0x1]
  %v12258 = vld [vmem:[%s5496 + $0x54] sm:$0xf]
  %v12259 = vld [vmem:[%s5496 + $0x58] sm:$0xf]
  %v12260 = vld [vmem:[%s5496 + $0x5c] sm:$0x1]
  %v12262 = vshrl.u32 %v12237, 16
  %v12264 = vrot.slane %v12262, 4
  %v12265 = vshll.u32 %v12237, 16
  %v12267 = vrot.slane %v12265, 5
  %v12268 = vor.u32 %v12264, %v12267
  %v12269 = vrot.slane %v12268, 4
  %v12271 = vshll.u32 %v12238, 16
  %v12273 = vrot.slane %v12271, 5
  %v12274 = vsel %vm743, %v12269, %v12273
  %v12275 = vshrl.u32 %v12238, 16
  %v12277 = vrot.slane %v12275, 4
  %v12278 = vor.u32 %v12277, %v12273
  %v12279 = vrot.slane %v12278, 4
  %v12281 = vshll.u32 %v12239, 16
  %v12283 = vrot.slane %v12281, 5
  %v12284 = vsel %vm743, %v12279, %v12283
  %v12286 = vshrl.u32 %v12240, 16
  %v12288 = vrot.slane %v12286, 4
  %v12289 = vshll.u32 %v12240, 16
  %v12291 = vrot.slane %v12289, 5
  %v12292 = vor.u32 %v12288, %v12291
  %v12293 = vrot.slane %v12292, 4
  %v12295 = vshll.u32 %v12241, 16
  %v12297 = vrot.slane %v12295, 5
  %v12298 = vsel %vm743, %v12293, %v12297
  %v12299 = vshrl.u32 %v12241, 16
  %v12301 = vrot.slane %v12299, 4
  %v12302 = vor.u32 %v12301, %v12297
  %v12303 = vrot.slane %v12302, 4
  %v12305 = vshll.u32 %v12242, 16
  %v12307 = vrot.slane %v12305, 5
  %v12308 = vsel %vm743, %v12303, %v12307
  %v12310 = vshrl.u32 %v12243, 16
  %v12312 = vrot.slane %v12310, 4
  %v12313 = vshll.u32 %v12243, 16
  %v12315 = vrot.slane %v12313, 5
  %v12316 = vor.u32 %v12312, %v12315
  %v12317 = vrot.slane %v12316, 4
  %v12319 = vshll.u32 %v12244, 16
  %v12321 = vrot.slane %v12319, 5
  %v12322 = vsel %vm743, %v12317, %v12321
  %v12323 = vshrl.u32 %v12244, 16
  %v12325 = vrot.slane %v12323, 4
  %v12326 = vor.u32 %v12325, %v12321
  %v12327 = vrot.slane %v12326, 4
  %v12329 = vshll.u32 %v12245, 16
  %v12331 = vrot.slane %v12329, 5
  %v12332 = vsel %vm743, %v12327, %v12331
  %v12334 = vshrl.u32 %v12246, 16
  %v12336 = vrot.slane %v12334, 4
  %v12337 = vshll.u32 %v12246, 16
  %v12339 = vrot.slane %v12337, 5
  %v12340 = vor.u32 %v12336, %v12339
  %v12341 = vrot.slane %v12340, 4
  %v12343 = vshll.u32 %v12247, 16
  %v12345 = vrot.slane %v12343, 5
  %v12346 = vsel %vm743, %v12341, %v12345
  %v12347 = vshrl.u32 %v12247, 16
  %v12349 = vrot.slane %v12347, 4
  %v12350 = vor.u32 %v12349, %v12345
  %v12351 = vrot.slane %v12350, 4
  %v12353 = vshll.u32 %v12248, 16
  %v12355 = vrot.slane %v12353, 5
  %v12356 = vsel %vm743, %v12351, %v12355
  %v12358 = vshrl.u32 %v12249, 16
  %v12360 = vrot.slane %v12358, 4
  %v12361 = vshll.u32 %v12249, 16
  %v12363 = vrot.slane %v12361, 5
  %v12364 = vor.u32 %v12360, %v12363
  %v12365 = vrot.slane %v12364, 4
  %v12367 = vshll.u32 %v12250, 16
  %v12369 = vrot.slane %v12367, 5
  %v12370 = vsel %vm743, %v12365, %v12369
  %v12371 = vshrl.u32 %v12250, 16
  %v12373 = vrot.slane %v12371, 4
  %v12374 = vor.u32 %v12373, %v12369
  %v12375 = vrot.slane %v12374, 4
  %v12377 = vshll.u32 %v12251, 16
  %v12379 = vrot.slane %v12377, 5
  %v12380 = vsel %vm743, %v12375, %v12379
  %v12382 = vshrl.u32 %v12252, 16
  %v12384 = vrot.slane %v12382, 4
  %v12385 = vshll.u32 %v12252, 16
  %v12387 = vrot.slane %v12385, 5
  %v12388 = vor.u32 %v12384, %v12387
  %v12389 = vrot.slane %v12388, 4
  %v12391 = vshll.u32 %v12253, 16
  %v12393 = vrot.slane %v12391, 5
  %v12394 = vsel %vm743, %v12389, %v12393
  %v12395 = vshrl.u32 %v12253, 16
  %v12397 = vrot.slane %v12395, 4
  %v12398 = vor.u32 %v12397, %v12393
  %v12399 = vrot.slane %v12398, 4
  %v12401 = vshll.u32 %v12254, 16
  %v12403 = vrot.slane %v12401, 5
  %v12404 = vsel %vm743, %v12399, %v12403
  %v12406 = vshrl.u32 %v12255, 16
  %v12408 = vrot.slane %v12406, 4
  %v12409 = vshll.u32 %v12255, 16
  %v12411 = vrot.slane %v12409, 5
  %v12412 = vor.u32 %v12408, %v12411
  %v12413 = vrot.slane %v12412, 4
  %v12415 = vshll.u32 %v12256, 16
  %v12417 = vrot.slane %v12415, 5
  %v12418 = vsel %vm743, %v12413, %v12417
  %v12419 = vshrl.u32 %v12256, 16
  %v12421 = vrot.slane %v12419, 4
  %v12422 = vor.u32 %v12421, %v12417
  %v12423 = vrot.slane %v12422, 4
  %v12425 = vshll.u32 %v12257, 16
  %v12427 = vrot.slane %v12425, 5
  %v12428 = vsel %vm743, %v12423, %v12427
  %v12430 = vshrl.u32 %v12258, 16
  %v12432 = vrot.slane %v12430, 4
  %v12433 = vshll.u32 %v12258, 16
  %v12435 = vrot.slane %v12433, 5
  %v12436 = vor.u32 %v12432, %v12435
  %v12437 = vrot.slane %v12436, 4
  %v12439 = vshll.u32 %v12259, 16
  %v12441 = vrot.slane %v12439, 5
  %v12442 = vsel %vm743, %v12437, %v12441
  %v12443 = vshrl.u32 %v12259, 16
  %v12445 = vrot.slane %v12443, 4
  %v12446 = vor.u32 %v12445, %v12441
  %v12447 = vrot.slane %v12446, 4
  %v12449 = vshll.u32 %v12260, 16
  %v12451 = vrot.slane %v12449, 5
  %v12452 = vsel %vm743, %v12447, %v12451
  %v12453 = vld [vmem:[%s3041] sm:$0xf]
  %v12454 = vld [vmem:[%s3041 + $0x4] sm:$0xf]
  %v12455 = vld [vmem:[%s3041 + $0x8] sm:$0xf]
  %v12456 = vld [vmem:[%s3041 + $0xc] sm:$0xf]
  %v12457 = vld [vmem:[%s3041 + $0x10] sm:$0xf]
  %v12458 = vld [vmem:[%s3041 + $0x14] sm:$0xf]
  %v12459 = vld [vmem:[%s3041 + $0x18] sm:$0xf]
  %v12460 = vld [vmem:[%s3041 + $0x1c] sm:$0xf]
  %v12461 = vld [vmem:[%s3041 + $0x20] sm:$0xf]
  %v12462 = vld [vmem:[%s3041 + $0x24] sm:$0xf]
  %v12463 = vld [vmem:[%s3041 + $0x28] sm:$0xf]
  %v12464 = vld [vmem:[%s3041 + $0x2c] sm:$0xf]
  %v12465 = vld [vmem:[%s3041 + $0x30] sm:$0xf]
  %v12466 = vld [vmem:[%s3041 + $0x34] sm:$0xf]
  %v12467 = vld [vmem:[%s3041 + $0x38] sm:$0xf]
  %v12468 = vld [vmem:[%s3041 + $0x3c] sm:$0xf]
  %v12469 = vunpack.c.l.b16 %v12274
  %v12470 = vunpack.c.l.b16 %v12284
  %v12471 = vunpack.c.l.b16 %v12298
  %v12472 = vunpack.c.l.b16 %v12308
  %v12473 = vunpack.c.l.b16 %v12322
  %v12474 = vunpack.c.l.b16 %v12332
  %v12475 = vunpack.c.l.b16 %v12346
  %v12476 = vunpack.c.l.b16 %v12356
  %v12477 = vunpack.c.l.b16 %v12370
  %v12478 = vunpack.c.l.b16 %v12380
  %v12479 = vunpack.c.l.b16 %v12394
  %v12480 = vunpack.c.l.b16 %v12404
  %v12481 = vunpack.c.l.b16 %v12418
  %v12482 = vunpack.c.l.b16 %v12428
  %v12483 = vunpack.c.l.b16 %v12442
  %v12484 = vunpack.c.l.b16 %v12452
  %v12485 = vpack.c.b16 %v12470, %v12469
  %v12486 = vpack.c.b16 %v12472, %v12471
  %v12487 = vpack.c.b16 %v12474, %v12473
  %v12488 = vpack.c.b16 %v12476, %v12475
  %v12489 = vpack.c.b16 %v12478, %v12477
  %v12490 = vpack.c.b16 %v12480, %v12479
  %v12491 = vpack.c.b16 %v12482, %v12481
  %v12492 = vpack.c.b16 %v12484, %v12483
  %v12517 = vunpack.c.l.b16 %v12453
  %v12518 = vunpack.c.l.b16 %v12454
  %v12519 = vunpack.c.l.b16 %v12455
  %v12520 = vunpack.c.l.b16 %v12456
  %v12521 = vunpack.c.l.b16 %v12457
  %v12522 = vunpack.c.l.b16 %v12458
  %v12523 = vunpack.c.l.b16 %v12459
  %v12524 = vunpack.c.l.b16 %v12460
  %v12525 = vunpack.c.l.b16 %v12461
  %v12526 = vunpack.c.l.b16 %v12462
  %v12527 = vunpack.c.l.b16 %v12463
  %v12528 = vunpack.c.l.b16 %v12464
  %v12529 = vunpack.c.l.b16 %v12465
  %v12530 = vunpack.c.l.b16 %v12466
  %v12531 = vunpack.c.l.b16 %v12467
  %v12532 = vunpack.c.l.b16 %v12468
  %v12533 = vpack.c.b16 %v12518, %v12517
  %v12534 = vpack.c.b16 %v12520, %v12519
  %v12535 = vpack.c.b16 %v12522, %v12521
  %v12536 = vpack.c.b16 %v12524, %v12523
  %v12537 = vpack.c.b16 %v12526, %v12525
  %v12538 = vpack.c.b16 %v12528, %v12527
  %v12539 = vpack.c.b16 %v12530, %v12529
  %v12540 = vpack.c.b16 %v12532, %v12531
  %12549 = vmatprep.subr.bf16.mxu0 0
  %12550 = vmatpush1.bf16.msra.mxu0 %v12533
  %12551 = vmatprep.subr.bf16.mxu0 0
  %12552 = vmatpush1.bf16.msra.mxu0 %v12534
  %12553 = vmatprep.subr.bf16.mxu0 0
  %12554 = vmatpush1.bf16.msra.mxu0 %v12535
  %12555 = vmatprep.subr.bf16.mxu0 0
  %12556 = vmatpush1.bf16.msra.mxu0 %v12536
  %12557 = vmatprep.subr.bf16.mxu0 0
  %12558 = vmatpush1.bf16.msra.mxu0 %v12537
  %12559 = vmatprep.subr.bf16.mxu0 0
  %12560 = vmatpush1.bf16.msra.mxu0 %v12538
  %12561 = vmatprep.subr.bf16.mxu0 0
  %12562 = vmatpush1.bf16.msra.mxu0 %v12539
  %12563 = vmatprep.subr.bf16.mxu0 0
  %12564 = vmatpush1.bf16.msra.mxu0 %v12540
  %12565 = vmatprep.subr.bf16.mxu0 0
  %12566 = vmatpush1.bf16.msra.mxu0 0
  %12567 = vmatprep.subr.bf16.mxu0 0
  %12568 = vmatpush1.bf16.msra.mxu0 0
  %12569 = vmatprep.subr.bf16.mxu0 0
  %12570 = vmatpush1.bf16.msra.mxu0 0
  %12571 = vmatprep.subr.bf16.mxu0 0
  %12572 = vmatpush1.bf16.msra.mxu0 0
  %12573 = vmatprep.subr.bf16.mxu0 0
  %12574 = vmatpush1.bf16.msra.mxu0 0
  %12575 = vmatprep.subr.bf16.mxu0 0
  %12576 = vmatpush1.bf16.msra.mxu0 0
  %12577 = vmatprep.subr.bf16.mxu0 0
  %12578 = vmatpush1.bf16.msra.mxu0 0
  %12579 = vmatprep.subr.bf16.mxu0 0
  %12580 = vmatpush1.bf16.msra.mxu0 0
  %12581 = vmatprep.mubr.bf16.mxu0 0
  %12582 = vmatmul.mubr.bf16.gmra.mrb[0].mxu0 %v12485
  %v12583 = vpop.f32.mrb[0].mxu0
  %v12584 = vadd.f32 0.0, %v12583
  %v12585 = vpop.f32.mrb[0].mxu0
  %v12586 = vpop.f32.mrb[0].mxu0
  %v12587 = vadd.f32 0.0, %v12586
  %v12588 = vpop.f32.mrb[0].mxu0
  %12589 = vmatprep.mubr.bf16.mxu0 0
  %12590 = vmatmul.mubr.bf16.gmra.mrb[0].mxu0 %v12486
  %v12591 = vpop.f32.mrb[0].mxu0
  %v12592 = vadd.f32 0.0, %v12591
  %v12593 = vpop.f32.mrb[0].mxu0
  %v12594 = vpop.f32.mrb[0].mxu0
  %v12595 = vadd.f32 0.0, %v12594
  %v12596 = vpop.f32.mrb[0].mxu0
  %12597 = vmatprep.mubr.bf16.mxu0 0
  %12598 = vmatmul.mubr.bf16.gmra.mrb[0].mxu0 %v12487
  %v12599 = vpop.f32.mrb[0].mxu0
  %v12600 = vadd.f32 0.0, %v12599
  %v12601 = vpop.f32.mrb[0].mxu0
  %v12602 = vpop.f32.mrb[0].mxu0
  %v12603 = vadd.f32 0.0, %v12602
  %v12604 = vpop.f32.mrb[0].mxu0
  %12605 = vmatprep.mubr.bf16.mxu0 0
  %12606 = vmatmul.mubr.bf16.gmra.mrb[0].mxu0 %v12488
  %v12607 = vpop.f32.mrb[0].mxu0
  %v12608 = vadd.f32 0.0, %v12607
  %v12609 = vpop.f32.mrb[0].mxu0
  %v12610 = vpop.f32.mrb[0].mxu0
  %v12611 = vadd.f32 0.0, %v12610
  %v12612 = vpop.f32.mrb[0].mxu0
  %12613 = vmatprep.mubr.bf16.mxu0 0
  %12614 = vmatmul.mubr.bf16.gmra.mrb[0].mxu0 %v12489
  %v12615 = vpop.f32.mrb[0].mxu0
  %v12616 = vadd.f32 0.0, %v12615
  %v12617 = vpop.f32.mrb[0].mxu0
  %v12618 = vpop.f32.mrb[0].mxu0
  %v12619 = vadd.f32 0.0, %v12618
  %v12620 = vpop.f32.mrb[0].mxu0
  %12621 = vmatprep.mubr.bf16.mxu0 0
  %12622 = vmatmul.mubr.bf16.gmra.mrb[0].mxu0 %v12490
  %v12623 = vpop.f32.mrb[0].mxu0
  %v12624 = vadd.f32 0.0, %v12623
  %v12625 = vpop.f32.mrb[0].mxu0
  %v12626 = vpop.f32.mrb[0].mxu0
  %v12627 = vadd.f32 0.0, %v12626
  %v12628 = vpop.f32.mrb[0].mxu0
  %12629 = vmatprep.mubr.bf16.mxu0 0
  %12630 = vmatmul.mubr.bf16.gmra.mrb[0].mxu0 %v12491
  %v12631 = vpop.f32.mrb[0].mxu0
  %v12632 = vadd.f32 0.0, %v12631
  %v12633 = vpop.f32.mrb[0].mxu0
  %v12634 = vpop.f32.mrb[0].mxu0
  %v12635 = vadd.f32 0.0, %v12634
  %v12636 = vpop.f32.mrb[0].mxu0
  %12637 = vmatprep.mubr.bf16.mxu0 0
  %12638 = vmatmul.mubr.bf16.gmra.mrb[0].mxu0 %v12492
  %v12639 = vpop.f32.mrb[0].mxu0
  %v12640 = vadd.f32 0.0, %v12639
  %v12641 = vpop.f32.mrb[0].mxu0
  %v12642 = vpop.f32.mrb[0].mxu0
  %v12643 = vadd.f32 0.0, %v12642
  %v12644 = vpop.f32.mrb[0].mxu0
  %12645 = vdwg.mxu0
  %v12646 = vadd.f32 %v12221, %v12584
  %v12647 = vadd.f32 %v12222, %v12587
  %v12648 = vadd.f32 %v12223, %v12592
  %v12649 = vadd.f32 %v12224, %v12595
  %v12650 = vadd.f32 %v12225, %v12600
  %v12651 = vadd.f32 %v12226, %v12603
  %v12652 = vadd.f32 %v12227, %v12608
  %v12653 = vadd.f32 %v12228, %v12611
  %v12654 = vadd.f32 %v12229, %v12616
  %v12655 = vadd.f32 %v12230, %v12619
  %v12656 = vadd.f32 %v12231, %v12624
  %v12657 = vadd.f32 %v12232, %v12627
  %v12658 = vadd.f32 %v12233, %v12632
  %v12659 = vadd.f32 %v12234, %v12635
  %v12660 = vadd.f32 %v12235, %v12640
  %v12661 = vadd.f32 %v12236, %v12643
  %v12662 = vld [vmem:[%s5496] sm:$0xe]
  %v12663 = vld [vmem:[%s5496 + $0xc] sm:$0xe]
  %v12664 = vld [vmem:[%s5496 + $0x18] sm:$0xe]
  %v12665 = vld [vmem:[%s5496 + $0x24] sm:$0xe]
  %v12666 = vld [vmem:[%s5496 + $0x30] sm:$0xe]
  %v12667 = vld [vmem:[%s5496 + $0x3c] sm:$0xe]
  %v12668 = vld [vmem:[%s5496 + $0x48] sm:$0xe]
  %v12669 = vld [vmem:[%s5496 + $0x54] sm:$0xe]
  %v12694 = vrot.slane %v12662, 5
  %v12695 = vrot.slane %v12694, 4
  %v12696 = vrot.slane %v12238, 5
  %v12697 = vsel %vm1349, %v12695, %v12696
  %v12698 = vrot.slane %v12696, 4
  %v12699 = vrot.slane %v12239, 5
  %v12700 = vsel %vm1349, %v12698, %v12699
  %v12701 = vrot.slane %v12663, 5
  %v12702 = vrot.slane %v12701, 4
  %v12703 = vrot.slane %v12241, 5
  %v12704 = vsel %vm1349, %v12702, %v12703
  %v12705 = vrot.slane %v12703, 4
  %v12706 = vrot.slane %v12242, 5
  %v12707 = vsel %vm1349, %v12705, %v12706
  %v12708 = vrot.slane %v12664, 5
  %v12709 = vrot.slane %v12708, 4
  %v12710 = vrot.slane %v12244, 5
  %v12711 = vsel %vm1349, %v12709, %v12710
  %v12712 = vrot.slane %v12710, 4
  %v12713 = vrot.slane %v12245, 5
  %v12714 = vsel %vm1349, %v12712, %v12713
  %v12715 = vrot.slane %v12665, 5
  %v12716 = vrot.slane %v12715, 4
  %v12717 = vrot.slane %v12247, 5
  %v12718 = vsel %vm1349, %v12716, %v12717
  %v12719 = vrot.slane %v12717, 4
  %v12720 = vrot.slane %v12248, 5
  %v12721 = vsel %vm1349, %v12719, %v12720
  %v12722 = vrot.slane %v12666, 5
  %v12723 = vrot.slane %v12722, 4
  %v12724 = vrot.slane %v12250, 5
  %v12725 = vsel %vm1349, %v12723, %v12724
  %v12726 = vrot.slane %v12724, 4
  %v12727 = vrot.slane %v12251, 5
  %v12728 = vsel %vm1349, %v12726, %v12727
  %v12729 = vrot.slane %v12667, 5
  %v12730 = vrot.slane %v12729, 4
  %v12731 = vrot.slane %v12253, 5
  %v12732 = vsel %vm1349, %v12730, %v12731
  %v12733 = vrot.slane %v12731, 4
  %v12734 = vrot.slane %v12254, 5
  %v12735 = vsel %vm1349, %v12733, %v12734
  %v12736 = vrot.slane %v12668, 5
  %v12737 = vrot.slane %v12736, 4
  %v12738 = vrot.slane %v12256, 5
  %v12739 = vsel %vm1349, %v12737, %v12738
  %v12740 = vrot.slane %v12738, 4
  %v12741 = vrot.slane %v12257, 5
  %v12742 = vsel %vm1349, %v12740, %v12741
  %v12743 = vrot.slane %v12669, 5
  %v12744 = vrot.slane %v12743, 4
  %v12745 = vrot.slane %v12259, 5
  %v12746 = vsel %vm1349, %v12744, %v12745
  %v12747 = vrot.slane %v12745, 4
  %v12748 = vrot.slane %v12260, 5
  %v12749 = vsel %vm1349, %v12747, %v12748
  %v12750 = vld [vmem:[%s3339] sm:$0xf]
  %v12751 = vld [vmem:[%s3339 + $0x4] sm:$0xf]
  %v12752 = vld [vmem:[%s3339 + $0x8] sm:$0xf]
  %v12753 = vld [vmem:[%s3339 + $0xc] sm:$0xf]
  %v12754 = vld [vmem:[%s3339 + $0x10] sm:$0xf]
  %v12755 = vld [vmem:[%s3339 + $0x14] sm:$0xf]
  %v12756 = vld [vmem:[%s3339 + $0x18] sm:$0xf]
  %v12757 = vld [vmem:[%s3339 + $0x1c] sm:$0xf]
  %v12758 = vld [vmem:[%s3339 + $0x20] sm:$0xf]
  %v12759 = vld [vmem:[%s3339 + $0x24] sm:$0xf]
  %v12760 = vld [vmem:[%s3339 + $0x28] sm:$0xf]
  %v12761 = vld [vmem:[%s3339 + $0x2c] sm:$0xf]
  %v12762 = vld [vmem:[%s3339 + $0x30] sm:$0xf]
  %v12763 = vld [vmem:[%s3339 + $0x34] sm:$0xf]
  %v12764 = vld [vmem:[%s3339 + $0x38] sm:$0xf]
  %v12765 = vld [vmem:[%s3339 + $0x3c] sm:$0xf]
  %v12766 = vunpack.c.l.b16 %v12697
  %v12767 = vunpack.c.l.b16 %v12700
  %v12768 = vunpack.c.l.b16 %v12704
  %v12769 = vunpack.c.l.b16 %v12707
  %v12770 = vunpack.c.l.b16 %v12711
  %v12771 = vunpack.c.l.b16 %v12714
  %v12772 = vunpack.c.l.b16 %v12718
  %v12773 = vunpack.c.l.b16 %v12721
  %v12774 = vunpack.c.l.b16 %v12725
  %v12775 = vunpack.c.l.b16 %v12728
  %v12776 = vunpack.c.l.b16 %v12732
  %v12777 = vunpack.c.l.b16 %v12735
  %v12778 = vunpack.c.l.b16 %v12739
  %v12779 = vunpack.c.l.b16 %v12742
  %v12780 = vunpack.c.l.b16 %v12746
  %v12781 = vunpack.c.l.b16 %v12749
  %v12782 = vpack.c.b16 %v12767, %v12766
  %v12783 = vpack.c.b16 %v12769, %v12768
  %v12784 = vpack.c.b16 %v12771, %v12770
  %v12785 = vpack.c.b16 %v12773, %v12772
  %v12786 = vpack.c.b16 %v12775, %v12774
  %v12787 = vpack.c.b16 %v12777, %v12776
  %v12788 = vpack.c.b16 %v12779, %v12778
  %v12789 = vpack.c.b16 %v12781, %v12780
  %v12814 = vunpack.c.l.b16 %v12750
  %v12815 = vunpack.c.l.b16 %v12751
  %v12816 = vunpack.c.l.b16 %v12752
  %v12817 = vunpack.c.l.b16 %v12753
  %v12818 = vunpack.c.l.b16 %v12754
  %v12819 = vunpack.c.l.b16 %v12755
  %v12820 = vunpack.c.l.b16 %v12756
  %v12821 = vunpack.c.l.b16 %v12757
  %v12822 = vunpack.c.l.b16 %v12758
  %v12823 = vunpack.c.l.b16 %v12759
  %v12824 = vunpack.c.l.b16 %v12760
  %v12825 = vunpack.c.l.b16 %v12761
  %v12826 = vunpack.c.l.b16 %v12762
  %v12827 = vunpack.c.l.b16 %v12763
  %v12828 = vunpack.c.l.b16 %v12764
  %v12829 = vunpack.c.l.b16 %v12765
  %v12830 = vpack.c.b16 %v12815, %v12814
  %v12831 = vpack.c.b16 %v12817, %v12816
  %v12832 = vpack.c.b16 %v12819, %v12818
  %v12833 = vpack.c.b16 %v12821, %v12820
  %v12834 = vpack.c.b16 %v12823, %v12822
  %v12835 = vpack.c.b16 %v12825, %v12824
  %v12836 = vpack.c.b16 %v12827, %v12826
  %v12837 = vpack.c.b16 %v12829, %v12828
  %12846 = vmatprep.subr.bf16.mxu0 0
  %12847 = vmatpush1.bf16.msra.mxu0 %v12830
  %12848 = vmatprep.subr.bf16.mxu0 0
  %12849 = vmatpush1.bf16.msra.mxu0 %v12831
  %12850 = vmatprep.subr.bf16.mxu0 0
  %12851 = vmatpush1.bf16.msra.mxu0 %v12832
  %12852 = vmatprep.subr.bf16.mxu0 0
  %12853 = vmatpush1.bf16.msra.mxu0 %v12833
  %12854 = vmatprep.subr.bf16.mxu0 0
  %12855 = vmatpush1.bf16.msra.mxu0 %v12834
  %12856 = vmatprep.subr.bf16.mxu0 0
  %12857 = vmatpush1.bf16.msra.mxu0 %v12835
  %12858 = vmatprep.subr.bf16.mxu0 0
  %12859 = vmatpush1.bf16.msra.mxu0 %v12836
  %12860 = vmatprep.subr.bf16.mxu0 0
  %12861 = vmatpush1.bf16.msra.mxu0 %v12837
  %12862 = vmatprep.subr.bf16.mxu0 0
  %12863 = vmatpush1.bf16.msra.mxu0 0
  %12864 = vmatprep.subr.bf16.mxu0 0
  %12865 = vmatpush1.bf16.msra.mxu0 0
  %12866 = vmatprep.subr.bf16.mxu0 0
  %12867 = vmatpush1.bf16.msra.mxu0 0
  %12868 = vmatprep.subr.bf16.mxu0 0
  %12869 = vmatpush1.bf16.msra.mxu0 0
  %12870 = vmatprep.subr.bf16.mxu0 0
  %12871 = vmatpush1.bf16.msra.mxu0 0
  %12872 = vmatprep.subr.bf16.mxu0 0
  %12873 = vmatpush1.bf16.msra.mxu0 0
  %12874 = vmatprep.subr.bf16.mxu0 0
  %12875 = vmatpush1.bf16.msra.mxu0 0
  %12876 = vmatprep.subr.bf16.mxu0 0
  %12877 = vmatpush1.bf16.msra.mxu0 0
  %12878 = vmatprep.mubr.bf16.mxu0 0
  %12879 = vmatmul.mubr.bf16.gmra.mrb[0].mxu0 %v12782
  %v12880 = vpop.f32.mrb[0].mxu0
  %v12881 = vadd.f32 0.0, %v12880
  %v12882 = vpop.f32.mrb[0].mxu0
  %v12883 = vpop.f32.mrb[0].mxu0
  %v12884 = vadd.f32 0.0, %v12883
  %v12885 = vpop.f32.mrb[0].mxu0
  %12886 = vmatprep.mubr.bf16.mxu0 0
  %12887 = vmatmul.mubr.bf16.gmra.mrb[0].mxu0 %v12783
  %v12888 = vpop.f32.mrb[0].mxu0
  %v12889 = vadd.f32 0.0, %v12888
  %v12890 = vpop.f32.mrb[0].mxu0
  %v12891 = vpop.f32.mrb[0].mxu0
  %v12892 = vadd.f32 0.0, %v12891
  %v12893 = vpop.f32.mrb[0].mxu0
  %12894 = vmatprep.mubr.bf16.mxu0 0
  %12895 = vmatmul.mubr.bf16.gmra.mrb[0].mxu0 %v12784
  %v12896 = vpop.f32.mrb[0].mxu0
  %v12897 = vadd.f32 0.0, %v12896
  %v12898 = vpop.f32.mrb[0].mxu0
  %v12899 = vpop.f32.mrb[0].mxu0
  %v12900 = vadd.f32 0.0, %v12899
  %v12901 = vpop.f32.mrb[0].mxu0
  %12902 = vmatprep.mubr.bf16.mxu0 0
  %12903 = vmatmul.mubr.bf16.gmra.mrb[0].mxu0 %v12785
  %v12904 = vpop.f32.mrb[0].mxu0
  %v12905 = vadd.f32 0.0, %v12904
  %v12906 = vpop.f32.mrb[0].mxu0
  %v12907 = vpop.f32.mrb[0].mxu0
  %v12908 = vadd.f32 0.0, %v12907
  %v12909 = vpop.f32.mrb[0].mxu0
  %12910 = vmatprep.mubr.bf16.mxu0 0
  %12911 = vmatmul.mubr.bf16.gmra.mrb[0].mxu0 %v12786
  %v12912 = vpop.f32.mrb[0].mxu0
  %v12913 = vadd.f32 0.0, %v12912
  %v12914 = vpop.f32.mrb[0].mxu0
  %v12915 = vpop.f32.mrb[0].mxu0
  %v12916 = vadd.f32 0.0, %v12915
  %v12917 = vpop.f32.mrb[0].mxu0
  %12918 = vmatprep.mubr.bf16.mxu0 0
  %12919 = vmatmul.mubr.bf16.gmra.mrb[0].mxu0 %v12787
  %v12920 = vpop.f32.mrb[0].mxu0
  %v12921 = vadd.f32 0.0, %v12920
  %v12922 = vpop.f32.mrb[0].mxu0
  %v12923 = vpop.f32.mrb[0].mxu0
  %v12924 = vadd.f32 0.0, %v12923
  %v12925 = vpop.f32.mrb[0].mxu0
  %12926 = vmatprep.mubr.bf16.mxu0 0
  %12927 = vmatmul.mubr.bf16.gmra.mrb[0].mxu0 %v12788
  %v12928 = vpop.f32.mrb[0].mxu0
  %v12929 = vadd.f32 0.0, %v12928
  %v12930 = vpop.f32.mrb[0].mxu0
  %v12931 = vpop.f32.mrb[0].mxu0
  %v12932 = vadd.f32 0.0, %v12931
  %v12933 = vpop.f32.mrb[0].mxu0
  %12934 = vmatprep.mubr.bf16.mxu0 0
  %12935 = vmatmul.mubr.bf16.gmra.mrb[0].mxu0 %v12789
  %v12936 = vpop.f32.mrb[0].mxu0
  %v12937 = vadd.f32 0.0, %v12936
  %v12938 = vpop.f32.mrb[0].mxu0
  %v12939 = vpop.f32.mrb[0].mxu0
  %v12940 = vadd.f32 0.0, %v12939
  %v12941 = vpop.f32.mrb[0].mxu0
  %12942 = vdwg.mxu0
  %v12943 = vadd.f32 %v12646, %v12881
  %v12944 = vadd.f32 %v12647, %v12884
  %v12945 = vadd.f32 %v12648, %v12889
  %v12946 = vadd.f32 %v12649, %v12892
  %v12947 = vadd.f32 %v12650, %v12897
  %v12948 = vadd.f32 %v12651, %v12900
  %v12949 = vadd.f32 %v12652, %v12905
  %v12950 = vadd.f32 %v12653, %v12908
  %v12951 = vadd.f32 %v12654, %v12913
  %v12952 = vadd.f32 %v12655, %v12916
  %v12953 = vadd.f32 %v12656, %v12921
  %v12954 = vadd.f32 %v12657, %v12924
  %v12955 = vadd.f32 %v12658, %v12929
  %v12956 = vadd.f32 %v12659, %v12932
  %v12957 = vadd.f32 %v12660, %v12937
  %v12958 = vadd.f32 %v12661, %v12940
  %12959 = vst [vmem:[#allocation3 + $0x80] sm:$0xff] %v12943
  %12960 = vst [vmem:[#allocation3 + $0x88] sm:$0xff] %v12944
  %12961 = vst [vmem:[#allocation3 + $0x90] sm:$0xff] %v12945
  %12962 = vst [vmem:[#allocation3 + $0x98] sm:$0xff] %v12946
  %12963 = vst [vmem:[#allocation3 + $0xa0] sm:$0xff] %v12947
  %12964 = vst [vmem:[#allocation3 + $0xa8] sm:$0xff] %v12948
  %12965 = vst [vmem:[#allocation3 + $0xb0] sm:$0xff] %v12949
  %12966 = vst [vmem:[#allocation3 + $0xb8] sm:$0xff] %v12950
  %12967 = vst [vmem:[#allocation3 + $0xc0] sm:$0xff] %v12951
  %12968 = vst [vmem:[#allocation3 + $0xc8] sm:$0xff] %v12952
  %12969 = vst [vmem:[#allocation3 + $0xd0] sm:$0xff] %v12953
  %12970 = vst [vmem:[#allocation3 + $0xd8] sm:$0xff] %v12954
  %12971 = vst [vmem:[#allocation3 + $0xe0] sm:$0xff] %v12955
  %12972 = vst [vmem:[#allocation3 + $0xe8] sm:$0xff] %v12956
  %12973 = vst [vmem:[#allocation3 + $0xf0] sm:$0xff] %v12957
  %12974 = vst [vmem:[#allocation3 + $0xf8] sm:$0xff] %v12958
  %v12975 = vadd.f32 %v12943, %v12944
  %v12976 = vadd.f32 %v12975, %v12945
  %v12977 = vadd.f32 %v12976, %v12946
  %v12978 = vadd.f32 %v12977, %v12947
  %v12979 = vadd.f32 %v12978, %v12948
  %v12980 = vadd.f32 %v12979, %v12949
  %v12981 = vadd.f32 %v12980, %v12950
  %v12982 = vadd.f32 %v12981, %v12951
  %v12983 = vadd.f32 %v12982, %v12952
  %v12984 = vadd.f32 %v12983, %v12953
  %v12985 = vadd.f32 %v12984, %v12954
  %v12986 = vadd.f32 %v12985, %v12955
  %v12987 = vadd.f32 %v12986, %v12956
  %v12988 = vadd.f32 %v12987, %v12957
  %v12989 = vadd.f32 %v12988, %v12958
  %v12990 = vrot.slane %v12989, 4
  %v12991 = vadd.f32 %v12989, %v12990
  %v12992 = vrot.slane %v12991, 2
  %v12993 = vadd.f32 %v12991, %v12992
  %v12994 = vrot.slane %v12993, 1
  %v12995 = vadd.f32 %v12993, %v12994
  %v12996 = vadd.f32 %v10087, %v12995
  %v12997 = vmul.f32 %v12943, %v12943
  %v12998 = vmul.f32 %v12944, %v12944
  %v12999 = vmul.f32 %v12945, %v12945
  %v13000 = vmul.f32 %v12946, %v12946
  %v13001 = vmul.f32 %v12947, %v12947
  %v13002 = vmul.f32 %v12948, %v12948
  %v13003 = vmul.f32 %v12949, %v12949
  %v13004 = vmul.f32 %v12950, %v12950
  %v13005 = vmul.f32 %v12951, %v12951
  %v13006 = vmul.f32 %v12952, %v12952
  %v13007 = vmul.f32 %v12953, %v12953
  %v13008 = vmul.f32 %v12954, %v12954
  %v13009 = vmul.f32 %v12955, %v12955
  %v13010 = vmul.f32 %v12956, %v12956
  %v13011 = vmul.f32 %v12957, %v12957
  %v13012 = vmul.f32 %v12958, %v12958
  %v13013 = vadd.f32 %v12997, %v12998
  %v13014 = vadd.f32 %v13013, %v12999
  %v13015 = vadd.f32 %v13014, %v13000
  %v13016 = vadd.f32 %v13015, %v13001
  %v13017 = vadd.f32 %v13016, %v13002
  %v13018 = vadd.f32 %v13017, %v13003
  %v13019 = vadd.f32 %v13018, %v13004
  %v13020 = vadd.f32 %v13019, %v13005
  %v13021 = vadd.f32 %v13020, %v13006
  %v13022 = vadd.f32 %v13021, %v13007
  %v13023 = vadd.f32 %v13022, %v13008
  %v13024 = vadd.f32 %v13023, %v13009
  %v13025 = vadd.f32 %v13024, %v13010
  %v13026 = vadd.f32 %v13025, %v13011
  %v13027 = vadd.f32 %v13026, %v13012
  %v13028 = vrot.slane %v13027, 4
  %v13029 = vadd.f32 %v13027, %v13028
  %v13030 = vrot.slane %v13029, 2
  %v13031 = vadd.f32 %v13029, %v13030
  %v13032 = vrot.slane %v13031, 1
  %v13033 = vadd.f32 %v13031, %v13032
  %v13034 = vadd.f32 %v10125, %v13033
  %13035 = vrot.lane.b32.xlu0 %v12996, 64
  %v13036 = vpop.permute.xlu0 %13035
  %v13037 = vadd.f32 %v12996, %v13036
  %13038 = vrot.lane.b32.xlu0 %v13034, 64
  %v13039 = vpop.permute.xlu0 %13038
  %v13040 = vadd.f32 %v13034, %v13039
  %v13041 = vmul.f32 %v13037, 0.001953125
  %v13042 = vmul.f32 %v13040, 0.001953125
  %v13043 = vmul.f32 %v13041, %v13041
  %v13044 = vsub.f32 %v13042, %v13043
  %v13045 = vld [vmem:[%s2] sm:$0x1]
  %v13046 = vadd.f32 %v13044, 1e-05
  %v13047 = vrsqrt.pop %v13046
  %v13048 = vmul.f32 %v13045, %v13047
  %v13049 = vld [vmem:[%s2 + $0x1] sm:$0x1]
  %v13050 = vmul.f32 %v13041, %v13048
  %v13051 = vsub.f32 %v13049, %v13050
  %v13052 = vld [vmem:[#allocation3] sm:$0xff]
  %v13053 = vld [vmem:[#allocation3 + $0x8] sm:$0xff]
  %v13054 = vld [vmem:[#allocation3 + $0x10] sm:$0xff]
  %v13055 = vld [vmem:[#allocation3 + $0x18] sm:$0xff]
  %v13056 = vld [vmem:[#allocation3 + $0x20] sm:$0xff]
  %v13057 = vld [vmem:[#allocation3 + $0x28] sm:$0xff]
  %v13058 = vld [vmem:[#allocation3 + $0x30] sm:$0xff]
  %v13059 = vld [vmem:[#allocation3 + $0x38] sm:$0xff]
  %v13060 = vld [vmem:[#allocation3 + $0x40] sm:$0xff]
  %v13061 = vld [vmem:[#allocation3 + $0x48] sm:$0xff]
  %v13062 = vld [vmem:[#allocation3 + $0x50] sm:$0xff]
  %v13063 = vld [vmem:[#allocation3 + $0x58] sm:$0xff]
  %v13064 = vld [vmem:[#allocation3 + $0x60] sm:$0xff]
  %v13065 = vld [vmem:[#allocation3 + $0x68] sm:$0xff]
  %v13066 = vld [vmem:[#allocation3 + $0x70] sm:$0xff]
  %v13067 = vld [vmem:[#allocation3 + $0x78] sm:$0xff]
  %v13068 = vlaneseq
  %v13069 = vshrl.u32 %v13068, 7
  %v13070 = vsub.s32 0, %v13069
  %v13071 = vrot.slane %v13048, %v13070
  %v13072 = vmul.f32 %v13052, %v13071
  %v13073 = vmul.f32 %v13053, %v13071
  %v13074 = vmul.f32 %v13054, %v13071
  %v13075 = vmul.f32 %v13055, %v13071
  %v13076 = vmul.f32 %v13056, %v13071
  %v13077 = vmul.f32 %v13057, %v13071
  %v13078 = vmul.f32 %v13058, %v13071
  %v13079 = vmul.f32 %v13059, %v13071
  %v13080 = vmul.f32 %v13060, %v13071
  %v13081 = vmul.f32 %v13061, %v13071
  %v13082 = vmul.f32 %v13062, %v13071
  %v13083 = vmul.f32 %v13063, %v13071
  %v13084 = vmul.f32 %v13064, %v13071
  %v13085 = vmul.f32 %v13065, %v13071
  %v13086 = vmul.f32 %v13066, %v13071
  %v13087 = vmul.f32 %v13067, %v13071
  %v13088 = vlaneseq
  %v13089 = vshrl.u32 %v13088, 7
  %v13090 = vsub.s32 0, %v13089
  %v13091 = vrot.slane %v13051, %v13090
  %v13092 = vadd.f32 %v13072, %v13091
  %v13093 = vadd.f32 %v13073, %v13091
  %v13094 = vadd.f32 %v13074, %v13091
  %v13095 = vadd.f32 %v13075, %v13091
  %v13096 = vadd.f32 %v13076, %v13091
  %v13097 = vadd.f32 %v13077, %v13091
  %v13098 = vadd.f32 %v13078, %v13091
  %v13099 = vadd.f32 %v13079, %v13091
  %v13100 = vadd.f32 %v13080, %v13091
  %v13101 = vadd.f32 %v13081, %v13091
  %v13102 = vadd.f32 %v13082, %v13091
  %v13103 = vadd.f32 %v13083, %v13091
  %v13104 = vadd.f32 %v13084, %v13091
  %v13105 = vadd.f32 %v13085, %v13091
  %v13106 = vadd.f32 %v13086, %v13091
  %v13107 = vadd.f32 %v13087, %v13091
  %v13108 = vld [vmem:[%s0] sm:$0xff]
  %v13109 = vld [vmem:[%s0 + $0x8] sm:$0xff]
  %v13110 = vld [vmem:[%s0 + $0x10] sm:$0xff]
  %v13111 = vld [vmem:[%s0 + $0x18] sm:$0xff]
  %v13112 = vld [vmem:[%s0 + $0x20] sm:$0xff]
  %v13113 = vld [vmem:[%s0 + $0x28] sm:$0xff]
  %v13114 = vld [vmem:[%s0 + $0x30] sm:$0xff]
  %v13115 = vld [vmem:[%s0 + $0x38] sm:$0xff]
  %v13116 = vld [vmem:[%s0 + $0x40] sm:$0xff]
  %v13117 = vld [vmem:[%s0 + $0x48] sm:$0xff]
  %v13118 = vld [vmem:[%s0 + $0x50] sm:$0xff]
  %v13119 = vld [vmem:[%s0 + $0x58] sm:$0xff]
  %v13120 = vld [vmem:[%s0 + $0x60] sm:$0xff]
  %v13121 = vld [vmem:[%s0 + $0x68] sm:$0xff]
  %v13122 = vld [vmem:[%s0 + $0x70] sm:$0xff]
  %v13123 = vld [vmem:[%s0 + $0x78] sm:$0xff]
  %v13124 = vadd.f32 %v13092, %v13108
  %v13125 = vadd.f32 %v13093, %v13109
  %v13126 = vadd.f32 %v13094, %v13110
  %v13127 = vadd.f32 %v13095, %v13111
  %v13128 = vadd.f32 %v13096, %v13112
  %v13129 = vadd.f32 %v13097, %v13113
  %v13130 = vadd.f32 %v13098, %v13114
  %v13131 = vadd.f32 %v13099, %v13115
  %v13132 = vadd.f32 %v13100, %v13116
  %v13133 = vadd.f32 %v13101, %v13117
  %v13134 = vadd.f32 %v13102, %v13118
  %v13135 = vadd.f32 %v13103, %v13119
  %v13136 = vadd.f32 %v13104, %v13120
  %v13137 = vadd.f32 %v13105, %v13121
  %v13138 = vadd.f32 %v13106, %v13122
  %v13139 = vadd.f32 %v13107, %v13123
  %13140 = vst [vmem:[%s3] sm:$0xff] %v13124
  %13141 = vst [vmem:[%s3 + $0x8] sm:$0xff] %v13125
  %13142 = vst [vmem:[%s3 + $0x10] sm:$0xff] %v13126
  %13143 = vst [vmem:[%s3 + $0x18] sm:$0xff] %v13127
  %13144 = vst [vmem:[%s3 + $0x20] sm:$0xff] %v13128
  %13145 = vst [vmem:[%s3 + $0x28] sm:$0xff] %v13129
  %13146 = vst [vmem:[%s3 + $0x30] sm:$0xff] %v13130
  %13147 = vst [vmem:[%s3 + $0x38] sm:$0xff] %v13131
  %13148 = vst [vmem:[%s3 + $0x40] sm:$0xff] %v13132
  %13149 = vst [vmem:[%s3 + $0x48] sm:$0xff] %v13133
  %13150 = vst [vmem:[%s3 + $0x50] sm:$0xff] %v13134
  %13151 = vst [vmem:[%s3 + $0x58] sm:$0xff] %v13135
  %13152 = vst [vmem:[%s3 + $0x60] sm:$0xff] %v13136
  %13153 = vst [vmem:[%s3 + $0x68] sm:$0xff] %v13137
  %13154 = vst [vmem:[%s3 + $0x70] sm:$0xff] %v13138
  %13155 = vst [vmem:[%s3 + $0x78] sm:$0xff] %v13139
  %v13156 = vld [vmem:[#allocation3 + $0x80] sm:$0xff]
  %v13157 = vld [vmem:[#allocation3 + $0x88] sm:$0xff]
  %v13158 = vld [vmem:[#allocation3 + $0x90] sm:$0xff]
  %v13159 = vld [vmem:[#allocation3 + $0x98] sm:$0xff]
  %v13160 = vld [vmem:[#allocation3 + $0xa0] sm:$0xff]
  %v13161 = vld [vmem:[#allocation3 + $0xa8] sm:$0xff]
  %v13162 = vld [vmem:[#allocation3 + $0xb0] sm:$0xff]
  %v13163 = vld [vmem:[#allocation3 + $0xb8] sm:$0xff]
  %v13164 = vld [vmem:[#allocation3 + $0xc0] sm:$0xff]
  %v13165 = vld [vmem:[#allocation3 + $0xc8] sm:$0xff]
  %v13166 = vld [vmem:[#allocation3 + $0xd0] sm:$0xff]
  %v13167 = vld [vmem:[#allocation3 + $0xd8] sm:$0xff]
  %v13168 = vld [vmem:[#allocation3 + $0xe0] sm:$0xff]
  %v13169 = vld [vmem:[#allocation3 + $0xe8] sm:$0xff]
  %v13170 = vld [vmem:[#allocation3 + $0xf0] sm:$0xff]
  %v13171 = vld [vmem:[#allocation3 + $0xf8] sm:$0xff]
  %v13172 = vmul.f32 %v13156, %v13071
  %v13173 = vmul.f32 %v13157, %v13071
  %v13174 = vmul.f32 %v13158, %v13071
  %v13175 = vmul.f32 %v13159, %v13071
  %v13176 = vmul.f32 %v13160, %v13071
  %v13177 = vmul.f32 %v13161, %v13071
  %v13178 = vmul.f32 %v13162, %v13071
  %v13179 = vmul.f32 %v13163, %v13071
  %v13180 = vmul.f32 %v13164, %v13071
  %v13181 = vmul.f32 %v13165, %v13071
  %v13182 = vmul.f32 %v13166, %v13071
  %v13183 = vmul.f32 %v13167, %v13071
  %v13184 = vmul.f32 %v13168, %v13071
  %v13185 = vmul.f32 %v13169, %v13071
  %v13186 = vmul.f32 %v13170, %v13071
  %v13187 = vmul.f32 %v13171, %v13071
  %v13188 = vadd.f32 %v13172, %v13091
  %v13189 = vadd.f32 %v13173, %v13091
  %v13190 = vadd.f32 %v13174, %v13091
  %v13191 = vadd.f32 %v13175, %v13091
  %v13192 = vadd.f32 %v13176, %v13091
  %v13193 = vadd.f32 %v13177, %v13091
  %v13194 = vadd.f32 %v13178, %v13091
  %v13195 = vadd.f32 %v13179, %v13091
  %v13196 = vadd.f32 %v13180, %v13091
  %v13197 = vadd.f32 %v13181, %v13091
  %v13198 = vadd.f32 %v13182, %v13091
  %v13199 = vadd.f32 %v13183, %v13091
  %v13200 = vadd.f32 %v13184, %v13091
  %v13201 = vadd.f32 %v13185, %v13091
  %v13202 = vadd.f32 %v13186, %v13091
  %v13203 = vadd.f32 %v13187, %v13091
  %v13204 = vld [vmem:[%s0 + $0x80] sm:$0xff]
  %v13205 = vld [vmem:[%s0 + $0x88] sm:$0xff]
  %v13206 = vld [vmem:[%s0 + $0x90] sm:$0xff]
  %v13207 = vld [vmem:[%s0 + $0x98] sm:$0xff]
  %v13208 = vld [vmem:[%s0 + $0xa0] sm:$0xff]
  %v13209 = vld [vmem:[%s0 + $0xa8] sm:$0xff]
  %v13210 = vld [vmem:[%s0 + $0xb0] sm:$0xff]
  %v13211 = vld [vmem:[%s0 + $0xb8] sm:$0xff]
  %v13212 = vld [vmem:[%s0 + $0xc0] sm:$0xff]
  %v13213 = vld [vmem:[%s0 + $0xc8] sm:$0xff]
  %v13214 = vld [vmem:[%s0 + $0xd0] sm:$0xff]
  %v13215 = vld [vmem:[%s0 + $0xd8] sm:$0xff]
  %v13216 = vld [vmem:[%s0 + $0xe0] sm:$0xff]
  %v13217 = vld [vmem:[%s0 + $0xe8] sm:$0xff]
  %v13218 = vld [vmem:[%s0 + $0xf0] sm:$0xff]
  %v13219 = vld [vmem:[%s0 + $0xf8] sm:$0xff]
  %v13220 = vadd.f32 %v13188, %v13204
  %v13221 = vadd.f32 %v13189, %v13205
  %v13222 = vadd.f32 %v13190, %v13206
  %v13223 = vadd.f32 %v13191, %v13207
  %v13224 = vadd.f32 %v13192, %v13208
  %v13225 = vadd.f32 %v13193, %v13209
  %v13226 = vadd.f32 %v13194, %v13210
  %v13227 = vadd.f32 %v13195, %v13211
  %v13228 = vadd.f32 %v13196, %v13212
  %v13229 = vadd.f32 %v13197, %v13213
  %v13230 = vadd.f32 %v13198, %v13214
  %v13231 = vadd.f32 %v13199, %v13215
  %v13232 = vadd.f32 %v13200, %v13216
  %v13233 = vadd.f32 %v13201, %v13217
  %v13234 = vadd.f32 %v13202, %v13218
  %v13235 = vadd.f32 %v13203, %v13219
  %13236 = vst [vmem:[%s3 + $0x80] sm:$0xff] %v13220
  %13237 = vst [vmem:[%s3 + $0x88] sm:$0xff] %v13221
  %13238 = vst [vmem:[%s3 + $0x90] sm:$0xff] %v13222
  %13239 = vst [vmem:[%s3 + $0x98] sm:$0xff] %v13223
  %13240 = vst [vmem:[%s3 + $0xa0] sm:$0xff] %v13224
  %13241 = vst [vmem:[%s3 + $0xa8] sm:$0xff] %v13225
  %13242 = vst [vmem:[%s3 + $0xb0] sm:$0xff] %v13226
  %13243 = vst [vmem:[%s3 + $0xb8] sm:$0xff] %v13227
  %13244 = vst [vmem:[%s3 + $0xc0] sm:$0xff] %v13228
  %13245 = vst [vmem:[%s3 + $0xc8] sm:$0xff] %v13229
  %13246 = vst [vmem:[%s3 + $0xd0] sm:$0xff] %v13230
  %13247 = vst [vmem:[%s3 + $0xd8] sm:$0xff] %v13231
  %13248 = vst [vmem:[%s3 + $0xe0] sm:$0xff] %v13232
  %13249 = vst [vmem:[%s3 + $0xe8] sm:$0xff] %v13233
  %13250 = vst [vmem:[%s3 + $0xf0] sm:$0xff] %v13234
  %13251 = vst [vmem:[%s3 + $0xf8] sm:$0xff] %v13235
  // Predicated region
  $region14: #{resblock_forward.1} parent=0 // pred_check
    _
  $region15: #{resblock_forward.1} parent=0 // pred_check_branch
    %13253 = sbr.rel (0) target = $region17
  $region16: #{resblock_forward.1} parent=0 // pred_region
    _
  $region17: #{resblock_forward.1} parent=0 // pred_fallthru
    _
  // Predicated region
  $region18: #{resblock_forward.1} parent=0 // pred_check
    _
  $region19: #{resblock_forward.1} parent=0 // pred_check_branch
    %13255 = sbr.rel (0) target = $region21
  $region20: #{resblock_forward.1} parent=0 // pred_region
    _
  $region21: #{resblock_forward.1} parent=0 // pred_fallthru
    _

</llo_original>
